<compile_context>
chip_gen: v6e
topology: v6e:2x2x1
jax: 0.10.0
libtpu: 0.0.40
codegen_flags: <defaults>
</compile_context>

<pallas_src>
import math
import functools

import jax
import jax.numpy as jnp
from jax.experimental import pallas as pl
from jax.experimental.pallas import tpu as pltpu

# ---- model hyperparameters (small, consistent with the module __init__) ----
NUM_LAYERS = 2
D_MODEL = 32
NUM_HEADS = 4
D_FF = 64
VOCAB = 50
MAX_LEN = 16
EPS = 1e-5  # nn.LayerNorm default

# per-layer parameter ordering (flattened into the fused kernel's arg list)
PARAM_NAMES = [
    "w_qkv", "b_qkv", "wo1", "bo1",            # masked self-attention
    "wq2", "bq2", "w_kv2", "b_kv2", "wo2", "bo2",  # cross-attention
    "w1", "b1", "w2", "b2",                    # position-wise FFN
    "g1", "be1", "g2", "be2", "g3", "be3",     # the three LayerNorms
]


# -------------------- fused decoder kernel --------------------

def _decoder_kernel(*refs, batch, seq, seq_enc, num_heads, num_layers):
    emb_ref, pe_ref, enc_ref, la_ref, pad_ref = refs[:5]
    out_ref = refs[-1]
    flat = refs[5:-1]                      # num_layers * len(PARAM_NAMES) weight refs
    n_pp = len(PARAM_NAMES)

    B, S, Se, H = batch, seq, seq_enc, num_heads
    D = emb_ref.shape[-1]
    dh = D // H
    scale = 1.0 / math.sqrt(dh)

    # ---- embedding scale + positional encoding (dropout = identity, eval mode) ----
    x = emb_ref[...] * math.sqrt(D) + pe_ref[...]            # (B*S, D)
    enc = enc_ref[...]                                        # (B*Se, D)

    # ---- mask -> additive bias, computed once (shared by all heads / layers) ----
    bias_self = (la_ref[...] - 1.0) * 1e9                     # (B, S, S):  0 keep, -1e9 masked
    bias_cross = (pad_ref[...] - 1.0) * 1e9                   # (B, 1, Se)

    def layer_norm(t, g, be):
        mu = jnp.mean(t, axis=-1, keepdims=True)
        var = jnp.mean((t - mu) ** 2, axis=-1, keepdims=True)
        return (t - mu) * jax.lax.rsqrt(var + EPS) * g + be

    def mha(q, k, v, bias, s_q, s_kv):
        # q: (B*s_q, D), k/v: (B*s_kv, D), bias[b] broadcastable to (s_q, s_kv).
        # Tiny dims (S=8, dh=8): static unroll over batch and heads keeps every
        # matmul a plain 2-D MXU op (no in-kernel reshape/relayout needed).
        outs = []
        for b in range(B):
            qb = q[b * s_q:(b + 1) * s_q]
            kb = k[b * s_kv:(b + 1) * s_kv]
            vb = v[b * s_kv:(b + 1) * s_kv]
            bb = bias[b]
            heads = []
            for h in range(H):
                qh = qb[:, h * dh:(h + 1) * dh]
                kh = kb[:, h * dh:(h + 1) * dh]
                vh = vb[:, h * dh:(h + 1) * dh]
                s = jax.lax.dot_general(                     # q @ k^T, no transpose
                    qh, kh, (((1,), (1,)), ((), ())),
                    preferred_element_type=jnp.float32) * scale + bb
                s_max = jnp.max(s, axis=-1, keepdims=True)
                p = jnp.exp(s - s_max)
                p = p * pl.reciprocal(jnp.sum(p, axis=-1, keepdims=True), approx=True)
                heads.append(jnp.dot(p, vh, preferred_element_type=jnp.float32))
            outs.append(jnp.concatenate(heads, axis=-1))      # (s_q, D)
        return jnp.concatenate(outs, axis=0)                  # (B*s_q, D)

    # ---- both decoder layers, fully fused ----
    for l in range(num_layers):
        p = {name: flat[l * n_pp + i][...] for i, name in enumerate(PARAM_NAMES)}

        # masked self-attention (look-ahead mask)
        qkv = jnp.dot(x, p["w_qkv"], preferred_element_type=jnp.float32) + p["b_qkv"]
        q, k, v = qkv[:, :D], qkv[:, D:2 * D], qkv[:, 2 * D:]
        a1 = mha(q, k, v, bias_self, S, S)
        a1 = jnp.dot(a1, p["wo1"], preferred_element_type=jnp.float32) + p["bo1"]
        h1 = layer_norm(x + a1, p["g1"], p["be1"])

        # cross-attention over encoder output (padding mask)
        q2 = jnp.dot(h1, p["wq2"], preferred_element_type=jnp.float32) + p["bq2"]
        kv2 = jnp.dot(enc, p["w_kv2"], preferred_element_type=jnp.float32) + p["b_kv2"]
        k2, v2 = kv2[:, :D], kv2[:, D:]
        a2 = mha(q2, k2, v2, bias_cross, S, Se)
        a2 = jnp.dot(a2, p["wo2"], preferred_element_type=jnp.float32) + p["bo2"]
        h2 = layer_norm(h1 + a2, p["g2"], p["be2"])

        # position-wise feed-forward
        ff = jnp.maximum(
            jnp.dot(h2, p["w1"], preferred_element_type=jnp.float32) + p["b1"], 0.0)
        ff = jnp.dot(ff, p["w2"], preferred_element_type=jnp.float32) + p["b2"]
        x = layer_norm(h2 + ff, p["g3"], p["be3"])

    out_ref[...] = x


# -------------------- wrapper --------------------

def _full_spec(shape):
    nd = len(shape)
    return pl.BlockSpec(shape, lambda i, _nd=nd: (0,) * _nd)


def decoder_forward(tokens, enc_output, look_ahead_mask, padding_mask, params):
    """tokens: (B, S) int32; enc_output: (B, Se, D) f32;
    look_ahead_mask: (B, S, S) f32 (1=attend); padding_mask: (B, 1, Se) f32 (1=attend)."""
    B, S = tokens.shape
    _, Se, D = enc_output.shape

    # TODO(synk): embedding row-gather stays as a single plain-XLA jnp.take feeding the kernel.
    emb = jnp.take(params["embedding"], tokens, axis=0).reshape(B * S, D)
    pe = jnp.tile(params["pe"][:S], (B, 1))                   # (B*S, D)
    enc = enc_output.reshape(B * Se, D)

    flat_params = []
    for layer_p in params["layers"]:
        flat_params += [layer_p[name] for name in PARAM_NAMES]

    inputs = [emb, pe, enc, look_ahead_mask, padding_mask] + flat_params
    in_specs = [_full_spec(a.shape) for a in inputs]

    out = pl.pallas_call(
        functools.partial(_decoder_kernel, batch=B, seq=S, seq_enc=Se,
                          num_heads=NUM_HEADS, num_layers=NUM_LAYERS),
        out_shape=jax.ShapeDtypeStruct((B * S, D), jnp.float32),
        grid=(1,),                                            # whole batch, one step
        in_specs=in_specs,
        out_specs=pl.BlockSpec((B * S, D), lambda i: (0, 0)),
        compiler_params=pltpu.CompilerParams(dimension_semantics=("arbitrary",)),
    )(*inputs)
    return out.reshape(B, S, D)


# -------------------- deterministic parameter init --------------------

def _sinusoidal_pe(max_len, d_model):
    pos = jnp.arange(max_len, dtype=jnp.float32)[:, None]
    i = jnp.arange(0, d_model, 2, dtype=jnp.float32)
    div = jnp.exp(-math.log(10000.0) * i / d_model)
    pe = jnp.zeros((max_len, d_model), dtype=jnp.float32)
    pe = pe.at[:, 0::2].set(jnp.sin(pos * div))
    pe = pe.at[:, 1::2].set(jnp.cos(pos * div))
    return pe


def init_params(key):
    def nrm(k, shape):
        return jax.random.normal(k, shape, dtype=jnp.float32) * 0.02

    def zeros(n):
        return jnp.zeros((1, n), jnp.float32)

    keys = jax.random.split(key, 1 + NUM_LAYERS * 7)
    params = {
        "embedding": nrm(keys[0], (VOCAB, D_MODEL)),
        "pe": _sinusoidal_pe(MAX_LEN, D_MODEL),
        "layers": [],
    }
    idx = 1
    for _ in range(NUM_LAYERS):
        k_qkv, k_o1, k_q2, k_kv2, k_o2, k_f1, k_f2 = keys[idx:idx + 7]
        idx += 7
        # NOTE: weights in (in, out) layout; kernel computes x @ W + b
        # (== nn.Linear's x @ W.T + b for these synthetic weights).
        layer = {
            "w_qkv": nrm(k_qkv, (D_MODEL, 3 * D_MODEL)), "b_qkv": zeros(3 * D_MODEL),
            "wo1": nrm(k_o1, (D_MODEL, D_MODEL)),        "bo1": zeros(D_MODEL),
            "wq2": nrm(k_q2, (D_MODEL, D_MODEL)),        "bq2": zeros(D_MODEL),
            "w_kv2": nrm(k_kv2, (D_MODEL, 2 * D_MODEL)), "b_kv2": zeros(2 * D_MODEL),
            "wo2": nrm(k_o2, (D_MODEL, D_MODEL)),        "bo2": zeros(D_MODEL),
            "w1": nrm(k_f1, (D_MODEL, D_FF)),            "b1": zeros(D_FF),
            "w2": nrm(k_f2, (D_FF, D_MODEL)),            "b2": zeros(D_MODEL),
            "g1": jnp.ones((1, D_MODEL), jnp.float32), "be1": zeros(D_MODEL),
            "g2": jnp.ones((1, D_MODEL), jnp.float32), "be2": zeros(D_MODEL),
            "g3": jnp.ones((1, D_MODEL), jnp.float32), "be3": zeros(D_MODEL),
        }
        params["layers"].append(layer)
    return params


if __name__ == "__main__":
    key = jax.random.PRNGKey(0)
    k_params, k_tok, k_enc = jax.random.split(key, 3)

    B, S, Se = 2, 8, 8
    params = init_params(k_params)
    tokens = jax.random.randint(k_tok, (B, S), 0, VOCAB, dtype=jnp.int32)
    enc_output = jax.random.normal(k_enc, (B, Se, D_MODEL), dtype=jnp.float32)

    # look-ahead (causal) mask: 1.0 = attend; padding mask: all positions attendable
    causal = jnp.tril(jnp.ones((S, S), dtype=jnp.float32))
    look_ahead_mask = jnp.broadcast_to(causal, (B, S, S)).astype(jnp.float32)
    padding_mask = jnp.ones((B, 1, Se), dtype=jnp.float32)

    out = decoder_forward(tokens, enc_output, look_ahead_mask, padding_mask, params)
    jax.block_until_ready(out)
    assert out.shape == (B, S, D_MODEL) and out.dtype == jnp.float32
    assert bool(jnp.all(jnp.isfinite(out)))
    print("KERNEL_OK")
</pallas_src>

<mosaic_0001>
module attributes {stable_mosaic.version = 11 : i64} {
  func.func @_decoder_kernel(%arg0: i32, %arg1: memref<16x32xf32, #tpu.memory_space<vmem>>, %arg2: memref<16x32xf32, #tpu.memory_space<vmem>>, %arg3: memref<16x32xf32, #tpu.memory_space<vmem>>, %arg4: memref<2x8x8xf32, #tpu.memory_space<vmem>>, %arg5: memref<2x1x8xf32, #tpu.memory_space<vmem>>, %arg6: memref<32x96xf32, #tpu.memory_space<vmem>>, %arg7: memref<1x96xf32, #tpu.memory_space<vmem>>, %arg8: memref<32x32xf32, #tpu.memory_space<vmem>>, %arg9: memref<1x32xf32, #tpu.memory_space<vmem>>, %arg10: memref<32x32xf32, #tpu.memory_space<vmem>>, %arg11: memref<1x32xf32, #tpu.memory_space<vmem>>, %arg12: memref<32x64xf32, #tpu.memory_space<vmem>>, %arg13: memref<1x64xf32, #tpu.memory_space<vmem>>, %arg14: memref<32x32xf32, #tpu.memory_space<vmem>>, %arg15: memref<1x32xf32, #tpu.memory_space<vmem>>, %arg16: memref<32x64xf32, #tpu.memory_space<vmem>>, %arg17: memref<1x64xf32, #tpu.memory_space<vmem>>, %arg18: memref<64x32xf32, #tpu.memory_space<vmem>>, %arg19: memref<1x32xf32, #tpu.memory_space<vmem>>, %arg20: memref<1x32xf32, #tpu.memory_space<vmem>>, %arg21: memref<1x32xf32, #tpu.memory_space<vmem>>, %arg22: memref<1x32xf32, #tpu.memory_space<vmem>>, %arg23: memref<1x32xf32, #tpu.memory_space<vmem>>, %arg24: memref<1x32xf32, #tpu.memory_space<vmem>>, %arg25: memref<1x32xf32, #tpu.memory_space<vmem>>, %arg26: memref<32x96xf32, #tpu.memory_space<vmem>>, %arg27: memref<1x96xf32, #tpu.memory_space<vmem>>, %arg28: memref<32x32xf32, #tpu.memory_space<vmem>>, %arg29: memref<1x32xf32, #tpu.memory_space<vmem>>, %arg30: memref<32x32xf32, #tpu.memory_space<vmem>>, %arg31: memref<1x32xf32, #tpu.memory_space<vmem>>, %arg32: memref<32x64xf32, #tpu.memory_space<vmem>>, %arg33: memref<1x64xf32, #tpu.memory_space<vmem>>, %arg34: memref<32x32xf32, #tpu.memory_space<vmem>>, %arg35: memref<1x32xf32, #tpu.memory_space<vmem>>, %arg36: memref<32x64xf32, #tpu.memory_space<vmem>>, %arg37: memref<1x64xf32, #tpu.memory_space<vmem>>, %arg38: memref<64x32xf32, #tpu.memory_space<vmem>>, %arg39: memref<1x32xf32, #tpu.memory_space<vmem>>, %arg40: memref<1x32xf32, #tpu.memory_space<vmem>>, %arg41: memref<1x32xf32, #tpu.memory_space<vmem>>, %arg42: memref<1x32xf32, #tpu.memory_space<vmem>>, %arg43: memref<1x32xf32, #tpu.memory_space<vmem>>, %arg44: memref<1x32xf32, #tpu.memory_space<vmem>>, %arg45: memref<1x32xf32, #tpu.memory_space<vmem>>, %arg46: memref<16x32xf32, #tpu.memory_space<vmem>>) attributes {dimension_semantics = [#tpu.dimension_semantics<arbitrary>], iteration_bounds = array<i64: 1>, scalar_prefetch = 0 : i64, scratch_operands = 0 : i64, tpu.core_type = #tpu.core_type<tc>, window_params = [{pipeline_mode = #tpu.pipeline_mode<synchronous>, transform_indices = @transform_0, window_bounds = array<i64: 16, 32>}, {pipeline_mode = #tpu.pipeline_mode<synchronous>, transform_indices = @transform_1, window_bounds = array<i64: 16, 32>}, {pipeline_mode = #tpu.pipeline_mode<synchronous>, transform_indices = @transform_2, window_bounds = array<i64: 16, 32>}, {pipeline_mode = #tpu.pipeline_mode<synchronous>, transform_indices = @transform_3, window_bounds = array<i64: 2, 8, 8>}, {pipeline_mode = #tpu.pipeline_mode<synchronous>, transform_indices = @transform_4, window_bounds = array<i64: 2, 1, 8>}, {pipeline_mode = #tpu.pipeline_mode<synchronous>, transform_indices = @transform_5, window_bounds = array<i64: 32, 96>}, {pipeline_mode = #tpu.pipeline_mode<synchronous>, transform_indices = @transform_6, window_bounds = array<i64: 1, 96>}, {pipeline_mode = #tpu.pipeline_mode<synchronous>, transform_indices = @transform_7, window_bounds = array<i64: 32, 32>}, {pipeline_mode = #tpu.pipeline_mode<synchronous>, transform_indices = @transform_8, window_bounds = array<i64: 1, 32>}, {pipeline_mode = #tpu.pipeline_mode<synchronous>, transform_indices = @transform_9, window_bounds = array<i64: 32, 32>}, {pipeline_mode = #tpu.pipeline_mode<synchronous>, transform_indices = @transform_10, window_bounds = array<i64: 1, 32>}, {pipeline_mode = #tpu.pipeline_mode<synchronous>, transform_indices = @transform_11, window_bounds = array<i64: 32, 64>}, {pipeline_mode = #tpu.pipeline_mode<synchronous>, transform_indices = @transform_12, window_bounds = array<i64: 1, 64>}, {pipeline_mode = #tpu.pipeline_mode<synchronous>, transform_indices = @transform_13, window_bounds = array<i64: 32, 32>}, {pipeline_mode = #tpu.pipeline_mode<synchronous>, transform_indices = @transform_14, window_bounds = array<i64: 1, 32>}, {pipeline_mode = #tpu.pipeline_mode<synchronous>, transform_indices = @transform_15, window_bounds = array<i64: 32, 64>}, {pipeline_mode = #tpu.pipeline_mode<synchronous>, transform_indices = @transform_16, window_bounds = array<i64: 1, 64>}, {pipeline_mode = #tpu.pipeline_mode<synchronous>, transform_indices = @transform_17, window_bounds = array<i64: 64, 32>}, {pipeline_mode = #tpu.pipeline_mode<synchronous>, transform_indices = @transform_18, window_bounds = array<i64: 1, 32>}, {pipeline_mode = #tpu.pipeline_mode<synchronous>, transform_indices = @transform_19, window_bounds = array<i64: 1, 32>}, {pipeline_mode = #tpu.pipeline_mode<synchronous>, transform_indices = @transform_20, window_bounds = array<i64: 1, 32>}, {pipeline_mode = #tpu.pipeline_mode<synchronous>, transform_indices = @transform_21, window_bounds = array<i64: 1, 32>}, {pipeline_mode = #tpu.pipeline_mode<synchronous>, transform_indices = @transform_22, window_bounds = array<i64: 1, 32>}, {pipeline_mode = #tpu.pipeline_mode<synchronous>, transform_indices = @transform_23, window_bounds = array<i64: 1, 32>}, {pipeline_mode = #tpu.pipeline_mode<synchronous>, transform_indices = @transform_24, window_bounds = array<i64: 1, 32>}, {pipeline_mode = #tpu.pipeline_mode<synchronous>, transform_indices = @transform_25, window_bounds = array<i64: 32, 96>}, {pipeline_mode = #tpu.pipeline_mode<synchronous>, transform_indices = @transform_26, window_bounds = array<i64: 1, 96>}, {pipeline_mode = #tpu.pipeline_mode<synchronous>, transform_indices = @transform_27, window_bounds = array<i64: 32, 32>}, {pipeline_mode = #tpu.pipeline_mode<synchronous>, transform_indices = @transform_28, window_bounds = array<i64: 1, 32>}, {pipeline_mode = #tpu.pipeline_mode<synchronous>, transform_indices = @transform_29, window_bounds = array<i64: 32, 32>}, {pipeline_mode = #tpu.pipeline_mode<synchronous>, transform_indices = @transform_30, window_bounds = array<i64: 1, 32>}, {pipeline_mode = #tpu.pipeline_mode<synchronous>, transform_indices = @transform_31, window_bounds = array<i64: 32, 64>}, {pipeline_mode = #tpu.pipeline_mode<synchronous>, transform_indices = @transform_32, window_bounds = array<i64: 1, 64>}, {pipeline_mode = #tpu.pipeline_mode<synchronous>, transform_indices = @transform_33, window_bounds = array<i64: 32, 32>}, {pipeline_mode = #tpu.pipeline_mode<synchronous>, transform_indices = @transform_34, window_bounds = array<i64: 1, 32>}, {pipeline_mode = #tpu.pipeline_mode<synchronous>, transform_indices = @transform_35, window_bounds = array<i64: 32, 64>}, {pipeline_mode = #tpu.pipeline_mode<synchronous>, transform_indices = @transform_36, window_bounds = array<i64: 1, 64>}, {pipeline_mode = #tpu.pipeline_mode<synchronous>, transform_indices = @transform_37, window_bounds = array<i64: 64, 32>}, {pipeline_mode = #tpu.pipeline_mode<synchronous>, transform_indices = @transform_38, window_bounds = array<i64: 1, 32>}, {pipeline_mode = #tpu.pipeline_mode<synchronous>, transform_indices = @transform_39, window_bounds = array<i64: 1, 32>}, {pipeline_mode = #tpu.pipeline_mode<synchronous>, transform_indices = @transform_40, window_bounds = array<i64: 1, 32>}, {pipeline_mode = #tpu.pipeline_mode<synchronous>, transform_indices = @transform_41, window_bounds = array<i64: 1, 32>}, {pipeline_mode = #tpu.pipeline_mode<synchronous>, transform_indices = @transform_42, window_bounds = array<i64: 1, 32>}, {pipeline_mode = #tpu.pipeline_mode<synchronous>, transform_indices = @transform_43, window_bounds = array<i64: 1, 32>}, {pipeline_mode = #tpu.pipeline_mode<synchronous>, transform_indices = @transform_44, window_bounds = array<i64: 1, 32>}, {pipeline_mode = #tpu.pipeline_mode<synchronous>, transform_indices = @transform_45, window_bounds = array<i64: 16, 32>}]} {
    %c0 = arith.constant 0 : index
    %c0_0 = arith.constant 0 : index
    %0 = vector.load %arg1[%c0, %c0_0] : memref<16x32xf32, #tpu.memory_space<vmem>>, vector<16x32xf32>
    %cst = arith.constant 5.65685415 : f32
    %1 = vector.broadcast %cst : f32 to vector<16x32xf32>
    %2 = arith.mulf %0, %1 : vector<16x32xf32>
    %c0_1 = arith.constant 0 : index
    %c0_2 = arith.constant 0 : index
    %3 = vector.load %arg2[%c0_1, %c0_2] : memref<16x32xf32, #tpu.memory_space<vmem>>, vector<16x32xf32>
    %4 = arith.addf %2, %3 : vector<16x32xf32>
    %c0_3 = arith.constant 0 : index
    %c0_4 = arith.constant 0 : index
    %5 = vector.load %arg3[%c0_3, %c0_4] : memref<16x32xf32, #tpu.memory_space<vmem>>, vector<16x32xf32>
    %c0_5 = arith.constant 0 : index
    %c0_6 = arith.constant 0 : index
    %c0_7 = arith.constant 0 : index
    %6 = vector.load %arg4[%c0_5, %c0_6, %c0_7] : memref<2x8x8xf32, #tpu.memory_space<vmem>>, vector<2x8x8xf32>
    %cst_8 = arith.constant 1.000000e+00 : f32
    %7 = vector.broadcast %cst_8 : f32 to vector<2x8x8xf32>
    %8 = arith.subf %6, %7 : vector<2x8x8xf32>
    %cst_9 = arith.constant 1.000000e+09 : f32
    %9 = vector.broadcast %cst_9 : f32 to vector<2x8x8xf32>
    %10 = arith.mulf %8, %9 : vector<2x8x8xf32>
    %c0_10 = arith.constant 0 : index
    %c0_11 = arith.constant 0 : index
    %c0_12 = arith.constant 0 : index
    %11 = vector.load %arg5[%c0_10, %c0_11, %c0_12] : memref<2x1x8xf32, #tpu.memory_space<vmem>>, vector<2x1x8xf32>
    %cst_13 = arith.constant 1.000000e+00 : f32
    %12 = vector.broadcast %cst_13 : f32 to vector<2x1x8xf32>
    %13 = arith.subf %11, %12 : vector<2x1x8xf32>
    %cst_14 = arith.constant 1.000000e+09 : f32
    %14 = vector.broadcast %cst_14 : f32 to vector<2x1x8xf32>
    %15 = arith.mulf %13, %14 : vector<2x1x8xf32>
    %c0_15 = arith.constant 0 : index
    %c0_16 = arith.constant 0 : index
    %16 = vector.load %arg6[%c0_15, %c0_16] : memref<32x96xf32, #tpu.memory_space<vmem>>, vector<32x96xf32>
    %c0_17 = arith.constant 0 : index
    %c0_18 = arith.constant 0 : index
    %17 = vector.load %arg7[%c0_17, %c0_18] : memref<1x96xf32, #tpu.memory_space<vmem>>, vector<1x96xf32>
    %c0_19 = arith.constant 0 : index
    %c0_20 = arith.constant 0 : index
    %18 = vector.load %arg8[%c0_19, %c0_20] : memref<32x32xf32, #tpu.memory_space<vmem>>, vector<32x32xf32>
    %c0_21 = arith.constant 0 : index
    %c0_22 = arith.constant 0 : index
    %19 = vector.load %arg9[%c0_21, %c0_22] : memref<1x32xf32, #tpu.memory_space<vmem>>, vector<1x32xf32>
    %c0_23 = arith.constant 0 : index
    %c0_24 = arith.constant 0 : index
    %20 = vector.load %arg10[%c0_23, %c0_24] : memref<32x32xf32, #tpu.memory_space<vmem>>, vector<32x32xf32>
    %c0_25 = arith.constant 0 : index
    %c0_26 = arith.constant 0 : index
    %21 = vector.load %arg11[%c0_25, %c0_26] : memref<1x32xf32, #tpu.memory_space<vmem>>, vector<1x32xf32>
    %c0_27 = arith.constant 0 : index
    %c0_28 = arith.constant 0 : index
    %22 = vector.load %arg12[%c0_27, %c0_28] : memref<32x64xf32, #tpu.memory_space<vmem>>, vector<32x64xf32>
    %c0_29 = arith.constant 0 : index
    %c0_30 = arith.constant 0 : index
    %23 = vector.load %arg13[%c0_29, %c0_30] : memref<1x64xf32, #tpu.memory_space<vmem>>, vector<1x64xf32>
    %c0_31 = arith.constant 0 : index
    %c0_32 = arith.constant 0 : index
    %24 = vector.load %arg14[%c0_31, %c0_32] : memref<32x32xf32, #tpu.memory_space<vmem>>, vector<32x32xf32>
    %c0_33 = arith.constant 0 : index
    %c0_34 = arith.constant 0 : index
    %25 = vector.load %arg15[%c0_33, %c0_34] : memref<1x32xf32, #tpu.memory_space<vmem>>, vector<1x32xf32>
    %c0_35 = arith.constant 0 : index
    %c0_36 = arith.constant 0 : index
    %26 = vector.load %arg16[%c0_35, %c0_36] : memref<32x64xf32, #tpu.memory_space<vmem>>, vector<32x64xf32>
    %c0_37 = arith.constant 0 : index
    %c0_38 = arith.constant 0 : index
    %27 = vector.load %arg17[%c0_37, %c0_38] : memref<1x64xf32, #tpu.memory_space<vmem>>, vector<1x64xf32>
    %c0_39 = arith.constant 0 : index
    %c0_40 = arith.constant 0 : index
    %28 = vector.load %arg18[%c0_39, %c0_40] : memref<64x32xf32, #tpu.memory_space<vmem>>, vector<64x32xf32>
    %c0_41 = arith.constant 0 : index
    %c0_42 = arith.constant 0 : index
    %29 = vector.load %arg19[%c0_41, %c0_42] : memref<1x32xf32, #tpu.memory_space<vmem>>, vector<1x32xf32>
    %c0_43 = arith.constant 0 : index
    %c0_44 = arith.constant 0 : index
    %30 = vector.load %arg20[%c0_43, %c0_44] : memref<1x32xf32, #tpu.memory_space<vmem>>, vector<1x32xf32>
    %c0_45 = arith.constant 0 : index
    %c0_46 = arith.constant 0 : index
    %31 = vector.load %arg21[%c0_45, %c0_46] : memref<1x32xf32, #tpu.memory_space<vmem>>, vector<1x32xf32>
    %c0_47 = arith.constant 0 : index
    %c0_48 = arith.constant 0 : index
    %32 = vector.load %arg22[%c0_47, %c0_48] : memref<1x32xf32, #tpu.memory_space<vmem>>, vector<1x32xf32>
    %c0_49 = arith.constant 0 : index
    %c0_50 = arith.constant 0 : index
    %33 = vector.load %arg23[%c0_49, %c0_50] : memref<1x32xf32, #tpu.memory_space<vmem>>, vector<1x32xf32>
    %c0_51 = arith.constant 0 : index
    %c0_52 = arith.constant 0 : index
    %34 = vector.load %arg24[%c0_51, %c0_52] : memref<1x32xf32, #tpu.memory_space<vmem>>, vector<1x32xf32>
    %c0_53 = arith.constant 0 : index
    %c0_54 = arith.constant 0 : index
    %35 = vector.load %arg25[%c0_53, %c0_54] : memref<1x32xf32, #tpu.memory_space<vmem>>, vector<1x32xf32>
    %cst_55 = arith.constant dense<0.000000e+00> : vector<16x96xf32>
    %36 = tpu.matmul %4, %16, %cst_55 {dimension_numbers = #tpu.dot_dimension_numbers<[1], [0], [0], [1], [0, 0, 1, 1], [], []>} : vector<16x32xf32>, vector<32x96xf32>, vector<16x96xf32> -> vector<16x96xf32>
    %37 = vector.broadcast %17 : vector<1x96xf32> to vector<16x96xf32>
    %38 = arith.addf %36, %37 : vector<16x96xf32>
    %39 = vector.extract_strided_slice %38 {offsets = [0, 0], sizes = [16, 32], strides = [1, 1]} : vector<16x96xf32> to vector<16x32xf32>
    %40 = vector.extract_strided_slice %38 {offsets = [0, 32], sizes = [16, 32], strides = [1, 1]} : vector<16x96xf32> to vector<16x32xf32>
    %41 = vector.extract_strided_slice %38 {offsets = [0, 64], sizes = [16, 32], strides = [1, 1]} : vector<16x96xf32> to vector<16x32xf32>
    %42 = vector.extract_strided_slice %39 {offsets = [0, 0], sizes = [8, 32], strides = [1, 1]} : vector<16x32xf32> to vector<8x32xf32>
    %43 = vector.extract_strided_slice %40 {offsets = [0, 0], sizes = [8, 32], strides = [1, 1]} : vector<16x32xf32> to vector<8x32xf32>
    %44 = vector.extract_strided_slice %41 {offsets = [0, 0], sizes = [8, 32], strides = [1, 1]} : vector<16x32xf32> to vector<8x32xf32>
    %45 = vector.extract_strided_slice %10 {offsets = [0, 0, 0], sizes = [1, 8, 8], strides = [1, 1, 1]} : vector<2x8x8xf32> to vector<1x8x8xf32>
    %46 = vector.shape_cast %45 : vector<1x8x8xf32> to vector<8x8xf32>
    %47 = vector.extract_strided_slice %42 {offsets = [0, 0], sizes = [8, 8], strides = [1, 1]} : vector<8x32xf32> to vector<8x8xf32>
    %48 = vector.extract_strided_slice %43 {offsets = [0, 0], sizes = [8, 8], strides = [1, 1]} : vector<8x32xf32> to vector<8x8xf32>
    %49 = vector.extract_strided_slice %44 {offsets = [0, 0], sizes = [8, 8], strides = [1, 1]} : vector<8x32xf32> to vector<8x8xf32>
    %cst_56 = arith.constant dense<0.000000e+00> : vector<8x8xf32>
    %50 = tpu.matmul %47, %48, %cst_56 {dimension_numbers = #tpu.dot_dimension_numbers<[1], [1], [0], [0], [0, 0, 1, 0], [], []>} : vector<8x8xf32>, vector<8x8xf32>, vector<8x8xf32> -> vector<8x8xf32>
    %cst_57 = arith.constant 0.353553385 : f32
    %51 = vector.broadcast %cst_57 : f32 to vector<8x8xf32>
    %52 = arith.mulf %50, %51 : vector<8x8xf32>
    %53 = arith.addf %52, %46 : vector<8x8xf32>
    %cst_58 = arith.constant dense<0xFF800000> : vector<8xf32>
    %54 = vector.multi_reduction <maximumf>, %53, %cst_58 [1] : vector<8x8xf32> to vector<8xf32>
    %55 = vector.shape_cast %54 : vector<8xf32> to vector<8x1xf32>
    %56 = vector.broadcast %55 : vector<8x1xf32> to vector<8x8xf32>
    %57 = arith.subf %53, %56 : vector<8x8xf32>
    %58 = math.exp %57 : vector<8x8xf32>
    %cst_59 = arith.constant dense<0.000000e+00> : vector<8xf32>
    %59 = vector.multi_reduction <add>, %58, %cst_59 [1] : vector<8x8xf32> to vector<8xf32>
    %60 = vector.shape_cast %59 : vector<8xf32> to vector<8x1xf32>
    %61 = tpu.reciprocal %60 {approx = true} : vector<8x1xf32> -> vector<8x1xf32>
    %62 = vector.broadcast %61 : vector<8x1xf32> to vector<8x8xf32>
    %63 = arith.mulf %58, %62 : vector<8x8xf32>
    %cst_60 = arith.constant dense<0.000000e+00> : vector<8x8xf32>
    %64 = tpu.matmul %63, %49, %cst_60 {dimension_numbers = #tpu.dot_dimension_numbers<[1], [0], [0], [1], [0, 0, 1, 1], [], []>} : vector<8x8xf32>, vector<8x8xf32>, vector<8x8xf32> -> vector<8x8xf32>
    %65 = vector.extract_strided_slice %42 {offsets = [0, 8], sizes = [8, 8], strides = [1, 1]} : vector<8x32xf32> to vector<8x8xf32>
    %66 = vector.extract_strided_slice %43 {offsets = [0, 8], sizes = [8, 8], strides = [1, 1]} : vector<8x32xf32> to vector<8x8xf32>
    %67 = vector.extract_strided_slice %44 {offsets = [0, 8], sizes = [8, 8], strides = [1, 1]} : vector<8x32xf32> to vector<8x8xf32>
    %cst_61 = arith.constant dense<0.000000e+00> : vector<8x8xf32>
    %68 = tpu.matmul %65, %66, %cst_61 {dimension_numbers = #tpu.dot_dimension_numbers<[1], [1], [0], [0], [0, 0, 1, 0], [], []>} : vector<8x8xf32>, vector<8x8xf32>, vector<8x8xf32> -> vector<8x8xf32>
    %cst_62 = arith.constant 0.353553385 : f32
    %69 = vector.broadcast %cst_62 : f32 to vector<8x8xf32>
    %70 = arith.mulf %68, %69 : vector<8x8xf32>
    %71 = arith.addf %70, %46 : vector<8x8xf32>
    %cst_63 = arith.constant dense<0xFF800000> : vector<8xf32>
    %72 = vector.multi_reduction <maximumf>, %71, %cst_63 [1] : vector<8x8xf32> to vector<8xf32>
    %73 = vector.shape_cast %72 : vector<8xf32> to vector<8x1xf32>
    %74 = vector.broadcast %73 : vector<8x1xf32> to vector<8x8xf32>
    %75 = arith.subf %71, %74 : vector<8x8xf32>
    %76 = math.exp %75 : vector<8x8xf32>
    %cst_64 = arith.constant dense<0.000000e+00> : vector<8xf32>
    %77 = vector.multi_reduction <add>, %76, %cst_64 [1] : vector<8x8xf32> to vector<8xf32>
    %78 = vector.shape_cast %77 : vector<8xf32> to vector<8x1xf32>
    %79 = tpu.reciprocal %78 {approx = true} : vector<8x1xf32> -> vector<8x1xf32>
    %80 = vector.broadcast %79 : vector<8x1xf32> to vector<8x8xf32>
    %81 = arith.mulf %76, %80 : vector<8x8xf32>
    %cst_65 = arith.constant dense<0.000000e+00> : vector<8x8xf32>
    %82 = tpu.matmul %81, %67, %cst_65 {dimension_numbers = #tpu.dot_dimension_numbers<[1], [0], [0], [1], [0, 0, 1, 1], [], []>} : vector<8x8xf32>, vector<8x8xf32>, vector<8x8xf32> -> vector<8x8xf32>
    %83 = vector.extract_strided_slice %42 {offsets = [0, 16], sizes = [8, 8], strides = [1, 1]} : vector<8x32xf32> to vector<8x8xf32>
    %84 = vector.extract_strided_slice %43 {offsets = [0, 16], sizes = [8, 8], strides = [1, 1]} : vector<8x32xf32> to vector<8x8xf32>
    %85 = vector.extract_strided_slice %44 {offsets = [0, 16], sizes = [8, 8], strides = [1, 1]} : vector<8x32xf32> to vector<8x8xf32>
    %cst_66 = arith.constant dense<0.000000e+00> : vector<8x8xf32>
    %86 = tpu.matmul %83, %84, %cst_66 {dimension_numbers = #tpu.dot_dimension_numbers<[1], [1], [0], [0], [0, 0, 1, 0], [], []>} : vector<8x8xf32>, vector<8x8xf32>, vector<8x8xf32> -> vector<8x8xf32>
    %cst_67 = arith.constant 0.353553385 : f32
    %87 = vector.broadcast %cst_67 : f32 to vector<8x8xf32>
    %88 = arith.mulf %86, %87 : vector<8x8xf32>
    %89 = arith.addf %88, %46 : vector<8x8xf32>
    %cst_68 = arith.constant dense<0xFF800000> : vector<8xf32>
    %90 = vector.multi_reduction <maximumf>, %89, %cst_68 [1] : vector<8x8xf32> to vector<8xf32>
    %91 = vector.shape_cast %90 : vector<8xf32> to vector<8x1xf32>
    %92 = vector.broadcast %91 : vector<8x1xf32> to vector<8x8xf32>
    %93 = arith.subf %89, %92 : vector<8x8xf32>
    %94 = math.exp %93 : vector<8x8xf32>
    %cst_69 = arith.constant dense<0.000000e+00> : vector<8xf32>
    %95 = vector.multi_reduction <add>, %94, %cst_69 [1] : vector<8x8xf32> to vector<8xf32>
    %96 = vector.shape_cast %95 : vector<8xf32> to vector<8x1xf32>
    %97 = tpu.reciprocal %96 {approx = true} : vector<8x1xf32> -> vector<8x1xf32>
    %98 = vector.broadcast %97 : vector<8x1xf32> to vector<8x8xf32>
    %99 = arith.mulf %94, %98 : vector<8x8xf32>
    %cst_70 = arith.constant dense<0.000000e+00> : vector<8x8xf32>
    %100 = tpu.matmul %99, %85, %cst_70 {dimension_numbers = #tpu.dot_dimension_numbers<[1], [0], [0], [1], [0, 0, 1, 1], [], []>} : vector<8x8xf32>, vector<8x8xf32>, vector<8x8xf32> -> vector<8x8xf32>
    %101 = vector.extract_strided_slice %42 {offsets = [0, 24], sizes = [8, 8], strides = [1, 1]} : vector<8x32xf32> to vector<8x8xf32>
    %102 = vector.extract_strided_slice %43 {offsets = [0, 24], sizes = [8, 8], strides = [1, 1]} : vector<8x32xf32> to vector<8x8xf32>
    %103 = vector.extract_strided_slice %44 {offsets = [0, 24], sizes = [8, 8], strides = [1, 1]} : vector<8x32xf32> to vector<8x8xf32>
    %cst_71 = arith.constant dense<0.000000e+00> : vector<8x8xf32>
    %104 = tpu.matmul %101, %102, %cst_71 {dimension_numbers = #tpu.dot_dimension_numbers<[1], [1], [0], [0], [0, 0, 1, 0], [], []>} : vector<8x8xf32>, vector<8x8xf32>, vector<8x8xf32> -> vector<8x8xf32>
    %cst_72 = arith.constant 0.353553385 : f32
    %105 = vector.broadcast %cst_72 : f32 to vector<8x8xf32>
    %106 = arith.mulf %104, %105 : vector<8x8xf32>
    %107 = arith.addf %106, %46 : vector<8x8xf32>
    %cst_73 = arith.constant dense<0xFF800000> : vector<8xf32>
    %108 = vector.multi_reduction <maximumf>, %107, %cst_73 [1] : vector<8x8xf32> to vector<8xf32>
    %109 = vector.shape_cast %108 : vector<8xf32> to vector<8x1xf32>
    %110 = vector.broadcast %109 : vector<8x1xf32> to vector<8x8xf32>
    %111 = arith.subf %107, %110 : vector<8x8xf32>
    %112 = math.exp %111 : vector<8x8xf32>
    %cst_74 = arith.constant dense<0.000000e+00> : vector<8xf32>
    %113 = vector.multi_reduction <add>, %112, %cst_74 [1] : vector<8x8xf32> to vector<8xf32>
    %114 = vector.shape_cast %113 : vector<8xf32> to vector<8x1xf32>
    %115 = tpu.reciprocal %114 {approx = true} : vector<8x1xf32> -> vector<8x1xf32>
    %116 = vector.broadcast %115 : vector<8x1xf32> to vector<8x8xf32>
    %117 = arith.mulf %112, %116 : vector<8x8xf32>
    %cst_75 = arith.constant dense<0.000000e+00> : vector<8x8xf32>
    %118 = tpu.matmul %117, %103, %cst_75 {dimension_numbers = #tpu.dot_dimension_numbers<[1], [0], [0], [1], [0, 0, 1, 1], [], []>} : vector<8x8xf32>, vector<8x8xf32>, vector<8x8xf32> -> vector<8x8xf32>
    %119 = tpu.concatenate %64, %82, %100, %118 in 1 : vector<8x8xf32>, vector<8x8xf32>, vector<8x8xf32>, vector<8x8xf32> -> vector<8x32xf32>
    %120 = vector.extract_strided_slice %39 {offsets = [8, 0], sizes = [8, 32], strides = [1, 1]} : vector<16x32xf32> to vector<8x32xf32>
    %121 = vector.extract_strided_slice %40 {offsets = [8, 0], sizes = [8, 32], strides = [1, 1]} : vector<16x32xf32> to vector<8x32xf32>
    %122 = vector.extract_strided_slice %41 {offsets = [8, 0], sizes = [8, 32], strides = [1, 1]} : vector<16x32xf32> to vector<8x32xf32>
    %123 = vector.extract_strided_slice %10 {offsets = [1, 0, 0], sizes = [1, 8, 8], strides = [1, 1, 1]} : vector<2x8x8xf32> to vector<1x8x8xf32>
    %124 = vector.shape_cast %123 : vector<1x8x8xf32> to vector<8x8xf32>
    %125 = vector.extract_strided_slice %120 {offsets = [0, 0], sizes = [8, 8], strides = [1, 1]} : vector<8x32xf32> to vector<8x8xf32>
    %126 = vector.extract_strided_slice %121 {offsets = [0, 0], sizes = [8, 8], strides = [1, 1]} : vector<8x32xf32> to vector<8x8xf32>
    %127 = vector.extract_strided_slice %122 {offsets = [0, 0], sizes = [8, 8], strides = [1, 1]} : vector<8x32xf32> to vector<8x8xf32>
    %cst_76 = arith.constant dense<0.000000e+00> : vector<8x8xf32>
    %128 = tpu.matmul %125, %126, %cst_76 {dimension_numbers = #tpu.dot_dimension_numbers<[1], [1], [0], [0], [0, 0, 1, 0], [], []>} : vector<8x8xf32>, vector<8x8xf32>, vector<8x8xf32> -> vector<8x8xf32>
    %cst_77 = arith.constant 0.353553385 : f32
    %129 = vector.broadcast %cst_77 : f32 to vector<8x8xf32>
    %130 = arith.mulf %128, %129 : vector<8x8xf32>
    %131 = arith.addf %130, %124 : vector<8x8xf32>
    %cst_78 = arith.constant dense<0xFF800000> : vector<8xf32>
    %132 = vector.multi_reduction <maximumf>, %131, %cst_78 [1] : vector<8x8xf32> to vector<8xf32>
    %133 = vector.shape_cast %132 : vector<8xf32> to vector<8x1xf32>
    %134 = vector.broadcast %133 : vector<8x1xf32> to vector<8x8xf32>
    %135 = arith.subf %131, %134 : vector<8x8xf32>
    %136 = math.exp %135 : vector<8x8xf32>
    %cst_79 = arith.constant dense<0.000000e+00> : vector<8xf32>
    %137 = vector.multi_reduction <add>, %136, %cst_79 [1] : vector<8x8xf32> to vector<8xf32>
    %138 = vector.shape_cast %137 : vector<8xf32> to vector<8x1xf32>
    %139 = tpu.reciprocal %138 {approx = true} : vector<8x1xf32> -> vector<8x1xf32>
    %140 = vector.broadcast %139 : vector<8x1xf32> to vector<8x8xf32>
    %141 = arith.mulf %136, %140 : vector<8x8xf32>
    %cst_80 = arith.constant dense<0.000000e+00> : vector<8x8xf32>
    %142 = tpu.matmul %141, %127, %cst_80 {dimension_numbers = #tpu.dot_dimension_numbers<[1], [0], [0], [1], [0, 0, 1, 1], [], []>} : vector<8x8xf32>, vector<8x8xf32>, vector<8x8xf32> -> vector<8x8xf32>
    %143 = vector.extract_strided_slice %120 {offsets = [0, 8], sizes = [8, 8], strides = [1, 1]} : vector<8x32xf32> to vector<8x8xf32>
    %144 = vector.extract_strided_slice %121 {offsets = [0, 8], sizes = [8, 8], strides = [1, 1]} : vector<8x32xf32> to vector<8x8xf32>
    %145 = vector.extract_strided_slice %122 {offsets = [0, 8], sizes = [8, 8], strides = [1, 1]} : vector<8x32xf32> to vector<8x8xf32>
    %cst_81 = arith.constant dense<0.000000e+00> : vector<8x8xf32>
    %146 = tpu.matmul %143, %144, %cst_81 {dimension_numbers = #tpu.dot_dimension_numbers<[1], [1], [0], [0], [0, 0, 1, 0], [], []>} : vector<8x8xf32>, vector<8x8xf32>, vector<8x8xf32> -> vector<8x8xf32>
    %cst_82 = arith.constant 0.353553385 : f32
    %147 = vector.broadcast %cst_82 : f32 to vector<8x8xf32>
    %148 = arith.mulf %146, %147 : vector<8x8xf32>
    %149 = arith.addf %148, %124 : vector<8x8xf32>
    %cst_83 = arith.constant dense<0xFF800000> : vector<8xf32>
    %150 = vector.multi_reduction <maximumf>, %149, %cst_83 [1] : vector<8x8xf32> to vector<8xf32>
    %151 = vector.shape_cast %150 : vector<8xf32> to vector<8x1xf32>
    %152 = vector.broadcast %151 : vector<8x1xf32> to vector<8x8xf32>
    %153 = arith.subf %149, %152 : vector<8x8xf32>
    %154 = math.exp %153 : vector<8x8xf32>
    %cst_84 = arith.constant dense<0.000000e+00> : vector<8xf32>
    %155 = vector.multi_reduction <add>, %154, %cst_84 [1] : vector<8x8xf32> to vector<8xf32>
    %156 = vector.shape_cast %155 : vector<8xf32> to vector<8x1xf32>
    %157 = tpu.reciprocal %156 {approx = true} : vector<8x1xf32> -> vector<8x1xf32>
    %158 = vector.broadcast %157 : vector<8x1xf32> to vector<8x8xf32>
    %159 = arith.mulf %154, %158 : vector<8x8xf32>
    %cst_85 = arith.constant dense<0.000000e+00> : vector<8x8xf32>
    %160 = tpu.matmul %159, %145, %cst_85 {dimension_numbers = #tpu.dot_dimension_numbers<[1], [0], [0], [1], [0, 0, 1, 1], [], []>} : vector<8x8xf32>, vector<8x8xf32>, vector<8x8xf32> -> vector<8x8xf32>
    %161 = vector.extract_strided_slice %120 {offsets = [0, 16], sizes = [8, 8], strides = [1, 1]} : vector<8x32xf32> to vector<8x8xf32>
    %162 = vector.extract_strided_slice %121 {offsets = [0, 16], sizes = [8, 8], strides = [1, 1]} : vector<8x32xf32> to vector<8x8xf32>
    %163 = vector.extract_strided_slice %122 {offsets = [0, 16], sizes = [8, 8], strides = [1, 1]} : vector<8x32xf32> to vector<8x8xf32>
    %cst_86 = arith.constant dense<0.000000e+00> : vector<8x8xf32>
    %164 = tpu.matmul %161, %162, %cst_86 {dimension_numbers = #tpu.dot_dimension_numbers<[1], [1], [0], [0], [0, 0, 1, 0], [], []>} : vector<8x8xf32>, vector<8x8xf32>, vector<8x8xf32> -> vector<8x8xf32>
    %cst_87 = arith.constant 0.353553385 : f32
    %165 = vector.broadcast %cst_87 : f32 to vector<8x8xf32>
    %166 = arith.mulf %164, %165 : vector<8x8xf32>
    %167 = arith.addf %166, %124 : vector<8x8xf32>
    %cst_88 = arith.constant dense<0xFF800000> : vector<8xf32>
    %168 = vector.multi_reduction <maximumf>, %167, %cst_88 [1] : vector<8x8xf32> to vector<8xf32>
    %169 = vector.shape_cast %168 : vector<8xf32> to vector<8x1xf32>
    %170 = vector.broadcast %169 : vector<8x1xf32> to vector<8x8xf32>
    %171 = arith.subf %167, %170 : vector<8x8xf32>
    %172 = math.exp %171 : vector<8x8xf32>
    %cst_89 = arith.constant dense<0.000000e+00> : vector<8xf32>
    %173 = vector.multi_reduction <add>, %172, %cst_89 [1] : vector<8x8xf32> to vector<8xf32>
    %174 = vector.shape_cast %173 : vector<8xf32> to vector<8x1xf32>
    %175 = tpu.reciprocal %174 {approx = true} : vector<8x1xf32> -> vector<8x1xf32>
    %176 = vector.broadcast %175 : vector<8x1xf32> to vector<8x8xf32>
    %177 = arith.mulf %172, %176 : vector<8x8xf32>
    %cst_90 = arith.constant dense<0.000000e+00> : vector<8x8xf32>
    %178 = tpu.matmul %177, %163, %cst_90 {dimension_numbers = #tpu.dot_dimension_numbers<[1], [0], [0], [1], [0, 0, 1, 1], [], []>} : vector<8x8xf32>, vector<8x8xf32>, vector<8x8xf32> -> vector<8x8xf32>
    %179 = vector.extract_strided_slice %120 {offsets = [0, 24], sizes = [8, 8], strides = [1, 1]} : vector<8x32xf32> to vector<8x8xf32>
    %180 = vector.extract_strided_slice %121 {offsets = [0, 24], sizes = [8, 8], strides = [1, 1]} : vector<8x32xf32> to vector<8x8xf32>
    %181 = vector.extract_strided_slice %122 {offsets = [0, 24], sizes = [8, 8], strides = [1, 1]} : vector<8x32xf32> to vector<8x8xf32>
    %cst_91 = arith.constant dense<0.000000e+00> : vector<8x8xf32>
    %182 = tpu.matmul %179, %180, %cst_91 {dimension_numbers = #tpu.dot_dimension_numbers<[1], [1], [0], [0], [0, 0, 1, 0], [], []>} : vector<8x8xf32>, vector<8x8xf32>, vector<8x8xf32> -> vector<8x8xf32>
    %cst_92 = arith.constant 0.353553385 : f32
    %183 = vector.broadcast %cst_92 : f32 to vector<8x8xf32>
    %184 = arith.mulf %182, %183 : vector<8x8xf32>
    %185 = arith.addf %184, %124 : vector<8x8xf32>
    %cst_93 = arith.constant dense<0xFF800000> : vector<8xf32>
    %186 = vector.multi_reduction <maximumf>, %185, %cst_93 [1] : vector<8x8xf32> to vector<8xf32>
    %187 = vector.shape_cast %186 : vector<8xf32> to vector<8x1xf32>
    %188 = vector.broadcast %187 : vector<8x1xf32> to vector<8x8xf32>
    %189 = arith.subf %185, %188 : vector<8x8xf32>
    %190 = math.exp %189 : vector<8x8xf32>
    %cst_94 = arith.constant dense<0.000000e+00> : vector<8xf32>
    %191 = vector.multi_reduction <add>, %190, %cst_94 [1] : vector<8x8xf32> to vector<8xf32>
    %192 = vector.shape_cast %191 : vector<8xf32> to vector<8x1xf32>
    %193 = tpu.reciprocal %192 {approx = true} : vector<8x1xf32> -> vector<8x1xf32>
    %194 = vector.broadcast %193 : vector<8x1xf32> to vector<8x8xf32>
    %195 = arith.mulf %190, %194 : vector<8x8xf32>
    %cst_95 = arith.constant dense<0.000000e+00> : vector<8x8xf32>
    %196 = tpu.matmul %195, %181, %cst_95 {dimension_numbers = #tpu.dot_dimension_numbers<[1], [0], [0], [1], [0, 0, 1, 1], [], []>} : vector<8x8xf32>, vector<8x8xf32>, vector<8x8xf32> -> vector<8x8xf32>
    %197 = tpu.concatenate %142, %160, %178, %196 in 1 : vector<8x8xf32>, vector<8x8xf32>, vector<8x8xf32>, vector<8x8xf32> -> vector<8x32xf32>
    %198 = tpu.concatenate %119, %197 in 0 : vector<8x32xf32>, vector<8x32xf32> -> vector<16x32xf32>
    %cst_96 = arith.constant dense<0.000000e+00> : vector<16x32xf32>
    %199 = tpu.matmul %198, %18, %cst_96 {dimension_numbers = #tpu.dot_dimension_numbers<[1], [0], [0], [1], [0, 0, 1, 1], [], []>} : vector<16x32xf32>, vector<32x32xf32>, vector<16x32xf32> -> vector<16x32xf32>
    %200 = vector.broadcast %19 : vector<1x32xf32> to vector<16x32xf32>
    %201 = arith.addf %199, %200 : vector<16x32xf32>
    %202 = arith.addf %4, %201 : vector<16x32xf32>
    %cst_97 = arith.constant dense<0.000000e+00> : vector<16xf32>
    %203 = vector.multi_reduction <add>, %202, %cst_97 [1] : vector<16x32xf32> to vector<16xf32>
    %204 = vector.shape_cast %203 : vector<16xf32> to vector<16x1xf32>
    %cst_98 = arith.constant 3.200000e+01 : f32
    %205 = vector.broadcast %cst_98 : f32 to vector<16x1xf32>
    %206 = arith.divf %204, %205 : vector<16x1xf32>
    %207 = vector.broadcast %206 : vector<16x1xf32> to vector<16x32xf32>
    %208 = arith.subf %202, %207 : vector<16x32xf32>
    %209 = arith.mulf %208, %208 : vector<16x32xf32>
    %cst_99 = arith.constant dense<0.000000e+00> : vector<16xf32>
    %210 = vector.multi_reduction <add>, %209, %cst_99 [1] : vector<16x32xf32> to vector<16xf32>
    %211 = vector.shape_cast %210 : vector<16xf32> to vector<16x1xf32>
    %cst_100 = arith.constant 3.200000e+01 : f32
    %212 = vector.broadcast %cst_100 : f32 to vector<16x1xf32>
    %213 = arith.divf %211, %212 : vector<16x1xf32>
    %214 = vector.broadcast %206 : vector<16x1xf32> to vector<16x32xf32>
    %215 = arith.subf %202, %214 : vector<16x32xf32>
    %cst_101 = arith.constant 9.99999974E-6 : f32
    %216 = vector.broadcast %cst_101 : f32 to vector<16x1xf32>
    %217 = arith.addf %213, %216 : vector<16x1xf32>
    %218 = math.rsqrt %217 : vector<16x1xf32>
    %219 = vector.broadcast %218 : vector<16x1xf32> to vector<16x32xf32>
    %220 = arith.mulf %215, %219 : vector<16x32xf32>
    %221 = vector.broadcast %30 : vector<1x32xf32> to vector<16x32xf32>
    %222 = arith.mulf %220, %221 : vector<16x32xf32>
    %223 = vector.broadcast %31 : vector<1x32xf32> to vector<16x32xf32>
    %224 = arith.addf %222, %223 : vector<16x32xf32>
    %cst_102 = arith.constant dense<0.000000e+00> : vector<16x32xf32>
    %225 = tpu.matmul %224, %20, %cst_102 {dimension_numbers = #tpu.dot_dimension_numbers<[1], [0], [0], [1], [0, 0, 1, 1], [], []>} : vector<16x32xf32>, vector<32x32xf32>, vector<16x32xf32> -> vector<16x32xf32>
    %226 = vector.broadcast %21 : vector<1x32xf32> to vector<16x32xf32>
    %227 = arith.addf %225, %226 : vector<16x32xf32>
    %cst_103 = arith.constant dense<0.000000e+00> : vector<16x64xf32>
    %228 = tpu.matmul %5, %22, %cst_103 {dimension_numbers = #tpu.dot_dimension_numbers<[1], [0], [0], [1], [0, 0, 1, 1], [], []>} : vector<16x32xf32>, vector<32x64xf32>, vector<16x64xf32> -> vector<16x64xf32>
    %229 = vector.broadcast %23 : vector<1x64xf32> to vector<16x64xf32>
    %230 = arith.addf %228, %229 : vector<16x64xf32>
    %231 = vector.extract_strided_slice %230 {offsets = [0, 0], sizes = [16, 32], strides = [1, 1]} : vector<16x64xf32> to vector<16x32xf32>
    %232 = vector.extract_strided_slice %230 {offsets = [0, 32], sizes = [16, 32], strides = [1, 1]} : vector<16x64xf32> to vector<16x32xf32>
    %233 = vector.extract_strided_slice %227 {offsets = [0, 0], sizes = [8, 32], strides = [1, 1]} : vector<16x32xf32> to vector<8x32xf32>
    %234 = vector.extract_strided_slice %231 {offsets = [0, 0], sizes = [8, 32], strides = [1, 1]} : vector<16x32xf32> to vector<8x32xf32>
    %235 = vector.extract_strided_slice %232 {offsets = [0, 0], sizes = [8, 32], strides = [1, 1]} : vector<16x32xf32> to vector<8x32xf32>
    %236 = vector.extract_strided_slice %15 {offsets = [0, 0, 0], sizes = [1, 1, 8], strides = [1, 1, 1]} : vector<2x1x8xf32> to vector<1x1x8xf32>
    %237 = vector.shape_cast %236 : vector<1x1x8xf32> to vector<1x8xf32>
    %238 = vector.extract_strided_slice %233 {offsets = [0, 0], sizes = [8, 8], strides = [1, 1]} : vector<8x32xf32> to vector<8x8xf32>
    %239 = vector.extract_strided_slice %234 {offsets = [0, 0], sizes = [8, 8], strides = [1, 1]} : vector<8x32xf32> to vector<8x8xf32>
    %240 = vector.extract_strided_slice %235 {offsets = [0, 0], sizes = [8, 8], strides = [1, 1]} : vector<8x32xf32> to vector<8x8xf32>
    %cst_104 = arith.constant dense<0.000000e+00> : vector<8x8xf32>
    %241 = tpu.matmul %238, %239, %cst_104 {dimension_numbers = #tpu.dot_dimension_numbers<[1], [1], [0], [0], [0, 0, 1, 0], [], []>} : vector<8x8xf32>, vector<8x8xf32>, vector<8x8xf32> -> vector<8x8xf32>
    %cst_105 = arith.constant 0.353553385 : f32
    %242 = vector.broadcast %cst_105 : f32 to vector<8x8xf32>
    %243 = arith.mulf %241, %242 : vector<8x8xf32>
    %244 = vector.broadcast %237 : vector<1x8xf32> to vector<8x8xf32>
    %245 = arith.addf %243, %244 : vector<8x8xf32>
    %cst_106 = arith.constant dense<0xFF800000> : vector<8xf32>
    %246 = vector.multi_reduction <maximumf>, %245, %cst_106 [1] : vector<8x8xf32> to vector<8xf32>
    %247 = vector.shape_cast %246 : vector<8xf32> to vector<8x1xf32>
    %248 = vector.broadcast %247 : vector<8x1xf32> to vector<8x8xf32>
    %249 = arith.subf %245, %248 : vector<8x8xf32>
    %250 = math.exp %249 : vector<8x8xf32>
    %cst_107 = arith.constant dense<0.000000e+00> : vector<8xf32>
    %251 = vector.multi_reduction <add>, %250, %cst_107 [1] : vector<8x8xf32> to vector<8xf32>
    %252 = vector.shape_cast %251 : vector<8xf32> to vector<8x1xf32>
    %253 = tpu.reciprocal %252 {approx = true} : vector<8x1xf32> -> vector<8x1xf32>
    %254 = vector.broadcast %253 : vector<8x1xf32> to vector<8x8xf32>
    %255 = arith.mulf %250, %254 : vector<8x8xf32>
    %cst_108 = arith.constant dense<0.000000e+00> : vector<8x8xf32>
    %256 = tpu.matmul %255, %240, %cst_108 {dimension_numbers = #tpu.dot_dimension_numbers<[1], [0], [0], [1], [0, 0, 1, 1], [], []>} : vector<8x8xf32>, vector<8x8xf32>, vector<8x8xf32> -> vector<8x8xf32>
    %257 = vector.extract_strided_slice %233 {offsets = [0, 8], sizes = [8, 8], strides = [1, 1]} : vector<8x32xf32> to vector<8x8xf32>
    %258 = vector.extract_strided_slice %234 {offsets = [0, 8], sizes = [8, 8], strides = [1, 1]} : vector<8x32xf32> to vector<8x8xf32>
    %259 = vector.extract_strided_slice %235 {offsets = [0, 8], sizes = [8, 8], strides = [1, 1]} : vector<8x32xf32> to vector<8x8xf32>
    %cst_109 = arith.constant dense<0.000000e+00> : vector<8x8xf32>
    %260 = tpu.matmul %257, %258, %cst_109 {dimension_numbers = #tpu.dot_dimension_numbers<[1], [1], [0], [0], [0, 0, 1, 0], [], []>} : vector<8x8xf32>, vector<8x8xf32>, vector<8x8xf32> -> vector<8x8xf32>
    %cst_110 = arith.constant 0.353553385 : f32
    %261 = vector.broadcast %cst_110 : f32 to vector<8x8xf32>
    %262 = arith.mulf %260, %261 : vector<8x8xf32>
    %263 = vector.broadcast %237 : vector<1x8xf32> to vector<8x8xf32>
    %264 = arith.addf %262, %263 : vector<8x8xf32>
    %cst_111 = arith.constant dense<0xFF800000> : vector<8xf32>
    %265 = vector.multi_reduction <maximumf>, %264, %cst_111 [1] : vector<8x8xf32> to vector<8xf32>
    %266 = vector.shape_cast %265 : vector<8xf32> to vector<8x1xf32>
    %267 = vector.broadcast %266 : vector<8x1xf32> to vector<8x8xf32>
    %268 = arith.subf %264, %267 : vector<8x8xf32>
    %269 = math.exp %268 : vector<8x8xf32>
    %cst_112 = arith.constant dense<0.000000e+00> : vector<8xf32>
    %270 = vector.multi_reduction <add>, %269, %cst_112 [1] : vector<8x8xf32> to vector<8xf32>
    %271 = vector.shape_cast %270 : vector<8xf32> to vector<8x1xf32>
    %272 = tpu.reciprocal %271 {approx = true} : vector<8x1xf32> -> vector<8x1xf32>
    %273 = vector.broadcast %272 : vector<8x1xf32> to vector<8x8xf32>
    %274 = arith.mulf %269, %273 : vector<8x8xf32>
    %cst_113 = arith.constant dense<0.000000e+00> : vector<8x8xf32>
    %275 = tpu.matmul %274, %259, %cst_113 {dimension_numbers = #tpu.dot_dimension_numbers<[1], [0], [0], [1], [0, 0, 1, 1], [], []>} : vector<8x8xf32>, vector<8x8xf32>, vector<8x8xf32> -> vector<8x8xf32>
    %276 = vector.extract_strided_slice %233 {offsets = [0, 16], sizes = [8, 8], strides = [1, 1]} : vector<8x32xf32> to vector<8x8xf32>
    %277 = vector.extract_strided_slice %234 {offsets = [0, 16], sizes = [8, 8], strides = [1, 1]} : vector<8x32xf32> to vector<8x8xf32>
    %278 = vector.extract_strided_slice %235 {offsets = [0, 16], sizes = [8, 8], strides = [1, 1]} : vector<8x32xf32> to vector<8x8xf32>
    %cst_114 = arith.constant dense<0.000000e+00> : vector<8x8xf32>
    %279 = tpu.matmul %276, %277, %cst_114 {dimension_numbers = #tpu.dot_dimension_numbers<[1], [1], [0], [0], [0, 0, 1, 0], [], []>} : vector<8x8xf32>, vector<8x8xf32>, vector<8x8xf32> -> vector<8x8xf32>
    %cst_115 = arith.constant 0.353553385 : f32
    %280 = vector.broadcast %cst_115 : f32 to vector<8x8xf32>
    %281 = arith.mulf %279, %280 : vector<8x8xf32>
    %282 = vector.broadcast %237 : vector<1x8xf32> to vector<8x8xf32>
    %283 = arith.addf %281, %282 : vector<8x8xf32>
    %cst_116 = arith.constant dense<0xFF800000> : vector<8xf32>
    %284 = vector.multi_reduction <maximumf>, %283, %cst_116 [1] : vector<8x8xf32> to vector<8xf32>
    %285 = vector.shape_cast %284 : vector<8xf32> to vector<8x1xf32>
    %286 = vector.broadcast %285 : vector<8x1xf32> to vector<8x8xf32>
    %287 = arith.subf %283, %286 : vector<8x8xf32>
    %288 = math.exp %287 : vector<8x8xf32>
    %cst_117 = arith.constant dense<0.000000e+00> : vector<8xf32>
    %289 = vector.multi_reduction <add>, %288, %cst_117 [1] : vector<8x8xf32> to vector<8xf32>
    %290 = vector.shape_cast %289 : vector<8xf32> to vector<8x1xf32>
    %291 = tpu.reciprocal %290 {approx = true} : vector<8x1xf32> -> vector<8x1xf32>
    %292 = vector.broadcast %291 : vector<8x1xf32> to vector<8x8xf32>
    %293 = arith.mulf %288, %292 : vector<8x8xf32>
    %cst_118 = arith.constant dense<0.000000e+00> : vector<8x8xf32>
    %294 = tpu.matmul %293, %278, %cst_118 {dimension_numbers = #tpu.dot_dimension_numbers<[1], [0], [0], [1], [0, 0, 1, 1], [], []>} : vector<8x8xf32>, vector<8x8xf32>, vector<8x8xf32> -> vector<8x8xf32>
    %295 = vector.extract_strided_slice %233 {offsets = [0, 24], sizes = [8, 8], strides = [1, 1]} : vector<8x32xf32> to vector<8x8xf32>
    %296 = vector.extract_strided_slice %234 {offsets = [0, 24], sizes = [8, 8], strides = [1, 1]} : vector<8x32xf32> to vector<8x8xf32>
    %297 = vector.extract_strided_slice %235 {offsets = [0, 24], sizes = [8, 8], strides = [1, 1]} : vector<8x32xf32> to vector<8x8xf32>
    %cst_119 = arith.constant dense<0.000000e+00> : vector<8x8xf32>
    %298 = tpu.matmul %295, %296, %cst_119 {dimension_numbers = #tpu.dot_dimension_numbers<[1], [1], [0], [0], [0, 0, 1, 0], [], []>} : vector<8x8xf32>, vector<8x8xf32>, vector<8x8xf32> -> vector<8x8xf32>
    %cst_120 = arith.constant 0.353553385 : f32
    %299 = vector.broadcast %cst_120 : f32 to vector<8x8xf32>
    %300 = arith.mulf %298, %299 : vector<8x8xf32>
    %301 = vector.broadcast %237 : vector<1x8xf32> to vector<8x8xf32>
    %302 = arith.addf %300, %301 : vector<8x8xf32>
    %cst_121 = arith.constant dense<0xFF800000> : vector<8xf32>
    %303 = vector.multi_reduction <maximumf>, %302, %cst_121 [1] : vector<8x8xf32> to vector<8xf32>
    %304 = vector.shape_cast %303 : vector<8xf32> to vector<8x1xf32>
    %305 = vector.broadcast %304 : vector<8x1xf32> to vector<8x8xf32>
    %306 = arith.subf %302, %305 : vector<8x8xf32>
    %307 = math.exp %306 : vector<8x8xf32>
    %cst_122 = arith.constant dense<0.000000e+00> : vector<8xf32>
    %308 = vector.multi_reduction <add>, %307, %cst_122 [1] : vector<8x8xf32> to vector<8xf32>
    %309 = vector.shape_cast %308 : vector<8xf32> to vector<8x1xf32>
    %310 = tpu.reciprocal %309 {approx = true} : vector<8x1xf32> -> vector<8x1xf32>
    %311 = vector.broadcast %310 : vector<8x1xf32> to vector<8x8xf32>
    %312 = arith.mulf %307, %311 : vector<8x8xf32>
    %cst_123 = arith.constant dense<0.000000e+00> : vector<8x8xf32>
    %313 = tpu.matmul %312, %297, %cst_123 {dimension_numbers = #tpu.dot_dimension_numbers<[1], [0], [0], [1], [0, 0, 1, 1], [], []>} : vector<8x8xf32>, vector<8x8xf32>, vector<8x8xf32> -> vector<8x8xf32>
    %314 = tpu.concatenate %256, %275, %294, %313 in 1 : vector<8x8xf32>, vector<8x8xf32>, vector<8x8xf32>, vector<8x8xf32> -> vector<8x32xf32>
    %315 = vector.extract_strided_slice %227 {offsets = [8, 0], sizes = [8, 32], strides = [1, 1]} : vector<16x32xf32> to vector<8x32xf32>
    %316 = vector.extract_strided_slice %231 {offsets = [8, 0], sizes = [8, 32], strides = [1, 1]} : vector<16x32xf32> to vector<8x32xf32>
    %317 = vector.extract_strided_slice %232 {offsets = [8, 0], sizes = [8, 32], strides = [1, 1]} : vector<16x32xf32> to vector<8x32xf32>
    %318 = vector.extract_strided_slice %15 {offsets = [1, 0, 0], sizes = [1, 1, 8], strides = [1, 1, 1]} : vector<2x1x8xf32> to vector<1x1x8xf32>
    %319 = vector.shape_cast %318 : vector<1x1x8xf32> to vector<1x8xf32>
    %320 = vector.extract_strided_slice %315 {offsets = [0, 0], sizes = [8, 8], strides = [1, 1]} : vector<8x32xf32> to vector<8x8xf32>
    %321 = vector.extract_strided_slice %316 {offsets = [0, 0], sizes = [8, 8], strides = [1, 1]} : vector<8x32xf32> to vector<8x8xf32>
    %322 = vector.extract_strided_slice %317 {offsets = [0, 0], sizes = [8, 8], strides = [1, 1]} : vector<8x32xf32> to vector<8x8xf32>
    %cst_124 = arith.constant dense<0.000000e+00> : vector<8x8xf32>
    %323 = tpu.matmul %320, %321, %cst_124 {dimension_numbers = #tpu.dot_dimension_numbers<[1], [1], [0], [0], [0, 0, 1, 0], [], []>} : vector<8x8xf32>, vector<8x8xf32>, vector<8x8xf32> -> vector<8x8xf32>
    %cst_125 = arith.constant 0.353553385 : f32
    %324 = vector.broadcast %cst_125 : f32 to vector<8x8xf32>
    %325 = arith.mulf %323, %324 : vector<8x8xf32>
    %326 = vector.broadcast %319 : vector<1x8xf32> to vector<8x8xf32>
    %327 = arith.addf %325, %326 : vector<8x8xf32>
    %cst_126 = arith.constant dense<0xFF800000> : vector<8xf32>
    %328 = vector.multi_reduction <maximumf>, %327, %cst_126 [1] : vector<8x8xf32> to vector<8xf32>
    %329 = vector.shape_cast %328 : vector<8xf32> to vector<8x1xf32>
    %330 = vector.broadcast %329 : vector<8x1xf32> to vector<8x8xf32>
    %331 = arith.subf %327, %330 : vector<8x8xf32>
    %332 = math.exp %331 : vector<8x8xf32>
    %cst_127 = arith.constant dense<0.000000e+00> : vector<8xf32>
    %333 = vector.multi_reduction <add>, %332, %cst_127 [1] : vector<8x8xf32> to vector<8xf32>
    %334 = vector.shape_cast %333 : vector<8xf32> to vector<8x1xf32>
    %335 = tpu.reciprocal %334 {approx = true} : vector<8x1xf32> -> vector<8x1xf32>
    %336 = vector.broadcast %335 : vector<8x1xf32> to vector<8x8xf32>
    %337 = arith.mulf %332, %336 : vector<8x8xf32>
    %cst_128 = arith.constant dense<0.000000e+00> : vector<8x8xf32>
    %338 = tpu.matmul %337, %322, %cst_128 {dimension_numbers = #tpu.dot_dimension_numbers<[1], [0], [0], [1], [0, 0, 1, 1], [], []>} : vector<8x8xf32>, vector<8x8xf32>, vector<8x8xf32> -> vector<8x8xf32>
    %339 = vector.extract_strided_slice %315 {offsets = [0, 8], sizes = [8, 8], strides = [1, 1]} : vector<8x32xf32> to vector<8x8xf32>
    %340 = vector.extract_strided_slice %316 {offsets = [0, 8], sizes = [8, 8], strides = [1, 1]} : vector<8x32xf32> to vector<8x8xf32>
    %341 = vector.extract_strided_slice %317 {offsets = [0, 8], sizes = [8, 8], strides = [1, 1]} : vector<8x32xf32> to vector<8x8xf32>
    %cst_129 = arith.constant dense<0.000000e+00> : vector<8x8xf32>
    %342 = tpu.matmul %339, %340, %cst_129 {dimension_numbers = #tpu.dot_dimension_numbers<[1], [1], [0], [0], [0, 0, 1, 0], [], []>} : vector<8x8xf32>, vector<8x8xf32>, vector<8x8xf32> -> vector<8x8xf32>
    %cst_130 = arith.constant 0.353553385 : f32
    %343 = vector.broadcast %cst_130 : f32 to vector<8x8xf32>
    %344 = arith.mulf %342, %343 : vector<8x8xf32>
    %345 = vector.broadcast %319 : vector<1x8xf32> to vector<8x8xf32>
    %346 = arith.addf %344, %345 : vector<8x8xf32>
    %cst_131 = arith.constant dense<0xFF800000> : vector<8xf32>
    %347 = vector.multi_reduction <maximumf>, %346, %cst_131 [1] : vector<8x8xf32> to vector<8xf32>
    %348 = vector.shape_cast %347 : vector<8xf32> to vector<8x1xf32>
    %349 = vector.broadcast %348 : vector<8x1xf32> to vector<8x8xf32>
    %350 = arith.subf %346, %349 : vector<8x8xf32>
    %351 = math.exp %350 : vector<8x8xf32>
    %cst_132 = arith.constant dense<0.000000e+00> : vector<8xf32>
    %352 = vector.multi_reduction <add>, %351, %cst_132 [1] : vector<8x8xf32> to vector<8xf32>
    %353 = vector.shape_cast %352 : vector<8xf32> to vector<8x1xf32>
    %354 = tpu.reciprocal %353 {approx = true} : vector<8x1xf32> -> vector<8x1xf32>
    %355 = vector.broadcast %354 : vector<8x1xf32> to vector<8x8xf32>
    %356 = arith.mulf %351, %355 : vector<8x8xf32>
    %cst_133 = arith.constant dense<0.000000e+00> : vector<8x8xf32>
    %357 = tpu.matmul %356, %341, %cst_133 {dimension_numbers = #tpu.dot_dimension_numbers<[1], [0], [0], [1], [0, 0, 1, 1], [], []>} : vector<8x8xf32>, vector<8x8xf32>, vector<8x8xf32> -> vector<8x8xf32>
    %358 = vector.extract_strided_slice %315 {offsets = [0, 16], sizes = [8, 8], strides = [1, 1]} : vector<8x32xf32> to vector<8x8xf32>
    %359 = vector.extract_strided_slice %316 {offsets = [0, 16], sizes = [8, 8], strides = [1, 1]} : vector<8x32xf32> to vector<8x8xf32>
    %360 = vector.extract_strided_slice %317 {offsets = [0, 16], sizes = [8, 8], strides = [1, 1]} : vector<8x32xf32> to vector<8x8xf32>
    %cst_134 = arith.constant dense<0.000000e+00> : vector<8x8xf32>
    %361 = tpu.matmul %358, %359, %cst_134 {dimension_numbers = #tpu.dot_dimension_numbers<[1], [1], [0], [0], [0, 0, 1, 0], [], []>} : vector<8x8xf32>, vector<8x8xf32>, vector<8x8xf32> -> vector<8x8xf32>
    %cst_135 = arith.constant 0.353553385 : f32
    %362 = vector.broadcast %cst_135 : f32 to vector<8x8xf32>
    %363 = arith.mulf %361, %362 : vector<8x8xf32>
    %364 = vector.broadcast %319 : vector<1x8xf32> to vector<8x8xf32>
    %365 = arith.addf %363, %364 : vector<8x8xf32>
    %cst_136 = arith.constant dense<0xFF800000> : vector<8xf32>
    %366 = vector.multi_reduction <maximumf>, %365, %cst_136 [1] : vector<8x8xf32> to vector<8xf32>
    %367 = vector.shape_cast %366 : vector<8xf32> to vector<8x1xf32>
    %368 = vector.broadcast %367 : vector<8x1xf32> to vector<8x8xf32>
    %369 = arith.subf %365, %368 : vector<8x8xf32>
    %370 = math.exp %369 : vector<8x8xf32>
    %cst_137 = arith.constant dense<0.000000e+00> : vector<8xf32>
    %371 = vector.multi_reduction <add>, %370, %cst_137 [1] : vector<8x8xf32> to vector<8xf32>
    %372 = vector.shape_cast %371 : vector<8xf32> to vector<8x1xf32>
    %373 = tpu.reciprocal %372 {approx = true} : vector<8x1xf32> -> vector<8x1xf32>
    %374 = vector.broadcast %373 : vector<8x1xf32> to vector<8x8xf32>
    %375 = arith.mulf %370, %374 : vector<8x8xf32>
    %cst_138 = arith.constant dense<0.000000e+00> : vector<8x8xf32>
    %376 = tpu.matmul %375, %360, %cst_138 {dimension_numbers = #tpu.dot_dimension_numbers<[1], [0], [0], [1], [0, 0, 1, 1], [], []>} : vector<8x8xf32>, vector<8x8xf32>, vector<8x8xf32> -> vector<8x8xf32>
    %377 = vector.extract_strided_slice %315 {offsets = [0, 24], sizes = [8, 8], strides = [1, 1]} : vector<8x32xf32> to vector<8x8xf32>
    %378 = vector.extract_strided_slice %316 {offsets = [0, 24], sizes = [8, 8], strides = [1, 1]} : vector<8x32xf32> to vector<8x8xf32>
    %379 = vector.extract_strided_slice %317 {offsets = [0, 24], sizes = [8, 8], strides = [1, 1]} : vector<8x32xf32> to vector<8x8xf32>
    %cst_139 = arith.constant dense<0.000000e+00> : vector<8x8xf32>
    %380 = tpu.matmul %377, %378, %cst_139 {dimension_numbers = #tpu.dot_dimension_numbers<[1], [1], [0], [0], [0, 0, 1, 0], [], []>} : vector<8x8xf32>, vector<8x8xf32>, vector<8x8xf32> -> vector<8x8xf32>
    %cst_140 = arith.constant 0.353553385 : f32
    %381 = vector.broadcast %cst_140 : f32 to vector<8x8xf32>
    %382 = arith.mulf %380, %381 : vector<8x8xf32>
    %383 = vector.broadcast %319 : vector<1x8xf32> to vector<8x8xf32>
    %384 = arith.addf %382, %383 : vector<8x8xf32>
    %cst_141 = arith.constant dense<0xFF800000> : vector<8xf32>
    %385 = vector.multi_reduction <maximumf>, %384, %cst_141 [1] : vector<8x8xf32> to vector<8xf32>
    %386 = vector.shape_cast %385 : vector<8xf32> to vector<8x1xf32>
    %387 = vector.broadcast %386 : vector<8x1xf32> to vector<8x8xf32>
    %388 = arith.subf %384, %387 : vector<8x8xf32>
    %389 = math.exp %388 : vector<8x8xf32>
    %cst_142 = arith.constant dense<0.000000e+00> : vector<8xf32>
    %390 = vector.multi_reduction <add>, %389, %cst_142 [1] : vector<8x8xf32> to vector<8xf32>
    %391 = vector.shape_cast %390 : vector<8xf32> to vector<8x1xf32>
    %392 = tpu.reciprocal %391 {approx = true} : vector<8x1xf32> -> vector<8x1xf32>
    %393 = vector.broadcast %392 : vector<8x1xf32> to vector<8x8xf32>
    %394 = arith.mulf %389, %393 : vector<8x8xf32>
    %cst_143 = arith.constant dense<0.000000e+00> : vector<8x8xf32>
    %395 = tpu.matmul %394, %379, %cst_143 {dimension_numbers = #tpu.dot_dimension_numbers<[1], [0], [0], [1], [0, 0, 1, 1], [], []>} : vector<8x8xf32>, vector<8x8xf32>, vector<8x8xf32> -> vector<8x8xf32>
    %396 = tpu.concatenate %338, %357, %376, %395 in 1 : vector<8x8xf32>, vector<8x8xf32>, vector<8x8xf32>, vector<8x8xf32> -> vector<8x32xf32>
    %397 = tpu.concatenate %314, %396 in 0 : vector<8x32xf32>, vector<8x32xf32> -> vector<16x32xf32>
    %cst_144 = arith.constant dense<0.000000e+00> : vector<16x32xf32>
    %398 = tpu.matmul %397, %24, %cst_144 {dimension_numbers = #tpu.dot_dimension_numbers<[1], [0], [0], [1], [0, 0, 1, 1], [], []>} : vector<16x32xf32>, vector<32x32xf32>, vector<16x32xf32> -> vector<16x32xf32>
    %399 = vector.broadcast %25 : vector<1x32xf32> to vector<16x32xf32>
    %400 = arith.addf %398, %399 : vector<16x32xf32>
    %401 = arith.addf %224, %400 : vector<16x32xf32>
    %cst_145 = arith.constant dense<0.000000e+00> : vector<16xf32>
    %402 = vector.multi_reduction <add>, %401, %cst_145 [1] : vector<16x32xf32> to vector<16xf32>
    %403 = vector.shape_cast %402 : vector<16xf32> to vector<16x1xf32>
    %cst_146 = arith.constant 3.200000e+01 : f32
    %404 = vector.broadcast %cst_146 : f32 to vector<16x1xf32>
    %405 = arith.divf %403, %404 : vector<16x1xf32>
    %406 = vector.broadcast %405 : vector<16x1xf32> to vector<16x32xf32>
    %407 = arith.subf %401, %406 : vector<16x32xf32>
    %408 = arith.mulf %407, %407 : vector<16x32xf32>
    %cst_147 = arith.constant dense<0.000000e+00> : vector<16xf32>
    %409 = vector.multi_reduction <add>, %408, %cst_147 [1] : vector<16x32xf32> to vector<16xf32>
    %410 = vector.shape_cast %409 : vector<16xf32> to vector<16x1xf32>
    %cst_148 = arith.constant 3.200000e+01 : f32
    %411 = vector.broadcast %cst_148 : f32 to vector<16x1xf32>
    %412 = arith.divf %410, %411 : vector<16x1xf32>
    %413 = vector.broadcast %405 : vector<16x1xf32> to vector<16x32xf32>
    %414 = arith.subf %401, %413 : vector<16x32xf32>
    %cst_149 = arith.constant 9.99999974E-6 : f32
    %415 = vector.broadcast %cst_149 : f32 to vector<16x1xf32>
    %416 = arith.addf %412, %415 : vector<16x1xf32>
    %417 = math.rsqrt %416 : vector<16x1xf32>
    %418 = vector.broadcast %417 : vector<16x1xf32> to vector<16x32xf32>
    %419 = arith.mulf %414, %418 : vector<16x32xf32>
    %420 = vector.broadcast %32 : vector<1x32xf32> to vector<16x32xf32>
    %421 = arith.mulf %419, %420 : vector<16x32xf32>
    %422 = vector.broadcast %33 : vector<1x32xf32> to vector<16x32xf32>
    %423 = arith.addf %421, %422 : vector<16x32xf32>
    %cst_150 = arith.constant dense<0.000000e+00> : vector<16x64xf32>
    %424 = tpu.matmul %423, %26, %cst_150 {dimension_numbers = #tpu.dot_dimension_numbers<[1], [0], [0], [1], [0, 0, 1, 1], [], []>} : vector<16x32xf32>, vector<32x64xf32>, vector<16x64xf32> -> vector<16x64xf32>
    %425 = vector.broadcast %27 : vector<1x64xf32> to vector<16x64xf32>
    %426 = arith.addf %424, %425 : vector<16x64xf32>
    %cst_151 = arith.constant 0.000000e+00 : f32
    %427 = vector.broadcast %cst_151 : f32 to vector<16x64xf32>
    %428 = arith.maximumf %426, %427 : vector<16x64xf32>
    %cst_152 = arith.constant dense<0.000000e+00> : vector<16x32xf32>
    %429 = tpu.matmul %428, %28, %cst_152 {dimension_numbers = #tpu.dot_dimension_numbers<[1], [0], [0], [1], [0, 0, 1, 1], [], []>} : vector<16x64xf32>, vector<64x32xf32>, vector<16x32xf32> -> vector<16x32xf32>
    %430 = vector.broadcast %29 : vector<1x32xf32> to vector<16x32xf32>
    %431 = arith.addf %429, %430 : vector<16x32xf32>
    %432 = arith.addf %423, %431 : vector<16x32xf32>
    %cst_153 = arith.constant dense<0.000000e+00> : vector<16xf32>
    %433 = vector.multi_reduction <add>, %432, %cst_153 [1] : vector<16x32xf32> to vector<16xf32>
    %434 = vector.shape_cast %433 : vector<16xf32> to vector<16x1xf32>
    %cst_154 = arith.constant 3.200000e+01 : f32
    %435 = vector.broadcast %cst_154 : f32 to vector<16x1xf32>
    %436 = arith.divf %434, %435 : vector<16x1xf32>
    %437 = vector.broadcast %436 : vector<16x1xf32> to vector<16x32xf32>
    %438 = arith.subf %432, %437 : vector<16x32xf32>
    %439 = arith.mulf %438, %438 : vector<16x32xf32>
    %cst_155 = arith.constant dense<0.000000e+00> : vector<16xf32>
    %440 = vector.multi_reduction <add>, %439, %cst_155 [1] : vector<16x32xf32> to vector<16xf32>
    %441 = vector.shape_cast %440 : vector<16xf32> to vector<16x1xf32>
    %cst_156 = arith.constant 3.200000e+01 : f32
    %442 = vector.broadcast %cst_156 : f32 to vector<16x1xf32>
    %443 = arith.divf %441, %442 : vector<16x1xf32>
    %444 = vector.broadcast %436 : vector<16x1xf32> to vector<16x32xf32>
    %445 = arith.subf %432, %444 : vector<16x32xf32>
    %cst_157 = arith.constant 9.99999974E-6 : f32
    %446 = vector.broadcast %cst_157 : f32 to vector<16x1xf32>
    %447 = arith.addf %443, %446 : vector<16x1xf32>
    %448 = math.rsqrt %447 : vector<16x1xf32>
    %449 = vector.broadcast %448 : vector<16x1xf32> to vector<16x32xf32>
    %450 = arith.mulf %445, %449 : vector<16x32xf32>
    %451 = vector.broadcast %34 : vector<1x32xf32> to vector<16x32xf32>
    %452 = arith.mulf %450, %451 : vector<16x32xf32>
    %453 = vector.broadcast %35 : vector<1x32xf32> to vector<16x32xf32>
    %454 = arith.addf %452, %453 : vector<16x32xf32>
    %c0_158 = arith.constant 0 : index
    %c0_159 = arith.constant 0 : index
    %455 = vector.load %arg26[%c0_158, %c0_159] : memref<32x96xf32, #tpu.memory_space<vmem>>, vector<32x96xf32>
    %c0_160 = arith.constant 0 : index
    %c0_161 = arith.constant 0 : index
    %456 = vector.load %arg27[%c0_160, %c0_161] : memref<1x96xf32, #tpu.memory_space<vmem>>, vector<1x96xf32>
    %c0_162 = arith.constant 0 : index
    %c0_163 = arith.constant 0 : index
    %457 = vector.load %arg28[%c0_162, %c0_163] : memref<32x32xf32, #tpu.memory_space<vmem>>, vector<32x32xf32>
    %c0_164 = arith.constant 0 : index
    %c0_165 = arith.constant 0 : index
    %458 = vector.load %arg29[%c0_164, %c0_165] : memref<1x32xf32, #tpu.memory_space<vmem>>, vector<1x32xf32>
    %c0_166 = arith.constant 0 : index
    %c0_167 = arith.constant 0 : index
    %459 = vector.load %arg30[%c0_166, %c0_167] : memref<32x32xf32, #tpu.memory_space<vmem>>, vector<32x32xf32>
    %c0_168 = arith.constant 0 : index
    %c0_169 = arith.constant 0 : index
    %460 = vector.load %arg31[%c0_168, %c0_169] : memref<1x32xf32, #tpu.memory_space<vmem>>, vector<1x32xf32>
    %c0_170 = arith.constant 0 : index
    %c0_171 = arith.constant 0 : index
    %461 = vector.load %arg32[%c0_170, %c0_171] : memref<32x64xf32, #tpu.memory_space<vmem>>, vector<32x64xf32>
    %c0_172 = arith.constant 0 : index
    %c0_173 = arith.constant 0 : index
    %462 = vector.load %arg33[%c0_172, %c0_173] : memref<1x64xf32, #tpu.memory_space<vmem>>, vector<1x64xf32>
    %c0_174 = arith.constant 0 : index
    %c0_175 = arith.constant 0 : index
    %463 = vector.load %arg34[%c0_174, %c0_175] : memref<32x32xf32, #tpu.memory_space<vmem>>, vector<32x32xf32>
    %c0_176 = arith.constant 0 : index
    %c0_177 = arith.constant 0 : index
    %464 = vector.load %arg35[%c0_176, %c0_177] : memref<1x32xf32, #tpu.memory_space<vmem>>, vector<1x32xf32>
    %c0_178 = arith.constant 0 : index
    %c0_179 = arith.constant 0 : index
    %465 = vector.load %arg36[%c0_178, %c0_179] : memref<32x64xf32, #tpu.memory_space<vmem>>, vector<32x64xf32>
    %c0_180 = arith.constant 0 : index
    %c0_181 = arith.constant 0 : index
    %466 = vector.load %arg37[%c0_180, %c0_181] : memref<1x64xf32, #tpu.memory_space<vmem>>, vector<1x64xf32>
    %c0_182 = arith.constant 0 : index
    %c0_183 = arith.constant 0 : index
    %467 = vector.load %arg38[%c0_182, %c0_183] : memref<64x32xf32, #tpu.memory_space<vmem>>, vector<64x32xf32>
    %c0_184 = arith.constant 0 : index
    %c0_185 = arith.constant 0 : index
    %468 = vector.load %arg39[%c0_184, %c0_185] : memref<1x32xf32, #tpu.memory_space<vmem>>, vector<1x32xf32>
    %c0_186 = arith.constant 0 : index
    %c0_187 = arith.constant 0 : index
    %469 = vector.load %arg40[%c0_186, %c0_187] : memref<1x32xf32, #tpu.memory_space<vmem>>, vector<1x32xf32>
    %c0_188 = arith.constant 0 : index
    %c0_189 = arith.constant 0 : index
    %470 = vector.load %arg41[%c0_188, %c0_189] : memref<1x32xf32, #tpu.memory_space<vmem>>, vector<1x32xf32>
    %c0_190 = arith.constant 0 : index
    %c0_191 = arith.constant 0 : index
    %471 = vector.load %arg42[%c0_190, %c0_191] : memref<1x32xf32, #tpu.memory_space<vmem>>, vector<1x32xf32>
    %c0_192 = arith.constant 0 : index
    %c0_193 = arith.constant 0 : index
    %472 = vector.load %arg43[%c0_192, %c0_193] : memref<1x32xf32, #tpu.memory_space<vmem>>, vector<1x32xf32>
    %c0_194 = arith.constant 0 : index
    %c0_195 = arith.constant 0 : index
    %473 = vector.load %arg44[%c0_194, %c0_195] : memref<1x32xf32, #tpu.memory_space<vmem>>, vector<1x32xf32>
    %c0_196 = arith.constant 0 : index
    %c0_197 = arith.constant 0 : index
    %474 = vector.load %arg45[%c0_196, %c0_197] : memref<1x32xf32, #tpu.memory_space<vmem>>, vector<1x32xf32>
    %cst_198 = arith.constant dense<0.000000e+00> : vector<16x96xf32>
    %475 = tpu.matmul %454, %455, %cst_198 {dimension_numbers = #tpu.dot_dimension_numbers<[1], [0], [0], [1], [0, 0, 1, 1], [], []>} : vector<16x32xf32>, vector<32x96xf32>, vector<16x96xf32> -> vector<16x96xf32>
    %476 = vector.broadcast %456 : vector<1x96xf32> to vector<16x96xf32>
    %477 = arith.addf %475, %476 : vector<16x96xf32>
    %478 = vector.extract_strided_slice %477 {offsets = [0, 0], sizes = [16, 32], strides = [1, 1]} : vector<16x96xf32> to vector<16x32xf32>
    %479 = vector.extract_strided_slice %477 {offsets = [0, 32], sizes = [16, 32], strides = [1, 1]} : vector<16x96xf32> to vector<16x32xf32>
    %480 = vector.extract_strided_slice %477 {offsets = [0, 64], sizes = [16, 32], strides = [1, 1]} : vector<16x96xf32> to vector<16x32xf32>
    %481 = vector.extract_strided_slice %478 {offsets = [0, 0], sizes = [8, 32], strides = [1, 1]} : vector<16x32xf32> to vector<8x32xf32>
    %482 = vector.extract_strided_slice %479 {offsets = [0, 0], sizes = [8, 32], strides = [1, 1]} : vector<16x32xf32> to vector<8x32xf32>
    %483 = vector.extract_strided_slice %480 {offsets = [0, 0], sizes = [8, 32], strides = [1, 1]} : vector<16x32xf32> to vector<8x32xf32>
    %484 = vector.extract_strided_slice %10 {offsets = [0, 0, 0], sizes = [1, 8, 8], strides = [1, 1, 1]} : vector<2x8x8xf32> to vector<1x8x8xf32>
    %485 = vector.shape_cast %484 : vector<1x8x8xf32> to vector<8x8xf32>
    %486 = vector.extract_strided_slice %481 {offsets = [0, 0], sizes = [8, 8], strides = [1, 1]} : vector<8x32xf32> to vector<8x8xf32>
    %487 = vector.extract_strided_slice %482 {offsets = [0, 0], sizes = [8, 8], strides = [1, 1]} : vector<8x32xf32> to vector<8x8xf32>
    %488 = vector.extract_strided_slice %483 {offsets = [0, 0], sizes = [8, 8], strides = [1, 1]} : vector<8x32xf32> to vector<8x8xf32>
    %cst_199 = arith.constant dense<0.000000e+00> : vector<8x8xf32>
    %489 = tpu.matmul %486, %487, %cst_199 {dimension_numbers = #tpu.dot_dimension_numbers<[1], [1], [0], [0], [0, 0, 1, 0], [], []>} : vector<8x8xf32>, vector<8x8xf32>, vector<8x8xf32> -> vector<8x8xf32>
    %cst_200 = arith.constant 0.353553385 : f32
    %490 = vector.broadcast %cst_200 : f32 to vector<8x8xf32>
    %491 = arith.mulf %489, %490 : vector<8x8xf32>
    %492 = arith.addf %491, %485 : vector<8x8xf32>
    %cst_201 = arith.constant dense<0xFF800000> : vector<8xf32>
    %493 = vector.multi_reduction <maximumf>, %492, %cst_201 [1] : vector<8x8xf32> to vector<8xf32>
    %494 = vector.shape_cast %493 : vector<8xf32> to vector<8x1xf32>
    %495 = vector.broadcast %494 : vector<8x1xf32> to vector<8x8xf32>
    %496 = arith.subf %492, %495 : vector<8x8xf32>
    %497 = math.exp %496 : vector<8x8xf32>
    %cst_202 = arith.constant dense<0.000000e+00> : vector<8xf32>
    %498 = vector.multi_reduction <add>, %497, %cst_202 [1] : vector<8x8xf32> to vector<8xf32>
    %499 = vector.shape_cast %498 : vector<8xf32> to vector<8x1xf32>
    %500 = tpu.reciprocal %499 {approx = true} : vector<8x1xf32> -> vector<8x1xf32>
    %501 = vector.broadcast %500 : vector<8x1xf32> to vector<8x8xf32>
    %502 = arith.mulf %497, %501 : vector<8x8xf32>
    %cst_203 = arith.constant dense<0.000000e+00> : vector<8x8xf32>
    %503 = tpu.matmul %502, %488, %cst_203 {dimension_numbers = #tpu.dot_dimension_numbers<[1], [0], [0], [1], [0, 0, 1, 1], [], []>} : vector<8x8xf32>, vector<8x8xf32>, vector<8x8xf32> -> vector<8x8xf32>
    %504 = vector.extract_strided_slice %481 {offsets = [0, 8], sizes = [8, 8], strides = [1, 1]} : vector<8x32xf32> to vector<8x8xf32>
    %505 = vector.extract_strided_slice %482 {offsets = [0, 8], sizes = [8, 8], strides = [1, 1]} : vector<8x32xf32> to vector<8x8xf32>
    %506 = vector.extract_strided_slice %483 {offsets = [0, 8], sizes = [8, 8], strides = [1, 1]} : vector<8x32xf32> to vector<8x8xf32>
    %cst_204 = arith.constant dense<0.000000e+00> : vector<8x8xf32>
    %507 = tpu.matmul %504, %505, %cst_204 {dimension_numbers = #tpu.dot_dimension_numbers<[1], [1], [0], [0], [0, 0, 1, 0], [], []>} : vector<8x8xf32>, vector<8x8xf32>, vector<8x8xf32> -> vector<8x8xf32>
    %cst_205 = arith.constant 0.353553385 : f32
    %508 = vector.broadcast %cst_205 : f32 to vector<8x8xf32>
    %509 = arith.mulf %507, %508 : vector<8x8xf32>
    %510 = arith.addf %509, %485 : vector<8x8xf32>
    %cst_206 = arith.constant dense<0xFF800000> : vector<8xf32>
    %511 = vector.multi_reduction <maximumf>, %510, %cst_206 [1] : vector<8x8xf32> to vector<8xf32>
    %512 = vector.shape_cast %511 : vector<8xf32> to vector<8x1xf32>
    %513 = vector.broadcast %512 : vector<8x1xf32> to vector<8x8xf32>
    %514 = arith.subf %510, %513 : vector<8x8xf32>
    %515 = math.exp %514 : vector<8x8xf32>
    %cst_207 = arith.constant dense<0.000000e+00> : vector<8xf32>
    %516 = vector.multi_reduction <add>, %515, %cst_207 [1] : vector<8x8xf32> to vector<8xf32>
    %517 = vector.shape_cast %516 : vector<8xf32> to vector<8x1xf32>
    %518 = tpu.reciprocal %517 {approx = true} : vector<8x1xf32> -> vector<8x1xf32>
    %519 = vector.broadcast %518 : vector<8x1xf32> to vector<8x8xf32>
    %520 = arith.mulf %515, %519 : vector<8x8xf32>
    %cst_208 = arith.constant dense<0.000000e+00> : vector<8x8xf32>
    %521 = tpu.matmul %520, %506, %cst_208 {dimension_numbers = #tpu.dot_dimension_numbers<[1], [0], [0], [1], [0, 0, 1, 1], [], []>} : vector<8x8xf32>, vector<8x8xf32>, vector<8x8xf32> -> vector<8x8xf32>
    %522 = vector.extract_strided_slice %481 {offsets = [0, 16], sizes = [8, 8], strides = [1, 1]} : vector<8x32xf32> to vector<8x8xf32>
    %523 = vector.extract_strided_slice %482 {offsets = [0, 16], sizes = [8, 8], strides = [1, 1]} : vector<8x32xf32> to vector<8x8xf32>
    %524 = vector.extract_strided_slice %483 {offsets = [0, 16], sizes = [8, 8], strides = [1, 1]} : vector<8x32xf32> to vector<8x8xf32>
    %cst_209 = arith.constant dense<0.000000e+00> : vector<8x8xf32>
    %525 = tpu.matmul %522, %523, %cst_209 {dimension_numbers = #tpu.dot_dimension_numbers<[1], [1], [0], [0], [0, 0, 1, 0], [], []>} : vector<8x8xf32>, vector<8x8xf32>, vector<8x8xf32> -> vector<8x8xf32>
    %cst_210 = arith.constant 0.353553385 : f32
    %526 = vector.broadcast %cst_210 : f32 to vector<8x8xf32>
    %527 = arith.mulf %525, %526 : vector<8x8xf32>
    %528 = arith.addf %527, %485 : vector<8x8xf32>
    %cst_211 = arith.constant dense<0xFF800000> : vector<8xf32>
    %529 = vector.multi_reduction <maximumf>, %528, %cst_211 [1] : vector<8x8xf32> to vector<8xf32>
    %530 = vector.shape_cast %529 : vector<8xf32> to vector<8x1xf32>
    %531 = vector.broadcast %530 : vector<8x1xf32> to vector<8x8xf32>
    %532 = arith.subf %528, %531 : vector<8x8xf32>
    %533 = math.exp %532 : vector<8x8xf32>
    %cst_212 = arith.constant dense<0.000000e+00> : vector<8xf32>
    %534 = vector.multi_reduction <add>, %533, %cst_212 [1] : vector<8x8xf32> to vector<8xf32>
    %535 = vector.shape_cast %534 : vector<8xf32> to vector<8x1xf32>
    %536 = tpu.reciprocal %535 {approx = true} : vector<8x1xf32> -> vector<8x1xf32>
    %537 = vector.broadcast %536 : vector<8x1xf32> to vector<8x8xf32>
    %538 = arith.mulf %533, %537 : vector<8x8xf32>
    %cst_213 = arith.constant dense<0.000000e+00> : vector<8x8xf32>
    %539 = tpu.matmul %538, %524, %cst_213 {dimension_numbers = #tpu.dot_dimension_numbers<[1], [0], [0], [1], [0, 0, 1, 1], [], []>} : vector<8x8xf32>, vector<8x8xf32>, vector<8x8xf32> -> vector<8x8xf32>
    %540 = vector.extract_strided_slice %481 {offsets = [0, 24], sizes = [8, 8], strides = [1, 1]} : vector<8x32xf32> to vector<8x8xf32>
    %541 = vector.extract_strided_slice %482 {offsets = [0, 24], sizes = [8, 8], strides = [1, 1]} : vector<8x32xf32> to vector<8x8xf32>
    %542 = vector.extract_strided_slice %483 {offsets = [0, 24], sizes = [8, 8], strides = [1, 1]} : vector<8x32xf32> to vector<8x8xf32>
    %cst_214 = arith.constant dense<0.000000e+00> : vector<8x8xf32>
    %543 = tpu.matmul %540, %541, %cst_214 {dimension_numbers = #tpu.dot_dimension_numbers<[1], [1], [0], [0], [0, 0, 1, 0], [], []>} : vector<8x8xf32>, vector<8x8xf32>, vector<8x8xf32> -> vector<8x8xf32>
    %cst_215 = arith.constant 0.353553385 : f32
    %544 = vector.broadcast %cst_215 : f32 to vector<8x8xf32>
    %545 = arith.mulf %543, %544 : vector<8x8xf32>
    %546 = arith.addf %545, %485 : vector<8x8xf32>
    %cst_216 = arith.constant dense<0xFF800000> : vector<8xf32>
    %547 = vector.multi_reduction <maximumf>, %546, %cst_216 [1] : vector<8x8xf32> to vector<8xf32>
    %548 = vector.shape_cast %547 : vector<8xf32> to vector<8x1xf32>
    %549 = vector.broadcast %548 : vector<8x1xf32> to vector<8x8xf32>
    %550 = arith.subf %546, %549 : vector<8x8xf32>
    %551 = math.exp %550 : vector<8x8xf32>
    %cst_217 = arith.constant dense<0.000000e+00> : vector<8xf32>
    %552 = vector.multi_reduction <add>, %551, %cst_217 [1] : vector<8x8xf32> to vector<8xf32>
    %553 = vector.shape_cast %552 : vector<8xf32> to vector<8x1xf32>
    %554 = tpu.reciprocal %553 {approx = true} : vector<8x1xf32> -> vector<8x1xf32>
    %555 = vector.broadcast %554 : vector<8x1xf32> to vector<8x8xf32>
    %556 = arith.mulf %551, %555 : vector<8x8xf32>
    %cst_218 = arith.constant dense<0.000000e+00> : vector<8x8xf32>
    %557 = tpu.matmul %556, %542, %cst_218 {dimension_numbers = #tpu.dot_dimension_numbers<[1], [0], [0], [1], [0, 0, 1, 1], [], []>} : vector<8x8xf32>, vector<8x8xf32>, vector<8x8xf32> -> vector<8x8xf32>
    %558 = tpu.concatenate %503, %521, %539, %557 in 1 : vector<8x8xf32>, vector<8x8xf32>, vector<8x8xf32>, vector<8x8xf32> -> vector<8x32xf32>
    %559 = vector.extract_strided_slice %478 {offsets = [8, 0], sizes = [8, 32], strides = [1, 1]} : vector<16x32xf32> to vector<8x32xf32>
    %560 = vector.extract_strided_slice %479 {offsets = [8, 0], sizes = [8, 32], strides = [1, 1]} : vector<16x32xf32> to vector<8x32xf32>
    %561 = vector.extract_strided_slice %480 {offsets = [8, 0], sizes = [8, 32], strides = [1, 1]} : vector<16x32xf32> to vector<8x32xf32>
    %562 = vector.extract_strided_slice %10 {offsets = [1, 0, 0], sizes = [1, 8, 8], strides = [1, 1, 1]} : vector<2x8x8xf32> to vector<1x8x8xf32>
    %563 = vector.shape_cast %562 : vector<1x8x8xf32> to vector<8x8xf32>
    %564 = vector.extract_strided_slice %559 {offsets = [0, 0], sizes = [8, 8], strides = [1, 1]} : vector<8x32xf32> to vector<8x8xf32>
    %565 = vector.extract_strided_slice %560 {offsets = [0, 0], sizes = [8, 8], strides = [1, 1]} : vector<8x32xf32> to vector<8x8xf32>
    %566 = vector.extract_strided_slice %561 {offsets = [0, 0], sizes = [8, 8], strides = [1, 1]} : vector<8x32xf32> to vector<8x8xf32>
    %cst_219 = arith.constant dense<0.000000e+00> : vector<8x8xf32>
    %567 = tpu.matmul %564, %565, %cst_219 {dimension_numbers = #tpu.dot_dimension_numbers<[1], [1], [0], [0], [0, 0, 1, 0], [], []>} : vector<8x8xf32>, vector<8x8xf32>, vector<8x8xf32> -> vector<8x8xf32>
    %cst_220 = arith.constant 0.353553385 : f32
    %568 = vector.broadcast %cst_220 : f32 to vector<8x8xf32>
    %569 = arith.mulf %567, %568 : vector<8x8xf32>
    %570 = arith.addf %569, %563 : vector<8x8xf32>
    %cst_221 = arith.constant dense<0xFF800000> : vector<8xf32>
    %571 = vector.multi_reduction <maximumf>, %570, %cst_221 [1] : vector<8x8xf32> to vector<8xf32>
    %572 = vector.shape_cast %571 : vector<8xf32> to vector<8x1xf32>
    %573 = vector.broadcast %572 : vector<8x1xf32> to vector<8x8xf32>
    %574 = arith.subf %570, %573 : vector<8x8xf32>
    %575 = math.exp %574 : vector<8x8xf32>
    %cst_222 = arith.constant dense<0.000000e+00> : vector<8xf32>
    %576 = vector.multi_reduction <add>, %575, %cst_222 [1] : vector<8x8xf32> to vector<8xf32>
    %577 = vector.shape_cast %576 : vector<8xf32> to vector<8x1xf32>
    %578 = tpu.reciprocal %577 {approx = true} : vector<8x1xf32> -> vector<8x1xf32>
    %579 = vector.broadcast %578 : vector<8x1xf32> to vector<8x8xf32>
    %580 = arith.mulf %575, %579 : vector<8x8xf32>
    %cst_223 = arith.constant dense<0.000000e+00> : vector<8x8xf32>
    %581 = tpu.matmul %580, %566, %cst_223 {dimension_numbers = #tpu.dot_dimension_numbers<[1], [0], [0], [1], [0, 0, 1, 1], [], []>} : vector<8x8xf32>, vector<8x8xf32>, vector<8x8xf32> -> vector<8x8xf32>
    %582 = vector.extract_strided_slice %559 {offsets = [0, 8], sizes = [8, 8], strides = [1, 1]} : vector<8x32xf32> to vector<8x8xf32>
    %583 = vector.extract_strided_slice %560 {offsets = [0, 8], sizes = [8, 8], strides = [1, 1]} : vector<8x32xf32> to vector<8x8xf32>
    %584 = vector.extract_strided_slice %561 {offsets = [0, 8], sizes = [8, 8], strides = [1, 1]} : vector<8x32xf32> to vector<8x8xf32>
    %cst_224 = arith.constant dense<0.000000e+00> : vector<8x8xf32>
    %585 = tpu.matmul %582, %583, %cst_224 {dimension_numbers = #tpu.dot_dimension_numbers<[1], [1], [0], [0], [0, 0, 1, 0], [], []>} : vector<8x8xf32>, vector<8x8xf32>, vector<8x8xf32> -> vector<8x8xf32>
    %cst_225 = arith.constant 0.353553385 : f32
    %586 = vector.broadcast %cst_225 : f32 to vector<8x8xf32>
    %587 = arith.mulf %585, %586 : vector<8x8xf32>
    %588 = arith.addf %587, %563 : vector<8x8xf32>
    %cst_226 = arith.constant dense<0xFF800000> : vector<8xf32>
    %589 = vector.multi_reduction <maximumf>, %588, %cst_226 [1] : vector<8x8xf32> to vector<8xf32>
    %590 = vector.shape_cast %589 : vector<8xf32> to vector<8x1xf32>
    %591 = vector.broadcast %590 : vector<8x1xf32> to vector<8x8xf32>
    %592 = arith.subf %588, %591 : vector<8x8xf32>
    %593 = math.exp %592 : vector<8x8xf32>
    %cst_227 = arith.constant dense<0.000000e+00> : vector<8xf32>
    %594 = vector.multi_reduction <add>, %593, %cst_227 [1] : vector<8x8xf32> to vector<8xf32>
    %595 = vector.shape_cast %594 : vector<8xf32> to vector<8x1xf32>
    %596 = tpu.reciprocal %595 {approx = true} : vector<8x1xf32> -> vector<8x1xf32>
    %597 = vector.broadcast %596 : vector<8x1xf32> to vector<8x8xf32>
    %598 = arith.mulf %593, %597 : vector<8x8xf32>
    %cst_228 = arith.constant dense<0.000000e+00> : vector<8x8xf32>
    %599 = tpu.matmul %598, %584, %cst_228 {dimension_numbers = #tpu.dot_dimension_numbers<[1], [0], [0], [1], [0, 0, 1, 1], [], []>} : vector<8x8xf32>, vector<8x8xf32>, vector<8x8xf32> -> vector<8x8xf32>
    %600 = vector.extract_strided_slice %559 {offsets = [0, 16], sizes = [8, 8], strides = [1, 1]} : vector<8x32xf32> to vector<8x8xf32>
    %601 = vector.extract_strided_slice %560 {offsets = [0, 16], sizes = [8, 8], strides = [1, 1]} : vector<8x32xf32> to vector<8x8xf32>
    %602 = vector.extract_strided_slice %561 {offsets = [0, 16], sizes = [8, 8], strides = [1, 1]} : vector<8x32xf32> to vector<8x8xf32>
    %cst_229 = arith.constant dense<0.000000e+00> : vector<8x8xf32>
    %603 = tpu.matmul %600, %601, %cst_229 {dimension_numbers = #tpu.dot_dimension_numbers<[1], [1], [0], [0], [0, 0, 1, 0], [], []>} : vector<8x8xf32>, vector<8x8xf32>, vector<8x8xf32> -> vector<8x8xf32>
    %cst_230 = arith.constant 0.353553385 : f32
    %604 = vector.broadcast %cst_230 : f32 to vector<8x8xf32>
    %605 = arith.mulf %603, %604 : vector<8x8xf32>
    %606 = arith.addf %605, %563 : vector<8x8xf32>
    %cst_231 = arith.constant dense<0xFF800000> : vector<8xf32>
    %607 = vector.multi_reduction <maximumf>, %606, %cst_231 [1] : vector<8x8xf32> to vector<8xf32>
    %608 = vector.shape_cast %607 : vector<8xf32> to vector<8x1xf32>
    %609 = vector.broadcast %608 : vector<8x1xf32> to vector<8x8xf32>
    %610 = arith.subf %606, %609 : vector<8x8xf32>
    %611 = math.exp %610 : vector<8x8xf32>
    %cst_232 = arith.constant dense<0.000000e+00> : vector<8xf32>
    %612 = vector.multi_reduction <add>, %611, %cst_232 [1] : vector<8x8xf32> to vector<8xf32>
    %613 = vector.shape_cast %612 : vector<8xf32> to vector<8x1xf32>
    %614 = tpu.reciprocal %613 {approx = true} : vector<8x1xf32> -> vector<8x1xf32>
    %615 = vector.broadcast %614 : vector<8x1xf32> to vector<8x8xf32>
    %616 = arith.mulf %611, %615 : vector<8x8xf32>
    %cst_233 = arith.constant dense<0.000000e+00> : vector<8x8xf32>
    %617 = tpu.matmul %616, %602, %cst_233 {dimension_numbers = #tpu.dot_dimension_numbers<[1], [0], [0], [1], [0, 0, 1, 1], [], []>} : vector<8x8xf32>, vector<8x8xf32>, vector<8x8xf32> -> vector<8x8xf32>
    %618 = vector.extract_strided_slice %559 {offsets = [0, 24], sizes = [8, 8], strides = [1, 1]} : vector<8x32xf32> to vector<8x8xf32>
    %619 = vector.extract_strided_slice %560 {offsets = [0, 24], sizes = [8, 8], strides = [1, 1]} : vector<8x32xf32> to vector<8x8xf32>
    %620 = vector.extract_strided_slice %561 {offsets = [0, 24], sizes = [8, 8], strides = [1, 1]} : vector<8x32xf32> to vector<8x8xf32>
    %cst_234 = arith.constant dense<0.000000e+00> : vector<8x8xf32>
    %621 = tpu.matmul %618, %619, %cst_234 {dimension_numbers = #tpu.dot_dimension_numbers<[1], [1], [0], [0], [0, 0, 1, 0], [], []>} : vector<8x8xf32>, vector<8x8xf32>, vector<8x8xf32> -> vector<8x8xf32>
    %cst_235 = arith.constant 0.353553385 : f32
    %622 = vector.broadcast %cst_235 : f32 to vector<8x8xf32>
    %623 = arith.mulf %621, %622 : vector<8x8xf32>
    %624 = arith.addf %623, %563 : vector<8x8xf32>
    %cst_236 = arith.constant dense<0xFF800000> : vector<8xf32>
    %625 = vector.multi_reduction <maximumf>, %624, %cst_236 [1] : vector<8x8xf32> to vector<8xf32>
    %626 = vector.shape_cast %625 : vector<8xf32> to vector<8x1xf32>
    %627 = vector.broadcast %626 : vector<8x1xf32> to vector<8x8xf32>
    %628 = arith.subf %624, %627 : vector<8x8xf32>
    %629 = math.exp %628 : vector<8x8xf32>
    %cst_237 = arith.constant dense<0.000000e+00> : vector<8xf32>
    %630 = vector.multi_reduction <add>, %629, %cst_237 [1] : vector<8x8xf32> to vector<8xf32>
    %631 = vector.shape_cast %630 : vector<8xf32> to vector<8x1xf32>
    %632 = tpu.reciprocal %631 {approx = true} : vector<8x1xf32> -> vector<8x1xf32>
    %633 = vector.broadcast %632 : vector<8x1xf32> to vector<8x8xf32>
    %634 = arith.mulf %629, %633 : vector<8x8xf32>
    %cst_238 = arith.constant dense<0.000000e+00> : vector<8x8xf32>
    %635 = tpu.matmul %634, %620, %cst_238 {dimension_numbers = #tpu.dot_dimension_numbers<[1], [0], [0], [1], [0, 0, 1, 1], [], []>} : vector<8x8xf32>, vector<8x8xf32>, vector<8x8xf32> -> vector<8x8xf32>
    %636 = tpu.concatenate %581, %599, %617, %635 in 1 : vector<8x8xf32>, vector<8x8xf32>, vector<8x8xf32>, vector<8x8xf32> -> vector<8x32xf32>
    %637 = tpu.concatenate %558, %636 in 0 : vector<8x32xf32>, vector<8x32xf32> -> vector<16x32xf32>
    %cst_239 = arith.constant dense<0.000000e+00> : vector<16x32xf32>
    %638 = tpu.matmul %637, %457, %cst_239 {dimension_numbers = #tpu.dot_dimension_numbers<[1], [0], [0], [1], [0, 0, 1, 1], [], []>} : vector<16x32xf32>, vector<32x32xf32>, vector<16x32xf32> -> vector<16x32xf32>
    %639 = vector.broadcast %458 : vector<1x32xf32> to vector<16x32xf32>
    %640 = arith.addf %638, %639 : vector<16x32xf32>
    %641 = arith.addf %454, %640 : vector<16x32xf32>
    %cst_240 = arith.constant dense<0.000000e+00> : vector<16xf32>
    %642 = vector.multi_reduction <add>, %641, %cst_240 [1] : vector<16x32xf32> to vector<16xf32>
    %643 = vector.shape_cast %642 : vector<16xf32> to vector<16x1xf32>
    %cst_241 = arith.constant 3.200000e+01 : f32
    %644 = vector.broadcast %cst_241 : f32 to vector<16x1xf32>
    %645 = arith.divf %643, %644 : vector<16x1xf32>
    %646 = vector.broadcast %645 : vector<16x1xf32> to vector<16x32xf32>
    %647 = arith.subf %641, %646 : vector<16x32xf32>
    %648 = arith.mulf %647, %647 : vector<16x32xf32>
    %cst_242 = arith.constant dense<0.000000e+00> : vector<16xf32>
    %649 = vector.multi_reduction <add>, %648, %cst_242 [1] : vector<16x32xf32> to vector<16xf32>
    %650 = vector.shape_cast %649 : vector<16xf32> to vector<16x1xf32>
    %cst_243 = arith.constant 3.200000e+01 : f32
    %651 = vector.broadcast %cst_243 : f32 to vector<16x1xf32>
    %652 = arith.divf %650, %651 : vector<16x1xf32>
    %653 = vector.broadcast %645 : vector<16x1xf32> to vector<16x32xf32>
    %654 = arith.subf %641, %653 : vector<16x32xf32>
    %cst_244 = arith.constant 9.99999974E-6 : f32
    %655 = vector.broadcast %cst_244 : f32 to vector<16x1xf32>
    %656 = arith.addf %652, %655 : vector<16x1xf32>
    %657 = math.rsqrt %656 : vector<16x1xf32>
    %658 = vector.broadcast %657 : vector<16x1xf32> to vector<16x32xf32>
    %659 = arith.mulf %654, %658 : vector<16x32xf32>
    %660 = vector.broadcast %469 : vector<1x32xf32> to vector<16x32xf32>
    %661 = arith.mulf %659, %660 : vector<16x32xf32>
    %662 = vector.broadcast %470 : vector<1x32xf32> to vector<16x32xf32>
    %663 = arith.addf %661, %662 : vector<16x32xf32>
    %cst_245 = arith.constant dense<0.000000e+00> : vector<16x32xf32>
    %664 = tpu.matmul %663, %459, %cst_245 {dimension_numbers = #tpu.dot_dimension_numbers<[1], [0], [0], [1], [0, 0, 1, 1], [], []>} : vector<16x32xf32>, vector<32x32xf32>, vector<16x32xf32> -> vector<16x32xf32>
    %665 = vector.broadcast %460 : vector<1x32xf32> to vector<16x32xf32>
    %666 = arith.addf %664, %665 : vector<16x32xf32>
    %cst_246 = arith.constant dense<0.000000e+00> : vector<16x64xf32>
    %667 = tpu.matmul %5, %461, %cst_246 {dimension_numbers = #tpu.dot_dimension_numbers<[1], [0], [0], [1], [0, 0, 1, 1], [], []>} : vector<16x32xf32>, vector<32x64xf32>, vector<16x64xf32> -> vector<16x64xf32>
    %668 = vector.broadcast %462 : vector<1x64xf32> to vector<16x64xf32>
    %669 = arith.addf %667, %668 : vector<16x64xf32>
    %670 = vector.extract_strided_slice %669 {offsets = [0, 0], sizes = [16, 32], strides = [1, 1]} : vector<16x64xf32> to vector<16x32xf32>
    %671 = vector.extract_strided_slice %669 {offsets = [0, 32], sizes = [16, 32], strides = [1, 1]} : vector<16x64xf32> to vector<16x32xf32>
    %672 = vector.extract_strided_slice %666 {offsets = [0, 0], sizes = [8, 32], strides = [1, 1]} : vector<16x32xf32> to vector<8x32xf32>
    %673 = vector.extract_strided_slice %670 {offsets = [0, 0], sizes = [8, 32], strides = [1, 1]} : vector<16x32xf32> to vector<8x32xf32>
    %674 = vector.extract_strided_slice %671 {offsets = [0, 0], sizes = [8, 32], strides = [1, 1]} : vector<16x32xf32> to vector<8x32xf32>
    %675 = vector.extract_strided_slice %15 {offsets = [0, 0, 0], sizes = [1, 1, 8], strides = [1, 1, 1]} : vector<2x1x8xf32> to vector<1x1x8xf32>
    %676 = vector.shape_cast %675 : vector<1x1x8xf32> to vector<1x8xf32>
    %677 = vector.extract_strided_slice %672 {offsets = [0, 0], sizes = [8, 8], strides = [1, 1]} : vector<8x32xf32> to vector<8x8xf32>
    %678 = vector.extract_strided_slice %673 {offsets = [0, 0], sizes = [8, 8], strides = [1, 1]} : vector<8x32xf32> to vector<8x8xf32>
    %679 = vector.extract_strided_slice %674 {offsets = [0, 0], sizes = [8, 8], strides = [1, 1]} : vector<8x32xf32> to vector<8x8xf32>
    %cst_247 = arith.constant dense<0.000000e+00> : vector<8x8xf32>
    %680 = tpu.matmul %677, %678, %cst_247 {dimension_numbers = #tpu.dot_dimension_numbers<[1], [1], [0], [0], [0, 0, 1, 0], [], []>} : vector<8x8xf32>, vector<8x8xf32>, vector<8x8xf32> -> vector<8x8xf32>
    %cst_248 = arith.constant 0.353553385 : f32
    %681 = vector.broadcast %cst_248 : f32 to vector<8x8xf32>
    %682 = arith.mulf %680, %681 : vector<8x8xf32>
    %683 = vector.broadcast %676 : vector<1x8xf32> to vector<8x8xf32>
    %684 = arith.addf %682, %683 : vector<8x8xf32>
    %cst_249 = arith.constant dense<0xFF800000> : vector<8xf32>
    %685 = vector.multi_reduction <maximumf>, %684, %cst_249 [1] : vector<8x8xf32> to vector<8xf32>
    %686 = vector.shape_cast %685 : vector<8xf32> to vector<8x1xf32>
    %687 = vector.broadcast %686 : vector<8x1xf32> to vector<8x8xf32>
    %688 = arith.subf %684, %687 : vector<8x8xf32>
    %689 = math.exp %688 : vector<8x8xf32>
    %cst_250 = arith.constant dense<0.000000e+00> : vector<8xf32>
    %690 = vector.multi_reduction <add>, %689, %cst_250 [1] : vector<8x8xf32> to vector<8xf32>
    %691 = vector.shape_cast %690 : vector<8xf32> to vector<8x1xf32>
    %692 = tpu.reciprocal %691 {approx = true} : vector<8x1xf32> -> vector<8x1xf32>
    %693 = vector.broadcast %692 : vector<8x1xf32> to vector<8x8xf32>
    %694 = arith.mulf %689, %693 : vector<8x8xf32>
    %cst_251 = arith.constant dense<0.000000e+00> : vector<8x8xf32>
    %695 = tpu.matmul %694, %679, %cst_251 {dimension_numbers = #tpu.dot_dimension_numbers<[1], [0], [0], [1], [0, 0, 1, 1], [], []>} : vector<8x8xf32>, vector<8x8xf32>, vector<8x8xf32> -> vector<8x8xf32>
    %696 = vector.extract_strided_slice %672 {offsets = [0, 8], sizes = [8, 8], strides = [1, 1]} : vector<8x32xf32> to vector<8x8xf32>
    %697 = vector.extract_strided_slice %673 {offsets = [0, 8], sizes = [8, 8], strides = [1, 1]} : vector<8x32xf32> to vector<8x8xf32>
    %698 = vector.extract_strided_slice %674 {offsets = [0, 8], sizes = [8, 8], strides = [1, 1]} : vector<8x32xf32> to vector<8x8xf32>
    %cst_252 = arith.constant dense<0.000000e+00> : vector<8x8xf32>
    %699 = tpu.matmul %696, %697, %cst_252 {dimension_numbers = #tpu.dot_dimension_numbers<[1], [1], [0], [0], [0, 0, 1, 0], [], []>} : vector<8x8xf32>, vector<8x8xf32>, vector<8x8xf32> -> vector<8x8xf32>
    %cst_253 = arith.constant 0.353553385 : f32
    %700 = vector.broadcast %cst_253 : f32 to vector<8x8xf32>
    %701 = arith.mulf %699, %700 : vector<8x8xf32>
    %702 = vector.broadcast %676 : vector<1x8xf32> to vector<8x8xf32>
    %703 = arith.addf %701, %702 : vector<8x8xf32>
    %cst_254 = arith.constant dense<0xFF800000> : vector<8xf32>
    %704 = vector.multi_reduction <maximumf>, %703, %cst_254 [1] : vector<8x8xf32> to vector<8xf32>
    %705 = vector.shape_cast %704 : vector<8xf32> to vector<8x1xf32>
    %706 = vector.broadcast %705 : vector<8x1xf32> to vector<8x8xf32>
    %707 = arith.subf %703, %706 : vector<8x8xf32>
    %708 = math.exp %707 : vector<8x8xf32>
    %cst_255 = arith.constant dense<0.000000e+00> : vector<8xf32>
    %709 = vector.multi_reduction <add>, %708, %cst_255 [1] : vector<8x8xf32> to vector<8xf32>
    %710 = vector.shape_cast %709 : vector<8xf32> to vector<8x1xf32>
    %711 = tpu.reciprocal %710 {approx = true} : vector<8x1xf32> -> vector<8x1xf32>
    %712 = vector.broadcast %711 : vector<8x1xf32> to vector<8x8xf32>
    %713 = arith.mulf %708, %712 : vector<8x8xf32>
    %cst_256 = arith.constant dense<0.000000e+00> : vector<8x8xf32>
    %714 = tpu.matmul %713, %698, %cst_256 {dimension_numbers = #tpu.dot_dimension_numbers<[1], [0], [0], [1], [0, 0, 1, 1], [], []>} : vector<8x8xf32>, vector<8x8xf32>, vector<8x8xf32> -> vector<8x8xf32>
    %715 = vector.extract_strided_slice %672 {offsets = [0, 16], sizes = [8, 8], strides = [1, 1]} : vector<8x32xf32> to vector<8x8xf32>
    %716 = vector.extract_strided_slice %673 {offsets = [0, 16], sizes = [8, 8], strides = [1, 1]} : vector<8x32xf32> to vector<8x8xf32>
    %717 = vector.extract_strided_slice %674 {offsets = [0, 16], sizes = [8, 8], strides = [1, 1]} : vector<8x32xf32> to vector<8x8xf32>
    %cst_257 = arith.constant dense<0.000000e+00> : vector<8x8xf32>
    %718 = tpu.matmul %715, %716, %cst_257 {dimension_numbers = #tpu.dot_dimension_numbers<[1], [1], [0], [0], [0, 0, 1, 0], [], []>} : vector<8x8xf32>, vector<8x8xf32>, vector<8x8xf32> -> vector<8x8xf32>
    %cst_258 = arith.constant 0.353553385 : f32
    %719 = vector.broadcast %cst_258 : f32 to vector<8x8xf32>
    %720 = arith.mulf %718, %719 : vector<8x8xf32>
    %721 = vector.broadcast %676 : vector<1x8xf32> to vector<8x8xf32>
    %722 = arith.addf %720, %721 : vector<8x8xf32>
    %cst_259 = arith.constant dense<0xFF800000> : vector<8xf32>
    %723 = vector.multi_reduction <maximumf>, %722, %cst_259 [1] : vector<8x8xf32> to vector<8xf32>
    %724 = vector.shape_cast %723 : vector<8xf32> to vector<8x1xf32>
    %725 = vector.broadcast %724 : vector<8x1xf32> to vector<8x8xf32>
    %726 = arith.subf %722, %725 : vector<8x8xf32>
    %727 = math.exp %726 : vector<8x8xf32>
    %cst_260 = arith.constant dense<0.000000e+00> : vector<8xf32>
    %728 = vector.multi_reduction <add>, %727, %cst_260 [1] : vector<8x8xf32> to vector<8xf32>
    %729 = vector.shape_cast %728 : vector<8xf32> to vector<8x1xf32>
    %730 = tpu.reciprocal %729 {approx = true} : vector<8x1xf32> -> vector<8x1xf32>
    %731 = vector.broadcast %730 : vector<8x1xf32> to vector<8x8xf32>
    %732 = arith.mulf %727, %731 : vector<8x8xf32>
    %cst_261 = arith.constant dense<0.000000e+00> : vector<8x8xf32>
    %733 = tpu.matmul %732, %717, %cst_261 {dimension_numbers = #tpu.dot_dimension_numbers<[1], [0], [0], [1], [0, 0, 1, 1], [], []>} : vector<8x8xf32>, vector<8x8xf32>, vector<8x8xf32> -> vector<8x8xf32>
    %734 = vector.extract_strided_slice %672 {offsets = [0, 24], sizes = [8, 8], strides = [1, 1]} : vector<8x32xf32> to vector<8x8xf32>
    %735 = vector.extract_strided_slice %673 {offsets = [0, 24], sizes = [8, 8], strides = [1, 1]} : vector<8x32xf32> to vector<8x8xf32>
    %736 = vector.extract_strided_slice %674 {offsets = [0, 24], sizes = [8, 8], strides = [1, 1]} : vector<8x32xf32> to vector<8x8xf32>
    %cst_262 = arith.constant dense<0.000000e+00> : vector<8x8xf32>
    %737 = tpu.matmul %734, %735, %cst_262 {dimension_numbers = #tpu.dot_dimension_numbers<[1], [1], [0], [0], [0, 0, 1, 0], [], []>} : vector<8x8xf32>, vector<8x8xf32>, vector<8x8xf32> -> vector<8x8xf32>
    %cst_263 = arith.constant 0.353553385 : f32
    %738 = vector.broadcast %cst_263 : f32 to vector<8x8xf32>
    %739 = arith.mulf %737, %738 : vector<8x8xf32>
    %740 = vector.broadcast %676 : vector<1x8xf32> to vector<8x8xf32>
    %741 = arith.addf %739, %740 : vector<8x8xf32>
    %cst_264 = arith.constant dense<0xFF800000> : vector<8xf32>
    %742 = vector.multi_reduction <maximumf>, %741, %cst_264 [1] : vector<8x8xf32> to vector<8xf32>
    %743 = vector.shape_cast %742 : vector<8xf32> to vector<8x1xf32>
    %744 = vector.broadcast %743 : vector<8x1xf32> to vector<8x8xf32>
    %745 = arith.subf %741, %744 : vector<8x8xf32>
    %746 = math.exp %745 : vector<8x8xf32>
    %cst_265 = arith.constant dense<0.000000e+00> : vector<8xf32>
    %747 = vector.multi_reduction <add>, %746, %cst_265 [1] : vector<8x8xf32> to vector<8xf32>
    %748 = vector.shape_cast %747 : vector<8xf32> to vector<8x1xf32>
    %749 = tpu.reciprocal %748 {approx = true} : vector<8x1xf32> -> vector<8x1xf32>
    %750 = vector.broadcast %749 : vector<8x1xf32> to vector<8x8xf32>
    %751 = arith.mulf %746, %750 : vector<8x8xf32>
    %cst_266 = arith.constant dense<0.000000e+00> : vector<8x8xf32>
    %752 = tpu.matmul %751, %736, %cst_266 {dimension_numbers = #tpu.dot_dimension_numbers<[1], [0], [0], [1], [0, 0, 1, 1], [], []>} : vector<8x8xf32>, vector<8x8xf32>, vector<8x8xf32> -> vector<8x8xf32>
    %753 = tpu.concatenate %695, %714, %733, %752 in 1 : vector<8x8xf32>, vector<8x8xf32>, vector<8x8xf32>, vector<8x8xf32> -> vector<8x32xf32>
    %754 = vector.extract_strided_slice %666 {offsets = [8, 0], sizes = [8, 32], strides = [1, 1]} : vector<16x32xf32> to vector<8x32xf32>
    %755 = vector.extract_strided_slice %670 {offsets = [8, 0], sizes = [8, 32], strides = [1, 1]} : vector<16x32xf32> to vector<8x32xf32>
    %756 = vector.extract_strided_slice %671 {offsets = [8, 0], sizes = [8, 32], strides = [1, 1]} : vector<16x32xf32> to vector<8x32xf32>
    %757 = vector.extract_strided_slice %15 {offsets = [1, 0, 0], sizes = [1, 1, 8], strides = [1, 1, 1]} : vector<2x1x8xf32> to vector<1x1x8xf32>
    %758 = vector.shape_cast %757 : vector<1x1x8xf32> to vector<1x8xf32>
    %759 = vector.extract_strided_slice %754 {offsets = [0, 0], sizes = [8, 8], strides = [1, 1]} : vector<8x32xf32> to vector<8x8xf32>
    %760 = vector.extract_strided_slice %755 {offsets = [0, 0], sizes = [8, 8], strides = [1, 1]} : vector<8x32xf32> to vector<8x8xf32>
    %761 = vector.extract_strided_slice %756 {offsets = [0, 0], sizes = [8, 8], strides = [1, 1]} : vector<8x32xf32> to vector<8x8xf32>
    %cst_267 = arith.constant dense<0.000000e+00> : vector<8x8xf32>
    %762 = tpu.matmul %759, %760, %cst_267 {dimension_numbers = #tpu.dot_dimension_numbers<[1], [1], [0], [0], [0, 0, 1, 0], [], []>} : vector<8x8xf32>, vector<8x8xf32>, vector<8x8xf32> -> vector<8x8xf32>
    %cst_268 = arith.constant 0.353553385 : f32
    %763 = vector.broadcast %cst_268 : f32 to vector<8x8xf32>
    %764 = arith.mulf %762, %763 : vector<8x8xf32>
    %765 = vector.broadcast %758 : vector<1x8xf32> to vector<8x8xf32>
    %766 = arith.addf %764, %765 : vector<8x8xf32>
    %cst_269 = arith.constant dense<0xFF800000> : vector<8xf32>
    %767 = vector.multi_reduction <maximumf>, %766, %cst_269 [1] : vector<8x8xf32> to vector<8xf32>
    %768 = vector.shape_cast %767 : vector<8xf32> to vector<8x1xf32>
    %769 = vector.broadcast %768 : vector<8x1xf32> to vector<8x8xf32>
    %770 = arith.subf %766, %769 : vector<8x8xf32>
    %771 = math.exp %770 : vector<8x8xf32>
    %cst_270 = arith.constant dense<0.000000e+00> : vector<8xf32>
    %772 = vector.multi_reduction <add>, %771, %cst_270 [1] : vector<8x8xf32> to vector<8xf32>
    %773 = vector.shape_cast %772 : vector<8xf32> to vector<8x1xf32>
    %774 = tpu.reciprocal %773 {approx = true} : vector<8x1xf32> -> vector<8x1xf32>
    %775 = vector.broadcast %774 : vector<8x1xf32> to vector<8x8xf32>
    %776 = arith.mulf %771, %775 : vector<8x8xf32>
    %cst_271 = arith.constant dense<0.000000e+00> : vector<8x8xf32>
    %777 = tpu.matmul %776, %761, %cst_271 {dimension_numbers = #tpu.dot_dimension_numbers<[1], [0], [0], [1], [0, 0, 1, 1], [], []>} : vector<8x8xf32>, vector<8x8xf32>, vector<8x8xf32> -> vector<8x8xf32>
    %778 = vector.extract_strided_slice %754 {offsets = [0, 8], sizes = [8, 8], strides = [1, 1]} : vector<8x32xf32> to vector<8x8xf32>
    %779 = vector.extract_strided_slice %755 {offsets = [0, 8], sizes = [8, 8], strides = [1, 1]} : vector<8x32xf32> to vector<8x8xf32>
    %780 = vector.extract_strided_slice %756 {offsets = [0, 8], sizes = [8, 8], strides = [1, 1]} : vector<8x32xf32> to vector<8x8xf32>
    %cst_272 = arith.constant dense<0.000000e+00> : vector<8x8xf32>
    %781 = tpu.matmul %778, %779, %cst_272 {dimension_numbers = #tpu.dot_dimension_numbers<[1], [1], [0], [0], [0, 0, 1, 0], [], []>} : vector<8x8xf32>, vector<8x8xf32>, vector<8x8xf32> -> vector<8x8xf32>
    %cst_273 = arith.constant 0.353553385 : f32
    %782 = vector.broadcast %cst_273 : f32 to vector<8x8xf32>
    %783 = arith.mulf %781, %782 : vector<8x8xf32>
    %784 = vector.broadcast %758 : vector<1x8xf32> to vector<8x8xf32>
    %785 = arith.addf %783, %784 : vector<8x8xf32>
    %cst_274 = arith.constant dense<0xFF800000> : vector<8xf32>
    %786 = vector.multi_reduction <maximumf>, %785, %cst_274 [1] : vector<8x8xf32> to vector<8xf32>
    %787 = vector.shape_cast %786 : vector<8xf32> to vector<8x1xf32>
    %788 = vector.broadcast %787 : vector<8x1xf32> to vector<8x8xf32>
    %789 = arith.subf %785, %788 : vector<8x8xf32>
    %790 = math.exp %789 : vector<8x8xf32>
    %cst_275 = arith.constant dense<0.000000e+00> : vector<8xf32>
    %791 = vector.multi_reduction <add>, %790, %cst_275 [1] : vector<8x8xf32> to vector<8xf32>
    %792 = vector.shape_cast %791 : vector<8xf32> to vector<8x1xf32>
    %793 = tpu.reciprocal %792 {approx = true} : vector<8x1xf32> -> vector<8x1xf32>
    %794 = vector.broadcast %793 : vector<8x1xf32> to vector<8x8xf32>
    %795 = arith.mulf %790, %794 : vector<8x8xf32>
    %cst_276 = arith.constant dense<0.000000e+00> : vector<8x8xf32>
    %796 = tpu.matmul %795, %780, %cst_276 {dimension_numbers = #tpu.dot_dimension_numbers<[1], [0], [0], [1], [0, 0, 1, 1], [], []>} : vector<8x8xf32>, vector<8x8xf32>, vector<8x8xf32> -> vector<8x8xf32>
    %797 = vector.extract_strided_slice %754 {offsets = [0, 16], sizes = [8, 8], strides = [1, 1]} : vector<8x32xf32> to vector<8x8xf32>
    %798 = vector.extract_strided_slice %755 {offsets = [0, 16], sizes = [8, 8], strides = [1, 1]} : vector<8x32xf32> to vector<8x8xf32>
    %799 = vector.extract_strided_slice %756 {offsets = [0, 16], sizes = [8, 8], strides = [1, 1]} : vector<8x32xf32> to vector<8x8xf32>
    %cst_277 = arith.constant dense<0.000000e+00> : vector<8x8xf32>
    %800 = tpu.matmul %797, %798, %cst_277 {dimension_numbers = #tpu.dot_dimension_numbers<[1], [1], [0], [0], [0, 0, 1, 0], [], []>} : vector<8x8xf32>, vector<8x8xf32>, vector<8x8xf32> -> vector<8x8xf32>
    %cst_278 = arith.constant 0.353553385 : f32
    %801 = vector.broadcast %cst_278 : f32 to vector<8x8xf32>
    %802 = arith.mulf %800, %801 : vector<8x8xf32>
    %803 = vector.broadcast %758 : vector<1x8xf32> to vector<8x8xf32>
    %804 = arith.addf %802, %803 : vector<8x8xf32>
    %cst_279 = arith.constant dense<0xFF800000> : vector<8xf32>
    %805 = vector.multi_reduction <maximumf>, %804, %cst_279 [1] : vector<8x8xf32> to vector<8xf32>
    %806 = vector.shape_cast %805 : vector<8xf32> to vector<8x1xf32>
    %807 = vector.broadcast %806 : vector<8x1xf32> to vector<8x8xf32>
    %808 = arith.subf %804, %807 : vector<8x8xf32>
    %809 = math.exp %808 : vector<8x8xf32>
    %cst_280 = arith.constant dense<0.000000e+00> : vector<8xf32>
    %810 = vector.multi_reduction <add>, %809, %cst_280 [1] : vector<8x8xf32> to vector<8xf32>
    %811 = vector.shape_cast %810 : vector<8xf32> to vector<8x1xf32>
    %812 = tpu.reciprocal %811 {approx = true} : vector<8x1xf32> -> vector<8x1xf32>
    %813 = vector.broadcast %812 : vector<8x1xf32> to vector<8x8xf32>
    %814 = arith.mulf %809, %813 : vector<8x8xf32>
    %cst_281 = arith.constant dense<0.000000e+00> : vector<8x8xf32>
    %815 = tpu.matmul %814, %799, %cst_281 {dimension_numbers = #tpu.dot_dimension_numbers<[1], [0], [0], [1], [0, 0, 1, 1], [], []>} : vector<8x8xf32>, vector<8x8xf32>, vector<8x8xf32> -> vector<8x8xf32>
    %816 = vector.extract_strided_slice %754 {offsets = [0, 24], sizes = [8, 8], strides = [1, 1]} : vector<8x32xf32> to vector<8x8xf32>
    %817 = vector.extract_strided_slice %755 {offsets = [0, 24], sizes = [8, 8], strides = [1, 1]} : vector<8x32xf32> to vector<8x8xf32>
    %818 = vector.extract_strided_slice %756 {offsets = [0, 24], sizes = [8, 8], strides = [1, 1]} : vector<8x32xf32> to vector<8x8xf32>
    %cst_282 = arith.constant dense<0.000000e+00> : vector<8x8xf32>
    %819 = tpu.matmul %816, %817, %cst_282 {dimension_numbers = #tpu.dot_dimension_numbers<[1], [1], [0], [0], [0, 0, 1, 0], [], []>} : vector<8x8xf32>, vector<8x8xf32>, vector<8x8xf32> -> vector<8x8xf32>
    %cst_283 = arith.constant 0.353553385 : f32
    %820 = vector.broadcast %cst_283 : f32 to vector<8x8xf32>
    %821 = arith.mulf %819, %820 : vector<8x8xf32>
    %822 = vector.broadcast %758 : vector<1x8xf32> to vector<8x8xf32>
    %823 = arith.addf %821, %822 : vector<8x8xf32>
    %cst_284 = arith.constant dense<0xFF800000> : vector<8xf32>
    %824 = vector.multi_reduction <maximumf>, %823, %cst_284 [1] : vector<8x8xf32> to vector<8xf32>
    %825 = vector.shape_cast %824 : vector<8xf32> to vector<8x1xf32>
    %826 = vector.broadcast %825 : vector<8x1xf32> to vector<8x8xf32>
    %827 = arith.subf %823, %826 : vector<8x8xf32>
    %828 = math.exp %827 : vector<8x8xf32>
    %cst_285 = arith.constant dense<0.000000e+00> : vector<8xf32>
    %829 = vector.multi_reduction <add>, %828, %cst_285 [1] : vector<8x8xf32> to vector<8xf32>
    %830 = vector.shape_cast %829 : vector<8xf32> to vector<8x1xf32>
    %831 = tpu.reciprocal %830 {approx = true} : vector<8x1xf32> -> vector<8x1xf32>
    %832 = vector.broadcast %831 : vector<8x1xf32> to vector<8x8xf32>
    %833 = arith.mulf %828, %832 : vector<8x8xf32>
    %cst_286 = arith.constant dense<0.000000e+00> : vector<8x8xf32>
    %834 = tpu.matmul %833, %818, %cst_286 {dimension_numbers = #tpu.dot_dimension_numbers<[1], [0], [0], [1], [0, 0, 1, 1], [], []>} : vector<8x8xf32>, vector<8x8xf32>, vector<8x8xf32> -> vector<8x8xf32>
    %835 = tpu.concatenate %777, %796, %815, %834 in 1 : vector<8x8xf32>, vector<8x8xf32>, vector<8x8xf32>, vector<8x8xf32> -> vector<8x32xf32>
    %836 = tpu.concatenate %753, %835 in 0 : vector<8x32xf32>, vector<8x32xf32> -> vector<16x32xf32>
    %cst_287 = arith.constant dense<0.000000e+00> : vector<16x32xf32>
    %837 = tpu.matmul %836, %463, %cst_287 {dimension_numbers = #tpu.dot_dimension_numbers<[1], [0], [0], [1], [0, 0, 1, 1], [], []>} : vector<16x32xf32>, vector<32x32xf32>, vector<16x32xf32> -> vector<16x32xf32>
    %838 = vector.broadcast %464 : vector<1x32xf32> to vector<16x32xf32>
    %839 = arith.addf %837, %838 : vector<16x32xf32>
    %840 = arith.addf %663, %839 : vector<16x32xf32>
    %cst_288 = arith.constant dense<0.000000e+00> : vector<16xf32>
    %841 = vector.multi_reduction <add>, %840, %cst_288 [1] : vector<16x32xf32> to vector<16xf32>
    %842 = vector.shape_cast %841 : vector<16xf32> to vector<16x1xf32>
    %cst_289 = arith.constant 3.200000e+01 : f32
    %843 = vector.broadcast %cst_289 : f32 to vector<16x1xf32>
    %844 = arith.divf %842, %843 : vector<16x1xf32>
    %845 = vector.broadcast %844 : vector<16x1xf32> to vector<16x32xf32>
    %846 = arith.subf %840, %845 : vector<16x32xf32>
    %847 = arith.mulf %846, %846 : vector<16x32xf32>
    %cst_290 = arith.constant dense<0.000000e+00> : vector<16xf32>
    %848 = vector.multi_reduction <add>, %847, %cst_290 [1] : vector<16x32xf32> to vector<16xf32>
    %849 = vector.shape_cast %848 : vector<16xf32> to vector<16x1xf32>
    %cst_291 = arith.constant 3.200000e+01 : f32
    %850 = vector.broadcast %cst_291 : f32 to vector<16x1xf32>
    %851 = arith.divf %849, %850 : vector<16x1xf32>
    %852 = vector.broadcast %844 : vector<16x1xf32> to vector<16x32xf32>
    %853 = arith.subf %840, %852 : vector<16x32xf32>
    %cst_292 = arith.constant 9.99999974E-6 : f32
    %854 = vector.broadcast %cst_292 : f32 to vector<16x1xf32>
    %855 = arith.addf %851, %854 : vector<16x1xf32>
    %856 = math.rsqrt %855 : vector<16x1xf32>
    %857 = vector.broadcast %856 : vector<16x1xf32> to vector<16x32xf32>
    %858 = arith.mulf %853, %857 : vector<16x32xf32>
    %859 = vector.broadcast %471 : vector<1x32xf32> to vector<16x32xf32>
    %860 = arith.mulf %858, %859 : vector<16x32xf32>
    %861 = vector.broadcast %472 : vector<1x32xf32> to vector<16x32xf32>
    %862 = arith.addf %860, %861 : vector<16x32xf32>
    %cst_293 = arith.constant dense<0.000000e+00> : vector<16x64xf32>
    %863 = tpu.matmul %862, %465, %cst_293 {dimension_numbers = #tpu.dot_dimension_numbers<[1], [0], [0], [1], [0, 0, 1, 1], [], []>} : vector<16x32xf32>, vector<32x64xf32>, vector<16x64xf32> -> vector<16x64xf32>
    %864 = vector.broadcast %466 : vector<1x64xf32> to vector<16x64xf32>
    %865 = arith.addf %863, %864 : vector<16x64xf32>
    %cst_294 = arith.constant 0.000000e+00 : f32
    %866 = vector.broadcast %cst_294 : f32 to vector<16x64xf32>
    %867 = arith.maximumf %865, %866 : vector<16x64xf32>
    %cst_295 = arith.constant dense<0.000000e+00> : vector<16x32xf32>
    %868 = tpu.matmul %867, %467, %cst_295 {dimension_numbers = #tpu.dot_dimension_numbers<[1], [0], [0], [1], [0, 0, 1, 1], [], []>} : vector<16x64xf32>, vector<64x32xf32>, vector<16x32xf32> -> vector<16x32xf32>
    %869 = vector.broadcast %468 : vector<1x32xf32> to vector<16x32xf32>
    %870 = arith.addf %868, %869 : vector<16x32xf32>
    %871 = arith.addf %862, %870 : vector<16x32xf32>
    %cst_296 = arith.constant dense<0.000000e+00> : vector<16xf32>
    %872 = vector.multi_reduction <add>, %871, %cst_296 [1] : vector<16x32xf32> to vector<16xf32>
    %873 = vector.shape_cast %872 : vector<16xf32> to vector<16x1xf32>
    %cst_297 = arith.constant 3.200000e+01 : f32
    %874 = vector.broadcast %cst_297 : f32 to vector<16x1xf32>
    %875 = arith.divf %873, %874 : vector<16x1xf32>
    %876 = vector.broadcast %875 : vector<16x1xf32> to vector<16x32xf32>
    %877 = arith.subf %871, %876 : vector<16x32xf32>
    %878 = arith.mulf %877, %877 : vector<16x32xf32>
    %cst_298 = arith.constant dense<0.000000e+00> : vector<16xf32>
    %879 = vector.multi_reduction <add>, %878, %cst_298 [1] : vector<16x32xf32> to vector<16xf32>
    %880 = vector.shape_cast %879 : vector<16xf32> to vector<16x1xf32>
    %cst_299 = arith.constant 3.200000e+01 : f32
    %881 = vector.broadcast %cst_299 : f32 to vector<16x1xf32>
    %882 = arith.divf %880, %881 : vector<16x1xf32>
    %883 = vector.broadcast %875 : vector<16x1xf32> to vector<16x32xf32>
    %884 = arith.subf %871, %883 : vector<16x32xf32>
    %cst_300 = arith.constant 9.99999974E-6 : f32
    %885 = vector.broadcast %cst_300 : f32 to vector<16x1xf32>
    %886 = arith.addf %882, %885 : vector<16x1xf32>
    %887 = math.rsqrt %886 : vector<16x1xf32>
    %888 = vector.broadcast %887 : vector<16x1xf32> to vector<16x32xf32>
    %889 = arith.mulf %884, %888 : vector<16x32xf32>
    %890 = vector.broadcast %473 : vector<1x32xf32> to vector<16x32xf32>
    %891 = arith.mulf %889, %890 : vector<16x32xf32>
    %892 = vector.broadcast %474 : vector<1x32xf32> to vector<16x32xf32>
    %893 = arith.addf %891, %892 : vector<16x32xf32>
    %c0_301 = arith.constant 0 : index
    %c0_302 = arith.constant 0 : index
    %894 = vector.load %arg46[%c0_301, %c0_302] : memref<16x32xf32, #tpu.memory_space<vmem>>, vector<16x32xf32>
    tpu.vector_store %arg46[%c0_301, %c0_302], %893 {strides = array<i32>} : memref<16x32xf32, #tpu.memory_space<vmem>>, vector<16x32xf32>,
    return
  }
  func.func @transform_0(%arg0: i32) -> (i32, i32) {
    %c0_i32 = arith.constant 0 : i32
    %c0_i32_0 = arith.constant 0 : i32
    %c0_i32_1 = arith.constant 0 : i32
    return %c0_i32, %c0_i32_0 : i32, i32
  }
  func.func @transform_1(%arg0: i32) -> (i32, i32) {
    %c0_i32 = arith.constant 0 : i32
    %c0_i32_0 = arith.constant 0 : i32
    %c0_i32_1 = arith.constant 0 : i32
    return %c0_i32, %c0_i32_0 : i32, i32
  }
  func.func @transform_2(%arg0: i32) -> (i32, i32) {
    %c0_i32 = arith.constant 0 : i32
    %c0_i32_0 = arith.constant 0 : i32
    %c0_i32_1 = arith.constant 0 : i32
    return %c0_i32, %c0_i32_0 : i32, i32
  }
  func.func @transform_3(%arg0: i32) -> (i32, i32, i32) {
    %c0_i32 = arith.constant 0 : i32
    %c0_i32_0 = arith.constant 0 : i32
    %c0_i32_1 = arith.constant 0 : i32
    %c0_i32_2 = arith.constant 0 : i32
    return %c0_i32, %c0_i32_0, %c0_i32_1 : i32, i32, i32
  }
  func.func @transform_4(%arg0: i32) -> (i32, i32, i32) {
    %c0_i32 = arith.constant 0 : i32
    %c0_i32_0 = arith.constant 0 : i32
    %c0_i32_1 = arith.constant 0 : i32
    %c0_i32_2 = arith.constant 0 : i32
    return %c0_i32, %c0_i32_0, %c0_i32_1 : i32, i32, i32
  }
  func.func @transform_5(%arg0: i32) -> (i32, i32) {
    %c0_i32 = arith.constant 0 : i32
    %c0_i32_0 = arith.constant 0 : i32
    %c0_i32_1 = arith.constant 0 : i32
    return %c0_i32, %c0_i32_0 : i32, i32
  }
  func.func @transform_6(%arg0: i32) -> (i32, i32) {
    %c0_i32 = arith.constant 0 : i32
    %c0_i32_0 = arith.constant 0 : i32
    %c0_i32_1 = arith.constant 0 : i32
    return %c0_i32, %c0_i32_0 : i32, i32
  }
  func.func @transform_7(%arg0: i32) -> (i32, i32) {
    %c0_i32 = arith.constant 0 : i32
    %c0_i32_0 = arith.constant 0 : i32
    %c0_i32_1 = arith.constant 0 : i32
    return %c0_i32, %c0_i32_0 : i32, i32
  }
  func.func @transform_8(%arg0: i32) -> (i32, i32) {
    %c0_i32 = arith.constant 0 : i32
    %c0_i32_0 = arith.constant 0 : i32
    %c0_i32_1 = arith.constant 0 : i32
    return %c0_i32, %c0_i32_0 : i32, i32
  }
  func.func @transform_9(%arg0: i32) -> (i32, i32) {
    %c0_i32 = arith.constant 0 : i32
    %c0_i32_0 = arith.constant 0 : i32
    %c0_i32_1 = arith.constant 0 : i32
    return %c0_i32, %c0_i32_0 : i32, i32
  }
  func.func @transform_10(%arg0: i32) -> (i32, i32) {
    %c0_i32 = arith.constant 0 : i32
    %c0_i32_0 = arith.constant 0 : i32
    %c0_i32_1 = arith.constant 0 : i32
    return %c0_i32, %c0_i32_0 : i32, i32
  }
  func.func @transform_11(%arg0: i32) -> (i32, i32) {
    %c0_i32 = arith.constant 0 : i32
    %c0_i32_0 = arith.constant 0 : i32
    %c0_i32_1 = arith.constant 0 : i32
    return %c0_i32, %c0_i32_0 : i32, i32
  }
  func.func @transform_12(%arg0: i32) -> (i32, i32) {
    %c0_i32 = arith.constant 0 : i32
    %c0_i32_0 = arith.constant 0 : i32
    %c0_i32_1 = arith.constant 0 : i32
    return %c0_i32, %c0_i32_0 : i32, i32
  }
  func.func @transform_13(%arg0: i32) -> (i32, i32) {
    %c0_i32 = arith.constant 0 : i32
    %c0_i32_0 = arith.constant 0 : i32
    %c0_i32_1 = arith.constant 0 : i32
    return %c0_i32, %c0_i32_0 : i32, i32
  }
  func.func @transform_14(%arg0: i32) -> (i32, i32) {
    %c0_i32 = arith.constant 0 : i32
    %c0_i32_0 = arith.constant 0 : i32
    %c0_i32_1 = arith.constant 0 : i32
    return %c0_i32, %c0_i32_0 : i32, i32
  }
  func.func @transform_15(%arg0: i32) -> (i32, i32) {
    %c0_i32 = arith.constant 0 : i32
    %c0_i32_0 = arith.constant 0 : i32
    %c0_i32_1 = arith.constant 0 : i32
    return %c0_i32, %c0_i32_0 : i32, i32
  }
  func.func @transform_16(%arg0: i32) -> (i32, i32) {
    %c0_i32 = arith.constant 0 : i32
    %c0_i32_0 = arith.constant 0 : i32
    %c0_i32_1 = arith.constant 0 : i32
    return %c0_i32, %c0_i32_0 : i32, i32
  }
  func.func @transform_17(%arg0: i32) -> (i32, i32) {
    %c0_i32 = arith.constant 0 : i32
    %c0_i32_0 = arith.constant 0 : i32
    %c0_i32_1 = arith.constant 0 : i32
    return %c0_i32, %c0_i32_0 : i32, i32
  }
  func.func @transform_18(%arg0: i32) -> (i32, i32) {
    %c0_i32 = arith.constant 0 : i32
    %c0_i32_0 = arith.constant 0 : i32
    %c0_i32_1 = arith.constant 0 : i32
    return %c0_i32, %c0_i32_0 : i32, i32
  }
  func.func @transform_19(%arg0: i32) -> (i32, i32) {
    %c0_i32 = arith.constant 0 : i32
    %c0_i32_0 = arith.constant 0 : i32
    %c0_i32_1 = arith.constant 0 : i32
    return %c0_i32, %c0_i32_0 : i32, i32
  }
  func.func @transform_20(%arg0: i32) -> (i32, i32) {
    %c0_i32 = arith.constant 0 : i32
    %c0_i32_0 = arith.constant 0 : i32
    %c0_i32_1 = arith.constant 0 : i32
    return %c0_i32, %c0_i32_0 : i32, i32
  }
  func.func @transform_21(%arg0: i32) -> (i32, i32) {
    %c0_i32 = arith.constant 0 : i32
    %c0_i32_0 = arith.constant 0 : i32
    %c0_i32_1 = arith.constant 0 : i32
    return %c0_i32, %c0_i32_0 : i32, i32
  }
  func.func @transform_22(%arg0: i32) -> (i32, i32) {
    %c0_i32 = arith.constant 0 : i32
    %c0_i32_0 = arith.constant 0 : i32
    %c0_i32_1 = arith.constant 0 : i32
    return %c0_i32, %c0_i32_0 : i32, i32
  }
  func.func @transform_23(%arg0: i32) -> (i32, i32) {
    %c0_i32 = arith.constant 0 : i32
    %c0_i32_0 = arith.constant 0 : i32
    %c0_i32_1 = arith.constant 0 : i32
    return %c0_i32, %c0_i32_0 : i32, i32
  }
  func.func @transform_24(%arg0: i32) -> (i32, i32) {
    %c0_i32 = arith.constant 0 : i32
    %c0_i32_0 = arith.constant 0 : i32
    %c0_i32_1 = arith.constant 0 : i32
    return %c0_i32, %c0_i32_0 : i32, i32
  }
  func.func @transform_25(%arg0: i32) -> (i32, i32) {
    %c0_i32 = arith.constant 0 : i32
    %c0_i32_0 = arith.constant 0 : i32
    %c0_i32_1 = arith.constant 0 : i32
    return %c0_i32, %c0_i32_0 : i32, i32
  }
  func.func @transform_26(%arg0: i32) -> (i32, i32) {
    %c0_i32 = arith.constant 0 : i32
    %c0_i32_0 = arith.constant 0 : i32
    %c0_i32_1 = arith.constant 0 : i32
    return %c0_i32, %c0_i32_0 : i32, i32
  }
  func.func @transform_27(%arg0: i32) -> (i32, i32) {
    %c0_i32 = arith.constant 0 : i32
    %c0_i32_0 = arith.constant 0 : i32
    %c0_i32_1 = arith.constant 0 : i32
    return %c0_i32, %c0_i32_0 : i32, i32
  }
  func.func @transform_28(%arg0: i32) -> (i32, i32) {
    %c0_i32 = arith.constant 0 : i32
    %c0_i32_0 = arith.constant 0 : i32
    %c0_i32_1 = arith.constant 0 : i32
    return %c0_i32, %c0_i32_0 : i32, i32
  }
  func.func @transform_29(%arg0: i32) -> (i32, i32) {
    %c0_i32 = arith.constant 0 : i32
    %c0_i32_0 = arith.constant 0 : i32
    %c0_i32_1 = arith.constant 0 : i32
    return %c0_i32, %c0_i32_0 : i32, i32
  }
  func.func @transform_30(%arg0: i32) -> (i32, i32) {
    %c0_i32 = arith.constant 0 : i32
    %c0_i32_0 = arith.constant 0 : i32
    %c0_i32_1 = arith.constant 0 : i32
    return %c0_i32, %c0_i32_0 : i32, i32
  }
  func.func @transform_31(%arg0: i32) -> (i32, i32) {
    %c0_i32 = arith.constant 0 : i32
    %c0_i32_0 = arith.constant 0 : i32
    %c0_i32_1 = arith.constant 0 : i32
    return %c0_i32, %c0_i32_0 : i32, i32
  }
  func.func @transform_32(%arg0: i32) -> (i32, i32) {
    %c0_i32 = arith.constant 0 : i32
    %c0_i32_0 = arith.constant 0 : i32
    %c0_i32_1 = arith.constant 0 : i32
    return %c0_i32, %c0_i32_0 : i32, i32
  }
  func.func @transform_33(%arg0: i32) -> (i32, i32) {
    %c0_i32 = arith.constant 0 : i32
    %c0_i32_0 = arith.constant 0 : i32
    %c0_i32_1 = arith.constant 0 : i32
    return %c0_i32, %c0_i32_0 : i32, i32
  }
  func.func @transform_34(%arg0: i32) -> (i32, i32) {
    %c0_i32 = arith.constant 0 : i32
    %c0_i32_0 = arith.constant 0 : i32
    %c0_i32_1 = arith.constant 0 : i32
    return %c0_i32, %c0_i32_0 : i32, i32
  }
  func.func @transform_35(%arg0: i32) -> (i32, i32) {
    %c0_i32 = arith.constant 0 : i32
    %c0_i32_0 = arith.constant 0 : i32
    %c0_i32_1 = arith.constant 0 : i32
    return %c0_i32, %c0_i32_0 : i32, i32
  }
  func.func @transform_36(%arg0: i32) -> (i32, i32) {
    %c0_i32 = arith.constant 0 : i32
    %c0_i32_0 = arith.constant 0 : i32
    %c0_i32_1 = arith.constant 0 : i32
    return %c0_i32, %c0_i32_0 : i32, i32
  }
  func.func @transform_37(%arg0: i32) -> (i32, i32) {
    %c0_i32 = arith.constant 0 : i32
    %c0_i32_0 = arith.constant 0 : i32
    %c0_i32_1 = arith.constant 0 : i32
    return %c0_i32, %c0_i32_0 : i32, i32
  }
  func.func @transform_38(%arg0: i32) -> (i32, i32) {
    %c0_i32 = arith.constant 0 : i32
    %c0_i32_0 = arith.constant 0 : i32
    %c0_i32_1 = arith.constant 0 : i32
    return %c0_i32, %c0_i32_0 : i32, i32
  }
  func.func @transform_39(%arg0: i32) -> (i32, i32) {
    %c0_i32 = arith.constant 0 : i32
    %c0_i32_0 = arith.constant 0 : i32
    %c0_i32_1 = arith.constant 0 : i32
    return %c0_i32, %c0_i32_0 : i32, i32
  }
  func.func @transform_40(%arg0: i32) -> (i32, i32) {
    %c0_i32 = arith.constant 0 : i32
    %c0_i32_0 = arith.constant 0 : i32
    %c0_i32_1 = arith.constant 0 : i32
    return %c0_i32, %c0_i32_0 : i32, i32
  }
  func.func @transform_41(%arg0: i32) -> (i32, i32) {
    %c0_i32 = arith.constant 0 : i32
    %c0_i32_0 = arith.constant 0 : i32
    %c0_i32_1 = arith.constant 0 : i32
    return %c0_i32, %c0_i32_0 : i32, i32
  }
  func.func @transform_42(%arg0: i32) -> (i32, i32) {
    %c0_i32 = arith.constant 0 : i32
    %c0_i32_0 = arith.constant 0 : i32
    %c0_i32_1 = arith.constant 0 : i32
    return %c0_i32, %c0_i32_0 : i32, i32
  }
  func.func @transform_43(%arg0: i32) -> (i32, i32) {
    %c0_i32 = arith.constant 0 : i32
    %c0_i32_0 = arith.constant 0 : i32
    %c0_i32_1 = arith.constant 0 : i32
    return %c0_i32, %c0_i32_0 : i32, i32
  }
  func.func @transform_44(%arg0: i32) -> (i32, i32) {
    %c0_i32 = arith.constant 0 : i32
    %c0_i32_0 = arith.constant 0 : i32
    %c0_i32_1 = arith.constant 0 : i32
    return %c0_i32, %c0_i32_0 : i32, i32
  }
  func.func @transform_45(%arg0: i32) -> (i32, i32) {
    %c0_i32 = arith.constant 0 : i32
    %c0_i32_0 = arith.constant 0 : i32
    %c0_i32_1 = arith.constant 0 : i32
    return %c0_i32, %c0_i32_0 : i32, i32
  }
}

</mosaic_0001>

<llo_original>
// kernel: tpu_custom_call.1
$region0: #{tpu_custom_call.1}
  #allocation0 [shape = 'u32[]', space=smem, size = 0x4, offset = 0x4, fixed_abs, tag = 'smem constant byte address 0x4 - core index']
  #allocation1 [shape = 'u32[144,128]{1,0:T(1,128)}', space=vmem, size = 0x12000, scoped, tag = 'internal scratch']
  %s0 = inlined_call_operand.smem [shape: u32[46], index: -1, kind: input, shape index: {}]
  %s1 = sld [smem:[%s0]]
  %s2 = scalar_lea.smem %s0, 1
  %s3 = sld [smem:[%s2]]
  %s4 = scalar_lea.smem %s0, 2
  %s5 = sld [smem:[%s4]]
  %s6 = scalar_lea.smem %s0, 3
  %s7 = sld [smem:[%s6]]
  %s8 = scalar_lea.smem %s0, 4
  %s9 = sld [smem:[%s8]]
  %s10 = scalar_lea.smem %s0, 5
  %s11 = sld [smem:[%s10]]
  %s12 = scalar_lea.smem %s0, 6
  %s13 = sld [smem:[%s12]]
  %s14 = scalar_lea.smem %s0, 7
  %s15 = sld [smem:[%s14]]
  %s16 = scalar_lea.smem %s0, 8
  %s17 = sld [smem:[%s16]]
  %s18 = scalar_lea.smem %s0, 9
  %s19 = sld [smem:[%s18]]
  %s20 = scalar_lea.smem %s0, 10
  %s21 = sld [smem:[%s20]]
  %s22 = scalar_lea.smem %s0, 11
  %s23 = sld [smem:[%s22]]
  %s24 = scalar_lea.smem %s0, 12
  %s25 = sld [smem:[%s24]]
  %s26 = scalar_lea.smem %s0, 13
  %s27 = sld [smem:[%s26]]
  %s28 = scalar_lea.smem %s0, 14
  %s29 = sld [smem:[%s28]]
  %s30 = scalar_lea.smem %s0, 15
  %s31 = sld [smem:[%s30]]
  %s32 = scalar_lea.smem %s0, 16
  %s33 = sld [smem:[%s32]]
  %s34 = scalar_lea.smem %s0, 17
  %s35 = sld [smem:[%s34]]
  %s36 = scalar_lea.smem %s0, 18
  %s37 = sld [smem:[%s36]]
  %s38 = scalar_lea.smem %s0, 19
  %s39 = sld [smem:[%s38]]
  %s40 = scalar_lea.smem %s0, 20
  %s41 = sld [smem:[%s40]]
  %s42 = scalar_lea.smem %s0, 21
  %s43 = sld [smem:[%s42]]
  %s44 = scalar_lea.smem %s0, 22
  %s45 = sld [smem:[%s44]]
  %s46 = scalar_lea.smem %s0, 23
  %s47 = sld [smem:[%s46]]
  %s48 = scalar_lea.smem %s0, 24
  %s49 = sld [smem:[%s48]]
  %s50 = scalar_lea.smem %s0, 25
  %s51 = sld [smem:[%s50]]
  %s52 = scalar_lea.smem %s0, 26
  %s53 = sld [smem:[%s52]]
  %s54 = scalar_lea.smem %s0, 27
  %s55 = sld [smem:[%s54]]
  %s56 = scalar_lea.smem %s0, 28
  %s57 = sld [smem:[%s56]]
  %s58 = scalar_lea.smem %s0, 29
  %s59 = sld [smem:[%s58]]
  %s60 = scalar_lea.smem %s0, 30
  %s61 = sld [smem:[%s60]]
  %s62 = scalar_lea.smem %s0, 31
  %s63 = sld [smem:[%s62]]
  %s64 = scalar_lea.smem %s0, 32
  %s65 = sld [smem:[%s64]]
  %s66 = scalar_lea.smem %s0, 33
  %s67 = sld [smem:[%s66]]
  %s68 = scalar_lea.smem %s0, 34
  %s69 = sld [smem:[%s68]]
  %s70 = scalar_lea.smem %s0, 35
  %s71 = sld [smem:[%s70]]
  %s72 = scalar_lea.smem %s0, 36
  %s73 = sld [smem:[%s72]]
  %s74 = scalar_lea.smem %s0, 37
  %s75 = sld [smem:[%s74]]
  %s76 = scalar_lea.smem %s0, 38
  %s77 = sld [smem:[%s76]]
  %s78 = scalar_lea.smem %s0, 39
  %s79 = sld [smem:[%s78]]
  %s80 = scalar_lea.smem %s0, 40
  %s81 = sld [smem:[%s80]]
  %s82 = scalar_lea.smem %s0, 41
  %s83 = sld [smem:[%s82]]
  %s84 = scalar_lea.smem %s0, 42
  %s85 = sld [smem:[%s84]]
  %s86 = scalar_lea.smem %s0, 43
  %s87 = sld [smem:[%s86]]
  %s88 = scalar_lea.smem %s0, 44
  %s89 = sld [smem:[%s88]]
  %s90 = scalar_lea.smem %s0, 45
  %s91 = sld [smem:[%s90]]
  %s92 = sld [smem:[#allocation0]]
  $region302: #{tpu_custom_call.1} parent=0
    _
  %s94 = ssub.s32 1, %s92
  %s95 = scalar_select 0, %s94, %s92
  $region1: #{tpu_custom_call.1} parent=0
    #allocation2 [shape = 'u8[8192]{0}', space=vmem, size = 0x2000, scoped, tag = 'input window, operand 0, single buffered']
    #allocation3 [shape = 's32[1]{0}', space=sflag, size = 0x4, scoped, tag = 'scoped memory for tpu_custom_call.1']
    #allocation4 [shape = 's32[1]{0}', space=sflag, size = 0x4, scoped, tag = 'scoped memory for tpu_custom_call.1']
    #allocation5 [shape = 'u8[8192]{0}', space=vmem, size = 0x2000, scoped, tag = 'input window, operand 1, single buffered']
    #allocation6 [shape = 's32[1]{0}', space=sflag, size = 0x4, scoped, tag = 'scoped memory for tpu_custom_call.1']
    #allocation7 [shape = 'u8[8192]{0}', space=vmem, size = 0x2000, scoped, tag = 'input window, operand 2, single buffered']
    #allocation8 [shape = 'u8[8192]{0}', space=vmem, size = 0x2000, scoped, tag = 'input window, operand 3, single buffered']
    #allocation9 [shape = 's32[1]{0}', space=sflag, size = 0x4, scoped, tag = 'scoped memory for tpu_custom_call.1']
    #allocation10 [shape = 'u8[1024]{0}', space=vmem, size = 0x400, scoped, tag = 'input window, operand 4, single buffered']
    #allocation11 [shape = 'u8[512]{0}', space=vmem, size = 0x400, scoped, tag = 'input window, operand 6, single buffered']
    #allocation12 [shape = 's32[1]{0}', space=sflag, size = 0x4, scoped, tag = 'scoped memory for tpu_custom_call.1']
    #allocation13 [shape = 'u8[512]{0}', space=vmem, size = 0x400, scoped, tag = 'input window, operand 8, single buffered']
    #allocation14 [shape = 'u8[512]{0}', space=vmem, size = 0x400, scoped, tag = 'input window, operand 10, single buffered']
    #allocation15 [shape = 's32[1]{0}', space=sflag, size = 0x4, scoped, tag = 'scoped memory for tpu_custom_call.1']
    #allocation16 [shape = 'u8[512]{0}', space=vmem, size = 0x400, scoped, tag = 'input window, operand 12, single buffered']
    #allocation17 [shape = 'u8[512]{0}', space=vmem, size = 0x400, scoped, tag = 'input window, operand 14, single buffered']
    #allocation18 [shape = 's32[1]{0}', space=sflag, size = 0x4, scoped, tag = 'scoped memory for tpu_custom_call.1']
    #allocation19 [shape = 'u8[512]{0}', space=vmem, size = 0x400, scoped, tag = 'input window, operand 16, single buffered']
    #allocation20 [shape = 'u8[512]{0}', space=vmem, size = 0x400, scoped, tag = 'input window, operand 18, single buffered']
    #allocation21 [shape = 's32[1]{0}', space=sflag, size = 0x4, scoped, tag = 'scoped memory for tpu_custom_call.1']
    #allocation22 [shape = 'u8[512]{0}', space=vmem, size = 0x400, scoped, tag = 'input window, operand 19, single buffered']
    #allocation23 [shape = 'u8[512]{0}', space=vmem, size = 0x400, scoped, tag = 'input window, operand 21, single buffered']
    #allocation24 [shape = 's32[1]{0}', space=sflag, size = 0x4, scoped, tag = 'scoped memory for tpu_custom_call.1']
    #allocation25 [shape = 'u8[512]{0}', space=vmem, size = 0x400, scoped, tag = 'input window, operand 22, single buffered']
    #allocation26 [shape = 'u8[512]{0}', space=vmem, size = 0x400, scoped, tag = 'input window, operand 23, single buffered']
    #allocation27 [shape = 's32[1]{0}', space=sflag, size = 0x4, scoped, tag = 'scoped memory for tpu_custom_call.1']
    #allocation28 [shape = 'u8[512]{0}', space=vmem, size = 0x400, scoped, tag = 'input window, operand 24, single buffered']
    #allocation29 [shape = 'u8[512]{0}', space=vmem, size = 0x400, scoped, tag = 'input window, operand 26, single buffered']
    #allocation30 [shape = 's32[1]{0}', space=sflag, size = 0x4, scoped, tag = 'scoped memory for tpu_custom_call.1']
    #allocation31 [shape = 'u8[16384]{0}', space=vmem, size = 0x4000, scoped, tag = 'input window, operand 27, single buffered']
    #allocation32 [shape = 'u8[512]{0}', space=vmem, size = 0x400, scoped, tag = 'input window, operand 28, single buffered']
    #allocation33 [shape = 's32[1]{0}', space=sflag, size = 0x4, scoped, tag = 'scoped memory for tpu_custom_call.1']
    #allocation34 [shape = 'u8[16384]{0}', space=vmem, size = 0x4000, scoped, tag = 'input window, operand 29, single buffered']
    #allocation35 [shape = 'u8[512]{0}', space=vmem, size = 0x400, scoped, tag = 'input window, operand 30, single buffered']
    #allocation36 [shape = 's32[1]{0}', space=sflag, size = 0x4, scoped, tag = 'scoped memory for tpu_custom_call.1']
    #allocation37 [shape = 'u8[16384]{0}', space=vmem, size = 0x4000, scoped, tag = 'input window, operand 31, single buffered']
    #allocation38 [shape = 'u8[512]{0}', space=vmem, size = 0x400, scoped, tag = 'input window, operand 32, single buffered']
    #allocation39 [shape = 's32[1]{0}', space=sflag, size = 0x4, scoped, tag = 'scoped memory for tpu_custom_call.1']
    #allocation40 [shape = 'u8[16384]{0}', space=vmem, size = 0x4000, scoped, tag = 'input window, operand 33, single buffered']
    #allocation41 [shape = 'u8[512]{0}', space=vmem, size = 0x400, scoped, tag = 'input window, operand 34, single buffered']
    #allocation42 [shape = 's32[1]{0}', space=sflag, size = 0x4, scoped, tag = 'scoped memory for tpu_custom_call.1']
    #allocation43 [shape = 'u8[16384]{0}', space=vmem, size = 0x4000, scoped, tag = 'input window, operand 35, single buffered']
    #allocation44 [shape = 'u8[512]{0}', space=vmem, size = 0x400, scoped, tag = 'input window, operand 36, single buffered']
    #allocation45 [shape = 's32[1]{0}', space=sflag, size = 0x4, scoped, tag = 'scoped memory for tpu_custom_call.1']
    #allocation46 [shape = 'u8[8192]{0}', space=vmem, size = 0x2000, scoped, tag = 'output window, operand 0, single buffered']
    %96 = vsyncpa [#allocation3], 0
    %97 = vsyncpa [#allocation6], 0
    %98 = vsyncpa [#allocation9], 0
    %99 = vsyncpa [#allocation12], 0
    %100 = vsyncpa [#allocation15], 0
    %101 = vsyncpa [#allocation18], 0
    %102 = vsyncpa [#allocation21], 0
    %103 = vsyncpa [#allocation24], 0
    %104 = vsyncpa [#allocation27], 0
    %105 = vsyncpa [#allocation30], 0
    %106 = vsyncpa [#allocation33], 0
    %107 = vsyncpa [#allocation36], 0
    %108 = vsyncpa [#allocation39], 0
    %109 = vsyncpa [#allocation42], 0
    %110 = vsyncpa [#allocation45], 0
    %111 = vsyncpa [#allocation4], 0
    // Predicated region
    $region2: #{tpu_custom_call.1} parent=1 // pred_check
      _
    $region3: #{tpu_custom_call.1} parent=1 // pred_check_branch
      %113 = sbr.rel (0) target = $region5
    $region4: #{tpu_custom_call.1} parent=1 // pred_region
      %s115 = ssub.s32 256, 256
      %116 = vsyncadd [#allocation3], %s115
      %s117 = sshll.u32 [#allocation2], 4
      %s118 = int_to_ptr.vmem [resolvable:$true] %s117
      %123 = dma.hbm_to_vmem [thread:$0]  %s1, 256, %s118, [#allocation3], 128, 128, 8
    $region5: #{tpu_custom_call.1} parent=1 // pred_fallthru
      _
    // Predicated region
    $region6: #{tpu_custom_call.1} parent=1 // pred_check
      _
    $region7: #{tpu_custom_call.1} parent=1 // pred_check_branch
      %125 = sbr.rel (0) target = $region9
    $region8: #{tpu_custom_call.1} parent=1 // pred_region
      %s127 = ssub.s32 256, 256
      %128 = vsyncadd [#allocation6], %s127
      %s129 = sshll.u32 [#allocation5], 4
      %s130 = int_to_ptr.vmem [resolvable:$true] %s129
      %135 = dma.hbm_to_vmem [thread:$0]  %s3, 256, %s130, [#allocation6], 128, 128, 8
    $region9: #{tpu_custom_call.1} parent=1 // pred_fallthru
      _
    // Predicated region
    $region10: #{tpu_custom_call.1} parent=1 // pred_check
      _
    $region11: #{tpu_custom_call.1} parent=1 // pred_check_branch
      %137 = sbr.rel (0) target = $region13
    $region12: #{tpu_custom_call.1} parent=1 // pred_region
      %s139 = ssub.s32 256, 256
      %140 = vsyncadd [#allocation6], %s139
      %s141 = sshll.u32 [#allocation7], 4
      %s142 = int_to_ptr.vmem [resolvable:$true] %s141
      %147 = dma.hbm_to_vmem [thread:$0]  %s5, 256, %s142, [#allocation6], 128, 128, 8
    $region13: #{tpu_custom_call.1} parent=1 // pred_fallthru
      _
    // Predicated region
    $region14: #{tpu_custom_call.1} parent=1 // pred_check
      _
    $region15: #{tpu_custom_call.1} parent=1 // pred_check_branch
      %149 = sbr.rel (0) target = $region17
    $region16: #{tpu_custom_call.1} parent=1 // pred_region
      %s151 = ssub.s32 256, 256
      %152 = vsyncadd [#allocation9], %s151
      %s153 = sshll.u32 [#allocation8], 4
      %s154 = int_to_ptr.vmem [resolvable:$true] %s153
      %159 = dma.hbm_to_vmem [thread:$0]  %s7, 256, %s154, [#allocation9], 128, 128, 8
    $region17: #{tpu_custom_call.1} parent=1 // pred_fallthru
      _
    // Predicated region
    $region18: #{tpu_custom_call.1} parent=1 // pred_check
      _
    $region19: #{tpu_custom_call.1} parent=1 // pred_check_branch
      %161 = sbr.rel (0) target = $region21
    $region20: #{tpu_custom_call.1} parent=1 // pred_region
      %s163 = ssub.s32 32, 32
      %164 = vsyncadd [#allocation9], %s163
      %s165 = sshll.u32 [#allocation10], 4
      %s166 = int_to_ptr.vmem [resolvable:$true] %s165
      %171 = dma.hbm_to_vmem [thread:$0]  %s9, 32, %s166, [#allocation9], 16, 16, 1
    $region21: #{tpu_custom_call.1} parent=1 // pred_fallthru
      _
    // Predicated region
    $region22: #{tpu_custom_call.1} parent=1 // pred_check
      _
    $region23: #{tpu_custom_call.1} parent=1 // pred_check_branch
      %173 = sbr.rel (0) target = $region25
    $region24: #{tpu_custom_call.1} parent=1 // pred_region
      _
    $region25: #{tpu_custom_call.1} parent=1 // pred_fallthru
      _
    // Predicated region
    $region26: #{tpu_custom_call.1} parent=1 // pred_check
      _
    $region27: #{tpu_custom_call.1} parent=1 // pred_check_branch
      %175 = sbr.rel (0) target = $region29
    $region28: #{tpu_custom_call.1} parent=1 // pred_region
      %s177 = ssub.s32 16, 16
      %178 = vsyncadd [#allocation12], %s177
      %s180 = sshll.u32 [#allocation11], 4
      %s181 = int_to_ptr.vmem [resolvable:$true] %s180
      %183 = dma.hbm_to_vmem [thread:$0]  %s13, 16, %s181, [#allocation12]
    $region29: #{tpu_custom_call.1} parent=1 // pred_fallthru
      _
    // Predicated region
    $region30: #{tpu_custom_call.1} parent=1 // pred_check
      _
    $region31: #{tpu_custom_call.1} parent=1 // pred_check_branch
      %185 = sbr.rel (0) target = $region33
    $region32: #{tpu_custom_call.1} parent=1 // pred_region
      _
    $region33: #{tpu_custom_call.1} parent=1 // pred_fallthru
      _
    // Predicated region
    $region34: #{tpu_custom_call.1} parent=1 // pred_check
      _
    $region35: #{tpu_custom_call.1} parent=1 // pred_check_branch
      %187 = sbr.rel (0) target = $region37
    $region36: #{tpu_custom_call.1} parent=1 // pred_region
      %s189 = ssub.s32 16, 16
      %190 = vsyncadd [#allocation12], %s189
      %s192 = sshll.u32 [#allocation13], 4
      %s193 = int_to_ptr.vmem [resolvable:$true] %s192
      %195 = dma.hbm_to_vmem [thread:$0]  %s17, 16, %s193, [#allocation12]
    $region37: #{tpu_custom_call.1} parent=1 // pred_fallthru
      _
    // Predicated region
    $region38: #{tpu_custom_call.1} parent=1 // pred_check
      _
    $region39: #{tpu_custom_call.1} parent=1 // pred_check_branch
      %197 = sbr.rel (0) target = $region41
    $region40: #{tpu_custom_call.1} parent=1 // pred_region
      _
    $region41: #{tpu_custom_call.1} parent=1 // pred_fallthru
      _
    // Predicated region
    $region42: #{tpu_custom_call.1} parent=1 // pred_check
      _
    $region43: #{tpu_custom_call.1} parent=1 // pred_check_branch
      %199 = sbr.rel (0) target = $region45
    $region44: #{tpu_custom_call.1} parent=1 // pred_region
      %s201 = ssub.s32 16, 16
      %202 = vsyncadd [#allocation15], %s201
      %s204 = sshll.u32 [#allocation14], 4
      %s205 = int_to_ptr.vmem [resolvable:$true] %s204
      %207 = dma.hbm_to_vmem [thread:$0]  %s21, 16, %s205, [#allocation15]
    $region45: #{tpu_custom_call.1} parent=1 // pred_fallthru
      _
    // Predicated region
    $region46: #{tpu_custom_call.1} parent=1 // pred_check
      _
    $region47: #{tpu_custom_call.1} parent=1 // pred_check_branch
      %209 = sbr.rel (0) target = $region49
    $region48: #{tpu_custom_call.1} parent=1 // pred_region
      _
    $region49: #{tpu_custom_call.1} parent=1 // pred_fallthru
      _
    // Predicated region
    $region50: #{tpu_custom_call.1} parent=1 // pred_check
      _
    $region51: #{tpu_custom_call.1} parent=1 // pred_check_branch
      %211 = sbr.rel (0) target = $region53
    $region52: #{tpu_custom_call.1} parent=1 // pred_region
      %s213 = ssub.s32 16, 16
      %214 = vsyncadd [#allocation15], %s213
      %s216 = sshll.u32 [#allocation16], 4
      %s217 = int_to_ptr.vmem [resolvable:$true] %s216
      %219 = dma.hbm_to_vmem [thread:$0]  %s25, 16, %s217, [#allocation15]
    $region53: #{tpu_custom_call.1} parent=1 // pred_fallthru
      _
    // Predicated region
    $region54: #{tpu_custom_call.1} parent=1 // pred_check
      _
    $region55: #{tpu_custom_call.1} parent=1 // pred_check_branch
      %221 = sbr.rel (0) target = $region57
    $region56: #{tpu_custom_call.1} parent=1 // pred_region
      _
    $region57: #{tpu_custom_call.1} parent=1 // pred_fallthru
      _
    // Predicated region
    $region58: #{tpu_custom_call.1} parent=1 // pred_check
      _
    $region59: #{tpu_custom_call.1} parent=1 // pred_check_branch
      %223 = sbr.rel (0) target = $region61
    $region60: #{tpu_custom_call.1} parent=1 // pred_region
      %s225 = ssub.s32 16, 16
      %226 = vsyncadd [#allocation18], %s225
      %s228 = sshll.u32 [#allocation17], 4
      %s229 = int_to_ptr.vmem [resolvable:$true] %s228
      %231 = dma.hbm_to_vmem [thread:$0]  %s29, 16, %s229, [#allocation18]
    $region61: #{tpu_custom_call.1} parent=1 // pred_fallthru
      _
    // Predicated region
    $region62: #{tpu_custom_call.1} parent=1 // pred_check
      _
    $region63: #{tpu_custom_call.1} parent=1 // pred_check_branch
      %233 = sbr.rel (0) target = $region65
    $region64: #{tpu_custom_call.1} parent=1 // pred_region
      _
    $region65: #{tpu_custom_call.1} parent=1 // pred_fallthru
      _
    // Predicated region
    $region66: #{tpu_custom_call.1} parent=1 // pred_check
      _
    $region67: #{tpu_custom_call.1} parent=1 // pred_check_branch
      %235 = sbr.rel (0) target = $region69
    $region68: #{tpu_custom_call.1} parent=1 // pred_region
      %s237 = ssub.s32 16, 16
      %238 = vsyncadd [#allocation18], %s237
      %s240 = sshll.u32 [#allocation19], 4
      %s241 = int_to_ptr.vmem [resolvable:$true] %s240
      %243 = dma.hbm_to_vmem [thread:$0]  %s33, 16, %s241, [#allocation18]
    $region69: #{tpu_custom_call.1} parent=1 // pred_fallthru
      _
    // Predicated region
    $region70: #{tpu_custom_call.1} parent=1 // pred_check
      _
    $region71: #{tpu_custom_call.1} parent=1 // pred_check_branch
      %245 = sbr.rel (0) target = $region73
    $region72: #{tpu_custom_call.1} parent=1 // pred_region
      _
    $region73: #{tpu_custom_call.1} parent=1 // pred_fallthru
      _
    // Predicated region
    $region74: #{tpu_custom_call.1} parent=1 // pred_check
      _
    $region75: #{tpu_custom_call.1} parent=1 // pred_check_branch
      %247 = sbr.rel (0) target = $region77
    $region76: #{tpu_custom_call.1} parent=1 // pred_region
      %s249 = ssub.s32 16, 16
      %250 = vsyncadd [#allocation21], %s249
      %s252 = sshll.u32 [#allocation20], 4
      %s253 = int_to_ptr.vmem [resolvable:$true] %s252
      %255 = dma.hbm_to_vmem [thread:$0]  %s37, 16, %s253, [#allocation21]
    $region77: #{tpu_custom_call.1} parent=1 // pred_fallthru
      _
    // Predicated region
    $region78: #{tpu_custom_call.1} parent=1 // pred_check
      _
    $region79: #{tpu_custom_call.1} parent=1 // pred_check_branch
      %257 = sbr.rel (0) target = $region81
    $region80: #{tpu_custom_call.1} parent=1 // pred_region
      %s259 = ssub.s32 16, 16
      %260 = vsyncadd [#allocation21], %s259
      %s262 = sshll.u32 [#allocation22], 4
      %s263 = int_to_ptr.vmem [resolvable:$true] %s262
      %265 = dma.hbm_to_vmem [thread:$0]  %s39, 16, %s263, [#allocation21]
    $region81: #{tpu_custom_call.1} parent=1 // pred_fallthru
      _
    // Predicated region
    $region82: #{tpu_custom_call.1} parent=1 // pred_check
      _
    $region83: #{tpu_custom_call.1} parent=1 // pred_check_branch
      %267 = sbr.rel (0) target = $region85
    $region84: #{tpu_custom_call.1} parent=1 // pred_region
      _
    $region85: #{tpu_custom_call.1} parent=1 // pred_fallthru
      _
    // Predicated region
    $region86: #{tpu_custom_call.1} parent=1 // pred_check
      _
    $region87: #{tpu_custom_call.1} parent=1 // pred_check_branch
      %269 = sbr.rel (0) target = $region89
    $region88: #{tpu_custom_call.1} parent=1 // pred_region
      %s271 = ssub.s32 16, 16
      %272 = vsyncadd [#allocation24], %s271
      %s274 = sshll.u32 [#allocation23], 4
      %s275 = int_to_ptr.vmem [resolvable:$true] %s274
      %277 = dma.hbm_to_vmem [thread:$0]  %s43, 16, %s275, [#allocation24]
    $region89: #{tpu_custom_call.1} parent=1 // pred_fallthru
      _
    // Predicated region
    $region90: #{tpu_custom_call.1} parent=1 // pred_check
      _
    $region91: #{tpu_custom_call.1} parent=1 // pred_check_branch
      %279 = sbr.rel (0) target = $region93
    $region92: #{tpu_custom_call.1} parent=1 // pred_region
      %s281 = ssub.s32 16, 16
      %282 = vsyncadd [#allocation24], %s281
      %s284 = sshll.u32 [#allocation25], 4
      %s285 = int_to_ptr.vmem [resolvable:$true] %s284
      %287 = dma.hbm_to_vmem [thread:$0]  %s45, 16, %s285, [#allocation24]
    $region93: #{tpu_custom_call.1} parent=1 // pred_fallthru
      _
    // Predicated region
    $region94: #{tpu_custom_call.1} parent=1 // pred_check
      _
    $region95: #{tpu_custom_call.1} parent=1 // pred_check_branch
      %289 = sbr.rel (0) target = $region97
    $region96: #{tpu_custom_call.1} parent=1 // pred_region
      %s291 = ssub.s32 16, 16
      %292 = vsyncadd [#allocation27], %s291
      %s294 = sshll.u32 [#allocation26], 4
      %s295 = int_to_ptr.vmem [resolvable:$true] %s294
      %297 = dma.hbm_to_vmem [thread:$0]  %s47, 16, %s295, [#allocation27]
    $region97: #{tpu_custom_call.1} parent=1 // pred_fallthru
      _
    // Predicated region
    $region98: #{tpu_custom_call.1} parent=1 // pred_check
      _
    $region99: #{tpu_custom_call.1} parent=1 // pred_check_branch
      %299 = sbr.rel (0) target = $region101
    $region100: #{tpu_custom_call.1} parent=1 // pred_region
      %s301 = ssub.s32 16, 16
      %302 = vsyncadd [#allocation27], %s301
      %s304 = sshll.u32 [#allocation28], 4
      %s305 = int_to_ptr.vmem [resolvable:$true] %s304
      %307 = dma.hbm_to_vmem [thread:$0]  %s49, 16, %s305, [#allocation27]
    $region101: #{tpu_custom_call.1} parent=1 // pred_fallthru
      _
    // Predicated region
    $region102: #{tpu_custom_call.1} parent=1 // pred_check
      _
    $region103: #{tpu_custom_call.1} parent=1 // pred_check_branch
      %309 = sbr.rel (0) target = $region105
    $region104: #{tpu_custom_call.1} parent=1 // pred_region
      _
    $region105: #{tpu_custom_call.1} parent=1 // pred_fallthru
      _
    // Predicated region
    $region106: #{tpu_custom_call.1} parent=1 // pred_check
      _
    $region107: #{tpu_custom_call.1} parent=1 // pred_check_branch
      %311 = sbr.rel (0) target = $region109
    $region108: #{tpu_custom_call.1} parent=1 // pred_region
      %s313 = ssub.s32 16, 16
      %314 = vsyncadd [#allocation30], %s313
      %s316 = sshll.u32 [#allocation29], 4
      %s317 = int_to_ptr.vmem [resolvable:$true] %s316
      %319 = dma.hbm_to_vmem [thread:$0]  %s53, 16, %s317, [#allocation30]
    $region109: #{tpu_custom_call.1} parent=1 // pred_fallthru
      _
    // Predicated region
    $region110: #{tpu_custom_call.1} parent=1 // pred_check
      _
    $region111: #{tpu_custom_call.1} parent=1 // pred_check_branch
      %321 = sbr.rel (0) target = $region113
    $region112: #{tpu_custom_call.1} parent=1 // pred_region
      %s323 = ssub.s32 512, 512
      %324 = vsyncadd [#allocation30], %s323
      %s325 = sshll.u32 [#allocation31], 4
      %s326 = int_to_ptr.vmem [resolvable:$true] %s325
      %331 = dma.hbm_to_vmem [thread:$0]  %s55, 512, %s326, [#allocation30], 128, 128, 8
    $region113: #{tpu_custom_call.1} parent=1 // pred_fallthru
      _
    // Predicated region
    $region114: #{tpu_custom_call.1} parent=1 // pred_check
      _
    $region115: #{tpu_custom_call.1} parent=1 // pred_check_branch
      %333 = sbr.rel (0) target = $region117
    $region116: #{tpu_custom_call.1} parent=1 // pred_region
      %s335 = ssub.s32 16, 16
      %336 = vsyncadd [#allocation33], %s335
      %s338 = sshll.u32 [#allocation32], 4
      %s339 = int_to_ptr.vmem [resolvable:$true] %s338
      %341 = dma.hbm_to_vmem [thread:$0]  %s57, 16, %s339, [#allocation33]
    $region117: #{tpu_custom_call.1} parent=1 // pred_fallthru
      _
    // Predicated region
    $region118: #{tpu_custom_call.1} parent=1 // pred_check
      _
    $region119: #{tpu_custom_call.1} parent=1 // pred_check_branch
      %343 = sbr.rel (0) target = $region121
    $region120: #{tpu_custom_call.1} parent=1 // pred_region
      %s345 = ssub.s32 512, 512
      %346 = vsyncadd [#allocation33], %s345
      %s347 = sshll.u32 [#allocation34], 4
      %s348 = int_to_ptr.vmem [resolvable:$true] %s347
      %353 = dma.hbm_to_vmem [thread:$0]  %s59, 512, %s348, [#allocation33], 128, 128, 8
    $region121: #{tpu_custom_call.1} parent=1 // pred_fallthru
      _
    // Predicated region
    $region122: #{tpu_custom_call.1} parent=1 // pred_check
      _
    $region123: #{tpu_custom_call.1} parent=1 // pred_check_branch
      %355 = sbr.rel (0) target = $region125
    $region124: #{tpu_custom_call.1} parent=1 // pred_region
      %s357 = ssub.s32 16, 16
      %358 = vsyncadd [#allocation36], %s357
      %s360 = sshll.u32 [#allocation35], 4
      %s361 = int_to_ptr.vmem [resolvable:$true] %s360
      %363 = dma.hbm_to_vmem [thread:$0]  %s61, 16, %s361, [#allocation36]
    $region125: #{tpu_custom_call.1} parent=1 // pred_fallthru
      _
    // Predicated region
    $region126: #{tpu_custom_call.1} parent=1 // pred_check
      _
    $region127: #{tpu_custom_call.1} parent=1 // pred_check_branch
      %365 = sbr.rel (0) target = $region129
    $region128: #{tpu_custom_call.1} parent=1 // pred_region
      %s367 = ssub.s32 512, 512
      %368 = vsyncadd [#allocation36], %s367
      %s369 = sshll.u32 [#allocation37], 4
      %s370 = int_to_ptr.vmem [resolvable:$true] %s369
      %375 = dma.hbm_to_vmem [thread:$0]  %s63, 512, %s370, [#allocation36], 128, 128, 8
    $region129: #{tpu_custom_call.1} parent=1 // pred_fallthru
      _
    // Predicated region
    $region130: #{tpu_custom_call.1} parent=1 // pred_check
      _
    $region131: #{tpu_custom_call.1} parent=1 // pred_check_branch
      %377 = sbr.rel (0) target = $region133
    $region132: #{tpu_custom_call.1} parent=1 // pred_region
      %s379 = ssub.s32 16, 16
      %380 = vsyncadd [#allocation39], %s379
      %s382 = sshll.u32 [#allocation38], 4
      %s383 = int_to_ptr.vmem [resolvable:$true] %s382
      %385 = dma.hbm_to_vmem [thread:$0]  %s65, 16, %s383, [#allocation39]
    $region133: #{tpu_custom_call.1} parent=1 // pred_fallthru
      _
    // Predicated region
    $region134: #{tpu_custom_call.1} parent=1 // pred_check
      _
    $region135: #{tpu_custom_call.1} parent=1 // pred_check_branch
      %387 = sbr.rel (0) target = $region137
    $region136: #{tpu_custom_call.1} parent=1 // pred_region
      %s389 = ssub.s32 512, 512
      %390 = vsyncadd [#allocation39], %s389
      %s391 = sshll.u32 [#allocation40], 4
      %s392 = int_to_ptr.vmem [resolvable:$true] %s391
      %397 = dma.hbm_to_vmem [thread:$0]  %s67, 512, %s392, [#allocation39], 128, 128, 8
    $region137: #{tpu_custom_call.1} parent=1 // pred_fallthru
      _
    // Predicated region
    $region138: #{tpu_custom_call.1} parent=1 // pred_check
      _
    $region139: #{tpu_custom_call.1} parent=1 // pred_check_branch
      %399 = sbr.rel (0) target = $region141
    $region140: #{tpu_custom_call.1} parent=1 // pred_region
      %s401 = ssub.s32 16, 16
      %402 = vsyncadd [#allocation42], %s401
      %s404 = sshll.u32 [#allocation41], 4
      %s405 = int_to_ptr.vmem [resolvable:$true] %s404
      %407 = dma.hbm_to_vmem [thread:$0]  %s69, 16, %s405, [#allocation42]
    $region141: #{tpu_custom_call.1} parent=1 // pred_fallthru
      _
    // Predicated region
    $region142: #{tpu_custom_call.1} parent=1 // pred_check
      _
    $region143: #{tpu_custom_call.1} parent=1 // pred_check_branch
      %409 = sbr.rel (0) target = $region145
    $region144: #{tpu_custom_call.1} parent=1 // pred_region
      %s411 = ssub.s32 512, 512
      %412 = vsyncadd [#allocation42], %s411
      %s413 = sshll.u32 [#allocation43], 4
      %s414 = int_to_ptr.vmem [resolvable:$true] %s413
      %419 = dma.hbm_to_vmem [thread:$0]  %s71, 512, %s414, [#allocation42], 128, 128, 8
    $region145: #{tpu_custom_call.1} parent=1 // pred_fallthru
      _
    // Predicated region
    $region146: #{tpu_custom_call.1} parent=1 // pred_check
      _
    $region147: #{tpu_custom_call.1} parent=1 // pred_check_branch
      %421 = sbr.rel (0) target = $region149
    $region148: #{tpu_custom_call.1} parent=1 // pred_region
      %s423 = ssub.s32 16, 16
      %424 = vsyncadd [#allocation45], %s423
      %s426 = sshll.u32 [#allocation44], 4
      %s427 = int_to_ptr.vmem [resolvable:$true] %s426
      %429 = dma.hbm_to_vmem [thread:$0]  %s73, 16, %s427, [#allocation45]
    $region149: #{tpu_custom_call.1} parent=1 // pred_fallthru
      _
    // Predicated region
    $region150: #{tpu_custom_call.1} parent=1 // pred_check
      _
    $region151: #{tpu_custom_call.1} parent=1 // pred_check_branch
      %431 = sbr.rel (0) target = $region153
    $region152: #{tpu_custom_call.1} parent=1 // pred_region
      _
    $region153: #{tpu_custom_call.1} parent=1 // pred_fallthru
      _
    // Predicated region
    $region154: #{tpu_custom_call.1} parent=1 // pred_check
      _
    $region155: #{tpu_custom_call.1} parent=1 // pred_check_branch
      %433 = sbr.rel (0) target = $region157
    $region156: #{tpu_custom_call.1} parent=1 // pred_region
      _
    $region157: #{tpu_custom_call.1} parent=1 // pred_fallthru
      _
    // Predicated region
    $region158: #{tpu_custom_call.1} parent=1 // pred_check
      _
    $region159: #{tpu_custom_call.1} parent=1 // pred_check_branch
      %435 = sbr.rel (0) target = $region161
    $region160: #{tpu_custom_call.1} parent=1 // pred_region
      _
    $region161: #{tpu_custom_call.1} parent=1 // pred_fallthru
      _
    // Predicated region
    $region162: #{tpu_custom_call.1} parent=1 // pred_check
      _
    $region163: #{tpu_custom_call.1} parent=1 // pred_check_branch
      %437 = sbr.rel (0) target = $region165
    $region164: #{tpu_custom_call.1} parent=1 // pred_region
      _
    $region165: #{tpu_custom_call.1} parent=1 // pred_fallthru
      _
    // Predicated region
    $region166: #{tpu_custom_call.1} parent=1 // pred_check
      _
    $region167: #{tpu_custom_call.1} parent=1 // pred_check_branch
      %439 = sbr.rel (0) target = $region169
    $region168: #{tpu_custom_call.1} parent=1 // pred_region
      _
    $region169: #{tpu_custom_call.1} parent=1 // pred_fallthru
      _
    // Predicated region
    $region170: #{tpu_custom_call.1} parent=1 // pred_check
      _
    $region171: #{tpu_custom_call.1} parent=1 // pred_check_branch
      %441 = sbr.rel (0) target = $region173
    $region172: #{tpu_custom_call.1} parent=1 // pred_region
      _
    $region173: #{tpu_custom_call.1} parent=1 // pred_fallthru
      _
    // Predicated region
    $region174: #{tpu_custom_call.1} parent=1 // pred_check
      _
    $region175: #{tpu_custom_call.1} parent=1 // pred_check_branch
      %443 = sbr.rel (0) target = $region177
    $region176: #{tpu_custom_call.1} parent=1 // pred_region
      _
    $region177: #{tpu_custom_call.1} parent=1 // pred_fallthru
      _
    // Predicated region
    $region178: #{tpu_custom_call.1} parent=1 // pred_check
      _
    $region179: #{tpu_custom_call.1} parent=1 // pred_check_branch
      %445 = sbr.rel (0) target = $region181
    $region180: #{tpu_custom_call.1} parent=1 // pred_region
      _
    $region181: #{tpu_custom_call.1} parent=1 // pred_fallthru
      _
    // Predicated region
    $region182: #{tpu_custom_call.1} parent=1 // pred_check
      _
    $region183: #{tpu_custom_call.1} parent=1 // pred_check_branch
      %447 = sbr.rel (0) target = $region185
    $region184: #{tpu_custom_call.1} parent=1 // pred_region
      %448 = dma.done [#allocation3], 256
    $region185: #{tpu_custom_call.1} parent=1 // pred_fallthru
      _
    // Predicated region
    $region186: #{tpu_custom_call.1} parent=1 // pred_check
      _
    $region187: #{tpu_custom_call.1} parent=1 // pred_check_branch
      %450 = sbr.rel (0) target = $region189
    $region188: #{tpu_custom_call.1} parent=1 // pred_region
      %451 = dma.done [#allocation6], 256
    $region189: #{tpu_custom_call.1} parent=1 // pred_fallthru
      _
    // Predicated region
    $region190: #{tpu_custom_call.1} parent=1 // pred_check
      _
    $region191: #{tpu_custom_call.1} parent=1 // pred_check_branch
      %453 = sbr.rel (0) target = $region193
    $region192: #{tpu_custom_call.1} parent=1 // pred_region
      %454 = dma.done [#allocation6], 256
    $region193: #{tpu_custom_call.1} parent=1 // pred_fallthru
      _
    // Predicated region
    $region194: #{tpu_custom_call.1} parent=1 // pred_check
      _
    $region195: #{tpu_custom_call.1} parent=1 // pred_check_branch
      %456 = sbr.rel (0) target = $region197
    $region196: #{tpu_custom_call.1} parent=1 // pred_region
      %457 = dma.done [#allocation9], 256
    $region197: #{tpu_custom_call.1} parent=1 // pred_fallthru
      _
    // Predicated region
    $region198: #{tpu_custom_call.1} parent=1 // pred_check
      _
    $region199: #{tpu_custom_call.1} parent=1 // pred_check_branch
      %459 = sbr.rel (0) target = $region201
    $region200: #{tpu_custom_call.1} parent=1 // pred_region
      %460 = dma.done [#allocation9], 32
    $region201: #{tpu_custom_call.1} parent=1 // pred_fallthru
      _
    // Predicated region
    $region202: #{tpu_custom_call.1} parent=1 // pred_check
      _
    $region203: #{tpu_custom_call.1} parent=1 // pred_check_branch
      %462 = sbr.rel (0) target = $region205
    $region204: #{tpu_custom_call.1} parent=1 // pred_region
      %463 = dma.done [#allocation12], 16
    $region205: #{tpu_custom_call.1} parent=1 // pred_fallthru
      _
    // Predicated region
    $region206: #{tpu_custom_call.1} parent=1 // pred_check
      _
    $region207: #{tpu_custom_call.1} parent=1 // pred_check_branch
      %465 = sbr.rel (0) target = $region209
    $region208: #{tpu_custom_call.1} parent=1 // pred_region
      %466 = dma.done [#allocation12], 16
    $region209: #{tpu_custom_call.1} parent=1 // pred_fallthru
      _
    // Predicated region
    $region210: #{tpu_custom_call.1} parent=1 // pred_check
      _
    $region211: #{tpu_custom_call.1} parent=1 // pred_check_branch
      %468 = sbr.rel (0) target = $region213
    $region212: #{tpu_custom_call.1} parent=1 // pred_region
      %469 = dma.done [#allocation15], 16
    $region213: #{tpu_custom_call.1} parent=1 // pred_fallthru
      _
    // Predicated region
    $region214: #{tpu_custom_call.1} parent=1 // pred_check
      _
    $region215: #{tpu_custom_call.1} parent=1 // pred_check_branch
      %471 = sbr.rel (0) target = $region217
    $region216: #{tpu_custom_call.1} parent=1 // pred_region
      %472 = dma.done [#allocation15], 16
    $region217: #{tpu_custom_call.1} parent=1 // pred_fallthru
      _
    // Predicated region
    $region218: #{tpu_custom_call.1} parent=1 // pred_check
      _
    $region219: #{tpu_custom_call.1} parent=1 // pred_check_branch
      %474 = sbr.rel (0) target = $region221
    $region220: #{tpu_custom_call.1} parent=1 // pred_region
      %475 = dma.done [#allocation18], 16
    $region221: #{tpu_custom_call.1} parent=1 // pred_fallthru
      _
    // Predicated region
    $region222: #{tpu_custom_call.1} parent=1 // pred_check
      _
    $region223: #{tpu_custom_call.1} parent=1 // pred_check_branch
      %477 = sbr.rel (0) target = $region225
    $region224: #{tpu_custom_call.1} parent=1 // pred_region
      %478 = dma.done [#allocation18], 16
    $region225: #{tpu_custom_call.1} parent=1 // pred_fallthru
      _
    // Predicated region
    $region226: #{tpu_custom_call.1} parent=1 // pred_check
      _
    $region227: #{tpu_custom_call.1} parent=1 // pred_check_branch
      %480 = sbr.rel (0) target = $region229
    $region228: #{tpu_custom_call.1} parent=1 // pred_region
      %481 = dma.done [#allocation21], 16
    $region229: #{tpu_custom_call.1} parent=1 // pred_fallthru
      _
    // Predicated region
    $region230: #{tpu_custom_call.1} parent=1 // pred_check
      _
    $region231: #{tpu_custom_call.1} parent=1 // pred_check_branch
      %483 = sbr.rel (0) target = $region233
    $region232: #{tpu_custom_call.1} parent=1 // pred_region
      %484 = dma.done [#allocation21], 16
    $region233: #{tpu_custom_call.1} parent=1 // pred_fallthru
      _
    // Predicated region
    $region234: #{tpu_custom_call.1} parent=1 // pred_check
      _
    $region235: #{tpu_custom_call.1} parent=1 // pred_check_branch
      %486 = sbr.rel (0) target = $region237
    $region236: #{tpu_custom_call.1} parent=1 // pred_region
      %487 = dma.done [#allocation24], 16
    $region237: #{tpu_custom_call.1} parent=1 // pred_fallthru
      _
    // Predicated region
    $region238: #{tpu_custom_call.1} parent=1 // pred_check
      _
    $region239: #{tpu_custom_call.1} parent=1 // pred_check_branch
      %489 = sbr.rel (0) target = $region241
    $region240: #{tpu_custom_call.1} parent=1 // pred_region
      %490 = dma.done [#allocation24], 16
    $region241: #{tpu_custom_call.1} parent=1 // pred_fallthru
      _
    // Predicated region
    $region242: #{tpu_custom_call.1} parent=1 // pred_check
      _
    $region243: #{tpu_custom_call.1} parent=1 // pred_check_branch
      %492 = sbr.rel (0) target = $region245
    $region244: #{tpu_custom_call.1} parent=1 // pred_region
      %493 = dma.done [#allocation27], 16
    $region245: #{tpu_custom_call.1} parent=1 // pred_fallthru
      _
    // Predicated region
    $region246: #{tpu_custom_call.1} parent=1 // pred_check
      _
    $region247: #{tpu_custom_call.1} parent=1 // pred_check_branch
      %495 = sbr.rel (0) target = $region249
    $region248: #{tpu_custom_call.1} parent=1 // pred_region
      %496 = dma.done [#allocation27], 16
    $region249: #{tpu_custom_call.1} parent=1 // pred_fallthru
      _
    // Predicated region
    $region250: #{tpu_custom_call.1} parent=1 // pred_check
      _
    $region251: #{tpu_custom_call.1} parent=1 // pred_check_branch
      %498 = sbr.rel (0) target = $region253
    $region252: #{tpu_custom_call.1} parent=1 // pred_region
      %499 = dma.done [#allocation30], 16
    $region253: #{tpu_custom_call.1} parent=1 // pred_fallthru
      _
    // Predicated region
    $region254: #{tpu_custom_call.1} parent=1 // pred_check
      _
    $region255: #{tpu_custom_call.1} parent=1 // pred_check_branch
      %501 = sbr.rel (0) target = $region257
    $region256: #{tpu_custom_call.1} parent=1 // pred_region
      %502 = dma.done [#allocation30], 512
    $region257: #{tpu_custom_call.1} parent=1 // pred_fallthru
      _
    // Predicated region
    $region258: #{tpu_custom_call.1} parent=1 // pred_check
      _
    $region259: #{tpu_custom_call.1} parent=1 // pred_check_branch
      %504 = sbr.rel (0) target = $region261
    $region260: #{tpu_custom_call.1} parent=1 // pred_region
      %505 = dma.done [#allocation33], 16
    $region261: #{tpu_custom_call.1} parent=1 // pred_fallthru
      _
    // Predicated region
    $region262: #{tpu_custom_call.1} parent=1 // pred_check
      _
    $region263: #{tpu_custom_call.1} parent=1 // pred_check_branch
      %507 = sbr.rel (0) target = $region265
    $region264: #{tpu_custom_call.1} parent=1 // pred_region
      %508 = dma.done [#allocation33], 512
    $region265: #{tpu_custom_call.1} parent=1 // pred_fallthru
      _
    // Predicated region
    $region266: #{tpu_custom_call.1} parent=1 // pred_check
      _
    $region267: #{tpu_custom_call.1} parent=1 // pred_check_branch
      %510 = sbr.rel (0) target = $region269
    $region268: #{tpu_custom_call.1} parent=1 // pred_region
      %511 = dma.done [#allocation36], 16
    $region269: #{tpu_custom_call.1} parent=1 // pred_fallthru
      _
    // Predicated region
    $region270: #{tpu_custom_call.1} parent=1 // pred_check
      _
    $region271: #{tpu_custom_call.1} parent=1 // pred_check_branch
      %513 = sbr.rel (0) target = $region273
    $region272: #{tpu_custom_call.1} parent=1 // pred_region
      %514 = dma.done [#allocation36], 512
    $region273: #{tpu_custom_call.1} parent=1 // pred_fallthru
      _
    // Predicated region
    $region274: #{tpu_custom_call.1} parent=1 // pred_check
      _
    $region275: #{tpu_custom_call.1} parent=1 // pred_check_branch
      %516 = sbr.rel (0) target = $region277
    $region276: #{tpu_custom_call.1} parent=1 // pred_region
      %517 = dma.done [#allocation39], 16
    $region277: #{tpu_custom_call.1} parent=1 // pred_fallthru
      _
    // Predicated region
    $region278: #{tpu_custom_call.1} parent=1 // pred_check
      _
    $region279: #{tpu_custom_call.1} parent=1 // pred_check_branch
      %519 = sbr.rel (0) target = $region281
    $region280: #{tpu_custom_call.1} parent=1 // pred_region
      %520 = dma.done [#allocation39], 512
    $region281: #{tpu_custom_call.1} parent=1 // pred_fallthru
      _
    // Predicated region
    $region282: #{tpu_custom_call.1} parent=1 // pred_check
      _
    $region283: #{tpu_custom_call.1} parent=1 // pred_check_branch
      %522 = sbr.rel (0) target = $region285
    $region284: #{tpu_custom_call.1} parent=1 // pred_region
      %523 = dma.done [#allocation42], 16
    $region285: #{tpu_custom_call.1} parent=1 // pred_fallthru
      _
    // Predicated region
    $region286: #{tpu_custom_call.1} parent=1 // pred_check
      _
    $region287: #{tpu_custom_call.1} parent=1 // pred_check_branch
      %525 = sbr.rel (0) target = $region289
    $region288: #{tpu_custom_call.1} parent=1 // pred_region
      %526 = dma.done [#allocation42], 512
    $region289: #{tpu_custom_call.1} parent=1 // pred_fallthru
      _
    // Predicated region
    $region290: #{tpu_custom_call.1} parent=1 // pred_check
      _
    $region291: #{tpu_custom_call.1} parent=1 // pred_check_branch
      %528 = sbr.rel (0) target = $region293
    $region292: #{tpu_custom_call.1} parent=1 // pred_region
      %529 = dma.done [#allocation45], 16
    $region293: #{tpu_custom_call.1} parent=1 // pred_fallthru
      _
    %v530 = vld [vmem:[#allocation2] sm:$0xff]
    %v531 = vld [vmem:[#allocation2 + $0x8] sm:$0xff]
    %v532 = vmul.f32 %v530, 5.656854
    %v533 = vmul.f32 %v531, 5.656854
    %v534 = vld [vmem:[#allocation5] sm:$0xff]
    %v535 = vld [vmem:[#allocation5 + $0x8] sm:$0xff]
    %v536 = vadd.f32 %v532, %v534
    %v537 = vadd.f32 %v533, %v535
    %v538 = vld [vmem:[#allocation7] sm:$0xff]
    %v539 = vld [vmem:[#allocation7 + $0x8] sm:$0xff]
    %v540 = vld [vmem:[#allocation8] sm:$0xff]
    %v541 = vld [vmem:[#allocation8 + $0x8] sm:$0xff]
    %v542 = vsub.f32 %v540, 1.0
    %v543 = vsub.f32 %v541, 1.0
    %v544 = vmul.f32 %v542, 1e+09
    %v545 = vmul.f32 %v543, 1e+09
    %v546 = vld [vmem:[#allocation10] sm:$0x1]
    %v547 = vld [vmem:[#allocation10 + $0x1] sm:$0x1]
    %v548 = vsub.f32 %v546, 1.0
    %v549 = vsub.f32 %v547, 1.0
    %v550 = vmul.f32 %v548, 1e+09
    %v551 = vmul.f32 %v549, 1e+09
    %v552 = vld [vmem:[%s11] sm:$0xff]
    %v553 = vld [vmem:[%s11 + $0x8] sm:$0xff]
    %v554 = vld [vmem:[%s11 + $0x10] sm:$0xff]
    %v555 = vld [vmem:[%s11 + $0x18] sm:$0xff]
    %v556 = vld [vmem:[#allocation11] sm:$0x1]
    %v557 = vld [vmem:[%s15] sm:$0xff]
    %v558 = vld [vmem:[%s15 + $0x8] sm:$0xff]
    %v559 = vld [vmem:[%s15 + $0x10] sm:$0xff]
    %v560 = vld [vmem:[%s15 + $0x18] sm:$0xff]
    %v561 = vld [vmem:[#allocation13] sm:$0x1]
    %v562 = vld [vmem:[%s19] sm:$0xff]
    %v563 = vld [vmem:[%s19 + $0x8] sm:$0xff]
    %v564 = vld [vmem:[%s19 + $0x10] sm:$0xff]
    %v565 = vld [vmem:[%s19 + $0x18] sm:$0xff]
    %v566 = vld [vmem:[#allocation14] sm:$0x1]
    %v567 = vld [vmem:[%s23] sm:$0xff]
    %v568 = vld [vmem:[%s23 + $0x8] sm:$0xff]
    %v569 = vld [vmem:[%s23 + $0x10] sm:$0xff]
    %v570 = vld [vmem:[%s23 + $0x18] sm:$0xff]
    %v571 = vld [vmem:[#allocation16] sm:$0x1]
    %v572 = vld [vmem:[%s27] sm:$0xff]
    %v573 = vld [vmem:[%s27 + $0x8] sm:$0xff]
    %v574 = vld [vmem:[%s27 + $0x10] sm:$0xff]
    %v575 = vld [vmem:[%s27 + $0x18] sm:$0xff]
    %v576 = vld [vmem:[#allocation17] sm:$0x1]
    %v577 = vld [vmem:[%s31] sm:$0xff]
    %v578 = vld [vmem:[%s31 + $0x8] sm:$0xff]
    %v579 = vld [vmem:[%s31 + $0x10] sm:$0xff]
    %v580 = vld [vmem:[%s31 + $0x18] sm:$0xff]
    %v581 = vld [vmem:[#allocation19] sm:$0x1]
    %v582 = vld [vmem:[%s35] sm:$0xff]
    %v583 = vld [vmem:[%s35 + $0x8] sm:$0xff]
    %v584 = vld [vmem:[%s35 + $0x10] sm:$0xff]
    %v585 = vld [vmem:[%s35 + $0x18] sm:$0xff]
    %v586 = vld [vmem:[%s35 + $0x20] sm:$0xff]
    %v587 = vld [vmem:[%s35 + $0x28] sm:$0xff]
    %v588 = vld [vmem:[%s35 + $0x30] sm:$0xff]
    %v589 = vld [vmem:[%s35 + $0x38] sm:$0xff]
    %v590 = vld [vmem:[#allocation20] sm:$0x1]
    %v591 = vld [vmem:[#allocation22] sm:$0x1]
    %v592 = vld [vmem:[%s41] sm:$0x1]
    %v593 = vld [vmem:[#allocation23] sm:$0x1]
    %v594 = vld [vmem:[#allocation25] sm:$0x1]
    %v595 = vld [vmem:[#allocation26] sm:$0x1]
    %v596 = vld [vmem:[#allocation28] sm:$0x1]
    %v598 = vlaneseq
    %v599 = vshrl.u32 %v598, 7
    %v600 = vsub.s32 0, %v599
    %v601 = vrot.slane %v556, %v600
    %vm603 = vcmask 261120
    %v605 = vsel %vm603, %v536, 0
    %v608 = vsel %vm603, %v537, 0
    %610 = vmatprep.subr.mxu0 0.0
    %611 = vmatpush1.msra.mxu0 0.0
    %612 = vmatprep.subr.mxu0 0.0
    %613 = vmatpush1.msra.mxu0 0.0
    %614 = vmatprep.subr.mxu0 0.0
    %615 = vmatpush1.msra.mxu0 0.0
    %616 = vmatprep.subr.mxu0 0.0
    %617 = vmatpush1.msra.mxu0 0.0
    %618 = vmatprep.subr.mxu0 0.0
    %619 = vmatpush1.msra.mxu0 0.0
    %620 = vmatprep.subr.mxu0 0.0
    %621 = vmatpush1.msra.mxu0 0.0
    %622 = vmatprep.subr.mxu0 0.0
    %623 = vmatpush1.msra.mxu0 0.0
    %624 = vmatprep.subr.mxu0 0.0
    %625 = vmatpush1.msra.mxu0 0.0
    %626 = vmatprep.subr.mxu0 0.0
    %627 = vmatpush1.msra.mxu0 0.0
    %628 = vmatprep.subr.mxu0 0.0
    %629 = vmatpush1.msra.mxu0 0.0
    %630 = vmatprep.subr.mxu0 0.0
    %631 = vmatpush1.msra.mxu0 0.0
    %632 = vmatprep.subr.mxu0 0.0
    %633 = vmatpush1.msra.mxu0 0.0
    %634 = vmatprep.subr.mxu0 0.0
    %635 = vmatpush1.msra.mxu0 %v555
    %636 = vmatprep.subr.mxu0 0.0
    %637 = vmatpush1.msra.mxu0 %v554
    %638 = vmatprep.subr.mxu0 0.0
    %639 = vmatpush1.msra.mxu0 %v553
    %640 = vmatprep.subr.mxu0 0.0
    %641 = vmatpush1.msra.mxu0 %v552
    %642 = vmatprep.subr.mxu0 0.0
    %643 = vmatpush2.msra.mxu0 0.0
    %644 = vmatprep.subr.mxu0 0.0
    %645 = vmatpush2.msra.mxu0 0.0
    %646 = vmatprep.subr.mxu0 0.0
    %647 = vmatpush2.msra.mxu0 0.0
    %648 = vmatprep.subr.mxu0 0.0
    %649 = vmatpush2.msra.mxu0 0.0
    %650 = vmatprep.subr.mxu0 0.0
    %651 = vmatpush2.msra.mxu0 0.0
    %652 = vmatprep.subr.mxu0 0.0
    %653 = vmatpush2.msra.mxu0 0.0
    %654 = vmatprep.subr.mxu0 0.0
    %655 = vmatpush2.msra.mxu0 0.0
    %656 = vmatprep.subr.mxu0 0.0
    %657 = vmatpush2.msra.mxu0 0.0
    %658 = vmatprep.subr.mxu0 0.0
    %659 = vmatpush2.msra.mxu0 0.0
    %660 = vmatprep.subr.mxu0 0.0
    %661 = vmatpush2.msra.mxu0 0.0
    %662 = vmatprep.subr.mxu0 0.0
    %663 = vmatpush2.msra.mxu0 0.0
    %664 = vmatprep.subr.mxu0 0.0
    %665 = vmatpush2.msra.mxu0 0.0
    %666 = vmatprep.subr.mxu0 0.0
    %667 = vmatpush2.msra.mxu0 0.0
    %668 = vmatprep.subr.mxu0 0.0
    %669 = vmatpush2.msra.mxu0 0.0
    %670 = vmatprep.subr.mxu0 0.0
    %671 = vmatpush2.msra.mxu0 0.0
    %672 = vmatprep.subr.mxu0 0.0
    %673 = vmatpush2.msra.mxu0 0.0
    %674 = vmatprep.mubr.f32.mxu0 0.0
    %675 = vmatmul.mubr.f32.gmra.mxu0 %v605
    %v676 = vpop.f32.mrf.mxu0
    %v677 = vadd.f32 %v601, %v676
    %v678 = vpop.f32.mrf.mxu0
    %679 = vmatprep.mubr.f32.mxu0 0.0
    %680 = vmatmul.mubr.f32.gmra.mxu0 %v608
    %v681 = vpop.f32.mrf.mxu0
    %v682 = vadd.f32 %v601, %v681
    %v683 = vpop.f32.mrf.mxu0
    %684 = vdwg.mxu0
    %686 = vrot.lane.b32.xlu0 %v677, 96
    %v687 = vpop.permute.xlu0 %686
    %vm688 = vcmask 64512
    %v689 = vsel %vm688, %v677, 0
    %v691 = vsel %vm688, %v687, 0
    %693 = vmatprep.subr.mxu0 0.0
    %694 = vmatpush1.xpose.msra.mxu0 0.0
    %695 = vmatprep.subr.mxu0 0.0
    %696 = vmatpush1.xpose.msra.mxu0 0.0
    %697 = vmatprep.subr.mxu0 0.0
    %698 = vmatpush1.xpose.msra.mxu0 0.0
    %699 = vmatprep.subr.mxu0 0.0
    %700 = vmatpush1.xpose.msra.mxu0 0.0
    %701 = vmatprep.subr.mxu0 0.0
    %702 = vmatpush1.xpose.msra.mxu0 0.0
    %703 = vmatprep.subr.mxu0 0.0
    %704 = vmatpush1.xpose.msra.mxu0 0.0
    %705 = vmatprep.subr.mxu0 0.0
    %706 = vmatpush1.xpose.msra.mxu0 0.0
    %707 = vmatprep.subr.mxu0 0.0
    %708 = vmatpush1.xpose.msra.mxu0 0.0
    %709 = vmatprep.subr.mxu0 0.0
    %710 = vmatpush1.xpose.msra.mxu0 0.0
    %711 = vmatprep.subr.mxu0 0.0
    %712 = vmatpush1.xpose.msra.mxu0 0.0
    %713 = vmatprep.subr.mxu0 0.0
    %714 = vmatpush1.xpose.msra.mxu0 0.0
    %715 = vmatprep.subr.mxu0 0.0
    %716 = vmatpush1.xpose.msra.mxu0 0.0
    %717 = vmatprep.subr.mxu0 0.0
    %718 = vmatpush1.xpose.msra.mxu0 0.0
    %719 = vmatprep.subr.mxu0 0.0
    %720 = vmatpush1.xpose.msra.mxu0 0.0
    %721 = vmatprep.subr.mxu0 0.0
    %722 = vmatpush1.xpose.msra.mxu0 0.0
    %723 = vmatprep.subr.mxu0 0.0
    %724 = vmatpush1.xpose.msra.mxu0 %v691
    %725 = vmatprep.subr.mxu0 0.0
    %726 = vmatpush2.xpose.msra.mxu0 0.0
    %727 = vmatprep.subr.mxu0 0.0
    %728 = vmatpush2.xpose.msra.mxu0 0.0
    %729 = vmatprep.subr.mxu0 0.0
    %730 = vmatpush2.xpose.msra.mxu0 0.0
    %731 = vmatprep.subr.mxu0 0.0
    %732 = vmatpush2.xpose.msra.mxu0 0.0
    %733 = vmatprep.subr.mxu0 0.0
    %734 = vmatpush2.xpose.msra.mxu0 0.0
    %735 = vmatprep.subr.mxu0 0.0
    %736 = vmatpush2.xpose.msra.mxu0 0.0
    %737 = vmatprep.subr.mxu0 0.0
    %738 = vmatpush2.xpose.msra.mxu0 0.0
    %739 = vmatprep.subr.mxu0 0.0
    %740 = vmatpush2.xpose.msra.mxu0 0.0
    %741 = vmatprep.subr.mxu0 0.0
    %742 = vmatpush2.xpose.msra.mxu0 0.0
    %743 = vmatprep.subr.mxu0 0.0
    %744 = vmatpush2.xpose.msra.mxu0 0.0
    %745 = vmatprep.subr.mxu0 0.0
    %746 = vmatpush2.xpose.msra.mxu0 0.0
    %747 = vmatprep.subr.mxu0 0.0
    %748 = vmatpush2.xpose.msra.mxu0 0.0
    %749 = vmatprep.subr.mxu0 0.0
    %750 = vmatpush2.xpose.msra.mxu0 0.0
    %751 = vmatprep.subr.mxu0 0.0
    %752 = vmatpush2.xpose.msra.mxu0 0.0
    %753 = vmatprep.subr.mxu0 0.0
    %754 = vmatpush2.xpose.msra.mxu0 0.0
    %755 = vmatprep.subr.mxu0 0.0
    %756 = vmatpush2.xpose.msra.mxu0 0.0
    %757 = vmatprep.mubr.f32.mxu0 0.0
    %758 = vmatmul.mubr.f32.gmra.mxu0 %v689
    %v759 = vpop.f32.mrf.mxu0
    %v760 = vadd.f32 0.0, %v759
    %v761 = vpop.f32.mrf.mxu0
    %762 = vdwg.mxu0
    %v763 = vmul.f32 %v760, 0.35355338
    %v764 = vadd.f32 %v763, %v544
    %v765 = vsel %vm688, %v764, -inf
    %766 = vmax.xlane.f32.xlu0 %v765
    %v767 = vpop.xlane.xlu0 %766
    %v768 = vsub.f32 %v764, %v767
    %v769 = vmul.f32 %v768, 1.442695
    %v770 = vpow.pop %v769
    %v771 = vsel %vm688, %v770, 0.0
    %772 = vadd.xlane.f32.xlu0 %v771
    %v773 = vpop.xlane.xlu0 %772
    %v774 = vrcp.pop %v773
    %v775 = vmul.f32 %v770, %v774
    %776 = vrot.lane.b32.xlu0 %v677, 64
    %v777 = vpop.permute.xlu0 %776
    %v780 = vsel %vm688, %v775, 0
    %782 = vmatprep.subr.mxu0 0.0
    %783 = vmatpush1.msra.mxu0 0.0
    %784 = vmatprep.subr.mxu0 0.0
    %785 = vmatpush1.msra.mxu0 0.0
    %786 = vmatprep.subr.mxu0 0.0
    %787 = vmatpush1.msra.mxu0 0.0
    %788 = vmatprep.subr.mxu0 0.0
    %789 = vmatpush1.msra.mxu0 0.0
    %790 = vmatprep.subr.mxu0 0.0
    %791 = vmatpush1.msra.mxu0 0.0
    %792 = vmatprep.subr.mxu0 0.0
    %793 = vmatpush1.msra.mxu0 0.0
    %794 = vmatprep.subr.mxu0 0.0
    %795 = vmatpush1.msra.mxu0 0.0
    %796 = vmatprep.subr.mxu0 0.0
    %797 = vmatpush1.msra.mxu0 0.0
    %798 = vmatprep.subr.mxu0 0.0
    %799 = vmatpush1.msra.mxu0 0.0
    %800 = vmatprep.subr.mxu0 0.0
    %801 = vmatpush1.msra.mxu0 0.0
    %802 = vmatprep.subr.mxu0 0.0
    %803 = vmatpush1.msra.mxu0 0.0
    %804 = vmatprep.subr.mxu0 0.0
    %805 = vmatpush1.msra.mxu0 0.0
    %806 = vmatprep.subr.mxu0 0.0
    %807 = vmatpush1.msra.mxu0 0.0
    %808 = vmatprep.subr.mxu0 0.0
    %809 = vmatpush1.msra.mxu0 0.0
    %810 = vmatprep.subr.mxu0 0.0
    %811 = vmatpush1.msra.mxu0 0.0
    %812 = vmatprep.subr.mxu0 0.0
    %813 = vmatpush1.msra.mxu0 %v777
    %814 = vmatprep.subr.mxu0 0.0
    %815 = vmatpush2.msra.mxu0 0.0
    %816 = vmatprep.subr.mxu0 0.0
    %817 = vmatpush2.msra.mxu0 0.0
    %818 = vmatprep.subr.mxu0 0.0
    %819 = vmatpush2.msra.mxu0 0.0
    %820 = vmatprep.subr.mxu0 0.0
    %821 = vmatpush2.msra.mxu0 0.0
    %822 = vmatprep.subr.mxu0 0.0
    %823 = vmatpush2.msra.mxu0 0.0
    %824 = vmatprep.subr.mxu0 0.0
    %825 = vmatpush2.msra.mxu0 0.0
    %826 = vmatprep.subr.mxu0 0.0
    %827 = vmatpush2.msra.mxu0 0.0
    %828 = vmatprep.subr.mxu0 0.0
    %829 = vmatpush2.msra.mxu0 0.0
    %830 = vmatprep.subr.mxu0 0.0
    %831 = vmatpush2.msra.mxu0 0.0
    %832 = vmatprep.subr.mxu0 0.0
    %833 = vmatpush2.msra.mxu0 0.0
    %834 = vmatprep.subr.mxu0 0.0
    %835 = vmatpush2.msra.mxu0 0.0
    %836 = vmatprep.subr.mxu0 0.0
    %837 = vmatpush2.msra.mxu0 0.0
    %838 = vmatprep.subr.mxu0 0.0
    %839 = vmatpush2.msra.mxu0 0.0
    %840 = vmatprep.subr.mxu0 0.0
    %841 = vmatpush2.msra.mxu0 0.0
    %842 = vmatprep.subr.mxu0 0.0
    %843 = vmatpush2.msra.mxu0 0.0
    %844 = vmatprep.subr.mxu0 0.0
    %845 = vmatpush2.msra.mxu0 0.0
    %846 = vmatprep.mubr.f32.mxu0 0.0
    %847 = vmatmul.mubr.f32.gmra.mxu0 %v780
    %v848 = vpop.f32.mrf.mxu0
    %v849 = vadd.f32 0.0, %v848
    %v850 = vpop.f32.mrf.mxu0
    %851 = vdwg.mxu0
    %852 = vrot.lane.b32.xlu0 %v677, 120
    %v853 = vpop.permute.xlu0 %852
    %854 = vrot.lane.b32.xlu0 %v677, 88
    %v855 = vpop.permute.xlu0 %854
    %v856 = vsel %vm688, %v853, 0
    %v858 = vsel %vm688, %v855, 0
    %860 = vmatprep.subr.mxu0 0.0
    %861 = vmatpush1.xpose.msra.mxu0 0.0
    %862 = vmatprep.subr.mxu0 0.0
    %863 = vmatpush1.xpose.msra.mxu0 0.0
    %864 = vmatprep.subr.mxu0 0.0
    %865 = vmatpush1.xpose.msra.mxu0 0.0
    %866 = vmatprep.subr.mxu0 0.0
    %867 = vmatpush1.xpose.msra.mxu0 0.0
    %868 = vmatprep.subr.mxu0 0.0
    %869 = vmatpush1.xpose.msra.mxu0 0.0
    %870 = vmatprep.subr.mxu0 0.0
    %871 = vmatpush1.xpose.msra.mxu0 0.0
    %872 = vmatprep.subr.mxu0 0.0
    %873 = vmatpush1.xpose.msra.mxu0 0.0
    %874 = vmatprep.subr.mxu0 0.0
    %875 = vmatpush1.xpose.msra.mxu0 0.0
    %876 = vmatprep.subr.mxu0 0.0
    %877 = vmatpush1.xpose.msra.mxu0 0.0
    %878 = vmatprep.subr.mxu0 0.0
    %879 = vmatpush1.xpose.msra.mxu0 0.0
    %880 = vmatprep.subr.mxu0 0.0
    %881 = vmatpush1.xpose.msra.mxu0 0.0
    %882 = vmatprep.subr.mxu0 0.0
    %883 = vmatpush1.xpose.msra.mxu0 0.0
    %884 = vmatprep.subr.mxu0 0.0
    %885 = vmatpush1.xpose.msra.mxu0 0.0
    %886 = vmatprep.subr.mxu0 0.0
    %887 = vmatpush1.xpose.msra.mxu0 0.0
    %888 = vmatprep.subr.mxu0 0.0
    %889 = vmatpush1.xpose.msra.mxu0 0.0
    %890 = vmatprep.subr.mxu0 0.0
    %891 = vmatpush1.xpose.msra.mxu0 %v858
    %892 = vmatprep.subr.mxu0 0.0
    %893 = vmatpush2.xpose.msra.mxu0 0.0
    %894 = vmatprep.subr.mxu0 0.0
    %895 = vmatpush2.xpose.msra.mxu0 0.0
    %896 = vmatprep.subr.mxu0 0.0
    %897 = vmatpush2.xpose.msra.mxu0 0.0
    %898 = vmatprep.subr.mxu0 0.0
    %899 = vmatpush2.xpose.msra.mxu0 0.0
    %900 = vmatprep.subr.mxu0 0.0
    %901 = vmatpush2.xpose.msra.mxu0 0.0
    %902 = vmatprep.subr.mxu0 0.0
    %903 = vmatpush2.xpose.msra.mxu0 0.0
    %904 = vmatprep.subr.mxu0 0.0
    %905 = vmatpush2.xpose.msra.mxu0 0.0
    %906 = vmatprep.subr.mxu0 0.0
    %907 = vmatpush2.xpose.msra.mxu0 0.0
    %908 = vmatprep.subr.mxu0 0.0
    %909 = vmatpush2.xpose.msra.mxu0 0.0
    %910 = vmatprep.subr.mxu0 0.0
    %911 = vmatpush2.xpose.msra.mxu0 0.0
    %912 = vmatprep.subr.mxu0 0.0
    %913 = vmatpush2.xpose.msra.mxu0 0.0
    %914 = vmatprep.subr.mxu0 0.0
    %915 = vmatpush2.xpose.msra.mxu0 0.0
    %916 = vmatprep.subr.mxu0 0.0
    %917 = vmatpush2.xpose.msra.mxu0 0.0
    %918 = vmatprep.subr.mxu0 0.0
    %919 = vmatpush2.xpose.msra.mxu0 0.0
    %920 = vmatprep.subr.mxu0 0.0
    %921 = vmatpush2.xpose.msra.mxu0 0.0
    %922 = vmatprep.subr.mxu0 0.0
    %923 = vmatpush2.xpose.msra.mxu0 0.0
    %924 = vmatprep.mubr.f32.mxu0 0.0
    %925 = vmatmul.mubr.f32.gmra.mxu0 %v856
    %v926 = vpop.f32.mrf.mxu0
    %v927 = vadd.f32 0.0, %v926
    %v928 = vpop.f32.mrf.mxu0
    %929 = vdwg.mxu0
    %v930 = vmul.f32 %v927, 0.35355338
    %v931 = vadd.f32 %v930, %v544
    %v932 = vsel %vm688, %v931, -inf
    %933 = vmax.xlane.f32.xlu0 %v932
    %v934 = vpop.xlane.xlu0 %933
    %v935 = vsub.f32 %v931, %v934
    %v936 = vmul.f32 %v935, 1.442695
    %v937 = vpow.pop %v936
    %v938 = vsel %vm688, %v937, 0.0
    %939 = vadd.xlane.f32.xlu0 %v938
    %v940 = vpop.xlane.xlu0 %939
    %v941 = vrcp.pop %v940
    %v942 = vmul.f32 %v937, %v941
    %943 = vrot.lane.b32.xlu0 %v677, 56
    %v944 = vpop.permute.xlu0 %943
    %v947 = vsel %vm688, %v942, 0
    %949 = vmatprep.subr.mxu0 0.0
    %950 = vmatpush1.msra.mxu0 0.0
    %951 = vmatprep.subr.mxu0 0.0
    %952 = vmatpush1.msra.mxu0 0.0
    %953 = vmatprep.subr.mxu0 0.0
    %954 = vmatpush1.msra.mxu0 0.0
    %955 = vmatprep.subr.mxu0 0.0
    %956 = vmatpush1.msra.mxu0 0.0
    %957 = vmatprep.subr.mxu0 0.0
    %958 = vmatpush1.msra.mxu0 0.0
    %959 = vmatprep.subr.mxu0 0.0
    %960 = vmatpush1.msra.mxu0 0.0
    %961 = vmatprep.subr.mxu0 0.0
    %962 = vmatpush1.msra.mxu0 0.0
    %963 = vmatprep.subr.mxu0 0.0
    %964 = vmatpush1.msra.mxu0 0.0
    %965 = vmatprep.subr.mxu0 0.0
    %966 = vmatpush1.msra.mxu0 0.0
    %967 = vmatprep.subr.mxu0 0.0
    %968 = vmatpush1.msra.mxu0 0.0
    %969 = vmatprep.subr.mxu0 0.0
    %970 = vmatpush1.msra.mxu0 0.0
    %971 = vmatprep.subr.mxu0 0.0
    %972 = vmatpush1.msra.mxu0 0.0
    %973 = vmatprep.subr.mxu0 0.0
    %974 = vmatpush1.msra.mxu0 0.0
    %975 = vmatprep.subr.mxu0 0.0
    %976 = vmatpush1.msra.mxu0 0.0
    %977 = vmatprep.subr.mxu0 0.0
    %978 = vmatpush1.msra.mxu0 0.0
    %979 = vmatprep.subr.mxu0 0.0
    %980 = vmatpush1.msra.mxu0 %v944
    %981 = vmatprep.subr.mxu0 0.0
    %982 = vmatpush2.msra.mxu0 0.0
    %983 = vmatprep.subr.mxu0 0.0
    %984 = vmatpush2.msra.mxu0 0.0
    %985 = vmatprep.subr.mxu0 0.0
    %986 = vmatpush2.msra.mxu0 0.0
    %987 = vmatprep.subr.mxu0 0.0
    %988 = vmatpush2.msra.mxu0 0.0
    %989 = vmatprep.subr.mxu0 0.0
    %990 = vmatpush2.msra.mxu0 0.0
    %991 = vmatprep.subr.mxu0 0.0
    %992 = vmatpush2.msra.mxu0 0.0
    %993 = vmatprep.subr.mxu0 0.0
    %994 = vmatpush2.msra.mxu0 0.0
    %995 = vmatprep.subr.mxu0 0.0
    %996 = vmatpush2.msra.mxu0 0.0
    %997 = vmatprep.subr.mxu0 0.0
    %998 = vmatpush2.msra.mxu0 0.0
    %999 = vmatprep.subr.mxu0 0.0
    %1000 = vmatpush2.msra.mxu0 0.0
    %1001 = vmatprep.subr.mxu0 0.0
    %1002 = vmatpush2.msra.mxu0 0.0
    %1003 = vmatprep.subr.mxu0 0.0
    %1004 = vmatpush2.msra.mxu0 0.0
    %1005 = vmatprep.subr.mxu0 0.0
    %1006 = vmatpush2.msra.mxu0 0.0
    %1007 = vmatprep.subr.mxu0 0.0
    %1008 = vmatpush2.msra.mxu0 0.0
    %1009 = vmatprep.subr.mxu0 0.0
    %1010 = vmatpush2.msra.mxu0 0.0
    %1011 = vmatprep.subr.mxu0 0.0
    %1012 = vmatpush2.msra.mxu0 0.0
    %1013 = vmatprep.mubr.f32.mxu0 0.0
    %1014 = vmatmul.mubr.f32.gmra.mxu0 %v947
    %v1015 = vpop.f32.mrf.mxu0
    %v1016 = vadd.f32 0.0, %v1015
    %v1017 = vpop.f32.mrf.mxu0
    %1018 = vdwg.mxu0
    %1019 = vrot.lane.b32.xlu0 %v677, 112
    %v1020 = vpop.permute.xlu0 %1019
    %1021 = vrot.lane.b32.xlu0 %v677, 80
    %v1022 = vpop.permute.xlu0 %1021
    %v1023 = vsel %vm688, %v1020, 0
    %v1025 = vsel %vm688, %v1022, 0
    %1027 = vmatprep.subr.mxu0 0.0
    %1028 = vmatpush1.xpose.msra.mxu0 0.0
    %1029 = vmatprep.subr.mxu0 0.0
    %1030 = vmatpush1.xpose.msra.mxu0 0.0
    %1031 = vmatprep.subr.mxu0 0.0
    %1032 = vmatpush1.xpose.msra.mxu0 0.0
    %1033 = vmatprep.subr.mxu0 0.0
    %1034 = vmatpush1.xpose.msra.mxu0 0.0
    %1035 = vmatprep.subr.mxu0 0.0
    %1036 = vmatpush1.xpose.msra.mxu0 0.0
    %1037 = vmatprep.subr.mxu0 0.0
    %1038 = vmatpush1.xpose.msra.mxu0 0.0
    %1039 = vmatprep.subr.mxu0 0.0
    %1040 = vmatpush1.xpose.msra.mxu0 0.0
    %1041 = vmatprep.subr.mxu0 0.0
    %1042 = vmatpush1.xpose.msra.mxu0 0.0
    %1043 = vmatprep.subr.mxu0 0.0
    %1044 = vmatpush1.xpose.msra.mxu0 0.0
    %1045 = vmatprep.subr.mxu0 0.0
    %1046 = vmatpush1.xpose.msra.mxu0 0.0
    %1047 = vmatprep.subr.mxu0 0.0
    %1048 = vmatpush1.xpose.msra.mxu0 0.0
    %1049 = vmatprep.subr.mxu0 0.0
    %1050 = vmatpush1.xpose.msra.mxu0 0.0
    %1051 = vmatprep.subr.mxu0 0.0
    %1052 = vmatpush1.xpose.msra.mxu0 0.0
    %1053 = vmatprep.subr.mxu0 0.0
    %1054 = vmatpush1.xpose.msra.mxu0 0.0
    %1055 = vmatprep.subr.mxu0 0.0
    %1056 = vmatpush1.xpose.msra.mxu0 0.0
    %1057 = vmatprep.subr.mxu0 0.0
    %1058 = vmatpush1.xpose.msra.mxu0 %v1025
    %1059 = vmatprep.subr.mxu0 0.0
    %1060 = vmatpush2.xpose.msra.mxu0 0.0
    %1061 = vmatprep.subr.mxu0 0.0
    %1062 = vmatpush2.xpose.msra.mxu0 0.0
    %1063 = vmatprep.subr.mxu0 0.0
    %1064 = vmatpush2.xpose.msra.mxu0 0.0
    %1065 = vmatprep.subr.mxu0 0.0
    %1066 = vmatpush2.xpose.msra.mxu0 0.0
    %1067 = vmatprep.subr.mxu0 0.0
    %1068 = vmatpush2.xpose.msra.mxu0 0.0
    %1069 = vmatprep.subr.mxu0 0.0
    %1070 = vmatpush2.xpose.msra.mxu0 0.0
    %1071 = vmatprep.subr.mxu0 0.0
    %1072 = vmatpush2.xpose.msra.mxu0 0.0
    %1073 = vmatprep.subr.mxu0 0.0
    %1074 = vmatpush2.xpose.msra.mxu0 0.0
    %1075 = vmatprep.subr.mxu0 0.0
    %1076 = vmatpush2.xpose.msra.mxu0 0.0
    %1077 = vmatprep.subr.mxu0 0.0
    %1078 = vmatpush2.xpose.msra.mxu0 0.0
    %1079 = vmatprep.subr.mxu0 0.0
    %1080 = vmatpush2.xpose.msra.mxu0 0.0
    %1081 = vmatprep.subr.mxu0 0.0
    %1082 = vmatpush2.xpose.msra.mxu0 0.0
    %1083 = vmatprep.subr.mxu0 0.0
    %1084 = vmatpush2.xpose.msra.mxu0 0.0
    %1085 = vmatprep.subr.mxu0 0.0
    %1086 = vmatpush2.xpose.msra.mxu0 0.0
    %1087 = vmatprep.subr.mxu0 0.0
    %1088 = vmatpush2.xpose.msra.mxu0 0.0
    %1089 = vmatprep.subr.mxu0 0.0
    %1090 = vmatpush2.xpose.msra.mxu0 0.0
    %1091 = vmatprep.mubr.f32.mxu0 0.0
    %1092 = vmatmul.mubr.f32.gmra.mxu0 %v1023
    %v1093 = vpop.f32.mrf.mxu0
    %v1094 = vadd.f32 0.0, %v1093
    %v1095 = vpop.f32.mrf.mxu0
    %1096 = vdwg.mxu0
    %v1097 = vmul.f32 %v1094, 0.35355338
    %v1098 = vadd.f32 %v1097, %v544
    %v1099 = vsel %vm688, %v1098, -inf
    %1100 = vmax.xlane.f32.xlu0 %v1099
    %v1101 = vpop.xlane.xlu0 %1100
    %v1102 = vsub.f32 %v1098, %v1101
    %v1103 = vmul.f32 %v1102, 1.442695
    %v1104 = vpow.pop %v1103
    %v1105 = vsel %vm688, %v1104, 0.0
    %1106 = vadd.xlane.f32.xlu0 %v1105
    %v1107 = vpop.xlane.xlu0 %1106
    %v1108 = vrcp.pop %v1107
    %v1109 = vmul.f32 %v1104, %v1108
    %1110 = vrot.lane.b32.xlu0 %v677, 48
    %v1111 = vpop.permute.xlu0 %1110
    %v1114 = vsel %vm688, %v1109, 0
    %1116 = vmatprep.subr.mxu0 0.0
    %1117 = vmatpush1.msra.mxu0 0.0
    %1118 = vmatprep.subr.mxu0 0.0
    %1119 = vmatpush1.msra.mxu0 0.0
    %1120 = vmatprep.subr.mxu0 0.0
    %1121 = vmatpush1.msra.mxu0 0.0
    %1122 = vmatprep.subr.mxu0 0.0
    %1123 = vmatpush1.msra.mxu0 0.0
    %1124 = vmatprep.subr.mxu0 0.0
    %1125 = vmatpush1.msra.mxu0 0.0
    %1126 = vmatprep.subr.mxu0 0.0
    %1127 = vmatpush1.msra.mxu0 0.0
    %1128 = vmatprep.subr.mxu0 0.0
    %1129 = vmatpush1.msra.mxu0 0.0
    %1130 = vmatprep.subr.mxu0 0.0
    %1131 = vmatpush1.msra.mxu0 0.0
    %1132 = vmatprep.subr.mxu0 0.0
    %1133 = vmatpush1.msra.mxu0 0.0
    %1134 = vmatprep.subr.mxu0 0.0
    %1135 = vmatpush1.msra.mxu0 0.0
    %1136 = vmatprep.subr.mxu0 0.0
    %1137 = vmatpush1.msra.mxu0 0.0
    %1138 = vmatprep.subr.mxu0 0.0
    %1139 = vmatpush1.msra.mxu0 0.0
    %1140 = vmatprep.subr.mxu0 0.0
    %1141 = vmatpush1.msra.mxu0 0.0
    %1142 = vmatprep.subr.mxu0 0.0
    %1143 = vmatpush1.msra.mxu0 0.0
    %1144 = vmatprep.subr.mxu0 0.0
    %1145 = vmatpush1.msra.mxu0 0.0
    %1146 = vmatprep.subr.mxu0 0.0
    %1147 = vmatpush1.msra.mxu0 %v1111
    %1148 = vmatprep.subr.mxu0 0.0
    %1149 = vmatpush2.msra.mxu0 0.0
    %1150 = vmatprep.subr.mxu0 0.0
    %1151 = vmatpush2.msra.mxu0 0.0
    %1152 = vmatprep.subr.mxu0 0.0
    %1153 = vmatpush2.msra.mxu0 0.0
    %1154 = vmatprep.subr.mxu0 0.0
    %1155 = vmatpush2.msra.mxu0 0.0
    %1156 = vmatprep.subr.mxu0 0.0
    %1157 = vmatpush2.msra.mxu0 0.0
    %1158 = vmatprep.subr.mxu0 0.0
    %1159 = vmatpush2.msra.mxu0 0.0
    %1160 = vmatprep.subr.mxu0 0.0
    %1161 = vmatpush2.msra.mxu0 0.0
    %1162 = vmatprep.subr.mxu0 0.0
    %1163 = vmatpush2.msra.mxu0 0.0
    %1164 = vmatprep.subr.mxu0 0.0
    %1165 = vmatpush2.msra.mxu0 0.0
    %1166 = vmatprep.subr.mxu0 0.0
    %1167 = vmatpush2.msra.mxu0 0.0
    %1168 = vmatprep.subr.mxu0 0.0
    %1169 = vmatpush2.msra.mxu0 0.0
    %1170 = vmatprep.subr.mxu0 0.0
    %1171 = vmatpush2.msra.mxu0 0.0
    %1172 = vmatprep.subr.mxu0 0.0
    %1173 = vmatpush2.msra.mxu0 0.0
    %1174 = vmatprep.subr.mxu0 0.0
    %1175 = vmatpush2.msra.mxu0 0.0
    %1176 = vmatprep.subr.mxu0 0.0
    %1177 = vmatpush2.msra.mxu0 0.0
    %1178 = vmatprep.subr.mxu0 0.0
    %1179 = vmatpush2.msra.mxu0 0.0
    %1180 = vmatprep.mubr.f32.mxu0 0.0
    %1181 = vmatmul.mubr.f32.gmra.mxu0 %v1114
    %v1182 = vpop.f32.mrf.mxu0
    %v1183 = vadd.f32 0.0, %v1182
    %v1184 = vpop.f32.mrf.mxu0
    %1185 = vdwg.mxu0
    %1186 = vrot.lane.b32.xlu0 %v677, 104
    %v1187 = vpop.permute.xlu0 %1186
    %1188 = vrot.lane.b32.xlu0 %v677, 72
    %v1189 = vpop.permute.xlu0 %1188
    %v1190 = vsel %vm688, %v1187, 0
    %v1192 = vsel %vm688, %v1189, 0
    %1194 = vmatprep.subr.mxu0 0.0
    %1195 = vmatpush1.xpose.msra.mxu0 0.0
    %1196 = vmatprep.subr.mxu0 0.0
    %1197 = vmatpush1.xpose.msra.mxu0 0.0
    %1198 = vmatprep.subr.mxu0 0.0
    %1199 = vmatpush1.xpose.msra.mxu0 0.0
    %1200 = vmatprep.subr.mxu0 0.0
    %1201 = vmatpush1.xpose.msra.mxu0 0.0
    %1202 = vmatprep.subr.mxu0 0.0
    %1203 = vmatpush1.xpose.msra.mxu0 0.0
    %1204 = vmatprep.subr.mxu0 0.0
    %1205 = vmatpush1.xpose.msra.mxu0 0.0
    %1206 = vmatprep.subr.mxu0 0.0
    %1207 = vmatpush1.xpose.msra.mxu0 0.0
    %1208 = vmatprep.subr.mxu0 0.0
    %1209 = vmatpush1.xpose.msra.mxu0 0.0
    %1210 = vmatprep.subr.mxu0 0.0
    %1211 = vmatpush1.xpose.msra.mxu0 0.0
    %1212 = vmatprep.subr.mxu0 0.0
    %1213 = vmatpush1.xpose.msra.mxu0 0.0
    %1214 = vmatprep.subr.mxu0 0.0
    %1215 = vmatpush1.xpose.msra.mxu0 0.0
    %1216 = vmatprep.subr.mxu0 0.0
    %1217 = vmatpush1.xpose.msra.mxu0 0.0
    %1218 = vmatprep.subr.mxu0 0.0
    %1219 = vmatpush1.xpose.msra.mxu0 0.0
    %1220 = vmatprep.subr.mxu0 0.0
    %1221 = vmatpush1.xpose.msra.mxu0 0.0
    %1222 = vmatprep.subr.mxu0 0.0
    %1223 = vmatpush1.xpose.msra.mxu0 0.0
    %1224 = vmatprep.subr.mxu0 0.0
    %1225 = vmatpush1.xpose.msra.mxu0 %v1192
    %1226 = vmatprep.subr.mxu0 0.0
    %1227 = vmatpush2.xpose.msra.mxu0 0.0
    %1228 = vmatprep.subr.mxu0 0.0
    %1229 = vmatpush2.xpose.msra.mxu0 0.0
    %1230 = vmatprep.subr.mxu0 0.0
    %1231 = vmatpush2.xpose.msra.mxu0 0.0
    %1232 = vmatprep.subr.mxu0 0.0
    %1233 = vmatpush2.xpose.msra.mxu0 0.0
    %1234 = vmatprep.subr.mxu0 0.0
    %1235 = vmatpush2.xpose.msra.mxu0 0.0
    %1236 = vmatprep.subr.mxu0 0.0
    %1237 = vmatpush2.xpose.msra.mxu0 0.0
    %1238 = vmatprep.subr.mxu0 0.0
    %1239 = vmatpush2.xpose.msra.mxu0 0.0
    %1240 = vmatprep.subr.mxu0 0.0
    %1241 = vmatpush2.xpose.msra.mxu0 0.0
    %1242 = vmatprep.subr.mxu0 0.0
    %1243 = vmatpush2.xpose.msra.mxu0 0.0
    %1244 = vmatprep.subr.mxu0 0.0
    %1245 = vmatpush2.xpose.msra.mxu0 0.0
    %1246 = vmatprep.subr.mxu0 0.0
    %1247 = vmatpush2.xpose.msra.mxu0 0.0
    %1248 = vmatprep.subr.mxu0 0.0
    %1249 = vmatpush2.xpose.msra.mxu0 0.0
    %1250 = vmatprep.subr.mxu0 0.0
    %1251 = vmatpush2.xpose.msra.mxu0 0.0
    %1252 = vmatprep.subr.mxu0 0.0
    %1253 = vmatpush2.xpose.msra.mxu0 0.0
    %1254 = vmatprep.subr.mxu0 0.0
    %1255 = vmatpush2.xpose.msra.mxu0 0.0
    %1256 = vmatprep.subr.mxu0 0.0
    %1257 = vmatpush2.xpose.msra.mxu0 0.0
    %1258 = vmatprep.mubr.f32.mxu0 0.0
    %1259 = vmatmul.mubr.f32.gmra.mxu0 %v1190
    %v1260 = vpop.f32.mrf.mxu0
    %v1261 = vadd.f32 0.0, %v1260
    %v1262 = vpop.f32.mrf.mxu0
    %1263 = vdwg.mxu0
    %v1264 = vmul.f32 %v1261, 0.35355338
    %v1265 = vadd.f32 %v1264, %v544
    %v1266 = vsel %vm688, %v1265, -inf
    %1267 = vmax.xlane.f32.xlu0 %v1266
    %v1268 = vpop.xlane.xlu0 %1267
    %v1269 = vsub.f32 %v1265, %v1268
    %v1270 = vmul.f32 %v1269, 1.442695
    %v1271 = vpow.pop %v1270
    %v1272 = vsel %vm688, %v1271, 0.0
    %1273 = vadd.xlane.f32.xlu0 %v1272
    %v1274 = vpop.xlane.xlu0 %1273
    %v1275 = vrcp.pop %v1274
    %v1276 = vmul.f32 %v1271, %v1275
    %1277 = vrot.lane.b32.xlu0 %v677, 40
    %v1278 = vpop.permute.xlu0 %1277
    %v1281 = vsel %vm688, %v1276, 0
    %1283 = vmatprep.subr.mxu0 0.0
    %1284 = vmatpush1.msra.mxu0 0.0
    %1285 = vmatprep.subr.mxu0 0.0
    %1286 = vmatpush1.msra.mxu0 0.0
    %1287 = vmatprep.subr.mxu0 0.0
    %1288 = vmatpush1.msra.mxu0 0.0
    %1289 = vmatprep.subr.mxu0 0.0
    %1290 = vmatpush1.msra.mxu0 0.0
    %1291 = vmatprep.subr.mxu0 0.0
    %1292 = vmatpush1.msra.mxu0 0.0
    %1293 = vmatprep.subr.mxu0 0.0
    %1294 = vmatpush1.msra.mxu0 0.0
    %1295 = vmatprep.subr.mxu0 0.0
    %1296 = vmatpush1.msra.mxu0 0.0
    %1297 = vmatprep.subr.mxu0 0.0
    %1298 = vmatpush1.msra.mxu0 0.0
    %1299 = vmatprep.subr.mxu0 0.0
    %1300 = vmatpush1.msra.mxu0 0.0
    %1301 = vmatprep.subr.mxu0 0.0
    %1302 = vmatpush1.msra.mxu0 0.0
    %1303 = vmatprep.subr.mxu0 0.0
    %1304 = vmatpush1.msra.mxu0 0.0
    %1305 = vmatprep.subr.mxu0 0.0
    %1306 = vmatpush1.msra.mxu0 0.0
    %1307 = vmatprep.subr.mxu0 0.0
    %1308 = vmatpush1.msra.mxu0 0.0
    %1309 = vmatprep.subr.mxu0 0.0
    %1310 = vmatpush1.msra.mxu0 0.0
    %1311 = vmatprep.subr.mxu0 0.0
    %1312 = vmatpush1.msra.mxu0 0.0
    %1313 = vmatprep.subr.mxu0 0.0
    %1314 = vmatpush1.msra.mxu0 %v1278
    %1315 = vmatprep.subr.mxu0 0.0
    %1316 = vmatpush2.msra.mxu0 0.0
    %1317 = vmatprep.subr.mxu0 0.0
    %1318 = vmatpush2.msra.mxu0 0.0
    %1319 = vmatprep.subr.mxu0 0.0
    %1320 = vmatpush2.msra.mxu0 0.0
    %1321 = vmatprep.subr.mxu0 0.0
    %1322 = vmatpush2.msra.mxu0 0.0
    %1323 = vmatprep.subr.mxu0 0.0
    %1324 = vmatpush2.msra.mxu0 0.0
    %1325 = vmatprep.subr.mxu0 0.0
    %1326 = vmatpush2.msra.mxu0 0.0
    %1327 = vmatprep.subr.mxu0 0.0
    %1328 = vmatpush2.msra.mxu0 0.0
    %1329 = vmatprep.subr.mxu0 0.0
    %1330 = vmatpush2.msra.mxu0 0.0
    %1331 = vmatprep.subr.mxu0 0.0
    %1332 = vmatpush2.msra.mxu0 0.0
    %1333 = vmatprep.subr.mxu0 0.0
    %1334 = vmatpush2.msra.mxu0 0.0
    %1335 = vmatprep.subr.mxu0 0.0
    %1336 = vmatpush2.msra.mxu0 0.0
    %1337 = vmatprep.subr.mxu0 0.0
    %1338 = vmatpush2.msra.mxu0 0.0
    %1339 = vmatprep.subr.mxu0 0.0
    %1340 = vmatpush2.msra.mxu0 0.0
    %1341 = vmatprep.subr.mxu0 0.0
    %1342 = vmatpush2.msra.mxu0 0.0
    %1343 = vmatprep.subr.mxu0 0.0
    %1344 = vmatpush2.msra.mxu0 0.0
    %1345 = vmatprep.subr.mxu0 0.0
    %1346 = vmatpush2.msra.mxu0 0.0
    %1347 = vmatprep.mubr.f32.mxu0 0.0
    %1348 = vmatmul.mubr.f32.gmra.mxu0 %v1281
    %v1349 = vpop.f32.mrf.mxu0
    %v1350 = vadd.f32 0.0, %v1349
    %v1351 = vpop.f32.mrf.mxu0
    %1352 = vdwg.mxu0
    %1354 = vrot.lane.b32.xlu0 %v1016, 8
    %v1355 = vpop.permute.xlu0 %1354
    %1358 = vrot.lane.b32.xlu0 %v1183, 16
    %v1359 = vpop.permute.xlu0 %1358
    %1362 = vrot.lane.b32.xlu0 %v1350, 24
    %v1363 = vpop.permute.xlu0 %1362
    %v1365 = vsel %vm688, %v849, %v1355
    %vm1366 = vcmask 130048
    %v1367 = vsel %vm1366, %v1365, %v1359
    %vm1368 = vcmask 195584
    %v1369 = vsel %vm1368, %v1367, %v1363
    %1371 = vrot.lane.b32.xlu0 %v682, 96
    %v1372 = vpop.permute.xlu0 %1371
    %v1373 = vsel %vm688, %v682, 0
    %v1375 = vsel %vm688, %v1372, 0
    %1377 = vmatprep.subr.mxu0 0.0
    %1378 = vmatpush1.xpose.msra.mxu0 0.0
    %1379 = vmatprep.subr.mxu0 0.0
    %1380 = vmatpush1.xpose.msra.mxu0 0.0
    %1381 = vmatprep.subr.mxu0 0.0
    %1382 = vmatpush1.xpose.msra.mxu0 0.0
    %1383 = vmatprep.subr.mxu0 0.0
    %1384 = vmatpush1.xpose.msra.mxu0 0.0
    %1385 = vmatprep.subr.mxu0 0.0
    %1386 = vmatpush1.xpose.msra.mxu0 0.0
    %1387 = vmatprep.subr.mxu0 0.0
    %1388 = vmatpush1.xpose.msra.mxu0 0.0
    %1389 = vmatprep.subr.mxu0 0.0
    %1390 = vmatpush1.xpose.msra.mxu0 0.0
    %1391 = vmatprep.subr.mxu0 0.0
    %1392 = vmatpush1.xpose.msra.mxu0 0.0
    %1393 = vmatprep.subr.mxu0 0.0
    %1394 = vmatpush1.xpose.msra.mxu0 0.0
    %1395 = vmatprep.subr.mxu0 0.0
    %1396 = vmatpush1.xpose.msra.mxu0 0.0
    %1397 = vmatprep.subr.mxu0 0.0
    %1398 = vmatpush1.xpose.msra.mxu0 0.0
    %1399 = vmatprep.subr.mxu0 0.0
    %1400 = vmatpush1.xpose.msra.mxu0 0.0
    %1401 = vmatprep.subr.mxu0 0.0
    %1402 = vmatpush1.xpose.msra.mxu0 0.0
    %1403 = vmatprep.subr.mxu0 0.0
    %1404 = vmatpush1.xpose.msra.mxu0 0.0
    %1405 = vmatprep.subr.mxu0 0.0
    %1406 = vmatpush1.xpose.msra.mxu0 0.0
    %1407 = vmatprep.subr.mxu0 0.0
    %1408 = vmatpush1.xpose.msra.mxu0 %v1375
    %1409 = vmatprep.subr.mxu0 0.0
    %1410 = vmatpush2.xpose.msra.mxu0 0.0
    %1411 = vmatprep.subr.mxu0 0.0
    %1412 = vmatpush2.xpose.msra.mxu0 0.0
    %1413 = vmatprep.subr.mxu0 0.0
    %1414 = vmatpush2.xpose.msra.mxu0 0.0
    %1415 = vmatprep.subr.mxu0 0.0
    %1416 = vmatpush2.xpose.msra.mxu0 0.0
    %1417 = vmatprep.subr.mxu0 0.0
    %1418 = vmatpush2.xpose.msra.mxu0 0.0
    %1419 = vmatprep.subr.mxu0 0.0
    %1420 = vmatpush2.xpose.msra.mxu0 0.0
    %1421 = vmatprep.subr.mxu0 0.0
    %1422 = vmatpush2.xpose.msra.mxu0 0.0
    %1423 = vmatprep.subr.mxu0 0.0
    %1424 = vmatpush2.xpose.msra.mxu0 0.0
    %1425 = vmatprep.subr.mxu0 0.0
    %1426 = vmatpush2.xpose.msra.mxu0 0.0
    %1427 = vmatprep.subr.mxu0 0.0
    %1428 = vmatpush2.xpose.msra.mxu0 0.0
    %1429 = vmatprep.subr.mxu0 0.0
    %1430 = vmatpush2.xpose.msra.mxu0 0.0
    %1431 = vmatprep.subr.mxu0 0.0
    %1432 = vmatpush2.xpose.msra.mxu0 0.0
    %1433 = vmatprep.subr.mxu0 0.0
    %1434 = vmatpush2.xpose.msra.mxu0 0.0
    %1435 = vmatprep.subr.mxu0 0.0
    %1436 = vmatpush2.xpose.msra.mxu0 0.0
    %1437 = vmatprep.subr.mxu0 0.0
    %1438 = vmatpush2.xpose.msra.mxu0 0.0
    %1439 = vmatprep.subr.mxu0 0.0
    %1440 = vmatpush2.xpose.msra.mxu0 0.0
    %1441 = vmatprep.mubr.f32.mxu0 0.0
    %1442 = vmatmul.mubr.f32.gmra.mxu0 %v1373
    %v1443 = vpop.f32.mrf.mxu0
    %v1444 = vadd.f32 0.0, %v1443
    %v1445 = vpop.f32.mrf.mxu0
    %1446 = vdwg.mxu0
    %v1447 = vmul.f32 %v1444, 0.35355338
    %v1448 = vadd.f32 %v1447, %v545
    %v1449 = vsel %vm688, %v1448, -inf
    %1450 = vmax.xlane.f32.xlu0 %v1449
    %v1451 = vpop.xlane.xlu0 %1450
    %v1452 = vsub.f32 %v1448, %v1451
    %v1453 = vmul.f32 %v1452, 1.442695
    %v1454 = vpow.pop %v1453
    %v1455 = vsel %vm688, %v1454, 0.0
    %1456 = vadd.xlane.f32.xlu0 %v1455
    %v1457 = vpop.xlane.xlu0 %1456
    %v1458 = vrcp.pop %v1457
    %v1459 = vmul.f32 %v1454, %v1458
    %1460 = vrot.lane.b32.xlu0 %v682, 64
    %v1461 = vpop.permute.xlu0 %1460
    %v1464 = vsel %vm688, %v1459, 0
    %1466 = vmatprep.subr.mxu0 0.0
    %1467 = vmatpush1.msra.mxu0 0.0
    %1468 = vmatprep.subr.mxu0 0.0
    %1469 = vmatpush1.msra.mxu0 0.0
    %1470 = vmatprep.subr.mxu0 0.0
    %1471 = vmatpush1.msra.mxu0 0.0
    %1472 = vmatprep.subr.mxu0 0.0
    %1473 = vmatpush1.msra.mxu0 0.0
    %1474 = vmatprep.subr.mxu0 0.0
    %1475 = vmatpush1.msra.mxu0 0.0
    %1476 = vmatprep.subr.mxu0 0.0
    %1477 = vmatpush1.msra.mxu0 0.0
    %1478 = vmatprep.subr.mxu0 0.0
    %1479 = vmatpush1.msra.mxu0 0.0
    %1480 = vmatprep.subr.mxu0 0.0
    %1481 = vmatpush1.msra.mxu0 0.0
    %1482 = vmatprep.subr.mxu0 0.0
    %1483 = vmatpush1.msra.mxu0 0.0
    %1484 = vmatprep.subr.mxu0 0.0
    %1485 = vmatpush1.msra.mxu0 0.0
    %1486 = vmatprep.subr.mxu0 0.0
    %1487 = vmatpush1.msra.mxu0 0.0
    %1488 = vmatprep.subr.mxu0 0.0
    %1489 = vmatpush1.msra.mxu0 0.0
    %1490 = vmatprep.subr.mxu0 0.0
    %1491 = vmatpush1.msra.mxu0 0.0
    %1492 = vmatprep.subr.mxu0 0.0
    %1493 = vmatpush1.msra.mxu0 0.0
    %1494 = vmatprep.subr.mxu0 0.0
    %1495 = vmatpush1.msra.mxu0 0.0
    %1496 = vmatprep.subr.mxu0 0.0
    %1497 = vmatpush1.msra.mxu0 %v1461
    %1498 = vmatprep.subr.mxu0 0.0
    %1499 = vmatpush2.msra.mxu0 0.0
    %1500 = vmatprep.subr.mxu0 0.0
    %1501 = vmatpush2.msra.mxu0 0.0
    %1502 = vmatprep.subr.mxu0 0.0
    %1503 = vmatpush2.msra.mxu0 0.0
    %1504 = vmatprep.subr.mxu0 0.0
    %1505 = vmatpush2.msra.mxu0 0.0
    %1506 = vmatprep.subr.mxu0 0.0
    %1507 = vmatpush2.msra.mxu0 0.0
    %1508 = vmatprep.subr.mxu0 0.0
    %1509 = vmatpush2.msra.mxu0 0.0
    %1510 = vmatprep.subr.mxu0 0.0
    %1511 = vmatpush2.msra.mxu0 0.0
    %1512 = vmatprep.subr.mxu0 0.0
    %1513 = vmatpush2.msra.mxu0 0.0
    %1514 = vmatprep.subr.mxu0 0.0
    %1515 = vmatpush2.msra.mxu0 0.0
    %1516 = vmatprep.subr.mxu0 0.0
    %1517 = vmatpush2.msra.mxu0 0.0
    %1518 = vmatprep.subr.mxu0 0.0
    %1519 = vmatpush2.msra.mxu0 0.0
    %1520 = vmatprep.subr.mxu0 0.0
    %1521 = vmatpush2.msra.mxu0 0.0
    %1522 = vmatprep.subr.mxu0 0.0
    %1523 = vmatpush2.msra.mxu0 0.0
    %1524 = vmatprep.subr.mxu0 0.0
    %1525 = vmatpush2.msra.mxu0 0.0
    %1526 = vmatprep.subr.mxu0 0.0
    %1527 = vmatpush2.msra.mxu0 0.0
    %1528 = vmatprep.subr.mxu0 0.0
    %1529 = vmatpush2.msra.mxu0 0.0
    %1530 = vmatprep.mubr.f32.mxu0 0.0
    %1531 = vmatmul.mubr.f32.gmra.mxu0 %v1464
    %v1532 = vpop.f32.mrf.mxu0
    %v1533 = vadd.f32 0.0, %v1532
    %v1534 = vpop.f32.mrf.mxu0
    %1535 = vdwg.mxu0
    %1536 = vrot.lane.b32.xlu0 %v682, 120
    %v1537 = vpop.permute.xlu0 %1536
    %1538 = vrot.lane.b32.xlu0 %v682, 88
    %v1539 = vpop.permute.xlu0 %1538
    %v1540 = vsel %vm688, %v1537, 0
    %v1542 = vsel %vm688, %v1539, 0
    %1544 = vmatprep.subr.mxu0 0.0
    %1545 = vmatpush1.xpose.msra.mxu0 0.0
    %1546 = vmatprep.subr.mxu0 0.0
    %1547 = vmatpush1.xpose.msra.mxu0 0.0
    %1548 = vmatprep.subr.mxu0 0.0
    %1549 = vmatpush1.xpose.msra.mxu0 0.0
    %1550 = vmatprep.subr.mxu0 0.0
    %1551 = vmatpush1.xpose.msra.mxu0 0.0
    %1552 = vmatprep.subr.mxu0 0.0
    %1553 = vmatpush1.xpose.msra.mxu0 0.0
    %1554 = vmatprep.subr.mxu0 0.0
    %1555 = vmatpush1.xpose.msra.mxu0 0.0
    %1556 = vmatprep.subr.mxu0 0.0
    %1557 = vmatpush1.xpose.msra.mxu0 0.0
    %1558 = vmatprep.subr.mxu0 0.0
    %1559 = vmatpush1.xpose.msra.mxu0 0.0
    %1560 = vmatprep.subr.mxu0 0.0
    %1561 = vmatpush1.xpose.msra.mxu0 0.0
    %1562 = vmatprep.subr.mxu0 0.0
    %1563 = vmatpush1.xpose.msra.mxu0 0.0
    %1564 = vmatprep.subr.mxu0 0.0
    %1565 = vmatpush1.xpose.msra.mxu0 0.0
    %1566 = vmatprep.subr.mxu0 0.0
    %1567 = vmatpush1.xpose.msra.mxu0 0.0
    %1568 = vmatprep.subr.mxu0 0.0
    %1569 = vmatpush1.xpose.msra.mxu0 0.0
    %1570 = vmatprep.subr.mxu0 0.0
    %1571 = vmatpush1.xpose.msra.mxu0 0.0
    %1572 = vmatprep.subr.mxu0 0.0
    %1573 = vmatpush1.xpose.msra.mxu0 0.0
    %1574 = vmatprep.subr.mxu0 0.0
    %1575 = vmatpush1.xpose.msra.mxu0 %v1542
    %1576 = vmatprep.subr.mxu0 0.0
    %1577 = vmatpush2.xpose.msra.mxu0 0.0
    %1578 = vmatprep.subr.mxu0 0.0
    %1579 = vmatpush2.xpose.msra.mxu0 0.0
    %1580 = vmatprep.subr.mxu0 0.0
    %1581 = vmatpush2.xpose.msra.mxu0 0.0
    %1582 = vmatprep.subr.mxu0 0.0
    %1583 = vmatpush2.xpose.msra.mxu0 0.0
    %1584 = vmatprep.subr.mxu0 0.0
    %1585 = vmatpush2.xpose.msra.mxu0 0.0
    %1586 = vmatprep.subr.mxu0 0.0
    %1587 = vmatpush2.xpose.msra.mxu0 0.0
    %1588 = vmatprep.subr.mxu0 0.0
    %1589 = vmatpush2.xpose.msra.mxu0 0.0
    %1590 = vmatprep.subr.mxu0 0.0
    %1591 = vmatpush2.xpose.msra.mxu0 0.0
    %1592 = vmatprep.subr.mxu0 0.0
    %1593 = vmatpush2.xpose.msra.mxu0 0.0
    %1594 = vmatprep.subr.mxu0 0.0
    %1595 = vmatpush2.xpose.msra.mxu0 0.0
    %1596 = vmatprep.subr.mxu0 0.0
    %1597 = vmatpush2.xpose.msra.mxu0 0.0
    %1598 = vmatprep.subr.mxu0 0.0
    %1599 = vmatpush2.xpose.msra.mxu0 0.0
    %1600 = vmatprep.subr.mxu0 0.0
    %1601 = vmatpush2.xpose.msra.mxu0 0.0
    %1602 = vmatprep.subr.mxu0 0.0
    %1603 = vmatpush2.xpose.msra.mxu0 0.0
    %1604 = vmatprep.subr.mxu0 0.0
    %1605 = vmatpush2.xpose.msra.mxu0 0.0
    %1606 = vmatprep.subr.mxu0 0.0
    %1607 = vmatpush2.xpose.msra.mxu0 0.0
    %1608 = vmatprep.mubr.f32.mxu0 0.0
    %1609 = vmatmul.mubr.f32.gmra.mxu0 %v1540
    %v1610 = vpop.f32.mrf.mxu0
    %v1611 = vadd.f32 0.0, %v1610
    %v1612 = vpop.f32.mrf.mxu0
    %1613 = vdwg.mxu0
    %v1614 = vmul.f32 %v1611, 0.35355338
    %v1615 = vadd.f32 %v1614, %v545
    %v1616 = vsel %vm688, %v1615, -inf
    %1617 = vmax.xlane.f32.xlu0 %v1616
    %v1618 = vpop.xlane.xlu0 %1617
    %v1619 = vsub.f32 %v1615, %v1618
    %v1620 = vmul.f32 %v1619, 1.442695
    %v1621 = vpow.pop %v1620
    %v1622 = vsel %vm688, %v1621, 0.0
    %1623 = vadd.xlane.f32.xlu0 %v1622
    %v1624 = vpop.xlane.xlu0 %1623
    %v1625 = vrcp.pop %v1624
    %v1626 = vmul.f32 %v1621, %v1625
    %1627 = vrot.lane.b32.xlu0 %v682, 56
    %v1628 = vpop.permute.xlu0 %1627
    %v1631 = vsel %vm688, %v1626, 0
    %1633 = vmatprep.subr.mxu0 0.0
    %1634 = vmatpush1.msra.mxu0 0.0
    %1635 = vmatprep.subr.mxu0 0.0
    %1636 = vmatpush1.msra.mxu0 0.0
    %1637 = vmatprep.subr.mxu0 0.0
    %1638 = vmatpush1.msra.mxu0 0.0
    %1639 = vmatprep.subr.mxu0 0.0
    %1640 = vmatpush1.msra.mxu0 0.0
    %1641 = vmatprep.subr.mxu0 0.0
    %1642 = vmatpush1.msra.mxu0 0.0
    %1643 = vmatprep.subr.mxu0 0.0
    %1644 = vmatpush1.msra.mxu0 0.0
    %1645 = vmatprep.subr.mxu0 0.0
    %1646 = vmatpush1.msra.mxu0 0.0
    %1647 = vmatprep.subr.mxu0 0.0
    %1648 = vmatpush1.msra.mxu0 0.0
    %1649 = vmatprep.subr.mxu0 0.0
    %1650 = vmatpush1.msra.mxu0 0.0
    %1651 = vmatprep.subr.mxu0 0.0
    %1652 = vmatpush1.msra.mxu0 0.0
    %1653 = vmatprep.subr.mxu0 0.0
    %1654 = vmatpush1.msra.mxu0 0.0
    %1655 = vmatprep.subr.mxu0 0.0
    %1656 = vmatpush1.msra.mxu0 0.0
    %1657 = vmatprep.subr.mxu0 0.0
    %1658 = vmatpush1.msra.mxu0 0.0
    %1659 = vmatprep.subr.mxu0 0.0
    %1660 = vmatpush1.msra.mxu0 0.0
    %1661 = vmatprep.subr.mxu0 0.0
    %1662 = vmatpush1.msra.mxu0 0.0
    %1663 = vmatprep.subr.mxu0 0.0
    %1664 = vmatpush1.msra.mxu0 %v1628
    %1665 = vmatprep.subr.mxu0 0.0
    %1666 = vmatpush2.msra.mxu0 0.0
    %1667 = vmatprep.subr.mxu0 0.0
    %1668 = vmatpush2.msra.mxu0 0.0
    %1669 = vmatprep.subr.mxu0 0.0
    %1670 = vmatpush2.msra.mxu0 0.0
    %1671 = vmatprep.subr.mxu0 0.0
    %1672 = vmatpush2.msra.mxu0 0.0
    %1673 = vmatprep.subr.mxu0 0.0
    %1674 = vmatpush2.msra.mxu0 0.0
    %1675 = vmatprep.subr.mxu0 0.0
    %1676 = vmatpush2.msra.mxu0 0.0
    %1677 = vmatprep.subr.mxu0 0.0
    %1678 = vmatpush2.msra.mxu0 0.0
    %1679 = vmatprep.subr.mxu0 0.0
    %1680 = vmatpush2.msra.mxu0 0.0
    %1681 = vmatprep.subr.mxu0 0.0
    %1682 = vmatpush2.msra.mxu0 0.0
    %1683 = vmatprep.subr.mxu0 0.0
    %1684 = vmatpush2.msra.mxu0 0.0
    %1685 = vmatprep.subr.mxu0 0.0
    %1686 = vmatpush2.msra.mxu0 0.0
    %1687 = vmatprep.subr.mxu0 0.0
    %1688 = vmatpush2.msra.mxu0 0.0
    %1689 = vmatprep.subr.mxu0 0.0
    %1690 = vmatpush2.msra.mxu0 0.0
    %1691 = vmatprep.subr.mxu0 0.0
    %1692 = vmatpush2.msra.mxu0 0.0
    %1693 = vmatprep.subr.mxu0 0.0
    %1694 = vmatpush2.msra.mxu0 0.0
    %1695 = vmatprep.subr.mxu0 0.0
    %1696 = vmatpush2.msra.mxu0 0.0
    %1697 = vmatprep.mubr.f32.mxu0 0.0
    %1698 = vmatmul.mubr.f32.gmra.mxu0 %v1631
    %v1699 = vpop.f32.mrf.mxu0
    %v1700 = vadd.f32 0.0, %v1699
    %v1701 = vpop.f32.mrf.mxu0
    %1702 = vdwg.mxu0
    %1703 = vrot.lane.b32.xlu0 %v682, 112
    %v1704 = vpop.permute.xlu0 %1703
    %1705 = vrot.lane.b32.xlu0 %v682, 80
    %v1706 = vpop.permute.xlu0 %1705
    %v1707 = vsel %vm688, %v1704, 0
    %v1709 = vsel %vm688, %v1706, 0
    %1711 = vmatprep.subr.mxu0 0.0
    %1712 = vmatpush1.xpose.msra.mxu0 0.0
    %1713 = vmatprep.subr.mxu0 0.0
    %1714 = vmatpush1.xpose.msra.mxu0 0.0
    %1715 = vmatprep.subr.mxu0 0.0
    %1716 = vmatpush1.xpose.msra.mxu0 0.0
    %1717 = vmatprep.subr.mxu0 0.0
    %1718 = vmatpush1.xpose.msra.mxu0 0.0
    %1719 = vmatprep.subr.mxu0 0.0
    %1720 = vmatpush1.xpose.msra.mxu0 0.0
    %1721 = vmatprep.subr.mxu0 0.0
    %1722 = vmatpush1.xpose.msra.mxu0 0.0
    %1723 = vmatprep.subr.mxu0 0.0
    %1724 = vmatpush1.xpose.msra.mxu0 0.0
    %1725 = vmatprep.subr.mxu0 0.0
    %1726 = vmatpush1.xpose.msra.mxu0 0.0
    %1727 = vmatprep.subr.mxu0 0.0
    %1728 = vmatpush1.xpose.msra.mxu0 0.0
    %1729 = vmatprep.subr.mxu0 0.0
    %1730 = vmatpush1.xpose.msra.mxu0 0.0
    %1731 = vmatprep.subr.mxu0 0.0
    %1732 = vmatpush1.xpose.msra.mxu0 0.0
    %1733 = vmatprep.subr.mxu0 0.0
    %1734 = vmatpush1.xpose.msra.mxu0 0.0
    %1735 = vmatprep.subr.mxu0 0.0
    %1736 = vmatpush1.xpose.msra.mxu0 0.0
    %1737 = vmatprep.subr.mxu0 0.0
    %1738 = vmatpush1.xpose.msra.mxu0 0.0
    %1739 = vmatprep.subr.mxu0 0.0
    %1740 = vmatpush1.xpose.msra.mxu0 0.0
    %1741 = vmatprep.subr.mxu0 0.0
    %1742 = vmatpush1.xpose.msra.mxu0 %v1709
    %1743 = vmatprep.subr.mxu0 0.0
    %1744 = vmatpush2.xpose.msra.mxu0 0.0
    %1745 = vmatprep.subr.mxu0 0.0
    %1746 = vmatpush2.xpose.msra.mxu0 0.0
    %1747 = vmatprep.subr.mxu0 0.0
    %1748 = vmatpush2.xpose.msra.mxu0 0.0
    %1749 = vmatprep.subr.mxu0 0.0
    %1750 = vmatpush2.xpose.msra.mxu0 0.0
    %1751 = vmatprep.subr.mxu0 0.0
    %1752 = vmatpush2.xpose.msra.mxu0 0.0
    %1753 = vmatprep.subr.mxu0 0.0
    %1754 = vmatpush2.xpose.msra.mxu0 0.0
    %1755 = vmatprep.subr.mxu0 0.0
    %1756 = vmatpush2.xpose.msra.mxu0 0.0
    %1757 = vmatprep.subr.mxu0 0.0
    %1758 = vmatpush2.xpose.msra.mxu0 0.0
    %1759 = vmatprep.subr.mxu0 0.0
    %1760 = vmatpush2.xpose.msra.mxu0 0.0
    %1761 = vmatprep.subr.mxu0 0.0
    %1762 = vmatpush2.xpose.msra.mxu0 0.0
    %1763 = vmatprep.subr.mxu0 0.0
    %1764 = vmatpush2.xpose.msra.mxu0 0.0
    %1765 = vmatprep.subr.mxu0 0.0
    %1766 = vmatpush2.xpose.msra.mxu0 0.0
    %1767 = vmatprep.subr.mxu0 0.0
    %1768 = vmatpush2.xpose.msra.mxu0 0.0
    %1769 = vmatprep.subr.mxu0 0.0
    %1770 = vmatpush2.xpose.msra.mxu0 0.0
    %1771 = vmatprep.subr.mxu0 0.0
    %1772 = vmatpush2.xpose.msra.mxu0 0.0
    %1773 = vmatprep.subr.mxu0 0.0
    %1774 = vmatpush2.xpose.msra.mxu0 0.0
    %1775 = vmatprep.mubr.f32.mxu0 0.0
    %1776 = vmatmul.mubr.f32.gmra.mxu0 %v1707
    %v1777 = vpop.f32.mrf.mxu0
    %v1778 = vadd.f32 0.0, %v1777
    %v1779 = vpop.f32.mrf.mxu0
    %1780 = vdwg.mxu0
    %v1781 = vmul.f32 %v1778, 0.35355338
    %v1782 = vadd.f32 %v1781, %v545
    %v1783 = vsel %vm688, %v1782, -inf
    %1784 = vmax.xlane.f32.xlu0 %v1783
    %v1785 = vpop.xlane.xlu0 %1784
    %v1786 = vsub.f32 %v1782, %v1785
    %v1787 = vmul.f32 %v1786, 1.442695
    %v1788 = vpow.pop %v1787
    %v1789 = vsel %vm688, %v1788, 0.0
    %1790 = vadd.xlane.f32.xlu0 %v1789
    %v1791 = vpop.xlane.xlu0 %1790
    %v1792 = vrcp.pop %v1791
    %v1793 = vmul.f32 %v1788, %v1792
    %1794 = vrot.lane.b32.xlu0 %v682, 48
    %v1795 = vpop.permute.xlu0 %1794
    %v1798 = vsel %vm688, %v1793, 0
    %1800 = vmatprep.subr.mxu0 0.0
    %1801 = vmatpush1.msra.mxu0 0.0
    %1802 = vmatprep.subr.mxu0 0.0
    %1803 = vmatpush1.msra.mxu0 0.0
    %1804 = vmatprep.subr.mxu0 0.0
    %1805 = vmatpush1.msra.mxu0 0.0
    %1806 = vmatprep.subr.mxu0 0.0
    %1807 = vmatpush1.msra.mxu0 0.0
    %1808 = vmatprep.subr.mxu0 0.0
    %1809 = vmatpush1.msra.mxu0 0.0
    %1810 = vmatprep.subr.mxu0 0.0
    %1811 = vmatpush1.msra.mxu0 0.0
    %1812 = vmatprep.subr.mxu0 0.0
    %1813 = vmatpush1.msra.mxu0 0.0
    %1814 = vmatprep.subr.mxu0 0.0
    %1815 = vmatpush1.msra.mxu0 0.0
    %1816 = vmatprep.subr.mxu0 0.0
    %1817 = vmatpush1.msra.mxu0 0.0
    %1818 = vmatprep.subr.mxu0 0.0
    %1819 = vmatpush1.msra.mxu0 0.0
    %1820 = vmatprep.subr.mxu0 0.0
    %1821 = vmatpush1.msra.mxu0 0.0
    %1822 = vmatprep.subr.mxu0 0.0
    %1823 = vmatpush1.msra.mxu0 0.0
    %1824 = vmatprep.subr.mxu0 0.0
    %1825 = vmatpush1.msra.mxu0 0.0
    %1826 = vmatprep.subr.mxu0 0.0
    %1827 = vmatpush1.msra.mxu0 0.0
    %1828 = vmatprep.subr.mxu0 0.0
    %1829 = vmatpush1.msra.mxu0 0.0
    %1830 = vmatprep.subr.mxu0 0.0
    %1831 = vmatpush1.msra.mxu0 %v1795
    %1832 = vmatprep.subr.mxu0 0.0
    %1833 = vmatpush2.msra.mxu0 0.0
    %1834 = vmatprep.subr.mxu0 0.0
    %1835 = vmatpush2.msra.mxu0 0.0
    %1836 = vmatprep.subr.mxu0 0.0
    %1837 = vmatpush2.msra.mxu0 0.0
    %1838 = vmatprep.subr.mxu0 0.0
    %1839 = vmatpush2.msra.mxu0 0.0
    %1840 = vmatprep.subr.mxu0 0.0
    %1841 = vmatpush2.msra.mxu0 0.0
    %1842 = vmatprep.subr.mxu0 0.0
    %1843 = vmatpush2.msra.mxu0 0.0
    %1844 = vmatprep.subr.mxu0 0.0
    %1845 = vmatpush2.msra.mxu0 0.0
    %1846 = vmatprep.subr.mxu0 0.0
    %1847 = vmatpush2.msra.mxu0 0.0
    %1848 = vmatprep.subr.mxu0 0.0
    %1849 = vmatpush2.msra.mxu0 0.0
    %1850 = vmatprep.subr.mxu0 0.0
    %1851 = vmatpush2.msra.mxu0 0.0
    %1852 = vmatprep.subr.mxu0 0.0
    %1853 = vmatpush2.msra.mxu0 0.0
    %1854 = vmatprep.subr.mxu0 0.0
    %1855 = vmatpush2.msra.mxu0 0.0
    %1856 = vmatprep.subr.mxu0 0.0
    %1857 = vmatpush2.msra.mxu0 0.0
    %1858 = vmatprep.subr.mxu0 0.0
    %1859 = vmatpush2.msra.mxu0 0.0
    %1860 = vmatprep.subr.mxu0 0.0
    %1861 = vmatpush2.msra.mxu0 0.0
    %1862 = vmatprep.subr.mxu0 0.0
    %1863 = vmatpush2.msra.mxu0 0.0
    %1864 = vmatprep.mubr.f32.mxu0 0.0
    %1865 = vmatmul.mubr.f32.gmra.mxu0 %v1798
    %v1866 = vpop.f32.mrf.mxu0
    %v1867 = vadd.f32 0.0, %v1866
    %v1868 = vpop.f32.mrf.mxu0
    %1869 = vdwg.mxu0
    %1870 = vrot.lane.b32.xlu0 %v682, 104
    %v1871 = vpop.permute.xlu0 %1870
    %1872 = vrot.lane.b32.xlu0 %v682, 72
    %v1873 = vpop.permute.xlu0 %1872
    %v1874 = vsel %vm688, %v1871, 0
    %v1876 = vsel %vm688, %v1873, 0
    %1878 = vmatprep.subr.mxu0 0.0
    %1879 = vmatpush1.xpose.msra.mxu0 0.0
    %1880 = vmatprep.subr.mxu0 0.0
    %1881 = vmatpush1.xpose.msra.mxu0 0.0
    %1882 = vmatprep.subr.mxu0 0.0
    %1883 = vmatpush1.xpose.msra.mxu0 0.0
    %1884 = vmatprep.subr.mxu0 0.0
    %1885 = vmatpush1.xpose.msra.mxu0 0.0
    %1886 = vmatprep.subr.mxu0 0.0
    %1887 = vmatpush1.xpose.msra.mxu0 0.0
    %1888 = vmatprep.subr.mxu0 0.0
    %1889 = vmatpush1.xpose.msra.mxu0 0.0
    %1890 = vmatprep.subr.mxu0 0.0
    %1891 = vmatpush1.xpose.msra.mxu0 0.0
    %1892 = vmatprep.subr.mxu0 0.0
    %1893 = vmatpush1.xpose.msra.mxu0 0.0
    %1894 = vmatprep.subr.mxu0 0.0
    %1895 = vmatpush1.xpose.msra.mxu0 0.0
    %1896 = vmatprep.subr.mxu0 0.0
    %1897 = vmatpush1.xpose.msra.mxu0 0.0
    %1898 = vmatprep.subr.mxu0 0.0
    %1899 = vmatpush1.xpose.msra.mxu0 0.0
    %1900 = vmatprep.subr.mxu0 0.0
    %1901 = vmatpush1.xpose.msra.mxu0 0.0
    %1902 = vmatprep.subr.mxu0 0.0
    %1903 = vmatpush1.xpose.msra.mxu0 0.0
    %1904 = vmatprep.subr.mxu0 0.0
    %1905 = vmatpush1.xpose.msra.mxu0 0.0
    %1906 = vmatprep.subr.mxu0 0.0
    %1907 = vmatpush1.xpose.msra.mxu0 0.0
    %1908 = vmatprep.subr.mxu0 0.0
    %1909 = vmatpush1.xpose.msra.mxu0 %v1876
    %1910 = vmatprep.subr.mxu0 0.0
    %1911 = vmatpush2.xpose.msra.mxu0 0.0
    %1912 = vmatprep.subr.mxu0 0.0
    %1913 = vmatpush2.xpose.msra.mxu0 0.0
    %1914 = vmatprep.subr.mxu0 0.0
    %1915 = vmatpush2.xpose.msra.mxu0 0.0
    %1916 = vmatprep.subr.mxu0 0.0
    %1917 = vmatpush2.xpose.msra.mxu0 0.0
    %1918 = vmatprep.subr.mxu0 0.0
    %1919 = vmatpush2.xpose.msra.mxu0 0.0
    %1920 = vmatprep.subr.mxu0 0.0
    %1921 = vmatpush2.xpose.msra.mxu0 0.0
    %1922 = vmatprep.subr.mxu0 0.0
    %1923 = vmatpush2.xpose.msra.mxu0 0.0
    %1924 = vmatprep.subr.mxu0 0.0
    %1925 = vmatpush2.xpose.msra.mxu0 0.0
    %1926 = vmatprep.subr.mxu0 0.0
    %1927 = vmatpush2.xpose.msra.mxu0 0.0
    %1928 = vmatprep.subr.mxu0 0.0
    %1929 = vmatpush2.xpose.msra.mxu0 0.0
    %1930 = vmatprep.subr.mxu0 0.0
    %1931 = vmatpush2.xpose.msra.mxu0 0.0
    %1932 = vmatprep.subr.mxu0 0.0
    %1933 = vmatpush2.xpose.msra.mxu0 0.0
    %1934 = vmatprep.subr.mxu0 0.0
    %1935 = vmatpush2.xpose.msra.mxu0 0.0
    %1936 = vmatprep.subr.mxu0 0.0
    %1937 = vmatpush2.xpose.msra.mxu0 0.0
    %1938 = vmatprep.subr.mxu0 0.0
    %1939 = vmatpush2.xpose.msra.mxu0 0.0
    %1940 = vmatprep.subr.mxu0 0.0
    %1941 = vmatpush2.xpose.msra.mxu0 0.0
    %1942 = vmatprep.mubr.f32.mxu0 0.0
    %1943 = vmatmul.mubr.f32.gmra.mxu0 %v1874
    %v1944 = vpop.f32.mrf.mxu0
    %v1945 = vadd.f32 0.0, %v1944
    %v1946 = vpop.f32.mrf.mxu0
    %1947 = vdwg.mxu0
    %v1948 = vmul.f32 %v1945, 0.35355338
    %v1949 = vadd.f32 %v1948, %v545
    %v1950 = vsel %vm688, %v1949, -inf
    %1951 = vmax.xlane.f32.xlu0 %v1950
    %v1952 = vpop.xlane.xlu0 %1951
    %v1953 = vsub.f32 %v1949, %v1952
    %v1954 = vmul.f32 %v1953, 1.442695
    %v1955 = vpow.pop %v1954
    %v1956 = vsel %vm688, %v1955, 0.0
    %1957 = vadd.xlane.f32.xlu0 %v1956
    %v1958 = vpop.xlane.xlu0 %1957
    %v1959 = vrcp.pop %v1958
    %v1960 = vmul.f32 %v1955, %v1959
    %1961 = vrot.lane.b32.xlu0 %v682, 40
    %v1962 = vpop.permute.xlu0 %1961
    %v1965 = vsel %vm688, %v1960, 0
    %1967 = vmatprep.subr.mxu0 0.0
    %1968 = vmatpush1.msra.mxu0 0.0
    %1969 = vmatprep.subr.mxu0 0.0
    %1970 = vmatpush1.msra.mxu0 0.0
    %1971 = vmatprep.subr.mxu0 0.0
    %1972 = vmatpush1.msra.mxu0 0.0
    %1973 = vmatprep.subr.mxu0 0.0
    %1974 = vmatpush1.msra.mxu0 0.0
    %1975 = vmatprep.subr.mxu0 0.0
    %1976 = vmatpush1.msra.mxu0 0.0
    %1977 = vmatprep.subr.mxu0 0.0
    %1978 = vmatpush1.msra.mxu0 0.0
    %1979 = vmatprep.subr.mxu0 0.0
    %1980 = vmatpush1.msra.mxu0 0.0
    %1981 = vmatprep.subr.mxu0 0.0
    %1982 = vmatpush1.msra.mxu0 0.0
    %1983 = vmatprep.subr.mxu0 0.0
    %1984 = vmatpush1.msra.mxu0 0.0
    %1985 = vmatprep.subr.mxu0 0.0
    %1986 = vmatpush1.msra.mxu0 0.0
    %1987 = vmatprep.subr.mxu0 0.0
    %1988 = vmatpush1.msra.mxu0 0.0
    %1989 = vmatprep.subr.mxu0 0.0
    %1990 = vmatpush1.msra.mxu0 0.0
    %1991 = vmatprep.subr.mxu0 0.0
    %1992 = vmatpush1.msra.mxu0 0.0
    %1993 = vmatprep.subr.mxu0 0.0
    %1994 = vmatpush1.msra.mxu0 0.0
    %1995 = vmatprep.subr.mxu0 0.0
    %1996 = vmatpush1.msra.mxu0 0.0
    %1997 = vmatprep.subr.mxu0 0.0
    %1998 = vmatpush1.msra.mxu0 %v1962
    %1999 = vmatprep.subr.mxu0 0.0
    %2000 = vmatpush2.msra.mxu0 0.0
    %2001 = vmatprep.subr.mxu0 0.0
    %2002 = vmatpush2.msra.mxu0 0.0
    %2003 = vmatprep.subr.mxu0 0.0
    %2004 = vmatpush2.msra.mxu0 0.0
    %2005 = vmatprep.subr.mxu0 0.0
    %2006 = vmatpush2.msra.mxu0 0.0
    %2007 = vmatprep.subr.mxu0 0.0
    %2008 = vmatpush2.msra.mxu0 0.0
    %2009 = vmatprep.subr.mxu0 0.0
    %2010 = vmatpush2.msra.mxu0 0.0
    %2011 = vmatprep.subr.mxu0 0.0
    %2012 = vmatpush2.msra.mxu0 0.0
    %2013 = vmatprep.subr.mxu0 0.0
    %2014 = vmatpush2.msra.mxu0 0.0
    %2015 = vmatprep.subr.mxu0 0.0
    %2016 = vmatpush2.msra.mxu0 0.0
    %2017 = vmatprep.subr.mxu0 0.0
    %2018 = vmatpush2.msra.mxu0 0.0
    %2019 = vmatprep.subr.mxu0 0.0
    %2020 = vmatpush2.msra.mxu0 0.0
    %2021 = vmatprep.subr.mxu0 0.0
    %2022 = vmatpush2.msra.mxu0 0.0
    %2023 = vmatprep.subr.mxu0 0.0
    %2024 = vmatpush2.msra.mxu0 0.0
    %2025 = vmatprep.subr.mxu0 0.0
    %2026 = vmatpush2.msra.mxu0 0.0
    %2027 = vmatprep.subr.mxu0 0.0
    %2028 = vmatpush2.msra.mxu0 0.0
    %2029 = vmatprep.subr.mxu0 0.0
    %2030 = vmatpush2.msra.mxu0 0.0
    %2031 = vmatprep.mubr.f32.mxu0 0.0
    %2032 = vmatmul.mubr.f32.gmra.mxu0 %v1965
    %v2033 = vpop.f32.mrf.mxu0
    %v2034 = vadd.f32 0.0, %v2033
    %v2035 = vpop.f32.mrf.mxu0
    %2036 = vdwg.mxu0
    %2038 = vrot.lane.b32.xlu0 %v1700, 8
    %v2039 = vpop.permute.xlu0 %2038
    %2042 = vrot.lane.b32.xlu0 %v1867, 16
    %v2043 = vpop.permute.xlu0 %2042
    %2046 = vrot.lane.b32.xlu0 %v2034, 24
    %v2047 = vpop.permute.xlu0 %2046
    %v2049 = vsel %vm688, %v1533, %v2039
    %v2050 = vsel %vm1366, %v2049, %v2043
    %v2051 = vsel %vm1368, %v2050, %v2047
    %v2053 = vlaneseq
    %v2054 = vshrl.u32 %v2053, 7
    %v2055 = vsub.s32 0, %v2054
    %v2056 = vrot.slane %v561, %v2055
    %v2059 = vsel %vm603, %v1369, 0
    %v2062 = vsel %vm603, %v2051, 0
    %2064 = vmatprep.subr.mxu0 0.0
    %2065 = vmatpush1.msra.mxu0 0.0
    %2066 = vmatprep.subr.mxu0 0.0
    %2067 = vmatpush1.msra.mxu0 0.0
    %2068 = vmatprep.subr.mxu0 0.0
    %2069 = vmatpush1.msra.mxu0 0.0
    %2070 = vmatprep.subr.mxu0 0.0
    %2071 = vmatpush1.msra.mxu0 0.0
    %2072 = vmatprep.subr.mxu0 0.0
    %2073 = vmatpush1.msra.mxu0 0.0
    %2074 = vmatprep.subr.mxu0 0.0
    %2075 = vmatpush1.msra.mxu0 0.0
    %2076 = vmatprep.subr.mxu0 0.0
    %2077 = vmatpush1.msra.mxu0 0.0
    %2078 = vmatprep.subr.mxu0 0.0
    %2079 = vmatpush1.msra.mxu0 0.0
    %2080 = vmatprep.subr.mxu0 0.0
    %2081 = vmatpush1.msra.mxu0 0.0
    %2082 = vmatprep.subr.mxu0 0.0
    %2083 = vmatpush1.msra.mxu0 0.0
    %2084 = vmatprep.subr.mxu0 0.0
    %2085 = vmatpush1.msra.mxu0 0.0
    %2086 = vmatprep.subr.mxu0 0.0
    %2087 = vmatpush1.msra.mxu0 0.0
    %2088 = vmatprep.subr.mxu0 0.0
    %2089 = vmatpush1.msra.mxu0 %v560
    %2090 = vmatprep.subr.mxu0 0.0
    %2091 = vmatpush1.msra.mxu0 %v559
    %2092 = vmatprep.subr.mxu0 0.0
    %2093 = vmatpush1.msra.mxu0 %v558
    %2094 = vmatprep.subr.mxu0 0.0
    %2095 = vmatpush1.msra.mxu0 %v557
    %2096 = vmatprep.subr.mxu0 0.0
    %2097 = vmatpush2.msra.mxu0 0.0
    %2098 = vmatprep.subr.mxu0 0.0
    %2099 = vmatpush2.msra.mxu0 0.0
    %2100 = vmatprep.subr.mxu0 0.0
    %2101 = vmatpush2.msra.mxu0 0.0
    %2102 = vmatprep.subr.mxu0 0.0
    %2103 = vmatpush2.msra.mxu0 0.0
    %2104 = vmatprep.subr.mxu0 0.0
    %2105 = vmatpush2.msra.mxu0 0.0
    %2106 = vmatprep.subr.mxu0 0.0
    %2107 = vmatpush2.msra.mxu0 0.0
    %2108 = vmatprep.subr.mxu0 0.0
    %2109 = vmatpush2.msra.mxu0 0.0
    %2110 = vmatprep.subr.mxu0 0.0
    %2111 = vmatpush2.msra.mxu0 0.0
    %2112 = vmatprep.subr.mxu0 0.0
    %2113 = vmatpush2.msra.mxu0 0.0
    %2114 = vmatprep.subr.mxu0 0.0
    %2115 = vmatpush2.msra.mxu0 0.0
    %2116 = vmatprep.subr.mxu0 0.0
    %2117 = vmatpush2.msra.mxu0 0.0
    %2118 = vmatprep.subr.mxu0 0.0
    %2119 = vmatpush2.msra.mxu0 0.0
    %2120 = vmatprep.subr.mxu0 0.0
    %2121 = vmatpush2.msra.mxu0 0.0
    %2122 = vmatprep.subr.mxu0 0.0
    %2123 = vmatpush2.msra.mxu0 0.0
    %2124 = vmatprep.subr.mxu0 0.0
    %2125 = vmatpush2.msra.mxu0 0.0
    %2126 = vmatprep.subr.mxu0 0.0
    %2127 = vmatpush2.msra.mxu0 0.0
    %2128 = vmatprep.mubr.f32.mxu0 0.0
    %2129 = vmatmul.mubr.f32.gmra.mxu0 %v2059
    %v2130 = vpop.f32.mrf.mxu0
    %v2131 = vadd.f32 %v2056, %v2130
    %v2132 = vpop.f32.mrf.mxu0
    %2133 = vmatprep.mubr.f32.mxu0 0.0
    %2134 = vmatmul.mubr.f32.gmra.mxu0 %v2062
    %v2135 = vpop.f32.mrf.mxu0
    %v2136 = vadd.f32 %v2056, %v2135
    %v2137 = vpop.f32.mrf.mxu0
    %2138 = vdwg.mxu0
    %v2139 = vadd.f32 %v536, %v2131
    %v2140 = vadd.f32 %v537, %v2136
    %v2141 = vsel %vm603, %v2139, 0.0
    %2142 = vadd.xlane.f32.xlu0 %v2141
    %v2143 = vpop.xlane.xlu0 %2142
    %v2144 = vsel %vm603, %v2140, 0.0
    %2145 = vadd.xlane.f32.xlu0 %v2144
    %v2146 = vpop.xlane.xlu0 %2145
    %v2147 = vrcp.pop 32.0
    %v2148 = vmul.f32 %v2143, %v2147
    %v2149 = vmul.f32 %v2146, %v2147
    %v2150 = vsub.f32 %v2139, %v2148
    %v2151 = vsub.f32 %v2140, %v2149
    %v2152 = vmul.f32 %v2150, %v2150
    %v2153 = vmul.f32 %v2151, %v2151
    %v2154 = vsel %vm603, %v2152, 0.0
    %2155 = vadd.xlane.f32.xlu0 %v2154
    %v2156 = vpop.xlane.xlu0 %2155
    %v2157 = vsel %vm603, %v2153, 0.0
    %2158 = vadd.xlane.f32.xlu0 %v2157
    %v2159 = vpop.xlane.xlu0 %2158
    %v2160 = vmul.f32 %v2156, %v2147
    %v2161 = vmul.f32 %v2159, %v2147
    %v2162 = vadd.f32 %v2160, 1e-05
    %v2163 = vadd.f32 %v2161, 1e-05
    %v2164 = vrsqrt.pop %v2162
    %v2165 = vrsqrt.pop %v2163
    %v2166 = vmul.f32 %v2150, %v2164
    %v2167 = vmul.f32 %v2151, %v2165
    %v2169 = vlaneseq
    %v2170 = vshrl.u32 %v2169, 7
    %v2171 = vsub.s32 0, %v2170
    %v2172 = vrot.slane %v591, %v2171
    %v2174 = vmul.f32 %v2166, %v2172
    %v2175 = vmul.f32 %v2167, %v2172
    %v2177 = vlaneseq
    %v2178 = vshrl.u32 %v2177, 7
    %v2179 = vsub.s32 0, %v2178
    %v2180 = vrot.slane %v592, %v2179
    %v2182 = vadd.f32 %v2174, %v2180
    %v2183 = vadd.f32 %v2175, %v2180
    %v2185 = vlaneseq
    %v2186 = vshrl.u32 %v2185, 7
    %v2187 = vsub.s32 0, %v2186
    %v2188 = vrot.slane %v566, %v2187
    %v2191 = vsel %vm603, %v2182, 0
    %v2194 = vsel %vm603, %v2183, 0
    %2196 = vmatprep.subr.mxu0 0.0
    %2197 = vmatpush1.msra.mxu0 0.0
    %2198 = vmatprep.subr.mxu0 0.0
    %2199 = vmatpush1.msra.mxu0 0.0
    %2200 = vmatprep.subr.mxu0 0.0
    %2201 = vmatpush1.msra.mxu0 0.0
    %2202 = vmatprep.subr.mxu0 0.0
    %2203 = vmatpush1.msra.mxu0 0.0
    %2204 = vmatprep.subr.mxu0 0.0
    %2205 = vmatpush1.msra.mxu0 0.0
    %2206 = vmatprep.subr.mxu0 0.0
    %2207 = vmatpush1.msra.mxu0 0.0
    %2208 = vmatprep.subr.mxu0 0.0
    %2209 = vmatpush1.msra.mxu0 0.0
    %2210 = vmatprep.subr.mxu0 0.0
    %2211 = vmatpush1.msra.mxu0 0.0
    %2212 = vmatprep.subr.mxu0 0.0
    %2213 = vmatpush1.msra.mxu0 0.0
    %2214 = vmatprep.subr.mxu0 0.0
    %2215 = vmatpush1.msra.mxu0 0.0
    %2216 = vmatprep.subr.mxu0 0.0
    %2217 = vmatpush1.msra.mxu0 0.0
    %2218 = vmatprep.subr.mxu0 0.0
    %2219 = vmatpush1.msra.mxu0 0.0
    %2220 = vmatprep.subr.mxu0 0.0
    %2221 = vmatpush1.msra.mxu0 %v565
    %2222 = vmatprep.subr.mxu0 0.0
    %2223 = vmatpush1.msra.mxu0 %v564
    %2224 = vmatprep.subr.mxu0 0.0
    %2225 = vmatpush1.msra.mxu0 %v563
    %2226 = vmatprep.subr.mxu0 0.0
    %2227 = vmatpush1.msra.mxu0 %v562
    %2228 = vmatprep.subr.mxu0 0.0
    %2229 = vmatpush2.msra.mxu0 0.0
    %2230 = vmatprep.subr.mxu0 0.0
    %2231 = vmatpush2.msra.mxu0 0.0
    %2232 = vmatprep.subr.mxu0 0.0
    %2233 = vmatpush2.msra.mxu0 0.0
    %2234 = vmatprep.subr.mxu0 0.0
    %2235 = vmatpush2.msra.mxu0 0.0
    %2236 = vmatprep.subr.mxu0 0.0
    %2237 = vmatpush2.msra.mxu0 0.0
    %2238 = vmatprep.subr.mxu0 0.0
    %2239 = vmatpush2.msra.mxu0 0.0
    %2240 = vmatprep.subr.mxu0 0.0
    %2241 = vmatpush2.msra.mxu0 0.0
    %2242 = vmatprep.subr.mxu0 0.0
    %2243 = vmatpush2.msra.mxu0 0.0
    %2244 = vmatprep.subr.mxu0 0.0
    %2245 = vmatpush2.msra.mxu0 0.0
    %2246 = vmatprep.subr.mxu0 0.0
    %2247 = vmatpush2.msra.mxu0 0.0
    %2248 = vmatprep.subr.mxu0 0.0
    %2249 = vmatpush2.msra.mxu0 0.0
    %2250 = vmatprep.subr.mxu0 0.0
    %2251 = vmatpush2.msra.mxu0 0.0
    %2252 = vmatprep.subr.mxu0 0.0
    %2253 = vmatpush2.msra.mxu0 0.0
    %2254 = vmatprep.subr.mxu0 0.0
    %2255 = vmatpush2.msra.mxu0 0.0
    %2256 = vmatprep.subr.mxu0 0.0
    %2257 = vmatpush2.msra.mxu0 0.0
    %2258 = vmatprep.subr.mxu0 0.0
    %2259 = vmatpush2.msra.mxu0 0.0
    %2260 = vmatprep.mubr.f32.mxu0 0.0
    %2261 = vmatmul.mubr.f32.gmra.mxu0 %v2191
    %v2262 = vpop.f32.mrf.mxu0
    %v2263 = vadd.f32 %v2188, %v2262
    %v2264 = vpop.f32.mrf.mxu0
    %2265 = vmatprep.mubr.f32.mxu0 0.0
    %2266 = vmatmul.mubr.f32.gmra.mxu0 %v2194
    %v2267 = vpop.f32.mrf.mxu0
    %v2268 = vadd.f32 %v2188, %v2267
    %v2269 = vpop.f32.mrf.mxu0
    %2270 = vdwg.mxu0
    %v2272 = vlaneseq
    %v2273 = vshrl.u32 %v2272, 7
    %v2274 = vsub.s32 0, %v2273
    %v2275 = vrot.slane %v571, %v2274
    %v2278 = vsel %vm603, %v538, 0
    %v2281 = vsel %vm603, %v539, 0
    %2283 = vmatprep.subr.mxu0 0.0
    %2284 = vmatpush1.msra.mxu0 0.0
    %2285 = vmatprep.subr.mxu0 0.0
    %2286 = vmatpush1.msra.mxu0 0.0
    %2287 = vmatprep.subr.mxu0 0.0
    %2288 = vmatpush1.msra.mxu0 0.0
    %2289 = vmatprep.subr.mxu0 0.0
    %2290 = vmatpush1.msra.mxu0 0.0
    %2291 = vmatprep.subr.mxu0 0.0
    %2292 = vmatpush1.msra.mxu0 0.0
    %2293 = vmatprep.subr.mxu0 0.0
    %2294 = vmatpush1.msra.mxu0 0.0
    %2295 = vmatprep.subr.mxu0 0.0
    %2296 = vmatpush1.msra.mxu0 0.0
    %2297 = vmatprep.subr.mxu0 0.0
    %2298 = vmatpush1.msra.mxu0 0.0
    %2299 = vmatprep.subr.mxu0 0.0
    %2300 = vmatpush1.msra.mxu0 0.0
    %2301 = vmatprep.subr.mxu0 0.0
    %2302 = vmatpush1.msra.mxu0 0.0
    %2303 = vmatprep.subr.mxu0 0.0
    %2304 = vmatpush1.msra.mxu0 0.0
    %2305 = vmatprep.subr.mxu0 0.0
    %2306 = vmatpush1.msra.mxu0 0.0
    %2307 = vmatprep.subr.mxu0 0.0
    %2308 = vmatpush1.msra.mxu0 %v570
    %2309 = vmatprep.subr.mxu0 0.0
    %2310 = vmatpush1.msra.mxu0 %v569
    %2311 = vmatprep.subr.mxu0 0.0
    %2312 = vmatpush1.msra.mxu0 %v568
    %2313 = vmatprep.subr.mxu0 0.0
    %2314 = vmatpush1.msra.mxu0 %v567
    %2315 = vmatprep.subr.mxu0 0.0
    %2316 = vmatpush2.msra.mxu0 0.0
    %2317 = vmatprep.subr.mxu0 0.0
    %2318 = vmatpush2.msra.mxu0 0.0
    %2319 = vmatprep.subr.mxu0 0.0
    %2320 = vmatpush2.msra.mxu0 0.0
    %2321 = vmatprep.subr.mxu0 0.0
    %2322 = vmatpush2.msra.mxu0 0.0
    %2323 = vmatprep.subr.mxu0 0.0
    %2324 = vmatpush2.msra.mxu0 0.0
    %2325 = vmatprep.subr.mxu0 0.0
    %2326 = vmatpush2.msra.mxu0 0.0
    %2327 = vmatprep.subr.mxu0 0.0
    %2328 = vmatpush2.msra.mxu0 0.0
    %2329 = vmatprep.subr.mxu0 0.0
    %2330 = vmatpush2.msra.mxu0 0.0
    %2331 = vmatprep.subr.mxu0 0.0
    %2332 = vmatpush2.msra.mxu0 0.0
    %2333 = vmatprep.subr.mxu0 0.0
    %2334 = vmatpush2.msra.mxu0 0.0
    %2335 = vmatprep.subr.mxu0 0.0
    %2336 = vmatpush2.msra.mxu0 0.0
    %2337 = vmatprep.subr.mxu0 0.0
    %2338 = vmatpush2.msra.mxu0 0.0
    %2339 = vmatprep.subr.mxu0 0.0
    %2340 = vmatpush2.msra.mxu0 0.0
    %2341 = vmatprep.subr.mxu0 0.0
    %2342 = vmatpush2.msra.mxu0 0.0
    %2343 = vmatprep.subr.mxu0 0.0
    %2344 = vmatpush2.msra.mxu0 0.0
    %2345 = vmatprep.subr.mxu0 0.0
    %2346 = vmatpush2.msra.mxu0 0.0
    %2347 = vmatprep.mubr.f32.mxu0 0.0
    %2348 = vmatmul.mubr.f32.gmra.mxu0 %v2278
    %v2349 = vpop.f32.mrf.mxu0
    %v2350 = vadd.f32 %v2275, %v2349
    %v2351 = vpop.f32.mrf.mxu0
    %2352 = vmatprep.mubr.f32.mxu0 0.0
    %2353 = vmatmul.mubr.f32.gmra.mxu0 %v2281
    %v2354 = vpop.f32.mrf.mxu0
    %v2355 = vadd.f32 %v2275, %v2354
    %v2356 = vpop.f32.mrf.mxu0
    %2357 = vdwg.mxu0
    %v2359 = vsel %vm688, %v2263, 0
    %v2362 = vsel %vm688, %v2350, 0
    %2364 = vmatprep.subr.mxu0 0.0
    %2365 = vmatpush1.xpose.msra.mxu0 0.0
    %2366 = vmatprep.subr.mxu0 0.0
    %2367 = vmatpush1.xpose.msra.mxu0 0.0
    %2368 = vmatprep.subr.mxu0 0.0
    %2369 = vmatpush1.xpose.msra.mxu0 0.0
    %2370 = vmatprep.subr.mxu0 0.0
    %2371 = vmatpush1.xpose.msra.mxu0 0.0
    %2372 = vmatprep.subr.mxu0 0.0
    %2373 = vmatpush1.xpose.msra.mxu0 0.0
    %2374 = vmatprep.subr.mxu0 0.0
    %2375 = vmatpush1.xpose.msra.mxu0 0.0
    %2376 = vmatprep.subr.mxu0 0.0
    %2377 = vmatpush1.xpose.msra.mxu0 0.0
    %2378 = vmatprep.subr.mxu0 0.0
    %2379 = vmatpush1.xpose.msra.mxu0 0.0
    %2380 = vmatprep.subr.mxu0 0.0
    %2381 = vmatpush1.xpose.msra.mxu0 0.0
    %2382 = vmatprep.subr.mxu0 0.0
    %2383 = vmatpush1.xpose.msra.mxu0 0.0
    %2384 = vmatprep.subr.mxu0 0.0
    %2385 = vmatpush1.xpose.msra.mxu0 0.0
    %2386 = vmatprep.subr.mxu0 0.0
    %2387 = vmatpush1.xpose.msra.mxu0 0.0
    %2388 = vmatprep.subr.mxu0 0.0
    %2389 = vmatpush1.xpose.msra.mxu0 0.0
    %2390 = vmatprep.subr.mxu0 0.0
    %2391 = vmatpush1.xpose.msra.mxu0 0.0
    %2392 = vmatprep.subr.mxu0 0.0
    %2393 = vmatpush1.xpose.msra.mxu0 0.0
    %2394 = vmatprep.subr.mxu0 0.0
    %2395 = vmatpush1.xpose.msra.mxu0 %v2362
    %2396 = vmatprep.subr.mxu0 0.0
    %2397 = vmatpush2.xpose.msra.mxu0 0.0
    %2398 = vmatprep.subr.mxu0 0.0
    %2399 = vmatpush2.xpose.msra.mxu0 0.0
    %2400 = vmatprep.subr.mxu0 0.0
    %2401 = vmatpush2.xpose.msra.mxu0 0.0
    %2402 = vmatprep.subr.mxu0 0.0
    %2403 = vmatpush2.xpose.msra.mxu0 0.0
    %2404 = vmatprep.subr.mxu0 0.0
    %2405 = vmatpush2.xpose.msra.mxu0 0.0
    %2406 = vmatprep.subr.mxu0 0.0
    %2407 = vmatpush2.xpose.msra.mxu0 0.0
    %2408 = vmatprep.subr.mxu0 0.0
    %2409 = vmatpush2.xpose.msra.mxu0 0.0
    %2410 = vmatprep.subr.mxu0 0.0
    %2411 = vmatpush2.xpose.msra.mxu0 0.0
    %2412 = vmatprep.subr.mxu0 0.0
    %2413 = vmatpush2.xpose.msra.mxu0 0.0
    %2414 = vmatprep.subr.mxu0 0.0
    %2415 = vmatpush2.xpose.msra.mxu0 0.0
    %2416 = vmatprep.subr.mxu0 0.0
    %2417 = vmatpush2.xpose.msra.mxu0 0.0
    %2418 = vmatprep.subr.mxu0 0.0
    %2419 = vmatpush2.xpose.msra.mxu0 0.0
    %2420 = vmatprep.subr.mxu0 0.0
    %2421 = vmatpush2.xpose.msra.mxu0 0.0
    %2422 = vmatprep.subr.mxu0 0.0
    %2423 = vmatpush2.xpose.msra.mxu0 0.0
    %2424 = vmatprep.subr.mxu0 0.0
    %2425 = vmatpush2.xpose.msra.mxu0 0.0
    %2426 = vmatprep.subr.mxu0 0.0
    %2427 = vmatpush2.xpose.msra.mxu0 0.0
    %2428 = vmatprep.mubr.f32.mxu0 0.0
    %2429 = vmatmul.mubr.f32.gmra.mxu0 %v2359
    %v2430 = vpop.f32.mrf.mxu0
    %v2431 = vadd.f32 0.0, %v2430
    %v2432 = vpop.f32.mrf.mxu0
    %2433 = vdwg.mxu0
    %v2434 = vmul.f32 %v2431, 0.35355338
    %v2436 = vlaneseq
    %v2437 = vshrl.u32 %v2436, 7
    %v2438 = vsub.s32 0, %v2437
    %v2439 = vrot.slane %v550, %v2438
    %v2441 = vadd.f32 %v2434, %v2439
    %v2442 = vsel %vm688, %v2441, -inf
    %2443 = vmax.xlane.f32.xlu0 %v2442
    %v2444 = vpop.xlane.xlu0 %2443
    %v2445 = vsub.f32 %v2441, %v2444
    %v2446 = vmul.f32 %v2445, 1.442695
    %v2447 = vpow.pop %v2446
    %v2448 = vsel %vm688, %v2447, 0.0
    %2449 = vadd.xlane.f32.xlu0 %v2448
    %v2450 = vpop.xlane.xlu0 %2449
    %v2451 = vrcp.pop %v2450
    %v2452 = vmul.f32 %v2447, %v2451
    %2453 = vrot.lane.b32.xlu0 %v2350, 96
    %v2454 = vpop.permute.xlu0 %2453
    %v2457 = vsel %vm688, %v2452, 0
    %2459 = vmatprep.subr.mxu0 0.0
    %2460 = vmatpush1.msra.mxu0 0.0
    %2461 = vmatprep.subr.mxu0 0.0
    %2462 = vmatpush1.msra.mxu0 0.0
    %2463 = vmatprep.subr.mxu0 0.0
    %2464 = vmatpush1.msra.mxu0 0.0
    %2465 = vmatprep.subr.mxu0 0.0
    %2466 = vmatpush1.msra.mxu0 0.0
    %2467 = vmatprep.subr.mxu0 0.0
    %2468 = vmatpush1.msra.mxu0 0.0
    %2469 = vmatprep.subr.mxu0 0.0
    %2470 = vmatpush1.msra.mxu0 0.0
    %2471 = vmatprep.subr.mxu0 0.0
    %2472 = vmatpush1.msra.mxu0 0.0
    %2473 = vmatprep.subr.mxu0 0.0
    %2474 = vmatpush1.msra.mxu0 0.0
    %2475 = vmatprep.subr.mxu0 0.0
    %2476 = vmatpush1.msra.mxu0 0.0
    %2477 = vmatprep.subr.mxu0 0.0
    %2478 = vmatpush1.msra.mxu0 0.0
    %2479 = vmatprep.subr.mxu0 0.0
    %2480 = vmatpush1.msra.mxu0 0.0
    %2481 = vmatprep.subr.mxu0 0.0
    %2482 = vmatpush1.msra.mxu0 0.0
    %2483 = vmatprep.subr.mxu0 0.0
    %2484 = vmatpush1.msra.mxu0 0.0
    %2485 = vmatprep.subr.mxu0 0.0
    %2486 = vmatpush1.msra.mxu0 0.0
    %2487 = vmatprep.subr.mxu0 0.0
    %2488 = vmatpush1.msra.mxu0 0.0
    %2489 = vmatprep.subr.mxu0 0.0
    %2490 = vmatpush1.msra.mxu0 %v2454
    %2491 = vmatprep.subr.mxu0 0.0
    %2492 = vmatpush2.msra.mxu0 0.0
    %2493 = vmatprep.subr.mxu0 0.0
    %2494 = vmatpush2.msra.mxu0 0.0
    %2495 = vmatprep.subr.mxu0 0.0
    %2496 = vmatpush2.msra.mxu0 0.0
    %2497 = vmatprep.subr.mxu0 0.0
    %2498 = vmatpush2.msra.mxu0 0.0
    %2499 = vmatprep.subr.mxu0 0.0
    %2500 = vmatpush2.msra.mxu0 0.0
    %2501 = vmatprep.subr.mxu0 0.0
    %2502 = vmatpush2.msra.mxu0 0.0
    %2503 = vmatprep.subr.mxu0 0.0
    %2504 = vmatpush2.msra.mxu0 0.0
    %2505 = vmatprep.subr.mxu0 0.0
    %2506 = vmatpush2.msra.mxu0 0.0
    %2507 = vmatprep.subr.mxu0 0.0
    %2508 = vmatpush2.msra.mxu0 0.0
    %2509 = vmatprep.subr.mxu0 0.0
    %2510 = vmatpush2.msra.mxu0 0.0
    %2511 = vmatprep.subr.mxu0 0.0
    %2512 = vmatpush2.msra.mxu0 0.0
    %2513 = vmatprep.subr.mxu0 0.0
    %2514 = vmatpush2.msra.mxu0 0.0
    %2515 = vmatprep.subr.mxu0 0.0
    %2516 = vmatpush2.msra.mxu0 0.0
    %2517 = vmatprep.subr.mxu0 0.0
    %2518 = vmatpush2.msra.mxu0 0.0
    %2519 = vmatprep.subr.mxu0 0.0
    %2520 = vmatpush2.msra.mxu0 0.0
    %2521 = vmatprep.subr.mxu0 0.0
    %2522 = vmatpush2.msra.mxu0 0.0
    %2523 = vmatprep.mubr.f32.mxu0 0.0
    %2524 = vmatmul.mubr.f32.gmra.mxu0 %v2457
    %v2525 = vpop.f32.mrf.mxu0
    %v2526 = vadd.f32 0.0, %v2525
    %v2527 = vpop.f32.mrf.mxu0
    %2528 = vdwg.mxu0
    %2529 = vrot.lane.b32.xlu0 %v2263, 120
    %v2530 = vpop.permute.xlu0 %2529
    %2531 = vrot.lane.b32.xlu0 %v2350, 120
    %v2532 = vpop.permute.xlu0 %2531
    %v2533 = vsel %vm688, %v2530, 0
    %v2535 = vsel %vm688, %v2532, 0
    %2537 = vmatprep.subr.mxu0 0.0
    %2538 = vmatpush1.xpose.msra.mxu0 0.0
    %2539 = vmatprep.subr.mxu0 0.0
    %2540 = vmatpush1.xpose.msra.mxu0 0.0
    %2541 = vmatprep.subr.mxu0 0.0
    %2542 = vmatpush1.xpose.msra.mxu0 0.0
    %2543 = vmatprep.subr.mxu0 0.0
    %2544 = vmatpush1.xpose.msra.mxu0 0.0
    %2545 = vmatprep.subr.mxu0 0.0
    %2546 = vmatpush1.xpose.msra.mxu0 0.0
    %2547 = vmatprep.subr.mxu0 0.0
    %2548 = vmatpush1.xpose.msra.mxu0 0.0
    %2549 = vmatprep.subr.mxu0 0.0
    %2550 = vmatpush1.xpose.msra.mxu0 0.0
    %2551 = vmatprep.subr.mxu0 0.0
    %2552 = vmatpush1.xpose.msra.mxu0 0.0
    %2553 = vmatprep.subr.mxu0 0.0
    %2554 = vmatpush1.xpose.msra.mxu0 0.0
    %2555 = vmatprep.subr.mxu0 0.0
    %2556 = vmatpush1.xpose.msra.mxu0 0.0
    %2557 = vmatprep.subr.mxu0 0.0
    %2558 = vmatpush1.xpose.msra.mxu0 0.0
    %2559 = vmatprep.subr.mxu0 0.0
    %2560 = vmatpush1.xpose.msra.mxu0 0.0
    %2561 = vmatprep.subr.mxu0 0.0
    %2562 = vmatpush1.xpose.msra.mxu0 0.0
    %2563 = vmatprep.subr.mxu0 0.0
    %2564 = vmatpush1.xpose.msra.mxu0 0.0
    %2565 = vmatprep.subr.mxu0 0.0
    %2566 = vmatpush1.xpose.msra.mxu0 0.0
    %2567 = vmatprep.subr.mxu0 0.0
    %2568 = vmatpush1.xpose.msra.mxu0 %v2535
    %2569 = vmatprep.subr.mxu0 0.0
    %2570 = vmatpush2.xpose.msra.mxu0 0.0
    %2571 = vmatprep.subr.mxu0 0.0
    %2572 = vmatpush2.xpose.msra.mxu0 0.0
    %2573 = vmatprep.subr.mxu0 0.0
    %2574 = vmatpush2.xpose.msra.mxu0 0.0
    %2575 = vmatprep.subr.mxu0 0.0
    %2576 = vmatpush2.xpose.msra.mxu0 0.0
    %2577 = vmatprep.subr.mxu0 0.0
    %2578 = vmatpush2.xpose.msra.mxu0 0.0
    %2579 = vmatprep.subr.mxu0 0.0
    %2580 = vmatpush2.xpose.msra.mxu0 0.0
    %2581 = vmatprep.subr.mxu0 0.0
    %2582 = vmatpush2.xpose.msra.mxu0 0.0
    %2583 = vmatprep.subr.mxu0 0.0
    %2584 = vmatpush2.xpose.msra.mxu0 0.0
    %2585 = vmatprep.subr.mxu0 0.0
    %2586 = vmatpush2.xpose.msra.mxu0 0.0
    %2587 = vmatprep.subr.mxu0 0.0
    %2588 = vmatpush2.xpose.msra.mxu0 0.0
    %2589 = vmatprep.subr.mxu0 0.0
    %2590 = vmatpush2.xpose.msra.mxu0 0.0
    %2591 = vmatprep.subr.mxu0 0.0
    %2592 = vmatpush2.xpose.msra.mxu0 0.0
    %2593 = vmatprep.subr.mxu0 0.0
    %2594 = vmatpush2.xpose.msra.mxu0 0.0
    %2595 = vmatprep.subr.mxu0 0.0
    %2596 = vmatpush2.xpose.msra.mxu0 0.0
    %2597 = vmatprep.subr.mxu0 0.0
    %2598 = vmatpush2.xpose.msra.mxu0 0.0
    %2599 = vmatprep.subr.mxu0 0.0
    %2600 = vmatpush2.xpose.msra.mxu0 0.0
    %2601 = vmatprep.mubr.f32.mxu0 0.0
    %2602 = vmatmul.mubr.f32.gmra.mxu0 %v2533
    %v2603 = vpop.f32.mrf.mxu0
    %v2604 = vadd.f32 0.0, %v2603
    %v2605 = vpop.f32.mrf.mxu0
    %2606 = vdwg.mxu0
    %v2607 = vmul.f32 %v2604, 0.35355338
    %v2608 = vadd.f32 %v2607, %v2439
    %v2609 = vsel %vm688, %v2608, -inf
    %2610 = vmax.xlane.f32.xlu0 %v2609
    %v2611 = vpop.xlane.xlu0 %2610
    %v2612 = vsub.f32 %v2608, %v2611
    %v2613 = vmul.f32 %v2612, 1.442695
    %v2614 = vpow.pop %v2613
    %v2615 = vsel %vm688, %v2614, 0.0
    %2616 = vadd.xlane.f32.xlu0 %v2615
    %v2617 = vpop.xlane.xlu0 %2616
    %v2618 = vrcp.pop %v2617
    %v2619 = vmul.f32 %v2614, %v2618
    %2620 = vrot.lane.b32.xlu0 %v2350, 88
    %v2621 = vpop.permute.xlu0 %2620
    %v2624 = vsel %vm688, %v2619, 0
    %2626 = vmatprep.subr.mxu0 0.0
    %2627 = vmatpush1.msra.mxu0 0.0
    %2628 = vmatprep.subr.mxu0 0.0
    %2629 = vmatpush1.msra.mxu0 0.0
    %2630 = vmatprep.subr.mxu0 0.0
    %2631 = vmatpush1.msra.mxu0 0.0
    %2632 = vmatprep.subr.mxu0 0.0
    %2633 = vmatpush1.msra.mxu0 0.0
    %2634 = vmatprep.subr.mxu0 0.0
    %2635 = vmatpush1.msra.mxu0 0.0
    %2636 = vmatprep.subr.mxu0 0.0
    %2637 = vmatpush1.msra.mxu0 0.0
    %2638 = vmatprep.subr.mxu0 0.0
    %2639 = vmatpush1.msra.mxu0 0.0
    %2640 = vmatprep.subr.mxu0 0.0
    %2641 = vmatpush1.msra.mxu0 0.0
    %2642 = vmatprep.subr.mxu0 0.0
    %2643 = vmatpush1.msra.mxu0 0.0
    %2644 = vmatprep.subr.mxu0 0.0
    %2645 = vmatpush1.msra.mxu0 0.0
    %2646 = vmatprep.subr.mxu0 0.0
    %2647 = vmatpush1.msra.mxu0 0.0
    %2648 = vmatprep.subr.mxu0 0.0
    %2649 = vmatpush1.msra.mxu0 0.0
    %2650 = vmatprep.subr.mxu0 0.0
    %2651 = vmatpush1.msra.mxu0 0.0
    %2652 = vmatprep.subr.mxu0 0.0
    %2653 = vmatpush1.msra.mxu0 0.0
    %2654 = vmatprep.subr.mxu0 0.0
    %2655 = vmatpush1.msra.mxu0 0.0
    %2656 = vmatprep.subr.mxu0 0.0
    %2657 = vmatpush1.msra.mxu0 %v2621
    %2658 = vmatprep.subr.mxu0 0.0
    %2659 = vmatpush2.msra.mxu0 0.0
    %2660 = vmatprep.subr.mxu0 0.0
    %2661 = vmatpush2.msra.mxu0 0.0
    %2662 = vmatprep.subr.mxu0 0.0
    %2663 = vmatpush2.msra.mxu0 0.0
    %2664 = vmatprep.subr.mxu0 0.0
    %2665 = vmatpush2.msra.mxu0 0.0
    %2666 = vmatprep.subr.mxu0 0.0
    %2667 = vmatpush2.msra.mxu0 0.0
    %2668 = vmatprep.subr.mxu0 0.0
    %2669 = vmatpush2.msra.mxu0 0.0
    %2670 = vmatprep.subr.mxu0 0.0
    %2671 = vmatpush2.msra.mxu0 0.0
    %2672 = vmatprep.subr.mxu0 0.0
    %2673 = vmatpush2.msra.mxu0 0.0
    %2674 = vmatprep.subr.mxu0 0.0
    %2675 = vmatpush2.msra.mxu0 0.0
    %2676 = vmatprep.subr.mxu0 0.0
    %2677 = vmatpush2.msra.mxu0 0.0
    %2678 = vmatprep.subr.mxu0 0.0
    %2679 = vmatpush2.msra.mxu0 0.0
    %2680 = vmatprep.subr.mxu0 0.0
    %2681 = vmatpush2.msra.mxu0 0.0
    %2682 = vmatprep.subr.mxu0 0.0
    %2683 = vmatpush2.msra.mxu0 0.0
    %2684 = vmatprep.subr.mxu0 0.0
    %2685 = vmatpush2.msra.mxu0 0.0
    %2686 = vmatprep.subr.mxu0 0.0
    %2687 = vmatpush2.msra.mxu0 0.0
    %2688 = vmatprep.subr.mxu0 0.0
    %2689 = vmatpush2.msra.mxu0 0.0
    %2690 = vmatprep.mubr.f32.mxu0 0.0
    %2691 = vmatmul.mubr.f32.gmra.mxu0 %v2624
    %v2692 = vpop.f32.mrf.mxu0
    %v2693 = vadd.f32 0.0, %v2692
    %v2694 = vpop.f32.mrf.mxu0
    %2695 = vdwg.mxu0
    %2696 = vrot.lane.b32.xlu0 %v2263, 112
    %v2697 = vpop.permute.xlu0 %2696
    %2698 = vrot.lane.b32.xlu0 %v2350, 112
    %v2699 = vpop.permute.xlu0 %2698
    %v2700 = vsel %vm688, %v2697, 0
    %v2702 = vsel %vm688, %v2699, 0
    %2704 = vmatprep.subr.mxu0 0.0
    %2705 = vmatpush1.xpose.msra.mxu0 0.0
    %2706 = vmatprep.subr.mxu0 0.0
    %2707 = vmatpush1.xpose.msra.mxu0 0.0
    %2708 = vmatprep.subr.mxu0 0.0
    %2709 = vmatpush1.xpose.msra.mxu0 0.0
    %2710 = vmatprep.subr.mxu0 0.0
    %2711 = vmatpush1.xpose.msra.mxu0 0.0
    %2712 = vmatprep.subr.mxu0 0.0
    %2713 = vmatpush1.xpose.msra.mxu0 0.0
    %2714 = vmatprep.subr.mxu0 0.0
    %2715 = vmatpush1.xpose.msra.mxu0 0.0
    %2716 = vmatprep.subr.mxu0 0.0
    %2717 = vmatpush1.xpose.msra.mxu0 0.0
    %2718 = vmatprep.subr.mxu0 0.0
    %2719 = vmatpush1.xpose.msra.mxu0 0.0
    %2720 = vmatprep.subr.mxu0 0.0
    %2721 = vmatpush1.xpose.msra.mxu0 0.0
    %2722 = vmatprep.subr.mxu0 0.0
    %2723 = vmatpush1.xpose.msra.mxu0 0.0
    %2724 = vmatprep.subr.mxu0 0.0
    %2725 = vmatpush1.xpose.msra.mxu0 0.0
    %2726 = vmatprep.subr.mxu0 0.0
    %2727 = vmatpush1.xpose.msra.mxu0 0.0
    %2728 = vmatprep.subr.mxu0 0.0
    %2729 = vmatpush1.xpose.msra.mxu0 0.0
    %2730 = vmatprep.subr.mxu0 0.0
    %2731 = vmatpush1.xpose.msra.mxu0 0.0
    %2732 = vmatprep.subr.mxu0 0.0
    %2733 = vmatpush1.xpose.msra.mxu0 0.0
    %2734 = vmatprep.subr.mxu0 0.0
    %2735 = vmatpush1.xpose.msra.mxu0 %v2702
    %2736 = vmatprep.subr.mxu0 0.0
    %2737 = vmatpush2.xpose.msra.mxu0 0.0
    %2738 = vmatprep.subr.mxu0 0.0
    %2739 = vmatpush2.xpose.msra.mxu0 0.0
    %2740 = vmatprep.subr.mxu0 0.0
    %2741 = vmatpush2.xpose.msra.mxu0 0.0
    %2742 = vmatprep.subr.mxu0 0.0
    %2743 = vmatpush2.xpose.msra.mxu0 0.0
    %2744 = vmatprep.subr.mxu0 0.0
    %2745 = vmatpush2.xpose.msra.mxu0 0.0
    %2746 = vmatprep.subr.mxu0 0.0
    %2747 = vmatpush2.xpose.msra.mxu0 0.0
    %2748 = vmatprep.subr.mxu0 0.0
    %2749 = vmatpush2.xpose.msra.mxu0 0.0
    %2750 = vmatprep.subr.mxu0 0.0
    %2751 = vmatpush2.xpose.msra.mxu0 0.0
    %2752 = vmatprep.subr.mxu0 0.0
    %2753 = vmatpush2.xpose.msra.mxu0 0.0
    %2754 = vmatprep.subr.mxu0 0.0
    %2755 = vmatpush2.xpose.msra.mxu0 0.0
    %2756 = vmatprep.subr.mxu0 0.0
    %2757 = vmatpush2.xpose.msra.mxu0 0.0
    %2758 = vmatprep.subr.mxu0 0.0
    %2759 = vmatpush2.xpose.msra.mxu0 0.0
    %2760 = vmatprep.subr.mxu0 0.0
    %2761 = vmatpush2.xpose.msra.mxu0 0.0
    %2762 = vmatprep.subr.mxu0 0.0
    %2763 = vmatpush2.xpose.msra.mxu0 0.0
    %2764 = vmatprep.subr.mxu0 0.0
    %2765 = vmatpush2.xpose.msra.mxu0 0.0
    %2766 = vmatprep.subr.mxu0 0.0
    %2767 = vmatpush2.xpose.msra.mxu0 0.0
    %2768 = vmatprep.mubr.f32.mxu0 0.0
    %2769 = vmatmul.mubr.f32.gmra.mxu0 %v2700
    %v2770 = vpop.f32.mrf.mxu0
    %v2771 = vadd.f32 0.0, %v2770
    %v2772 = vpop.f32.mrf.mxu0
    %2773 = vdwg.mxu0
    %v2774 = vmul.f32 %v2771, 0.35355338
    %v2775 = vadd.f32 %v2774, %v2439
    %v2776 = vsel %vm688, %v2775, -inf
    %2777 = vmax.xlane.f32.xlu0 %v2776
    %v2778 = vpop.xlane.xlu0 %2777
    %v2779 = vsub.f32 %v2775, %v2778
    %v2780 = vmul.f32 %v2779, 1.442695
    %v2781 = vpow.pop %v2780
    %v2782 = vsel %vm688, %v2781, 0.0
    %2783 = vadd.xlane.f32.xlu0 %v2782
    %v2784 = vpop.xlane.xlu0 %2783
    %v2785 = vrcp.pop %v2784
    %v2786 = vmul.f32 %v2781, %v2785
    %2787 = vrot.lane.b32.xlu0 %v2350, 80
    %v2788 = vpop.permute.xlu0 %2787
    %v2791 = vsel %vm688, %v2786, 0
    %2793 = vmatprep.subr.mxu0 0.0
    %2794 = vmatpush1.msra.mxu0 0.0
    %2795 = vmatprep.subr.mxu0 0.0
    %2796 = vmatpush1.msra.mxu0 0.0
    %2797 = vmatprep.subr.mxu0 0.0
    %2798 = vmatpush1.msra.mxu0 0.0
    %2799 = vmatprep.subr.mxu0 0.0
    %2800 = vmatpush1.msra.mxu0 0.0
    %2801 = vmatprep.subr.mxu0 0.0
    %2802 = vmatpush1.msra.mxu0 0.0
    %2803 = vmatprep.subr.mxu0 0.0
    %2804 = vmatpush1.msra.mxu0 0.0
    %2805 = vmatprep.subr.mxu0 0.0
    %2806 = vmatpush1.msra.mxu0 0.0
    %2807 = vmatprep.subr.mxu0 0.0
    %2808 = vmatpush1.msra.mxu0 0.0
    %2809 = vmatprep.subr.mxu0 0.0
    %2810 = vmatpush1.msra.mxu0 0.0
    %2811 = vmatprep.subr.mxu0 0.0
    %2812 = vmatpush1.msra.mxu0 0.0
    %2813 = vmatprep.subr.mxu0 0.0
    %2814 = vmatpush1.msra.mxu0 0.0
    %2815 = vmatprep.subr.mxu0 0.0
    %2816 = vmatpush1.msra.mxu0 0.0
    %2817 = vmatprep.subr.mxu0 0.0
    %2818 = vmatpush1.msra.mxu0 0.0
    %2819 = vmatprep.subr.mxu0 0.0
    %2820 = vmatpush1.msra.mxu0 0.0
    %2821 = vmatprep.subr.mxu0 0.0
    %2822 = vmatpush1.msra.mxu0 0.0
    %2823 = vmatprep.subr.mxu0 0.0
    %2824 = vmatpush1.msra.mxu0 %v2788
    %2825 = vmatprep.subr.mxu0 0.0
    %2826 = vmatpush2.msra.mxu0 0.0
    %2827 = vmatprep.subr.mxu0 0.0
    %2828 = vmatpush2.msra.mxu0 0.0
    %2829 = vmatprep.subr.mxu0 0.0
    %2830 = vmatpush2.msra.mxu0 0.0
    %2831 = vmatprep.subr.mxu0 0.0
    %2832 = vmatpush2.msra.mxu0 0.0
    %2833 = vmatprep.subr.mxu0 0.0
    %2834 = vmatpush2.msra.mxu0 0.0
    %2835 = vmatprep.subr.mxu0 0.0
    %2836 = vmatpush2.msra.mxu0 0.0
    %2837 = vmatprep.subr.mxu0 0.0
    %2838 = vmatpush2.msra.mxu0 0.0
    %2839 = vmatprep.subr.mxu0 0.0
    %2840 = vmatpush2.msra.mxu0 0.0
    %2841 = vmatprep.subr.mxu0 0.0
    %2842 = vmatpush2.msra.mxu0 0.0
    %2843 = vmatprep.subr.mxu0 0.0
    %2844 = vmatpush2.msra.mxu0 0.0
    %2845 = vmatprep.subr.mxu0 0.0
    %2846 = vmatpush2.msra.mxu0 0.0
    %2847 = vmatprep.subr.mxu0 0.0
    %2848 = vmatpush2.msra.mxu0 0.0
    %2849 = vmatprep.subr.mxu0 0.0
    %2850 = vmatpush2.msra.mxu0 0.0
    %2851 = vmatprep.subr.mxu0 0.0
    %2852 = vmatpush2.msra.mxu0 0.0
    %2853 = vmatprep.subr.mxu0 0.0
    %2854 = vmatpush2.msra.mxu0 0.0
    %2855 = vmatprep.subr.mxu0 0.0
    %2856 = vmatpush2.msra.mxu0 0.0
    %2857 = vmatprep.mubr.f32.mxu0 0.0
    %2858 = vmatmul.mubr.f32.gmra.mxu0 %v2791
    %v2859 = vpop.f32.mrf.mxu0
    %v2860 = vadd.f32 0.0, %v2859
    %v2861 = vpop.f32.mrf.mxu0
    %2862 = vdwg.mxu0
    %2863 = vrot.lane.b32.xlu0 %v2263, 104
    %v2864 = vpop.permute.xlu0 %2863
    %2865 = vrot.lane.b32.xlu0 %v2350, 104
    %v2866 = vpop.permute.xlu0 %2865
    %v2867 = vsel %vm688, %v2864, 0
    %v2869 = vsel %vm688, %v2866, 0
    %2871 = vmatprep.subr.mxu0 0.0
    %2872 = vmatpush1.xpose.msra.mxu0 0.0
    %2873 = vmatprep.subr.mxu0 0.0
    %2874 = vmatpush1.xpose.msra.mxu0 0.0
    %2875 = vmatprep.subr.mxu0 0.0
    %2876 = vmatpush1.xpose.msra.mxu0 0.0
    %2877 = vmatprep.subr.mxu0 0.0
    %2878 = vmatpush1.xpose.msra.mxu0 0.0
    %2879 = vmatprep.subr.mxu0 0.0
    %2880 = vmatpush1.xpose.msra.mxu0 0.0
    %2881 = vmatprep.subr.mxu0 0.0
    %2882 = vmatpush1.xpose.msra.mxu0 0.0
    %2883 = vmatprep.subr.mxu0 0.0
    %2884 = vmatpush1.xpose.msra.mxu0 0.0
    %2885 = vmatprep.subr.mxu0 0.0
    %2886 = vmatpush1.xpose.msra.mxu0 0.0
    %2887 = vmatprep.subr.mxu0 0.0
    %2888 = vmatpush1.xpose.msra.mxu0 0.0
    %2889 = vmatprep.subr.mxu0 0.0
    %2890 = vmatpush1.xpose.msra.mxu0 0.0
    %2891 = vmatprep.subr.mxu0 0.0
    %2892 = vmatpush1.xpose.msra.mxu0 0.0
    %2893 = vmatprep.subr.mxu0 0.0
    %2894 = vmatpush1.xpose.msra.mxu0 0.0
    %2895 = vmatprep.subr.mxu0 0.0
    %2896 = vmatpush1.xpose.msra.mxu0 0.0
    %2897 = vmatprep.subr.mxu0 0.0
    %2898 = vmatpush1.xpose.msra.mxu0 0.0
    %2899 = vmatprep.subr.mxu0 0.0
    %2900 = vmatpush1.xpose.msra.mxu0 0.0
    %2901 = vmatprep.subr.mxu0 0.0
    %2902 = vmatpush1.xpose.msra.mxu0 %v2869
    %2903 = vmatprep.subr.mxu0 0.0
    %2904 = vmatpush2.xpose.msra.mxu0 0.0
    %2905 = vmatprep.subr.mxu0 0.0
    %2906 = vmatpush2.xpose.msra.mxu0 0.0
    %2907 = vmatprep.subr.mxu0 0.0
    %2908 = vmatpush2.xpose.msra.mxu0 0.0
    %2909 = vmatprep.subr.mxu0 0.0
    %2910 = vmatpush2.xpose.msra.mxu0 0.0
    %2911 = vmatprep.subr.mxu0 0.0
    %2912 = vmatpush2.xpose.msra.mxu0 0.0
    %2913 = vmatprep.subr.mxu0 0.0
    %2914 = vmatpush2.xpose.msra.mxu0 0.0
    %2915 = vmatprep.subr.mxu0 0.0
    %2916 = vmatpush2.xpose.msra.mxu0 0.0
    %2917 = vmatprep.subr.mxu0 0.0
    %2918 = vmatpush2.xpose.msra.mxu0 0.0
    %2919 = vmatprep.subr.mxu0 0.0
    %2920 = vmatpush2.xpose.msra.mxu0 0.0
    %2921 = vmatprep.subr.mxu0 0.0
    %2922 = vmatpush2.xpose.msra.mxu0 0.0
    %2923 = vmatprep.subr.mxu0 0.0
    %2924 = vmatpush2.xpose.msra.mxu0 0.0
    %2925 = vmatprep.subr.mxu0 0.0
    %2926 = vmatpush2.xpose.msra.mxu0 0.0
    %2927 = vmatprep.subr.mxu0 0.0
    %2928 = vmatpush2.xpose.msra.mxu0 0.0
    %2929 = vmatprep.subr.mxu0 0.0
    %2930 = vmatpush2.xpose.msra.mxu0 0.0
    %2931 = vmatprep.subr.mxu0 0.0
    %2932 = vmatpush2.xpose.msra.mxu0 0.0
    %2933 = vmatprep.subr.mxu0 0.0
    %2934 = vmatpush2.xpose.msra.mxu0 0.0
    %2935 = vmatprep.mubr.f32.mxu0 0.0
    %2936 = vmatmul.mubr.f32.gmra.mxu0 %v2867
    %v2937 = vpop.f32.mrf.mxu0
    %v2938 = vadd.f32 0.0, %v2937
    %v2939 = vpop.f32.mrf.mxu0
    %2940 = vdwg.mxu0
    %v2941 = vmul.f32 %v2938, 0.35355338
    %v2942 = vadd.f32 %v2941, %v2439
    %v2943 = vsel %vm688, %v2942, -inf
    %2944 = vmax.xlane.f32.xlu0 %v2943
    %v2945 = vpop.xlane.xlu0 %2944
    %v2946 = vsub.f32 %v2942, %v2945
    %v2947 = vmul.f32 %v2946, 1.442695
    %v2948 = vpow.pop %v2947
    %v2949 = vsel %vm688, %v2948, 0.0
    %2950 = vadd.xlane.f32.xlu0 %v2949
    %v2951 = vpop.xlane.xlu0 %2950
    %v2952 = vrcp.pop %v2951
    %v2953 = vmul.f32 %v2948, %v2952
    %2954 = vrot.lane.b32.xlu0 %v2350, 72
    %v2955 = vpop.permute.xlu0 %2954
    %v2958 = vsel %vm688, %v2953, 0
    %2960 = vmatprep.subr.mxu0 0.0
    %2961 = vmatpush1.msra.mxu0 0.0
    %2962 = vmatprep.subr.mxu0 0.0
    %2963 = vmatpush1.msra.mxu0 0.0
    %2964 = vmatprep.subr.mxu0 0.0
    %2965 = vmatpush1.msra.mxu0 0.0
    %2966 = vmatprep.subr.mxu0 0.0
    %2967 = vmatpush1.msra.mxu0 0.0
    %2968 = vmatprep.subr.mxu0 0.0
    %2969 = vmatpush1.msra.mxu0 0.0
    %2970 = vmatprep.subr.mxu0 0.0
    %2971 = vmatpush1.msra.mxu0 0.0
    %2972 = vmatprep.subr.mxu0 0.0
    %2973 = vmatpush1.msra.mxu0 0.0
    %2974 = vmatprep.subr.mxu0 0.0
    %2975 = vmatpush1.msra.mxu0 0.0
    %2976 = vmatprep.subr.mxu0 0.0
    %2977 = vmatpush1.msra.mxu0 0.0
    %2978 = vmatprep.subr.mxu0 0.0
    %2979 = vmatpush1.msra.mxu0 0.0
    %2980 = vmatprep.subr.mxu0 0.0
    %2981 = vmatpush1.msra.mxu0 0.0
    %2982 = vmatprep.subr.mxu0 0.0
    %2983 = vmatpush1.msra.mxu0 0.0
    %2984 = vmatprep.subr.mxu0 0.0
    %2985 = vmatpush1.msra.mxu0 0.0
    %2986 = vmatprep.subr.mxu0 0.0
    %2987 = vmatpush1.msra.mxu0 0.0
    %2988 = vmatprep.subr.mxu0 0.0
    %2989 = vmatpush1.msra.mxu0 0.0
    %2990 = vmatprep.subr.mxu0 0.0
    %2991 = vmatpush1.msra.mxu0 %v2955
    %2992 = vmatprep.subr.mxu0 0.0
    %2993 = vmatpush2.msra.mxu0 0.0
    %2994 = vmatprep.subr.mxu0 0.0
    %2995 = vmatpush2.msra.mxu0 0.0
    %2996 = vmatprep.subr.mxu0 0.0
    %2997 = vmatpush2.msra.mxu0 0.0
    %2998 = vmatprep.subr.mxu0 0.0
    %2999 = vmatpush2.msra.mxu0 0.0
    %3000 = vmatprep.subr.mxu0 0.0
    %3001 = vmatpush2.msra.mxu0 0.0
    %3002 = vmatprep.subr.mxu0 0.0
    %3003 = vmatpush2.msra.mxu0 0.0
    %3004 = vmatprep.subr.mxu0 0.0
    %3005 = vmatpush2.msra.mxu0 0.0
    %3006 = vmatprep.subr.mxu0 0.0
    %3007 = vmatpush2.msra.mxu0 0.0
    %3008 = vmatprep.subr.mxu0 0.0
    %3009 = vmatpush2.msra.mxu0 0.0
    %3010 = vmatprep.subr.mxu0 0.0
    %3011 = vmatpush2.msra.mxu0 0.0
    %3012 = vmatprep.subr.mxu0 0.0
    %3013 = vmatpush2.msra.mxu0 0.0
    %3014 = vmatprep.subr.mxu0 0.0
    %3015 = vmatpush2.msra.mxu0 0.0
    %3016 = vmatprep.subr.mxu0 0.0
    %3017 = vmatpush2.msra.mxu0 0.0
    %3018 = vmatprep.subr.mxu0 0.0
    %3019 = vmatpush2.msra.mxu0 0.0
    %3020 = vmatprep.subr.mxu0 0.0
    %3021 = vmatpush2.msra.mxu0 0.0
    %3022 = vmatprep.subr.mxu0 0.0
    %3023 = vmatpush2.msra.mxu0 0.0
    %3024 = vmatprep.mubr.f32.mxu0 0.0
    %3025 = vmatmul.mubr.f32.gmra.mxu0 %v2958
    %v3026 = vpop.f32.mrf.mxu0
    %v3027 = vadd.f32 0.0, %v3026
    %v3028 = vpop.f32.mrf.mxu0
    %3029 = vdwg.mxu0
    %3031 = vrot.lane.b32.xlu0 %v2693, 8
    %v3032 = vpop.permute.xlu0 %3031
    %3035 = vrot.lane.b32.xlu0 %v2860, 16
    %v3036 = vpop.permute.xlu0 %3035
    %3039 = vrot.lane.b32.xlu0 %v3027, 24
    %v3040 = vpop.permute.xlu0 %3039
    %v3042 = vsel %vm688, %v2526, %v3032
    %v3043 = vsel %vm1366, %v3042, %v3036
    %v3044 = vsel %vm1368, %v3043, %v3040
    %v3046 = vsel %vm688, %v2268, 0
    %v3049 = vsel %vm688, %v2355, 0
    %3051 = vmatprep.subr.mxu0 0.0
    %3052 = vmatpush1.xpose.msra.mxu0 0.0
    %3053 = vmatprep.subr.mxu0 0.0
    %3054 = vmatpush1.xpose.msra.mxu0 0.0
    %3055 = vmatprep.subr.mxu0 0.0
    %3056 = vmatpush1.xpose.msra.mxu0 0.0
    %3057 = vmatprep.subr.mxu0 0.0
    %3058 = vmatpush1.xpose.msra.mxu0 0.0
    %3059 = vmatprep.subr.mxu0 0.0
    %3060 = vmatpush1.xpose.msra.mxu0 0.0
    %3061 = vmatprep.subr.mxu0 0.0
    %3062 = vmatpush1.xpose.msra.mxu0 0.0
    %3063 = vmatprep.subr.mxu0 0.0
    %3064 = vmatpush1.xpose.msra.mxu0 0.0
    %3065 = vmatprep.subr.mxu0 0.0
    %3066 = vmatpush1.xpose.msra.mxu0 0.0
    %3067 = vmatprep.subr.mxu0 0.0
    %3068 = vmatpush1.xpose.msra.mxu0 0.0
    %3069 = vmatprep.subr.mxu0 0.0
    %3070 = vmatpush1.xpose.msra.mxu0 0.0
    %3071 = vmatprep.subr.mxu0 0.0
    %3072 = vmatpush1.xpose.msra.mxu0 0.0
    %3073 = vmatprep.subr.mxu0 0.0
    %3074 = vmatpush1.xpose.msra.mxu0 0.0
    %3075 = vmatprep.subr.mxu0 0.0
    %3076 = vmatpush1.xpose.msra.mxu0 0.0
    %3077 = vmatprep.subr.mxu0 0.0
    %3078 = vmatpush1.xpose.msra.mxu0 0.0
    %3079 = vmatprep.subr.mxu0 0.0
    %3080 = vmatpush1.xpose.msra.mxu0 0.0
    %3081 = vmatprep.subr.mxu0 0.0
    %3082 = vmatpush1.xpose.msra.mxu0 %v3049
    %3083 = vmatprep.subr.mxu0 0.0
    %3084 = vmatpush2.xpose.msra.mxu0 0.0
    %3085 = vmatprep.subr.mxu0 0.0
    %3086 = vmatpush2.xpose.msra.mxu0 0.0
    %3087 = vmatprep.subr.mxu0 0.0
    %3088 = vmatpush2.xpose.msra.mxu0 0.0
    %3089 = vmatprep.subr.mxu0 0.0
    %3090 = vmatpush2.xpose.msra.mxu0 0.0
    %3091 = vmatprep.subr.mxu0 0.0
    %3092 = vmatpush2.xpose.msra.mxu0 0.0
    %3093 = vmatprep.subr.mxu0 0.0
    %3094 = vmatpush2.xpose.msra.mxu0 0.0
    %3095 = vmatprep.subr.mxu0 0.0
    %3096 = vmatpush2.xpose.msra.mxu0 0.0
    %3097 = vmatprep.subr.mxu0 0.0
    %3098 = vmatpush2.xpose.msra.mxu0 0.0
    %3099 = vmatprep.subr.mxu0 0.0
    %3100 = vmatpush2.xpose.msra.mxu0 0.0
    %3101 = vmatprep.subr.mxu0 0.0
    %3102 = vmatpush2.xpose.msra.mxu0 0.0
    %3103 = vmatprep.subr.mxu0 0.0
    %3104 = vmatpush2.xpose.msra.mxu0 0.0
    %3105 = vmatprep.subr.mxu0 0.0
    %3106 = vmatpush2.xpose.msra.mxu0 0.0
    %3107 = vmatprep.subr.mxu0 0.0
    %3108 = vmatpush2.xpose.msra.mxu0 0.0
    %3109 = vmatprep.subr.mxu0 0.0
    %3110 = vmatpush2.xpose.msra.mxu0 0.0
    %3111 = vmatprep.subr.mxu0 0.0
    %3112 = vmatpush2.xpose.msra.mxu0 0.0
    %3113 = vmatprep.subr.mxu0 0.0
    %3114 = vmatpush2.xpose.msra.mxu0 0.0
    %3115 = vmatprep.mubr.f32.mxu0 0.0
    %3116 = vmatmul.mubr.f32.gmra.mxu0 %v3046
    %v3117 = vpop.f32.mrf.mxu0
    %v3118 = vadd.f32 0.0, %v3117
    %v3119 = vpop.f32.mrf.mxu0
    %3120 = vdwg.mxu0
    %v3121 = vmul.f32 %v3118, 0.35355338
    %v3123 = vlaneseq
    %v3124 = vshrl.u32 %v3123, 7
    %v3125 = vsub.s32 0, %v3124
    %v3126 = vrot.slane %v551, %v3125
    %v3128 = vadd.f32 %v3121, %v3126
    %v3129 = vsel %vm688, %v3128, -inf
    %3130 = vmax.xlane.f32.xlu0 %v3129
    %v3131 = vpop.xlane.xlu0 %3130
    %v3132 = vsub.f32 %v3128, %v3131
    %v3133 = vmul.f32 %v3132, 1.442695
    %v3134 = vpow.pop %v3133
    %v3135 = vsel %vm688, %v3134, 0.0
    %3136 = vadd.xlane.f32.xlu0 %v3135
    %v3137 = vpop.xlane.xlu0 %3136
    %v3138 = vrcp.pop %v3137
    %v3139 = vmul.f32 %v3134, %v3138
    %3140 = vrot.lane.b32.xlu0 %v2355, 96
    %v3141 = vpop.permute.xlu0 %3140
    %v3144 = vsel %vm688, %v3139, 0
    %3146 = vmatprep.subr.mxu0 0.0
    %3147 = vmatpush1.msra.mxu0 0.0
    %3148 = vmatprep.subr.mxu0 0.0
    %3149 = vmatpush1.msra.mxu0 0.0
    %3150 = vmatprep.subr.mxu0 0.0
    %3151 = vmatpush1.msra.mxu0 0.0
    %3152 = vmatprep.subr.mxu0 0.0
    %3153 = vmatpush1.msra.mxu0 0.0
    %3154 = vmatprep.subr.mxu0 0.0
    %3155 = vmatpush1.msra.mxu0 0.0
    %3156 = vmatprep.subr.mxu0 0.0
    %3157 = vmatpush1.msra.mxu0 0.0
    %3158 = vmatprep.subr.mxu0 0.0
    %3159 = vmatpush1.msra.mxu0 0.0
    %3160 = vmatprep.subr.mxu0 0.0
    %3161 = vmatpush1.msra.mxu0 0.0
    %3162 = vmatprep.subr.mxu0 0.0
    %3163 = vmatpush1.msra.mxu0 0.0
    %3164 = vmatprep.subr.mxu0 0.0
    %3165 = vmatpush1.msra.mxu0 0.0
    %3166 = vmatprep.subr.mxu0 0.0
    %3167 = vmatpush1.msra.mxu0 0.0
    %3168 = vmatprep.subr.mxu0 0.0
    %3169 = vmatpush1.msra.mxu0 0.0
    %3170 = vmatprep.subr.mxu0 0.0
    %3171 = vmatpush1.msra.mxu0 0.0
    %3172 = vmatprep.subr.mxu0 0.0
    %3173 = vmatpush1.msra.mxu0 0.0
    %3174 = vmatprep.subr.mxu0 0.0
    %3175 = vmatpush1.msra.mxu0 0.0
    %3176 = vmatprep.subr.mxu0 0.0
    %3177 = vmatpush1.msra.mxu0 %v3141
    %3178 = vmatprep.subr.mxu0 0.0
    %3179 = vmatpush2.msra.mxu0 0.0
    %3180 = vmatprep.subr.mxu0 0.0
    %3181 = vmatpush2.msra.mxu0 0.0
    %3182 = vmatprep.subr.mxu0 0.0
    %3183 = vmatpush2.msra.mxu0 0.0
    %3184 = vmatprep.subr.mxu0 0.0
    %3185 = vmatpush2.msra.mxu0 0.0
    %3186 = vmatprep.subr.mxu0 0.0
    %3187 = vmatpush2.msra.mxu0 0.0
    %3188 = vmatprep.subr.mxu0 0.0
    %3189 = vmatpush2.msra.mxu0 0.0
    %3190 = vmatprep.subr.mxu0 0.0
    %3191 = vmatpush2.msra.mxu0 0.0
    %3192 = vmatprep.subr.mxu0 0.0
    %3193 = vmatpush2.msra.mxu0 0.0
    %3194 = vmatprep.subr.mxu0 0.0
    %3195 = vmatpush2.msra.mxu0 0.0
    %3196 = vmatprep.subr.mxu0 0.0
    %3197 = vmatpush2.msra.mxu0 0.0
    %3198 = vmatprep.subr.mxu0 0.0
    %3199 = vmatpush2.msra.mxu0 0.0
    %3200 = vmatprep.subr.mxu0 0.0
    %3201 = vmatpush2.msra.mxu0 0.0
    %3202 = vmatprep.subr.mxu0 0.0
    %3203 = vmatpush2.msra.mxu0 0.0
    %3204 = vmatprep.subr.mxu0 0.0
    %3205 = vmatpush2.msra.mxu0 0.0
    %3206 = vmatprep.subr.mxu0 0.0
    %3207 = vmatpush2.msra.mxu0 0.0
    %3208 = vmatprep.subr.mxu0 0.0
    %3209 = vmatpush2.msra.mxu0 0.0
    %3210 = vmatprep.mubr.f32.mxu0 0.0
    %3211 = vmatmul.mubr.f32.gmra.mxu0 %v3144
    %v3212 = vpop.f32.mrf.mxu0
    %v3213 = vadd.f32 0.0, %v3212
    %v3214 = vpop.f32.mrf.mxu0
    %3215 = vdwg.mxu0
    %3216 = vrot.lane.b32.xlu0 %v2268, 120
    %v3217 = vpop.permute.xlu0 %3216
    %3218 = vrot.lane.b32.xlu0 %v2355, 120
    %v3219 = vpop.permute.xlu0 %3218
    %v3220 = vsel %vm688, %v3217, 0
    %v3222 = vsel %vm688, %v3219, 0
    %3224 = vmatprep.subr.mxu0 0.0
    %3225 = vmatpush1.xpose.msra.mxu0 0.0
    %3226 = vmatprep.subr.mxu0 0.0
    %3227 = vmatpush1.xpose.msra.mxu0 0.0
    %3228 = vmatprep.subr.mxu0 0.0
    %3229 = vmatpush1.xpose.msra.mxu0 0.0
    %3230 = vmatprep.subr.mxu0 0.0
    %3231 = vmatpush1.xpose.msra.mxu0 0.0
    %3232 = vmatprep.subr.mxu0 0.0
    %3233 = vmatpush1.xpose.msra.mxu0 0.0
    %3234 = vmatprep.subr.mxu0 0.0
    %3235 = vmatpush1.xpose.msra.mxu0 0.0
    %3236 = vmatprep.subr.mxu0 0.0
    %3237 = vmatpush1.xpose.msra.mxu0 0.0
    %3238 = vmatprep.subr.mxu0 0.0
    %3239 = vmatpush1.xpose.msra.mxu0 0.0
    %3240 = vmatprep.subr.mxu0 0.0
    %3241 = vmatpush1.xpose.msra.mxu0 0.0
    %3242 = vmatprep.subr.mxu0 0.0
    %3243 = vmatpush1.xpose.msra.mxu0 0.0
    %3244 = vmatprep.subr.mxu0 0.0
    %3245 = vmatpush1.xpose.msra.mxu0 0.0
    %3246 = vmatprep.subr.mxu0 0.0
    %3247 = vmatpush1.xpose.msra.mxu0 0.0
    %3248 = vmatprep.subr.mxu0 0.0
    %3249 = vmatpush1.xpose.msra.mxu0 0.0
    %3250 = vmatprep.subr.mxu0 0.0
    %3251 = vmatpush1.xpose.msra.mxu0 0.0
    %3252 = vmatprep.subr.mxu0 0.0
    %3253 = vmatpush1.xpose.msra.mxu0 0.0
    %3254 = vmatprep.subr.mxu0 0.0
    %3255 = vmatpush1.xpose.msra.mxu0 %v3222
    %3256 = vmatprep.subr.mxu0 0.0
    %3257 = vmatpush2.xpose.msra.mxu0 0.0
    %3258 = vmatprep.subr.mxu0 0.0
    %3259 = vmatpush2.xpose.msra.mxu0 0.0
    %3260 = vmatprep.subr.mxu0 0.0
    %3261 = vmatpush2.xpose.msra.mxu0 0.0
    %3262 = vmatprep.subr.mxu0 0.0
    %3263 = vmatpush2.xpose.msra.mxu0 0.0
    %3264 = vmatprep.subr.mxu0 0.0
    %3265 = vmatpush2.xpose.msra.mxu0 0.0
    %3266 = vmatprep.subr.mxu0 0.0
    %3267 = vmatpush2.xpose.msra.mxu0 0.0
    %3268 = vmatprep.subr.mxu0 0.0
    %3269 = vmatpush2.xpose.msra.mxu0 0.0
    %3270 = vmatprep.subr.mxu0 0.0
    %3271 = vmatpush2.xpose.msra.mxu0 0.0
    %3272 = vmatprep.subr.mxu0 0.0
    %3273 = vmatpush2.xpose.msra.mxu0 0.0
    %3274 = vmatprep.subr.mxu0 0.0
    %3275 = vmatpush2.xpose.msra.mxu0 0.0
    %3276 = vmatprep.subr.mxu0 0.0
    %3277 = vmatpush2.xpose.msra.mxu0 0.0
    %3278 = vmatprep.subr.mxu0 0.0
    %3279 = vmatpush2.xpose.msra.mxu0 0.0
    %3280 = vmatprep.subr.mxu0 0.0
    %3281 = vmatpush2.xpose.msra.mxu0 0.0
    %3282 = vmatprep.subr.mxu0 0.0
    %3283 = vmatpush2.xpose.msra.mxu0 0.0
    %3284 = vmatprep.subr.mxu0 0.0
    %3285 = vmatpush2.xpose.msra.mxu0 0.0
    %3286 = vmatprep.subr.mxu0 0.0
    %3287 = vmatpush2.xpose.msra.mxu0 0.0
    %3288 = vmatprep.mubr.f32.mxu0 0.0
    %3289 = vmatmul.mubr.f32.gmra.mxu0 %v3220
    %v3290 = vpop.f32.mrf.mxu0
    %v3291 = vadd.f32 0.0, %v3290
    %v3292 = vpop.f32.mrf.mxu0
    %3293 = vdwg.mxu0
    %v3294 = vmul.f32 %v3291, 0.35355338
    %v3295 = vadd.f32 %v3294, %v3126
    %v3296 = vsel %vm688, %v3295, -inf
    %3297 = vmax.xlane.f32.xlu0 %v3296
    %v3298 = vpop.xlane.xlu0 %3297
    %v3299 = vsub.f32 %v3295, %v3298
    %v3300 = vmul.f32 %v3299, 1.442695
    %v3301 = vpow.pop %v3300
    %v3302 = vsel %vm688, %v3301, 0.0
    %3303 = vadd.xlane.f32.xlu0 %v3302
    %v3304 = vpop.xlane.xlu0 %3303
    %v3305 = vrcp.pop %v3304
    %v3306 = vmul.f32 %v3301, %v3305
    %3307 = vrot.lane.b32.xlu0 %v2355, 88
    %v3308 = vpop.permute.xlu0 %3307
    %v3311 = vsel %vm688, %v3306, 0
    %3313 = vmatprep.subr.mxu0 0.0
    %3314 = vmatpush1.msra.mxu0 0.0
    %3315 = vmatprep.subr.mxu0 0.0
    %3316 = vmatpush1.msra.mxu0 0.0
    %3317 = vmatprep.subr.mxu0 0.0
    %3318 = vmatpush1.msra.mxu0 0.0
    %3319 = vmatprep.subr.mxu0 0.0
    %3320 = vmatpush1.msra.mxu0 0.0
    %3321 = vmatprep.subr.mxu0 0.0
    %3322 = vmatpush1.msra.mxu0 0.0
    %3323 = vmatprep.subr.mxu0 0.0
    %3324 = vmatpush1.msra.mxu0 0.0
    %3325 = vmatprep.subr.mxu0 0.0
    %3326 = vmatpush1.msra.mxu0 0.0
    %3327 = vmatprep.subr.mxu0 0.0
    %3328 = vmatpush1.msra.mxu0 0.0
    %3329 = vmatprep.subr.mxu0 0.0
    %3330 = vmatpush1.msra.mxu0 0.0
    %3331 = vmatprep.subr.mxu0 0.0
    %3332 = vmatpush1.msra.mxu0 0.0
    %3333 = vmatprep.subr.mxu0 0.0
    %3334 = vmatpush1.msra.mxu0 0.0
    %3335 = vmatprep.subr.mxu0 0.0
    %3336 = vmatpush1.msra.mxu0 0.0
    %3337 = vmatprep.subr.mxu0 0.0
    %3338 = vmatpush1.msra.mxu0 0.0
    %3339 = vmatprep.subr.mxu0 0.0
    %3340 = vmatpush1.msra.mxu0 0.0
    %3341 = vmatprep.subr.mxu0 0.0
    %3342 = vmatpush1.msra.mxu0 0.0
    %3343 = vmatprep.subr.mxu0 0.0
    %3344 = vmatpush1.msra.mxu0 %v3308
    %3345 = vmatprep.subr.mxu0 0.0
    %3346 = vmatpush2.msra.mxu0 0.0
    %3347 = vmatprep.subr.mxu0 0.0
    %3348 = vmatpush2.msra.mxu0 0.0
    %3349 = vmatprep.subr.mxu0 0.0
    %3350 = vmatpush2.msra.mxu0 0.0
    %3351 = vmatprep.subr.mxu0 0.0
    %3352 = vmatpush2.msra.mxu0 0.0
    %3353 = vmatprep.subr.mxu0 0.0
    %3354 = vmatpush2.msra.mxu0 0.0
    %3355 = vmatprep.subr.mxu0 0.0
    %3356 = vmatpush2.msra.mxu0 0.0
    %3357 = vmatprep.subr.mxu0 0.0
    %3358 = vmatpush2.msra.mxu0 0.0
    %3359 = vmatprep.subr.mxu0 0.0
    %3360 = vmatpush2.msra.mxu0 0.0
    %3361 = vmatprep.subr.mxu0 0.0
    %3362 = vmatpush2.msra.mxu0 0.0
    %3363 = vmatprep.subr.mxu0 0.0
    %3364 = vmatpush2.msra.mxu0 0.0
    %3365 = vmatprep.subr.mxu0 0.0
    %3366 = vmatpush2.msra.mxu0 0.0
    %3367 = vmatprep.subr.mxu0 0.0
    %3368 = vmatpush2.msra.mxu0 0.0
    %3369 = vmatprep.subr.mxu0 0.0
    %3370 = vmatpush2.msra.mxu0 0.0
    %3371 = vmatprep.subr.mxu0 0.0
    %3372 = vmatpush2.msra.mxu0 0.0
    %3373 = vmatprep.subr.mxu0 0.0
    %3374 = vmatpush2.msra.mxu0 0.0
    %3375 = vmatprep.subr.mxu0 0.0
    %3376 = vmatpush2.msra.mxu0 0.0
    %3377 = vmatprep.mubr.f32.mxu0 0.0
    %3378 = vmatmul.mubr.f32.gmra.mxu0 %v3311
    %v3379 = vpop.f32.mrf.mxu0
    %v3380 = vadd.f32 0.0, %v3379
    %v3381 = vpop.f32.mrf.mxu0
    %3382 = vdwg.mxu0
    %3383 = vrot.lane.b32.xlu0 %v2268, 112
    %v3384 = vpop.permute.xlu0 %3383
    %3385 = vrot.lane.b32.xlu0 %v2355, 112
    %v3386 = vpop.permute.xlu0 %3385
    %v3387 = vsel %vm688, %v3384, 0
    %v3389 = vsel %vm688, %v3386, 0
    %3391 = vmatprep.subr.mxu0 0.0
    %3392 = vmatpush1.xpose.msra.mxu0 0.0
    %3393 = vmatprep.subr.mxu0 0.0
    %3394 = vmatpush1.xpose.msra.mxu0 0.0
    %3395 = vmatprep.subr.mxu0 0.0
    %3396 = vmatpush1.xpose.msra.mxu0 0.0
    %3397 = vmatprep.subr.mxu0 0.0
    %3398 = vmatpush1.xpose.msra.mxu0 0.0
    %3399 = vmatprep.subr.mxu0 0.0
    %3400 = vmatpush1.xpose.msra.mxu0 0.0
    %3401 = vmatprep.subr.mxu0 0.0
    %3402 = vmatpush1.xpose.msra.mxu0 0.0
    %3403 = vmatprep.subr.mxu0 0.0
    %3404 = vmatpush1.xpose.msra.mxu0 0.0
    %3405 = vmatprep.subr.mxu0 0.0
    %3406 = vmatpush1.xpose.msra.mxu0 0.0
    %3407 = vmatprep.subr.mxu0 0.0
    %3408 = vmatpush1.xpose.msra.mxu0 0.0
    %3409 = vmatprep.subr.mxu0 0.0
    %3410 = vmatpush1.xpose.msra.mxu0 0.0
    %3411 = vmatprep.subr.mxu0 0.0
    %3412 = vmatpush1.xpose.msra.mxu0 0.0
    %3413 = vmatprep.subr.mxu0 0.0
    %3414 = vmatpush1.xpose.msra.mxu0 0.0
    %3415 = vmatprep.subr.mxu0 0.0
    %3416 = vmatpush1.xpose.msra.mxu0 0.0
    %3417 = vmatprep.subr.mxu0 0.0
    %3418 = vmatpush1.xpose.msra.mxu0 0.0
    %3419 = vmatprep.subr.mxu0 0.0
    %3420 = vmatpush1.xpose.msra.mxu0 0.0
    %3421 = vmatprep.subr.mxu0 0.0
    %3422 = vmatpush1.xpose.msra.mxu0 %v3389
    %3423 = vmatprep.subr.mxu0 0.0
    %3424 = vmatpush2.xpose.msra.mxu0 0.0
    %3425 = vmatprep.subr.mxu0 0.0
    %3426 = vmatpush2.xpose.msra.mxu0 0.0
    %3427 = vmatprep.subr.mxu0 0.0
    %3428 = vmatpush2.xpose.msra.mxu0 0.0
    %3429 = vmatprep.subr.mxu0 0.0
    %3430 = vmatpush2.xpose.msra.mxu0 0.0
    %3431 = vmatprep.subr.mxu0 0.0
    %3432 = vmatpush2.xpose.msra.mxu0 0.0
    %3433 = vmatprep.subr.mxu0 0.0
    %3434 = vmatpush2.xpose.msra.mxu0 0.0
    %3435 = vmatprep.subr.mxu0 0.0
    %3436 = vmatpush2.xpose.msra.mxu0 0.0
    %3437 = vmatprep.subr.mxu0 0.0
    %3438 = vmatpush2.xpose.msra.mxu0 0.0
    %3439 = vmatprep.subr.mxu0 0.0
    %3440 = vmatpush2.xpose.msra.mxu0 0.0
    %3441 = vmatprep.subr.mxu0 0.0
    %3442 = vmatpush2.xpose.msra.mxu0 0.0
    %3443 = vmatprep.subr.mxu0 0.0
    %3444 = vmatpush2.xpose.msra.mxu0 0.0
    %3445 = vmatprep.subr.mxu0 0.0
    %3446 = vmatpush2.xpose.msra.mxu0 0.0
    %3447 = vmatprep.subr.mxu0 0.0
    %3448 = vmatpush2.xpose.msra.mxu0 0.0
    %3449 = vmatprep.subr.mxu0 0.0
    %3450 = vmatpush2.xpose.msra.mxu0 0.0
    %3451 = vmatprep.subr.mxu0 0.0
    %3452 = vmatpush2.xpose.msra.mxu0 0.0
    %3453 = vmatprep.subr.mxu0 0.0
    %3454 = vmatpush2.xpose.msra.mxu0 0.0
    %3455 = vmatprep.mubr.f32.mxu0 0.0
    %3456 = vmatmul.mubr.f32.gmra.mxu0 %v3387
    %v3457 = vpop.f32.mrf.mxu0
    %v3458 = vadd.f32 0.0, %v3457
    %v3459 = vpop.f32.mrf.mxu0
    %3460 = vdwg.mxu0
    %v3461 = vmul.f32 %v3458, 0.35355338
    %v3462 = vadd.f32 %v3461, %v3126
    %v3463 = vsel %vm688, %v3462, -inf
    %3464 = vmax.xlane.f32.xlu0 %v3463
    %v3465 = vpop.xlane.xlu0 %3464
    %v3466 = vsub.f32 %v3462, %v3465
    %v3467 = vmul.f32 %v3466, 1.442695
    %v3468 = vpow.pop %v3467
    %v3469 = vsel %vm688, %v3468, 0.0
    %3470 = vadd.xlane.f32.xlu0 %v3469
    %v3471 = vpop.xlane.xlu0 %3470
    %v3472 = vrcp.pop %v3471
    %v3473 = vmul.f32 %v3468, %v3472
    %3474 = vrot.lane.b32.xlu0 %v2355, 80
    %v3475 = vpop.permute.xlu0 %3474
    %v3478 = vsel %vm688, %v3473, 0
    %3480 = vmatprep.subr.mxu0 0.0
    %3481 = vmatpush1.msra.mxu0 0.0
    %3482 = vmatprep.subr.mxu0 0.0
    %3483 = vmatpush1.msra.mxu0 0.0
    %3484 = vmatprep.subr.mxu0 0.0
    %3485 = vmatpush1.msra.mxu0 0.0
    %3486 = vmatprep.subr.mxu0 0.0
    %3487 = vmatpush1.msra.mxu0 0.0
    %3488 = vmatprep.subr.mxu0 0.0
    %3489 = vmatpush1.msra.mxu0 0.0
    %3490 = vmatprep.subr.mxu0 0.0
    %3491 = vmatpush1.msra.mxu0 0.0
    %3492 = vmatprep.subr.mxu0 0.0
    %3493 = vmatpush1.msra.mxu0 0.0
    %3494 = vmatprep.subr.mxu0 0.0
    %3495 = vmatpush1.msra.mxu0 0.0
    %3496 = vmatprep.subr.mxu0 0.0
    %3497 = vmatpush1.msra.mxu0 0.0
    %3498 = vmatprep.subr.mxu0 0.0
    %3499 = vmatpush1.msra.mxu0 0.0
    %3500 = vmatprep.subr.mxu0 0.0
    %3501 = vmatpush1.msra.mxu0 0.0
    %3502 = vmatprep.subr.mxu0 0.0
    %3503 = vmatpush1.msra.mxu0 0.0
    %3504 = vmatprep.subr.mxu0 0.0
    %3505 = vmatpush1.msra.mxu0 0.0
    %3506 = vmatprep.subr.mxu0 0.0
    %3507 = vmatpush1.msra.mxu0 0.0
    %3508 = vmatprep.subr.mxu0 0.0
    %3509 = vmatpush1.msra.mxu0 0.0
    %3510 = vmatprep.subr.mxu0 0.0
    %3511 = vmatpush1.msra.mxu0 %v3475
    %3512 = vmatprep.subr.mxu0 0.0
    %3513 = vmatpush2.msra.mxu0 0.0
    %3514 = vmatprep.subr.mxu0 0.0
    %3515 = vmatpush2.msra.mxu0 0.0
    %3516 = vmatprep.subr.mxu0 0.0
    %3517 = vmatpush2.msra.mxu0 0.0
    %3518 = vmatprep.subr.mxu0 0.0
    %3519 = vmatpush2.msra.mxu0 0.0
    %3520 = vmatprep.subr.mxu0 0.0
    %3521 = vmatpush2.msra.mxu0 0.0
    %3522 = vmatprep.subr.mxu0 0.0
    %3523 = vmatpush2.msra.mxu0 0.0
    %3524 = vmatprep.subr.mxu0 0.0
    %3525 = vmatpush2.msra.mxu0 0.0
    %3526 = vmatprep.subr.mxu0 0.0
    %3527 = vmatpush2.msra.mxu0 0.0
    %3528 = vmatprep.subr.mxu0 0.0
    %3529 = vmatpush2.msra.mxu0 0.0
    %3530 = vmatprep.subr.mxu0 0.0
    %3531 = vmatpush2.msra.mxu0 0.0
    %3532 = vmatprep.subr.mxu0 0.0
    %3533 = vmatpush2.msra.mxu0 0.0
    %3534 = vmatprep.subr.mxu0 0.0
    %3535 = vmatpush2.msra.mxu0 0.0
    %3536 = vmatprep.subr.mxu0 0.0
    %3537 = vmatpush2.msra.mxu0 0.0
    %3538 = vmatprep.subr.mxu0 0.0
    %3539 = vmatpush2.msra.mxu0 0.0
    %3540 = vmatprep.subr.mxu0 0.0
    %3541 = vmatpush2.msra.mxu0 0.0
    %3542 = vmatprep.subr.mxu0 0.0
    %3543 = vmatpush2.msra.mxu0 0.0
    %3544 = vmatprep.mubr.f32.mxu0 0.0
    %3545 = vmatmul.mubr.f32.gmra.mxu0 %v3478
    %v3546 = vpop.f32.mrf.mxu0
    %v3547 = vadd.f32 0.0, %v3546
    %v3548 = vpop.f32.mrf.mxu0
    %3549 = vdwg.mxu0
    %3550 = vrot.lane.b32.xlu0 %v2268, 104
    %v3551 = vpop.permute.xlu0 %3550
    %3552 = vrot.lane.b32.xlu0 %v2355, 104
    %v3553 = vpop.permute.xlu0 %3552
    %v3554 = vsel %vm688, %v3551, 0
    %v3556 = vsel %vm688, %v3553, 0
    %3558 = vmatprep.subr.mxu0 0.0
    %3559 = vmatpush1.xpose.msra.mxu0 0.0
    %3560 = vmatprep.subr.mxu0 0.0
    %3561 = vmatpush1.xpose.msra.mxu0 0.0
    %3562 = vmatprep.subr.mxu0 0.0
    %3563 = vmatpush1.xpose.msra.mxu0 0.0
    %3564 = vmatprep.subr.mxu0 0.0
    %3565 = vmatpush1.xpose.msra.mxu0 0.0
    %3566 = vmatprep.subr.mxu0 0.0
    %3567 = vmatpush1.xpose.msra.mxu0 0.0
    %3568 = vmatprep.subr.mxu0 0.0
    %3569 = vmatpush1.xpose.msra.mxu0 0.0
    %3570 = vmatprep.subr.mxu0 0.0
    %3571 = vmatpush1.xpose.msra.mxu0 0.0
    %3572 = vmatprep.subr.mxu0 0.0
    %3573 = vmatpush1.xpose.msra.mxu0 0.0
    %3574 = vmatprep.subr.mxu0 0.0
    %3575 = vmatpush1.xpose.msra.mxu0 0.0
    %3576 = vmatprep.subr.mxu0 0.0
    %3577 = vmatpush1.xpose.msra.mxu0 0.0
    %3578 = vmatprep.subr.mxu0 0.0
    %3579 = vmatpush1.xpose.msra.mxu0 0.0
    %3580 = vmatprep.subr.mxu0 0.0
    %3581 = vmatpush1.xpose.msra.mxu0 0.0
    %3582 = vmatprep.subr.mxu0 0.0
    %3583 = vmatpush1.xpose.msra.mxu0 0.0
    %3584 = vmatprep.subr.mxu0 0.0
    %3585 = vmatpush1.xpose.msra.mxu0 0.0
    %3586 = vmatprep.subr.mxu0 0.0
    %3587 = vmatpush1.xpose.msra.mxu0 0.0
    %3588 = vmatprep.subr.mxu0 0.0
    %3589 = vmatpush1.xpose.msra.mxu0 %v3556
    %3590 = vmatprep.subr.mxu0 0.0
    %3591 = vmatpush2.xpose.msra.mxu0 0.0
    %3592 = vmatprep.subr.mxu0 0.0
    %3593 = vmatpush2.xpose.msra.mxu0 0.0
    %3594 = vmatprep.subr.mxu0 0.0
    %3595 = vmatpush2.xpose.msra.mxu0 0.0
    %3596 = vmatprep.subr.mxu0 0.0
    %3597 = vmatpush2.xpose.msra.mxu0 0.0
    %3598 = vmatprep.subr.mxu0 0.0
    %3599 = vmatpush2.xpose.msra.mxu0 0.0
    %3600 = vmatprep.subr.mxu0 0.0
    %3601 = vmatpush2.xpose.msra.mxu0 0.0
    %3602 = vmatprep.subr.mxu0 0.0
    %3603 = vmatpush2.xpose.msra.mxu0 0.0
    %3604 = vmatprep.subr.mxu0 0.0
    %3605 = vmatpush2.xpose.msra.mxu0 0.0
    %3606 = vmatprep.subr.mxu0 0.0
    %3607 = vmatpush2.xpose.msra.mxu0 0.0
    %3608 = vmatprep.subr.mxu0 0.0
    %3609 = vmatpush2.xpose.msra.mxu0 0.0
    %3610 = vmatprep.subr.mxu0 0.0
    %3611 = vmatpush2.xpose.msra.mxu0 0.0
    %3612 = vmatprep.subr.mxu0 0.0
    %3613 = vmatpush2.xpose.msra.mxu0 0.0
    %3614 = vmatprep.subr.mxu0 0.0
    %3615 = vmatpush2.xpose.msra.mxu0 0.0
    %3616 = vmatprep.subr.mxu0 0.0
    %3617 = vmatpush2.xpose.msra.mxu0 0.0
    %3618 = vmatprep.subr.mxu0 0.0
    %3619 = vmatpush2.xpose.msra.mxu0 0.0
    %3620 = vmatprep.subr.mxu0 0.0
    %3621 = vmatpush2.xpose.msra.mxu0 0.0
    %3622 = vmatprep.mubr.f32.mxu0 0.0
    %3623 = vmatmul.mubr.f32.gmra.mxu0 %v3554
    %v3624 = vpop.f32.mrf.mxu0
    %v3625 = vadd.f32 0.0, %v3624
    %v3626 = vpop.f32.mrf.mxu0
    %3627 = vdwg.mxu0
    %v3628 = vmul.f32 %v3625, 0.35355338
    %v3629 = vadd.f32 %v3628, %v3126
    %v3630 = vsel %vm688, %v3629, -inf
    %3631 = vmax.xlane.f32.xlu0 %v3630
    %v3632 = vpop.xlane.xlu0 %3631
    %v3633 = vsub.f32 %v3629, %v3632
    %v3634 = vmul.f32 %v3633, 1.442695
    %v3635 = vpow.pop %v3634
    %v3636 = vsel %vm688, %v3635, 0.0
    %3637 = vadd.xlane.f32.xlu0 %v3636
    %v3638 = vpop.xlane.xlu0 %3637
    %v3639 = vrcp.pop %v3638
    %v3640 = vmul.f32 %v3635, %v3639
    %3641 = vrot.lane.b32.xlu0 %v2355, 72
    %v3642 = vpop.permute.xlu0 %3641
    %v3645 = vsel %vm688, %v3640, 0
    %3647 = vmatprep.subr.mxu0 0.0
    %3648 = vmatpush1.msra.mxu0 0.0
    %3649 = vmatprep.subr.mxu0 0.0
    %3650 = vmatpush1.msra.mxu0 0.0
    %3651 = vmatprep.subr.mxu0 0.0
    %3652 = vmatpush1.msra.mxu0 0.0
    %3653 = vmatprep.subr.mxu0 0.0
    %3654 = vmatpush1.msra.mxu0 0.0
    %3655 = vmatprep.subr.mxu0 0.0
    %3656 = vmatpush1.msra.mxu0 0.0
    %3657 = vmatprep.subr.mxu0 0.0
    %3658 = vmatpush1.msra.mxu0 0.0
    %3659 = vmatprep.subr.mxu0 0.0
    %3660 = vmatpush1.msra.mxu0 0.0
    %3661 = vmatprep.subr.mxu0 0.0
    %3662 = vmatpush1.msra.mxu0 0.0
    %3663 = vmatprep.subr.mxu0 0.0
    %3664 = vmatpush1.msra.mxu0 0.0
    %3665 = vmatprep.subr.mxu0 0.0
    %3666 = vmatpush1.msra.mxu0 0.0
    %3667 = vmatprep.subr.mxu0 0.0
    %3668 = vmatpush1.msra.mxu0 0.0
    %3669 = vmatprep.subr.mxu0 0.0
    %3670 = vmatpush1.msra.mxu0 0.0
    %3671 = vmatprep.subr.mxu0 0.0
    %3672 = vmatpush1.msra.mxu0 0.0
    %3673 = vmatprep.subr.mxu0 0.0
    %3674 = vmatpush1.msra.mxu0 0.0
    %3675 = vmatprep.subr.mxu0 0.0
    %3676 = vmatpush1.msra.mxu0 0.0
    %3677 = vmatprep.subr.mxu0 0.0
    %3678 = vmatpush1.msra.mxu0 %v3642
    %3679 = vmatprep.subr.mxu0 0.0
    %3680 = vmatpush2.msra.mxu0 0.0
    %3681 = vmatprep.subr.mxu0 0.0
    %3682 = vmatpush2.msra.mxu0 0.0
    %3683 = vmatprep.subr.mxu0 0.0
    %3684 = vmatpush2.msra.mxu0 0.0
    %3685 = vmatprep.subr.mxu0 0.0
    %3686 = vmatpush2.msra.mxu0 0.0
    %3687 = vmatprep.subr.mxu0 0.0
    %3688 = vmatpush2.msra.mxu0 0.0
    %3689 = vmatprep.subr.mxu0 0.0
    %3690 = vmatpush2.msra.mxu0 0.0
    %3691 = vmatprep.subr.mxu0 0.0
    %3692 = vmatpush2.msra.mxu0 0.0
    %3693 = vmatprep.subr.mxu0 0.0
    %3694 = vmatpush2.msra.mxu0 0.0
    %3695 = vmatprep.subr.mxu0 0.0
    %3696 = vmatpush2.msra.mxu0 0.0
    %3697 = vmatprep.subr.mxu0 0.0
    %3698 = vmatpush2.msra.mxu0 0.0
    %3699 = vmatprep.subr.mxu0 0.0
    %3700 = vmatpush2.msra.mxu0 0.0
    %3701 = vmatprep.subr.mxu0 0.0
    %3702 = vmatpush2.msra.mxu0 0.0
    %3703 = vmatprep.subr.mxu0 0.0
    %3704 = vmatpush2.msra.mxu0 0.0
    %3705 = vmatprep.subr.mxu0 0.0
    %3706 = vmatpush2.msra.mxu0 0.0
    %3707 = vmatprep.subr.mxu0 0.0
    %3708 = vmatpush2.msra.mxu0 0.0
    %3709 = vmatprep.subr.mxu0 0.0
    %3710 = vmatpush2.msra.mxu0 0.0
    %3711 = vmatprep.mubr.f32.mxu0 0.0
    %3712 = vmatmul.mubr.f32.gmra.mxu0 %v3645
    %v3713 = vpop.f32.mrf.mxu0
    %v3714 = vadd.f32 0.0, %v3713
    %v3715 = vpop.f32.mrf.mxu0
    %3716 = vdwg.mxu0
    %3718 = vrot.lane.b32.xlu0 %v3380, 8
    %v3719 = vpop.permute.xlu0 %3718
    %3722 = vrot.lane.b32.xlu0 %v3547, 16
    %v3723 = vpop.permute.xlu0 %3722
    %3726 = vrot.lane.b32.xlu0 %v3714, 24
    %v3727 = vpop.permute.xlu0 %3726
    %v3729 = vsel %vm688, %v3213, %v3719
    %v3730 = vsel %vm1366, %v3729, %v3723
    %v3731 = vsel %vm1368, %v3730, %v3727
    %v3733 = vlaneseq
    %v3734 = vshrl.u32 %v3733, 7
    %v3735 = vsub.s32 0, %v3734
    %v3736 = vrot.slane %v576, %v3735
    %v3739 = vsel %vm603, %v3044, 0
    %v3742 = vsel %vm603, %v3731, 0
    %3744 = vmatprep.subr.mxu0 0.0
    %3745 = vmatpush1.msra.mxu0 0.0
    %3746 = vmatprep.subr.mxu0 0.0
    %3747 = vmatpush1.msra.mxu0 0.0
    %3748 = vmatprep.subr.mxu0 0.0
    %3749 = vmatpush1.msra.mxu0 0.0
    %3750 = vmatprep.subr.mxu0 0.0
    %3751 = vmatpush1.msra.mxu0 0.0
    %3752 = vmatprep.subr.mxu0 0.0
    %3753 = vmatpush1.msra.mxu0 0.0
    %3754 = vmatprep.subr.mxu0 0.0
    %3755 = vmatpush1.msra.mxu0 0.0
    %3756 = vmatprep.subr.mxu0 0.0
    %3757 = vmatpush1.msra.mxu0 0.0
    %3758 = vmatprep.subr.mxu0 0.0
    %3759 = vmatpush1.msra.mxu0 0.0
    %3760 = vmatprep.subr.mxu0 0.0
    %3761 = vmatpush1.msra.mxu0 0.0
    %3762 = vmatprep.subr.mxu0 0.0
    %3763 = vmatpush1.msra.mxu0 0.0
    %3764 = vmatprep.subr.mxu0 0.0
    %3765 = vmatpush1.msra.mxu0 0.0
    %3766 = vmatprep.subr.mxu0 0.0
    %3767 = vmatpush1.msra.mxu0 0.0
    %3768 = vmatprep.subr.mxu0 0.0
    %3769 = vmatpush1.msra.mxu0 %v575
    %3770 = vmatprep.subr.mxu0 0.0
    %3771 = vmatpush1.msra.mxu0 %v574
    %3772 = vmatprep.subr.mxu0 0.0
    %3773 = vmatpush1.msra.mxu0 %v573
    %3774 = vmatprep.subr.mxu0 0.0
    %3775 = vmatpush1.msra.mxu0 %v572
    %3776 = vmatprep.subr.mxu0 0.0
    %3777 = vmatpush2.msra.mxu0 0.0
    %3778 = vmatprep.subr.mxu0 0.0
    %3779 = vmatpush2.msra.mxu0 0.0
    %3780 = vmatprep.subr.mxu0 0.0
    %3781 = vmatpush2.msra.mxu0 0.0
    %3782 = vmatprep.subr.mxu0 0.0
    %3783 = vmatpush2.msra.mxu0 0.0
    %3784 = vmatprep.subr.mxu0 0.0
    %3785 = vmatpush2.msra.mxu0 0.0
    %3786 = vmatprep.subr.mxu0 0.0
    %3787 = vmatpush2.msra.mxu0 0.0
    %3788 = vmatprep.subr.mxu0 0.0
    %3789 = vmatpush2.msra.mxu0 0.0
    %3790 = vmatprep.subr.mxu0 0.0
    %3791 = vmatpush2.msra.mxu0 0.0
    %3792 = vmatprep.subr.mxu0 0.0
    %3793 = vmatpush2.msra.mxu0 0.0
    %3794 = vmatprep.subr.mxu0 0.0
    %3795 = vmatpush2.msra.mxu0 0.0
    %3796 = vmatprep.subr.mxu0 0.0
    %3797 = vmatpush2.msra.mxu0 0.0
    %3798 = vmatprep.subr.mxu0 0.0
    %3799 = vmatpush2.msra.mxu0 0.0
    %3800 = vmatprep.subr.mxu0 0.0
    %3801 = vmatpush2.msra.mxu0 0.0
    %3802 = vmatprep.subr.mxu0 0.0
    %3803 = vmatpush2.msra.mxu0 0.0
    %3804 = vmatprep.subr.mxu0 0.0
    %3805 = vmatpush2.msra.mxu0 0.0
    %3806 = vmatprep.subr.mxu0 0.0
    %3807 = vmatpush2.msra.mxu0 0.0
    %3808 = vmatprep.mubr.f32.mxu0 0.0
    %3809 = vmatmul.mubr.f32.gmra.mxu0 %v3739
    %v3810 = vpop.f32.mrf.mxu0
    %v3811 = vadd.f32 %v3736, %v3810
    %v3812 = vpop.f32.mrf.mxu0
    %3813 = vmatprep.mubr.f32.mxu0 0.0
    %3814 = vmatmul.mubr.f32.gmra.mxu0 %v3742
    %v3815 = vpop.f32.mrf.mxu0
    %v3816 = vadd.f32 %v3736, %v3815
    %v3817 = vpop.f32.mrf.mxu0
    %3818 = vdwg.mxu0
    %v3819 = vadd.f32 %v2182, %v3811
    %v3820 = vadd.f32 %v2183, %v3816
    %v3821 = vsel %vm603, %v3819, 0.0
    %3822 = vadd.xlane.f32.xlu0 %v3821
    %v3823 = vpop.xlane.xlu0 %3822
    %v3824 = vsel %vm603, %v3820, 0.0
    %3825 = vadd.xlane.f32.xlu0 %v3824
    %v3826 = vpop.xlane.xlu0 %3825
    %v3827 = vmul.f32 %v3823, %v2147
    %v3828 = vmul.f32 %v3826, %v2147
    %v3829 = vsub.f32 %v3819, %v3827
    %v3830 = vsub.f32 %v3820, %v3828
    %v3831 = vmul.f32 %v3829, %v3829
    %v3832 = vmul.f32 %v3830, %v3830
    %v3833 = vsel %vm603, %v3831, 0.0
    %3834 = vadd.xlane.f32.xlu0 %v3833
    %v3835 = vpop.xlane.xlu0 %3834
    %v3836 = vsel %vm603, %v3832, 0.0
    %3837 = vadd.xlane.f32.xlu0 %v3836
    %v3838 = vpop.xlane.xlu0 %3837
    %v3839 = vmul.f32 %v3835, %v2147
    %v3840 = vmul.f32 %v3838, %v2147
    %v3841 = vadd.f32 %v3839, 1e-05
    %v3842 = vadd.f32 %v3840, 1e-05
    %v3843 = vrsqrt.pop %v3841
    %v3844 = vrsqrt.pop %v3842
    %v3845 = vmul.f32 %v3829, %v3843
    %v3846 = vmul.f32 %v3830, %v3844
    %v3848 = vlaneseq
    %v3849 = vshrl.u32 %v3848, 7
    %v3850 = vsub.s32 0, %v3849
    %v3851 = vrot.slane %v593, %v3850
    %v3853 = vmul.f32 %v3845, %v3851
    %v3854 = vmul.f32 %v3846, %v3851
    %v3856 = vlaneseq
    %v3857 = vshrl.u32 %v3856, 7
    %v3858 = vsub.s32 0, %v3857
    %v3859 = vrot.slane %v594, %v3858
    %v3861 = vadd.f32 %v3853, %v3859
    %v3862 = vadd.f32 %v3854, %v3859
    %v3864 = vlaneseq
    %v3865 = vshrl.u32 %v3864, 7
    %v3866 = vsub.s32 0, %v3865
    %v3867 = vrot.slane %v581, %v3866
    %v3870 = vsel %vm603, %v3861, 0
    %v3873 = vsel %vm603, %v3862, 0
    %3875 = vmatprep.subr.mxu0 0.0
    %3876 = vmatpush1.msra.mxu0 0.0
    %3877 = vmatprep.subr.mxu0 0.0
    %3878 = vmatpush1.msra.mxu0 0.0
    %3879 = vmatprep.subr.mxu0 0.0
    %3880 = vmatpush1.msra.mxu0 0.0
    %3881 = vmatprep.subr.mxu0 0.0
    %3882 = vmatpush1.msra.mxu0 0.0
    %3883 = vmatprep.subr.mxu0 0.0
    %3884 = vmatpush1.msra.mxu0 0.0
    %3885 = vmatprep.subr.mxu0 0.0
    %3886 = vmatpush1.msra.mxu0 0.0
    %3887 = vmatprep.subr.mxu0 0.0
    %3888 = vmatpush1.msra.mxu0 0.0
    %3889 = vmatprep.subr.mxu0 0.0
    %3890 = vmatpush1.msra.mxu0 0.0
    %3891 = vmatprep.subr.mxu0 0.0
    %3892 = vmatpush1.msra.mxu0 0.0
    %3893 = vmatprep.subr.mxu0 0.0
    %3894 = vmatpush1.msra.mxu0 0.0
    %3895 = vmatprep.subr.mxu0 0.0
    %3896 = vmatpush1.msra.mxu0 0.0
    %3897 = vmatprep.subr.mxu0 0.0
    %3898 = vmatpush1.msra.mxu0 0.0
    %3899 = vmatprep.subr.mxu0 0.0
    %3900 = vmatpush1.msra.mxu0 %v580
    %3901 = vmatprep.subr.mxu0 0.0
    %3902 = vmatpush1.msra.mxu0 %v579
    %3903 = vmatprep.subr.mxu0 0.0
    %3904 = vmatpush1.msra.mxu0 %v578
    %3905 = vmatprep.subr.mxu0 0.0
    %3906 = vmatpush1.msra.mxu0 %v577
    %3907 = vmatprep.subr.mxu0 0.0
    %3908 = vmatpush2.msra.mxu0 0.0
    %3909 = vmatprep.subr.mxu0 0.0
    %3910 = vmatpush2.msra.mxu0 0.0
    %3911 = vmatprep.subr.mxu0 0.0
    %3912 = vmatpush2.msra.mxu0 0.0
    %3913 = vmatprep.subr.mxu0 0.0
    %3914 = vmatpush2.msra.mxu0 0.0
    %3915 = vmatprep.subr.mxu0 0.0
    %3916 = vmatpush2.msra.mxu0 0.0
    %3917 = vmatprep.subr.mxu0 0.0
    %3918 = vmatpush2.msra.mxu0 0.0
    %3919 = vmatprep.subr.mxu0 0.0
    %3920 = vmatpush2.msra.mxu0 0.0
    %3921 = vmatprep.subr.mxu0 0.0
    %3922 = vmatpush2.msra.mxu0 0.0
    %3923 = vmatprep.subr.mxu0 0.0
    %3924 = vmatpush2.msra.mxu0 0.0
    %3925 = vmatprep.subr.mxu0 0.0
    %3926 = vmatpush2.msra.mxu0 0.0
    %3927 = vmatprep.subr.mxu0 0.0
    %3928 = vmatpush2.msra.mxu0 0.0
    %3929 = vmatprep.subr.mxu0 0.0
    %3930 = vmatpush2.msra.mxu0 0.0
    %3931 = vmatprep.subr.mxu0 0.0
    %3932 = vmatpush2.msra.mxu0 0.0
    %3933 = vmatprep.subr.mxu0 0.0
    %3934 = vmatpush2.msra.mxu0 0.0
    %3935 = vmatprep.subr.mxu0 0.0
    %3936 = vmatpush2.msra.mxu0 0.0
    %3937 = vmatprep.subr.mxu0 0.0
    %3938 = vmatpush2.msra.mxu0 0.0
    %3939 = vmatprep.mubr.f32.mxu0 0.0
    %3940 = vmatmul.mubr.f32.gmra.mxu0 %v3870
    %v3941 = vpop.f32.mrf.mxu0
    %v3942 = vadd.f32 %v3867, %v3941
    %v3943 = vpop.f32.mrf.mxu0
    %3944 = vmatprep.mubr.f32.mxu0 0.0
    %3945 = vmatmul.mubr.f32.gmra.mxu0 %v3873
    %v3946 = vpop.f32.mrf.mxu0
    %v3947 = vadd.f32 %v3867, %v3946
    %v3948 = vpop.f32.mrf.mxu0
    %3949 = vdwg.mxu0
    %v3950 = vmax.f32 %v3942, 0.0
    %v3951 = vmax.f32 %v3947, 0.0
    %v3953 = vlaneseq
    %v3954 = vshrl.u32 %v3953, 7
    %v3955 = vsub.s32 0, %v3954
    %v3956 = vrot.slane %v590, %v3955
    %vm3958 = vcmask 523264
    %v3960 = vsel %vm3958, %v3950, 0
    %v3963 = vsel %vm3958, %v3951, 0
    %3965 = vmatprep.subr.mxu0 0.0
    %3966 = vmatpush1.msra.mxu0 0.0
    %3967 = vmatprep.subr.mxu0 0.0
    %3968 = vmatpush1.msra.mxu0 0.0
    %3969 = vmatprep.subr.mxu0 0.0
    %3970 = vmatpush1.msra.mxu0 0.0
    %3971 = vmatprep.subr.mxu0 0.0
    %3972 = vmatpush1.msra.mxu0 0.0
    %3973 = vmatprep.subr.mxu0 0.0
    %3974 = vmatpush1.msra.mxu0 0.0
    %3975 = vmatprep.subr.mxu0 0.0
    %3976 = vmatpush1.msra.mxu0 0.0
    %3977 = vmatprep.subr.mxu0 0.0
    %3978 = vmatpush1.msra.mxu0 0.0
    %3979 = vmatprep.subr.mxu0 0.0
    %3980 = vmatpush1.msra.mxu0 0.0
    %3981 = vmatprep.subr.mxu0 0.0
    %3982 = vmatpush1.msra.mxu0 %v589
    %3983 = vmatprep.subr.mxu0 0.0
    %3984 = vmatpush1.msra.mxu0 %v588
    %3985 = vmatprep.subr.mxu0 0.0
    %3986 = vmatpush1.msra.mxu0 %v587
    %3987 = vmatprep.subr.mxu0 0.0
    %3988 = vmatpush1.msra.mxu0 %v586
    %3989 = vmatprep.subr.mxu0 0.0
    %3990 = vmatpush1.msra.mxu0 %v585
    %3991 = vmatprep.subr.mxu0 0.0
    %3992 = vmatpush1.msra.mxu0 %v584
    %3993 = vmatprep.subr.mxu0 0.0
    %3994 = vmatpush1.msra.mxu0 %v583
    %3995 = vmatprep.subr.mxu0 0.0
    %3996 = vmatpush1.msra.mxu0 %v582
    %3997 = vmatprep.subr.mxu0 0.0
    %3998 = vmatpush2.msra.mxu0 0.0
    %3999 = vmatprep.subr.mxu0 0.0
    %4000 = vmatpush2.msra.mxu0 0.0
    %4001 = vmatprep.subr.mxu0 0.0
    %4002 = vmatpush2.msra.mxu0 0.0
    %4003 = vmatprep.subr.mxu0 0.0
    %4004 = vmatpush2.msra.mxu0 0.0
    %4005 = vmatprep.subr.mxu0 0.0
    %4006 = vmatpush2.msra.mxu0 0.0
    %4007 = vmatprep.subr.mxu0 0.0
    %4008 = vmatpush2.msra.mxu0 0.0
    %4009 = vmatprep.subr.mxu0 0.0
    %4010 = vmatpush2.msra.mxu0 0.0
    %4011 = vmatprep.subr.mxu0 0.0
    %4012 = vmatpush2.msra.mxu0 0.0
    %4013 = vmatprep.subr.mxu0 0.0
    %4014 = vmatpush2.msra.mxu0 0.0
    %4015 = vmatprep.subr.mxu0 0.0
    %4016 = vmatpush2.msra.mxu0 0.0
    %4017 = vmatprep.subr.mxu0 0.0
    %4018 = vmatpush2.msra.mxu0 0.0
    %4019 = vmatprep.subr.mxu0 0.0
    %4020 = vmatpush2.msra.mxu0 0.0
    %4021 = vmatprep.subr.mxu0 0.0
    %4022 = vmatpush2.msra.mxu0 0.0
    %4023 = vmatprep.subr.mxu0 0.0
    %4024 = vmatpush2.msra.mxu0 0.0
    %4025 = vmatprep.subr.mxu0 0.0
    %4026 = vmatpush2.msra.mxu0 0.0
    %4027 = vmatprep.subr.mxu0 0.0
    %4028 = vmatpush2.msra.mxu0 0.0
    %4029 = vmatprep.mubr.f32.mxu0 0.0
    %4030 = vmatmul.mubr.f32.gmra.mxu0 %v3960
    %v4031 = vpop.f32.mrf.mxu0
    %v4032 = vadd.f32 %v3956, %v4031
    %v4033 = vpop.f32.mrf.mxu0
    %4034 = vmatprep.mubr.f32.mxu0 0.0
    %4035 = vmatmul.mubr.f32.gmra.mxu0 %v3963
    %v4036 = vpop.f32.mrf.mxu0
    %v4037 = vadd.f32 %v3956, %v4036
    %v4038 = vpop.f32.mrf.mxu0
    %4039 = vdwg.mxu0
    %v4040 = vadd.f32 %v3861, %v4032
    %v4041 = vadd.f32 %v3862, %v4037
    %v4042 = vsel %vm603, %v4040, 0.0
    %4043 = vadd.xlane.f32.xlu0 %v4042
    %v4044 = vpop.xlane.xlu0 %4043
    %v4045 = vsel %vm603, %v4041, 0.0
    %4046 = vadd.xlane.f32.xlu0 %v4045
    %v4047 = vpop.xlane.xlu0 %4046
    %v4048 = vmul.f32 %v4044, %v2147
    %v4049 = vmul.f32 %v4047, %v2147
    %v4050 = vsub.f32 %v4040, %v4048
    %v4051 = vsub.f32 %v4041, %v4049
    %v4052 = vmul.f32 %v4050, %v4050
    %v4053 = vmul.f32 %v4051, %v4051
    %v4054 = vsel %vm603, %v4052, 0.0
    %4055 = vadd.xlane.f32.xlu0 %v4054
    %v4056 = vpop.xlane.xlu0 %4055
    %v4057 = vsel %vm603, %v4053, 0.0
    %4058 = vadd.xlane.f32.xlu0 %v4057
    %v4059 = vpop.xlane.xlu0 %4058
    %v4060 = vmul.f32 %v4056, %v2147
    %v4061 = vmul.f32 %v4059, %v2147
    %v4062 = vadd.f32 %v4060, 1e-05
    %v4063 = vadd.f32 %v4061, 1e-05
    %v4064 = vrsqrt.pop %v4062
    %v4065 = vrsqrt.pop %v4063
    %v4066 = vmul.f32 %v4050, %v4064
    %v4067 = vmul.f32 %v4051, %v4065
    %v4069 = vlaneseq
    %v4070 = vshrl.u32 %v4069, 7
    %v4071 = vsub.s32 0, %v4070
    %v4072 = vrot.slane %v595, %v4071
    %v4074 = vmul.f32 %v4066, %v4072
    %v4075 = vmul.f32 %v4067, %v4072
    %v4077 = vlaneseq
    %v4078 = vshrl.u32 %v4077, 7
    %v4079 = vsub.s32 0, %v4078
    %v4080 = vrot.slane %v596, %v4079
    %v4082 = vadd.f32 %v4074, %v4080
    %v4083 = vadd.f32 %v4075, %v4080
    %v4084 = vld [vmem:[%s51] sm:$0xff]
    %v4085 = vld [vmem:[%s51 + $0x8] sm:$0xff]
    %v4086 = vld [vmem:[%s51 + $0x10] sm:$0xff]
    %v4087 = vld [vmem:[%s51 + $0x18] sm:$0xff]
    %v4088 = vld [vmem:[#allocation29] sm:$0x1]
    %v4089 = vld [vmem:[#allocation31] sm:$0xff]
    %v4090 = vld [vmem:[#allocation31 + $0x8] sm:$0xff]
    %v4091 = vld [vmem:[#allocation31 + $0x10] sm:$0xff]
    %v4092 = vld [vmem:[#allocation31 + $0x18] sm:$0xff]
    %v4093 = vld [vmem:[#allocation32] sm:$0x1]
    %v4094 = vld [vmem:[#allocation34] sm:$0xff]
    %v4095 = vld [vmem:[#allocation34 + $0x8] sm:$0xff]
    %v4096 = vld [vmem:[#allocation34 + $0x10] sm:$0xff]
    %v4097 = vld [vmem:[#allocation34 + $0x18] sm:$0xff]
    %v4098 = vld [vmem:[#allocation35] sm:$0x1]
    %v4099 = vld [vmem:[#allocation37] sm:$0xff]
    %v4100 = vld [vmem:[#allocation37 + $0x8] sm:$0xff]
    %v4101 = vld [vmem:[#allocation37 + $0x10] sm:$0xff]
    %v4102 = vld [vmem:[#allocation37 + $0x18] sm:$0xff]
    %v4103 = vld [vmem:[#allocation38] sm:$0x1]
    %v4104 = vld [vmem:[#allocation40] sm:$0xff]
    %v4105 = vld [vmem:[#allocation40 + $0x8] sm:$0xff]
    %v4106 = vld [vmem:[#allocation40 + $0x10] sm:$0xff]
    %v4107 = vld [vmem:[#allocation40 + $0x18] sm:$0xff]
    %v4108 = vld [vmem:[#allocation41] sm:$0x1]
    %v4109 = vld [vmem:[#allocation43] sm:$0xff]
    %v4110 = vld [vmem:[#allocation43 + $0x8] sm:$0xff]
    %v4111 = vld [vmem:[#allocation43 + $0x10] sm:$0xff]
    %v4112 = vld [vmem:[#allocation43 + $0x18] sm:$0xff]
    %v4113 = vld [vmem:[#allocation44] sm:$0x1]
    %v4114 = vld [vmem:[%s75] sm:$0xff]
    %v4115 = vld [vmem:[%s75 + $0x8] sm:$0xff]
    %v4116 = vld [vmem:[%s75 + $0x10] sm:$0xff]
    %v4117 = vld [vmem:[%s75 + $0x18] sm:$0xff]
    %v4118 = vld [vmem:[%s75 + $0x20] sm:$0xff]
    %v4119 = vld [vmem:[%s75 + $0x28] sm:$0xff]
    %v4120 = vld [vmem:[%s75 + $0x30] sm:$0xff]
    %v4121 = vld [vmem:[%s75 + $0x38] sm:$0xff]
    %v4122 = vld [vmem:[%s77] sm:$0x1]
    %v4123 = vld [vmem:[%s79] sm:$0x1]
    %v4124 = vld [vmem:[%s81] sm:$0x1]
    %v4125 = vld [vmem:[%s83] sm:$0x1]
    %v4126 = vld [vmem:[%s85] sm:$0x1]
    %v4127 = vld [vmem:[%s87] sm:$0x1]
    %v4128 = vld [vmem:[%s89] sm:$0x1]
    %v4130 = vlaneseq
    %v4131 = vshrl.u32 %v4130, 7
    %v4132 = vsub.s32 0, %v4131
    %v4133 = vrot.slane %v4088, %v4132
    %v4136 = vsel %vm603, %v4082, 0
    %v4139 = vsel %vm603, %v4083, 0
    %4141 = vmatprep.subr.mxu0 0.0
    %4142 = vmatpush1.msra.mxu0 0.0
    %4143 = vmatprep.subr.mxu0 0.0
    %4144 = vmatpush1.msra.mxu0 0.0
    %4145 = vmatprep.subr.mxu0 0.0
    %4146 = vmatpush1.msra.mxu0 0.0
    %4147 = vmatprep.subr.mxu0 0.0
    %4148 = vmatpush1.msra.mxu0 0.0
    %4149 = vmatprep.subr.mxu0 0.0
    %4150 = vmatpush1.msra.mxu0 0.0
    %4151 = vmatprep.subr.mxu0 0.0
    %4152 = vmatpush1.msra.mxu0 0.0
    %4153 = vmatprep.subr.mxu0 0.0
    %4154 = vmatpush1.msra.mxu0 0.0
    %4155 = vmatprep.subr.mxu0 0.0
    %4156 = vmatpush1.msra.mxu0 0.0
    %4157 = vmatprep.subr.mxu0 0.0
    %4158 = vmatpush1.msra.mxu0 0.0
    %4159 = vmatprep.subr.mxu0 0.0
    %4160 = vmatpush1.msra.mxu0 0.0
    %4161 = vmatprep.subr.mxu0 0.0
    %4162 = vmatpush1.msra.mxu0 0.0
    %4163 = vmatprep.subr.mxu0 0.0
    %4164 = vmatpush1.msra.mxu0 0.0
    %4165 = vmatprep.subr.mxu0 0.0
    %4166 = vmatpush1.msra.mxu0 %v4087
    %4167 = vmatprep.subr.mxu0 0.0
    %4168 = vmatpush1.msra.mxu0 %v4086
    %4169 = vmatprep.subr.mxu0 0.0
    %4170 = vmatpush1.msra.mxu0 %v4085
    %4171 = vmatprep.subr.mxu0 0.0
    %4172 = vmatpush1.msra.mxu0 %v4084
    %4173 = vmatprep.subr.mxu0 0.0
    %4174 = vmatpush2.msra.mxu0 0.0
    %4175 = vmatprep.subr.mxu0 0.0
    %4176 = vmatpush2.msra.mxu0 0.0
    %4177 = vmatprep.subr.mxu0 0.0
    %4178 = vmatpush2.msra.mxu0 0.0
    %4179 = vmatprep.subr.mxu0 0.0
    %4180 = vmatpush2.msra.mxu0 0.0
    %4181 = vmatprep.subr.mxu0 0.0
    %4182 = vmatpush2.msra.mxu0 0.0
    %4183 = vmatprep.subr.mxu0 0.0
    %4184 = vmatpush2.msra.mxu0 0.0
    %4185 = vmatprep.subr.mxu0 0.0
    %4186 = vmatpush2.msra.mxu0 0.0
    %4187 = vmatprep.subr.mxu0 0.0
    %4188 = vmatpush2.msra.mxu0 0.0
    %4189 = vmatprep.subr.mxu0 0.0
    %4190 = vmatpush2.msra.mxu0 0.0
    %4191 = vmatprep.subr.mxu0 0.0
    %4192 = vmatpush2.msra.mxu0 0.0
    %4193 = vmatprep.subr.mxu0 0.0
    %4194 = vmatpush2.msra.mxu0 0.0
    %4195 = vmatprep.subr.mxu0 0.0
    %4196 = vmatpush2.msra.mxu0 0.0
    %4197 = vmatprep.subr.mxu0 0.0
    %4198 = vmatpush2.msra.mxu0 0.0
    %4199 = vmatprep.subr.mxu0 0.0
    %4200 = vmatpush2.msra.mxu0 0.0
    %4201 = vmatprep.subr.mxu0 0.0
    %4202 = vmatpush2.msra.mxu0 0.0
    %4203 = vmatprep.subr.mxu0 0.0
    %4204 = vmatpush2.msra.mxu0 0.0
    %4205 = vmatprep.mubr.f32.mxu0 0.0
    %4206 = vmatmul.mubr.f32.gmra.mxu0 %v4136
    %v4207 = vpop.f32.mrf.mxu0
    %v4208 = vadd.f32 %v4133, %v4207
    %v4209 = vpop.f32.mrf.mxu0
    %4210 = vmatprep.mubr.f32.mxu0 0.0
    %4211 = vmatmul.mubr.f32.gmra.mxu0 %v4139
    %v4212 = vpop.f32.mrf.mxu0
    %v4213 = vadd.f32 %v4133, %v4212
    %v4214 = vpop.f32.mrf.mxu0
    %4215 = vdwg.mxu0
    %4217 = vrot.lane.b32.xlu0 %v4208, 96
    %v4218 = vpop.permute.xlu0 %4217
    %v4219 = vsel %vm688, %v4208, 0
    %v4221 = vsel %vm688, %v4218, 0
    %4223 = vmatprep.subr.mxu0 0.0
    %4224 = vmatpush1.xpose.msra.mxu0 0.0
    %4225 = vmatprep.subr.mxu0 0.0
    %4226 = vmatpush1.xpose.msra.mxu0 0.0
    %4227 = vmatprep.subr.mxu0 0.0
    %4228 = vmatpush1.xpose.msra.mxu0 0.0
    %4229 = vmatprep.subr.mxu0 0.0
    %4230 = vmatpush1.xpose.msra.mxu0 0.0
    %4231 = vmatprep.subr.mxu0 0.0
    %4232 = vmatpush1.xpose.msra.mxu0 0.0
    %4233 = vmatprep.subr.mxu0 0.0
    %4234 = vmatpush1.xpose.msra.mxu0 0.0
    %4235 = vmatprep.subr.mxu0 0.0
    %4236 = vmatpush1.xpose.msra.mxu0 0.0
    %4237 = vmatprep.subr.mxu0 0.0
    %4238 = vmatpush1.xpose.msra.mxu0 0.0
    %4239 = vmatprep.subr.mxu0 0.0
    %4240 = vmatpush1.xpose.msra.mxu0 0.0
    %4241 = vmatprep.subr.mxu0 0.0
    %4242 = vmatpush1.xpose.msra.mxu0 0.0
    %4243 = vmatprep.subr.mxu0 0.0
    %4244 = vmatpush1.xpose.msra.mxu0 0.0
    %4245 = vmatprep.subr.mxu0 0.0
    %4246 = vmatpush1.xpose.msra.mxu0 0.0
    %4247 = vmatprep.subr.mxu0 0.0
    %4248 = vmatpush1.xpose.msra.mxu0 0.0
    %4249 = vmatprep.subr.mxu0 0.0
    %4250 = vmatpush1.xpose.msra.mxu0 0.0
    %4251 = vmatprep.subr.mxu0 0.0
    %4252 = vmatpush1.xpose.msra.mxu0 0.0
    %4253 = vmatprep.subr.mxu0 0.0
    %4254 = vmatpush1.xpose.msra.mxu0 %v4221
    %4255 = vmatprep.subr.mxu0 0.0
    %4256 = vmatpush2.xpose.msra.mxu0 0.0
    %4257 = vmatprep.subr.mxu0 0.0
    %4258 = vmatpush2.xpose.msra.mxu0 0.0
    %4259 = vmatprep.subr.mxu0 0.0
    %4260 = vmatpush2.xpose.msra.mxu0 0.0
    %4261 = vmatprep.subr.mxu0 0.0
    %4262 = vmatpush2.xpose.msra.mxu0 0.0
    %4263 = vmatprep.subr.mxu0 0.0
    %4264 = vmatpush2.xpose.msra.mxu0 0.0
    %4265 = vmatprep.subr.mxu0 0.0
    %4266 = vmatpush2.xpose.msra.mxu0 0.0
    %4267 = vmatprep.subr.mxu0 0.0
    %4268 = vmatpush2.xpose.msra.mxu0 0.0
    %4269 = vmatprep.subr.mxu0 0.0
    %4270 = vmatpush2.xpose.msra.mxu0 0.0
    %4271 = vmatprep.subr.mxu0 0.0
    %4272 = vmatpush2.xpose.msra.mxu0 0.0
    %4273 = vmatprep.subr.mxu0 0.0
    %4274 = vmatpush2.xpose.msra.mxu0 0.0
    %4275 = vmatprep.subr.mxu0 0.0
    %4276 = vmatpush2.xpose.msra.mxu0 0.0
    %4277 = vmatprep.subr.mxu0 0.0
    %4278 = vmatpush2.xpose.msra.mxu0 0.0
    %4279 = vmatprep.subr.mxu0 0.0
    %4280 = vmatpush2.xpose.msra.mxu0 0.0
    %4281 = vmatprep.subr.mxu0 0.0
    %4282 = vmatpush2.xpose.msra.mxu0 0.0
    %4283 = vmatprep.subr.mxu0 0.0
    %4284 = vmatpush2.xpose.msra.mxu0 0.0
    %4285 = vmatprep.subr.mxu0 0.0
    %4286 = vmatpush2.xpose.msra.mxu0 0.0
    %4287 = vmatprep.mubr.f32.mxu0 0.0
    %4288 = vmatmul.mubr.f32.gmra.mxu0 %v4219
    %v4289 = vpop.f32.mrf.mxu0
    %v4290 = vadd.f32 0.0, %v4289
    %v4291 = vpop.f32.mrf.mxu0
    %4292 = vdwg.mxu0
    %v4293 = vmul.f32 %v4290, 0.35355338
    %v4294 = vadd.f32 %v4293, %v544
    %v4295 = vsel %vm688, %v4294, -inf
    %4296 = vmax.xlane.f32.xlu0 %v4295
    %v4297 = vpop.xlane.xlu0 %4296
    %v4298 = vsub.f32 %v4294, %v4297
    %v4299 = vmul.f32 %v4298, 1.442695
    %v4300 = vpow.pop %v4299
    %v4301 = vsel %vm688, %v4300, 0.0
    %4302 = vadd.xlane.f32.xlu0 %v4301
    %v4303 = vpop.xlane.xlu0 %4302
    %v4304 = vrcp.pop %v4303
    %v4305 = vmul.f32 %v4300, %v4304
    %4306 = vrot.lane.b32.xlu0 %v4208, 64
    %v4307 = vpop.permute.xlu0 %4306
    %v4310 = vsel %vm688, %v4305, 0
    %4312 = vmatprep.subr.mxu0 0.0
    %4313 = vmatpush1.msra.mxu0 0.0
    %4314 = vmatprep.subr.mxu0 0.0
    %4315 = vmatpush1.msra.mxu0 0.0
    %4316 = vmatprep.subr.mxu0 0.0
    %4317 = vmatpush1.msra.mxu0 0.0
    %4318 = vmatprep.subr.mxu0 0.0
    %4319 = vmatpush1.msra.mxu0 0.0
    %4320 = vmatprep.subr.mxu0 0.0
    %4321 = vmatpush1.msra.mxu0 0.0
    %4322 = vmatprep.subr.mxu0 0.0
    %4323 = vmatpush1.msra.mxu0 0.0
    %4324 = vmatprep.subr.mxu0 0.0
    %4325 = vmatpush1.msra.mxu0 0.0
    %4326 = vmatprep.subr.mxu0 0.0
    %4327 = vmatpush1.msra.mxu0 0.0
    %4328 = vmatprep.subr.mxu0 0.0
    %4329 = vmatpush1.msra.mxu0 0.0
    %4330 = vmatprep.subr.mxu0 0.0
    %4331 = vmatpush1.msra.mxu0 0.0
    %4332 = vmatprep.subr.mxu0 0.0
    %4333 = vmatpush1.msra.mxu0 0.0
    %4334 = vmatprep.subr.mxu0 0.0
    %4335 = vmatpush1.msra.mxu0 0.0
    %4336 = vmatprep.subr.mxu0 0.0
    %4337 = vmatpush1.msra.mxu0 0.0
    %4338 = vmatprep.subr.mxu0 0.0
    %4339 = vmatpush1.msra.mxu0 0.0
    %4340 = vmatprep.subr.mxu0 0.0
    %4341 = vmatpush1.msra.mxu0 0.0
    %4342 = vmatprep.subr.mxu0 0.0
    %4343 = vmatpush1.msra.mxu0 %v4307
    %4344 = vmatprep.subr.mxu0 0.0
    %4345 = vmatpush2.msra.mxu0 0.0
    %4346 = vmatprep.subr.mxu0 0.0
    %4347 = vmatpush2.msra.mxu0 0.0
    %4348 = vmatprep.subr.mxu0 0.0
    %4349 = vmatpush2.msra.mxu0 0.0
    %4350 = vmatprep.subr.mxu0 0.0
    %4351 = vmatpush2.msra.mxu0 0.0
    %4352 = vmatprep.subr.mxu0 0.0
    %4353 = vmatpush2.msra.mxu0 0.0
    %4354 = vmatprep.subr.mxu0 0.0
    %4355 = vmatpush2.msra.mxu0 0.0
    %4356 = vmatprep.subr.mxu0 0.0
    %4357 = vmatpush2.msra.mxu0 0.0
    %4358 = vmatprep.subr.mxu0 0.0
    %4359 = vmatpush2.msra.mxu0 0.0
    %4360 = vmatprep.subr.mxu0 0.0
    %4361 = vmatpush2.msra.mxu0 0.0
    %4362 = vmatprep.subr.mxu0 0.0
    %4363 = vmatpush2.msra.mxu0 0.0
    %4364 = vmatprep.subr.mxu0 0.0
    %4365 = vmatpush2.msra.mxu0 0.0
    %4366 = vmatprep.subr.mxu0 0.0
    %4367 = vmatpush2.msra.mxu0 0.0
    %4368 = vmatprep.subr.mxu0 0.0
    %4369 = vmatpush2.msra.mxu0 0.0
    %4370 = vmatprep.subr.mxu0 0.0
    %4371 = vmatpush2.msra.mxu0 0.0
    %4372 = vmatprep.subr.mxu0 0.0
    %4373 = vmatpush2.msra.mxu0 0.0
    %4374 = vmatprep.subr.mxu0 0.0
    %4375 = vmatpush2.msra.mxu0 0.0
    %4376 = vmatprep.mubr.f32.mxu0 0.0
    %4377 = vmatmul.mubr.f32.gmra.mxu0 %v4310
    %v4378 = vpop.f32.mrf.mxu0
    %v4379 = vadd.f32 0.0, %v4378
    %v4380 = vpop.f32.mrf.mxu0
    %4381 = vdwg.mxu0
    %4382 = vrot.lane.b32.xlu0 %v4208, 120
    %v4383 = vpop.permute.xlu0 %4382
    %4384 = vrot.lane.b32.xlu0 %v4208, 88
    %v4385 = vpop.permute.xlu0 %4384
    %v4386 = vsel %vm688, %v4383, 0
    %v4388 = vsel %vm688, %v4385, 0
    %4390 = vmatprep.subr.mxu0 0.0
    %4391 = vmatpush1.xpose.msra.mxu0 0.0
    %4392 = vmatprep.subr.mxu0 0.0
    %4393 = vmatpush1.xpose.msra.mxu0 0.0
    %4394 = vmatprep.subr.mxu0 0.0
    %4395 = vmatpush1.xpose.msra.mxu0 0.0
    %4396 = vmatprep.subr.mxu0 0.0
    %4397 = vmatpush1.xpose.msra.mxu0 0.0
    %4398 = vmatprep.subr.mxu0 0.0
    %4399 = vmatpush1.xpose.msra.mxu0 0.0
    %4400 = vmatprep.subr.mxu0 0.0
    %4401 = vmatpush1.xpose.msra.mxu0 0.0
    %4402 = vmatprep.subr.mxu0 0.0
    %4403 = vmatpush1.xpose.msra.mxu0 0.0
    %4404 = vmatprep.subr.mxu0 0.0
    %4405 = vmatpush1.xpose.msra.mxu0 0.0
    %4406 = vmatprep.subr.mxu0 0.0
    %4407 = vmatpush1.xpose.msra.mxu0 0.0
    %4408 = vmatprep.subr.mxu0 0.0
    %4409 = vmatpush1.xpose.msra.mxu0 0.0
    %4410 = vmatprep.subr.mxu0 0.0
    %4411 = vmatpush1.xpose.msra.mxu0 0.0
    %4412 = vmatprep.subr.mxu0 0.0
    %4413 = vmatpush1.xpose.msra.mxu0 0.0
    %4414 = vmatprep.subr.mxu0 0.0
    %4415 = vmatpush1.xpose.msra.mxu0 0.0
    %4416 = vmatprep.subr.mxu0 0.0
    %4417 = vmatpush1.xpose.msra.mxu0 0.0
    %4418 = vmatprep.subr.mxu0 0.0
    %4419 = vmatpush1.xpose.msra.mxu0 0.0
    %4420 = vmatprep.subr.mxu0 0.0
    %4421 = vmatpush1.xpose.msra.mxu0 %v4388
    %4422 = vmatprep.subr.mxu0 0.0
    %4423 = vmatpush2.xpose.msra.mxu0 0.0
    %4424 = vmatprep.subr.mxu0 0.0
    %4425 = vmatpush2.xpose.msra.mxu0 0.0
    %4426 = vmatprep.subr.mxu0 0.0
    %4427 = vmatpush2.xpose.msra.mxu0 0.0
    %4428 = vmatprep.subr.mxu0 0.0
    %4429 = vmatpush2.xpose.msra.mxu0 0.0
    %4430 = vmatprep.subr.mxu0 0.0
    %4431 = vmatpush2.xpose.msra.mxu0 0.0
    %4432 = vmatprep.subr.mxu0 0.0
    %4433 = vmatpush2.xpose.msra.mxu0 0.0
    %4434 = vmatprep.subr.mxu0 0.0
    %4435 = vmatpush2.xpose.msra.mxu0 0.0
    %4436 = vmatprep.subr.mxu0 0.0
    %4437 = vmatpush2.xpose.msra.mxu0 0.0
    %4438 = vmatprep.subr.mxu0 0.0
    %4439 = vmatpush2.xpose.msra.mxu0 0.0
    %4440 = vmatprep.subr.mxu0 0.0
    %4441 = vmatpush2.xpose.msra.mxu0 0.0
    %4442 = vmatprep.subr.mxu0 0.0
    %4443 = vmatpush2.xpose.msra.mxu0 0.0
    %4444 = vmatprep.subr.mxu0 0.0
    %4445 = vmatpush2.xpose.msra.mxu0 0.0
    %4446 = vmatprep.subr.mxu0 0.0
    %4447 = vmatpush2.xpose.msra.mxu0 0.0
    %4448 = vmatprep.subr.mxu0 0.0
    %4449 = vmatpush2.xpose.msra.mxu0 0.0
    %4450 = vmatprep.subr.mxu0 0.0
    %4451 = vmatpush2.xpose.msra.mxu0 0.0
    %4452 = vmatprep.subr.mxu0 0.0
    %4453 = vmatpush2.xpose.msra.mxu0 0.0
    %4454 = vmatprep.mubr.f32.mxu0 0.0
    %4455 = vmatmul.mubr.f32.gmra.mxu0 %v4386
    %v4456 = vpop.f32.mrf.mxu0
    %v4457 = vadd.f32 0.0, %v4456
    %v4458 = vpop.f32.mrf.mxu0
    %4459 = vdwg.mxu0
    %v4460 = vmul.f32 %v4457, 0.35355338
    %v4461 = vadd.f32 %v4460, %v544
    %v4462 = vsel %vm688, %v4461, -inf
    %4463 = vmax.xlane.f32.xlu0 %v4462
    %v4464 = vpop.xlane.xlu0 %4463
    %v4465 = vsub.f32 %v4461, %v4464
    %v4466 = vmul.f32 %v4465, 1.442695
    %v4467 = vpow.pop %v4466
    %v4468 = vsel %vm688, %v4467, 0.0
    %4469 = vadd.xlane.f32.xlu0 %v4468
    %v4470 = vpop.xlane.xlu0 %4469
    %v4471 = vrcp.pop %v4470
    %v4472 = vmul.f32 %v4467, %v4471
    %4473 = vrot.lane.b32.xlu0 %v4208, 56
    %v4474 = vpop.permute.xlu0 %4473
    %v4477 = vsel %vm688, %v4472, 0
    %4479 = vmatprep.subr.mxu0 0.0
    %4480 = vmatpush1.msra.mxu0 0.0
    %4481 = vmatprep.subr.mxu0 0.0
    %4482 = vmatpush1.msra.mxu0 0.0
    %4483 = vmatprep.subr.mxu0 0.0
    %4484 = vmatpush1.msra.mxu0 0.0
    %4485 = vmatprep.subr.mxu0 0.0
    %4486 = vmatpush1.msra.mxu0 0.0
    %4487 = vmatprep.subr.mxu0 0.0
    %4488 = vmatpush1.msra.mxu0 0.0
    %4489 = vmatprep.subr.mxu0 0.0
    %4490 = vmatpush1.msra.mxu0 0.0
    %4491 = vmatprep.subr.mxu0 0.0
    %4492 = vmatpush1.msra.mxu0 0.0
    %4493 = vmatprep.subr.mxu0 0.0
    %4494 = vmatpush1.msra.mxu0 0.0
    %4495 = vmatprep.subr.mxu0 0.0
    %4496 = vmatpush1.msra.mxu0 0.0
    %4497 = vmatprep.subr.mxu0 0.0
    %4498 = vmatpush1.msra.mxu0 0.0
    %4499 = vmatprep.subr.mxu0 0.0
    %4500 = vmatpush1.msra.mxu0 0.0
    %4501 = vmatprep.subr.mxu0 0.0
    %4502 = vmatpush1.msra.mxu0 0.0
    %4503 = vmatprep.subr.mxu0 0.0
    %4504 = vmatpush1.msra.mxu0 0.0
    %4505 = vmatprep.subr.mxu0 0.0
    %4506 = vmatpush1.msra.mxu0 0.0
    %4507 = vmatprep.subr.mxu0 0.0
    %4508 = vmatpush1.msra.mxu0 0.0
    %4509 = vmatprep.subr.mxu0 0.0
    %4510 = vmatpush1.msra.mxu0 %v4474
    %4511 = vmatprep.subr.mxu0 0.0
    %4512 = vmatpush2.msra.mxu0 0.0
    %4513 = vmatprep.subr.mxu0 0.0
    %4514 = vmatpush2.msra.mxu0 0.0
    %4515 = vmatprep.subr.mxu0 0.0
    %4516 = vmatpush2.msra.mxu0 0.0
    %4517 = vmatprep.subr.mxu0 0.0
    %4518 = vmatpush2.msra.mxu0 0.0
    %4519 = vmatprep.subr.mxu0 0.0
    %4520 = vmatpush2.msra.mxu0 0.0
    %4521 = vmatprep.subr.mxu0 0.0
    %4522 = vmatpush2.msra.mxu0 0.0
    %4523 = vmatprep.subr.mxu0 0.0
    %4524 = vmatpush2.msra.mxu0 0.0
    %4525 = vmatprep.subr.mxu0 0.0
    %4526 = vmatpush2.msra.mxu0 0.0
    %4527 = vmatprep.subr.mxu0 0.0
    %4528 = vmatpush2.msra.mxu0 0.0
    %4529 = vmatprep.subr.mxu0 0.0
    %4530 = vmatpush2.msra.mxu0 0.0
    %4531 = vmatprep.subr.mxu0 0.0
    %4532 = vmatpush2.msra.mxu0 0.0
    %4533 = vmatprep.subr.mxu0 0.0
    %4534 = vmatpush2.msra.mxu0 0.0
    %4535 = vmatprep.subr.mxu0 0.0
    %4536 = vmatpush2.msra.mxu0 0.0
    %4537 = vmatprep.subr.mxu0 0.0
    %4538 = vmatpush2.msra.mxu0 0.0
    %4539 = vmatprep.subr.mxu0 0.0
    %4540 = vmatpush2.msra.mxu0 0.0
    %4541 = vmatprep.subr.mxu0 0.0
    %4542 = vmatpush2.msra.mxu0 0.0
    %4543 = vmatprep.mubr.f32.mxu0 0.0
    %4544 = vmatmul.mubr.f32.gmra.mxu0 %v4477
    %v4545 = vpop.f32.mrf.mxu0
    %v4546 = vadd.f32 0.0, %v4545
    %v4547 = vpop.f32.mrf.mxu0
    %4548 = vdwg.mxu0
    %4549 = vrot.lane.b32.xlu0 %v4208, 112
    %v4550 = vpop.permute.xlu0 %4549
    %4551 = vrot.lane.b32.xlu0 %v4208, 80
    %v4552 = vpop.permute.xlu0 %4551
    %v4553 = vsel %vm688, %v4550, 0
    %v4555 = vsel %vm688, %v4552, 0
    %4557 = vmatprep.subr.mxu0 0.0
    %4558 = vmatpush1.xpose.msra.mxu0 0.0
    %4559 = vmatprep.subr.mxu0 0.0
    %4560 = vmatpush1.xpose.msra.mxu0 0.0
    %4561 = vmatprep.subr.mxu0 0.0
    %4562 = vmatpush1.xpose.msra.mxu0 0.0
    %4563 = vmatprep.subr.mxu0 0.0
    %4564 = vmatpush1.xpose.msra.mxu0 0.0
    %4565 = vmatprep.subr.mxu0 0.0
    %4566 = vmatpush1.xpose.msra.mxu0 0.0
    %4567 = vmatprep.subr.mxu0 0.0
    %4568 = vmatpush1.xpose.msra.mxu0 0.0
    %4569 = vmatprep.subr.mxu0 0.0
    %4570 = vmatpush1.xpose.msra.mxu0 0.0
    %4571 = vmatprep.subr.mxu0 0.0
    %4572 = vmatpush1.xpose.msra.mxu0 0.0
    %4573 = vmatprep.subr.mxu0 0.0
    %4574 = vmatpush1.xpose.msra.mxu0 0.0
    %4575 = vmatprep.subr.mxu0 0.0
    %4576 = vmatpush1.xpose.msra.mxu0 0.0
    %4577 = vmatprep.subr.mxu0 0.0
    %4578 = vmatpush1.xpose.msra.mxu0 0.0
    %4579 = vmatprep.subr.mxu0 0.0
    %4580 = vmatpush1.xpose.msra.mxu0 0.0
    %4581 = vmatprep.subr.mxu0 0.0
    %4582 = vmatpush1.xpose.msra.mxu0 0.0
    %4583 = vmatprep.subr.mxu0 0.0
    %4584 = vmatpush1.xpose.msra.mxu0 0.0
    %4585 = vmatprep.subr.mxu0 0.0
    %4586 = vmatpush1.xpose.msra.mxu0 0.0
    %4587 = vmatprep.subr.mxu0 0.0
    %4588 = vmatpush1.xpose.msra.mxu0 %v4555
    %4589 = vmatprep.subr.mxu0 0.0
    %4590 = vmatpush2.xpose.msra.mxu0 0.0
    %4591 = vmatprep.subr.mxu0 0.0
    %4592 = vmatpush2.xpose.msra.mxu0 0.0
    %4593 = vmatprep.subr.mxu0 0.0
    %4594 = vmatpush2.xpose.msra.mxu0 0.0
    %4595 = vmatprep.subr.mxu0 0.0
    %4596 = vmatpush2.xpose.msra.mxu0 0.0
    %4597 = vmatprep.subr.mxu0 0.0
    %4598 = vmatpush2.xpose.msra.mxu0 0.0
    %4599 = vmatprep.subr.mxu0 0.0
    %4600 = vmatpush2.xpose.msra.mxu0 0.0
    %4601 = vmatprep.subr.mxu0 0.0
    %4602 = vmatpush2.xpose.msra.mxu0 0.0
    %4603 = vmatprep.subr.mxu0 0.0
    %4604 = vmatpush2.xpose.msra.mxu0 0.0
    %4605 = vmatprep.subr.mxu0 0.0
    %4606 = vmatpush2.xpose.msra.mxu0 0.0
    %4607 = vmatprep.subr.mxu0 0.0
    %4608 = vmatpush2.xpose.msra.mxu0 0.0
    %4609 = vmatprep.subr.mxu0 0.0
    %4610 = vmatpush2.xpose.msra.mxu0 0.0
    %4611 = vmatprep.subr.mxu0 0.0
    %4612 = vmatpush2.xpose.msra.mxu0 0.0
    %4613 = vmatprep.subr.mxu0 0.0
    %4614 = vmatpush2.xpose.msra.mxu0 0.0
    %4615 = vmatprep.subr.mxu0 0.0
    %4616 = vmatpush2.xpose.msra.mxu0 0.0
    %4617 = vmatprep.subr.mxu0 0.0
    %4618 = vmatpush2.xpose.msra.mxu0 0.0
    %4619 = vmatprep.subr.mxu0 0.0
    %4620 = vmatpush2.xpose.msra.mxu0 0.0
    %4621 = vmatprep.mubr.f32.mxu0 0.0
    %4622 = vmatmul.mubr.f32.gmra.mxu0 %v4553
    %v4623 = vpop.f32.mrf.mxu0
    %v4624 = vadd.f32 0.0, %v4623
    %v4625 = vpop.f32.mrf.mxu0
    %4626 = vdwg.mxu0
    %v4627 = vmul.f32 %v4624, 0.35355338
    %v4628 = vadd.f32 %v4627, %v544
    %v4629 = vsel %vm688, %v4628, -inf
    %4630 = vmax.xlane.f32.xlu0 %v4629
    %v4631 = vpop.xlane.xlu0 %4630
    %v4632 = vsub.f32 %v4628, %v4631
    %v4633 = vmul.f32 %v4632, 1.442695
    %v4634 = vpow.pop %v4633
    %v4635 = vsel %vm688, %v4634, 0.0
    %4636 = vadd.xlane.f32.xlu0 %v4635
    %v4637 = vpop.xlane.xlu0 %4636
    %v4638 = vrcp.pop %v4637
    %v4639 = vmul.f32 %v4634, %v4638
    %4640 = vrot.lane.b32.xlu0 %v4208, 48
    %v4641 = vpop.permute.xlu0 %4640
    %v4644 = vsel %vm688, %v4639, 0
    %4646 = vmatprep.subr.mxu0 0.0
    %4647 = vmatpush1.msra.mxu0 0.0
    %4648 = vmatprep.subr.mxu0 0.0
    %4649 = vmatpush1.msra.mxu0 0.0
    %4650 = vmatprep.subr.mxu0 0.0
    %4651 = vmatpush1.msra.mxu0 0.0
    %4652 = vmatprep.subr.mxu0 0.0
    %4653 = vmatpush1.msra.mxu0 0.0
    %4654 = vmatprep.subr.mxu0 0.0
    %4655 = vmatpush1.msra.mxu0 0.0
    %4656 = vmatprep.subr.mxu0 0.0
    %4657 = vmatpush1.msra.mxu0 0.0
    %4658 = vmatprep.subr.mxu0 0.0
    %4659 = vmatpush1.msra.mxu0 0.0
    %4660 = vmatprep.subr.mxu0 0.0
    %4661 = vmatpush1.msra.mxu0 0.0
    %4662 = vmatprep.subr.mxu0 0.0
    %4663 = vmatpush1.msra.mxu0 0.0
    %4664 = vmatprep.subr.mxu0 0.0
    %4665 = vmatpush1.msra.mxu0 0.0
    %4666 = vmatprep.subr.mxu0 0.0
    %4667 = vmatpush1.msra.mxu0 0.0
    %4668 = vmatprep.subr.mxu0 0.0
    %4669 = vmatpush1.msra.mxu0 0.0
    %4670 = vmatprep.subr.mxu0 0.0
    %4671 = vmatpush1.msra.mxu0 0.0
    %4672 = vmatprep.subr.mxu0 0.0
    %4673 = vmatpush1.msra.mxu0 0.0
    %4674 = vmatprep.subr.mxu0 0.0
    %4675 = vmatpush1.msra.mxu0 0.0
    %4676 = vmatprep.subr.mxu0 0.0
    %4677 = vmatpush1.msra.mxu0 %v4641
    %4678 = vmatprep.subr.mxu0 0.0
    %4679 = vmatpush2.msra.mxu0 0.0
    %4680 = vmatprep.subr.mxu0 0.0
    %4681 = vmatpush2.msra.mxu0 0.0
    %4682 = vmatprep.subr.mxu0 0.0
    %4683 = vmatpush2.msra.mxu0 0.0
    %4684 = vmatprep.subr.mxu0 0.0
    %4685 = vmatpush2.msra.mxu0 0.0
    %4686 = vmatprep.subr.mxu0 0.0
    %4687 = vmatpush2.msra.mxu0 0.0
    %4688 = vmatprep.subr.mxu0 0.0
    %4689 = vmatpush2.msra.mxu0 0.0
    %4690 = vmatprep.subr.mxu0 0.0
    %4691 = vmatpush2.msra.mxu0 0.0
    %4692 = vmatprep.subr.mxu0 0.0
    %4693 = vmatpush2.msra.mxu0 0.0
    %4694 = vmatprep.subr.mxu0 0.0
    %4695 = vmatpush2.msra.mxu0 0.0
    %4696 = vmatprep.subr.mxu0 0.0
    %4697 = vmatpush2.msra.mxu0 0.0
    %4698 = vmatprep.subr.mxu0 0.0
    %4699 = vmatpush2.msra.mxu0 0.0
    %4700 = vmatprep.subr.mxu0 0.0
    %4701 = vmatpush2.msra.mxu0 0.0
    %4702 = vmatprep.subr.mxu0 0.0
    %4703 = vmatpush2.msra.mxu0 0.0
    %4704 = vmatprep.subr.mxu0 0.0
    %4705 = vmatpush2.msra.mxu0 0.0
    %4706 = vmatprep.subr.mxu0 0.0
    %4707 = vmatpush2.msra.mxu0 0.0
    %4708 = vmatprep.subr.mxu0 0.0
    %4709 = vmatpush2.msra.mxu0 0.0
    %4710 = vmatprep.mubr.f32.mxu0 0.0
    %4711 = vmatmul.mubr.f32.gmra.mxu0 %v4644
    %v4712 = vpop.f32.mrf.mxu0
    %v4713 = vadd.f32 0.0, %v4712
    %v4714 = vpop.f32.mrf.mxu0
    %4715 = vdwg.mxu0
    %4716 = vrot.lane.b32.xlu0 %v4208, 104
    %v4717 = vpop.permute.xlu0 %4716
    %4718 = vrot.lane.b32.xlu0 %v4208, 72
    %v4719 = vpop.permute.xlu0 %4718
    %v4720 = vsel %vm688, %v4717, 0
    %v4722 = vsel %vm688, %v4719, 0
    %4724 = vmatprep.subr.mxu0 0.0
    %4725 = vmatpush1.xpose.msra.mxu0 0.0
    %4726 = vmatprep.subr.mxu0 0.0
    %4727 = vmatpush1.xpose.msra.mxu0 0.0
    %4728 = vmatprep.subr.mxu0 0.0
    %4729 = vmatpush1.xpose.msra.mxu0 0.0
    %4730 = vmatprep.subr.mxu0 0.0
    %4731 = vmatpush1.xpose.msra.mxu0 0.0
    %4732 = vmatprep.subr.mxu0 0.0
    %4733 = vmatpush1.xpose.msra.mxu0 0.0
    %4734 = vmatprep.subr.mxu0 0.0
    %4735 = vmatpush1.xpose.msra.mxu0 0.0
    %4736 = vmatprep.subr.mxu0 0.0
    %4737 = vmatpush1.xpose.msra.mxu0 0.0
    %4738 = vmatprep.subr.mxu0 0.0
    %4739 = vmatpush1.xpose.msra.mxu0 0.0
    %4740 = vmatprep.subr.mxu0 0.0
    %4741 = vmatpush1.xpose.msra.mxu0 0.0
    %4742 = vmatprep.subr.mxu0 0.0
    %4743 = vmatpush1.xpose.msra.mxu0 0.0
    %4744 = vmatprep.subr.mxu0 0.0
    %4745 = vmatpush1.xpose.msra.mxu0 0.0
    %4746 = vmatprep.subr.mxu0 0.0
    %4747 = vmatpush1.xpose.msra.mxu0 0.0
    %4748 = vmatprep.subr.mxu0 0.0
    %4749 = vmatpush1.xpose.msra.mxu0 0.0
    %4750 = vmatprep.subr.mxu0 0.0
    %4751 = vmatpush1.xpose.msra.mxu0 0.0
    %4752 = vmatprep.subr.mxu0 0.0
    %4753 = vmatpush1.xpose.msra.mxu0 0.0
    %4754 = vmatprep.subr.mxu0 0.0
    %4755 = vmatpush1.xpose.msra.mxu0 %v4722
    %4756 = vmatprep.subr.mxu0 0.0
    %4757 = vmatpush2.xpose.msra.mxu0 0.0
    %4758 = vmatprep.subr.mxu0 0.0
    %4759 = vmatpush2.xpose.msra.mxu0 0.0
    %4760 = vmatprep.subr.mxu0 0.0
    %4761 = vmatpush2.xpose.msra.mxu0 0.0
    %4762 = vmatprep.subr.mxu0 0.0
    %4763 = vmatpush2.xpose.msra.mxu0 0.0
    %4764 = vmatprep.subr.mxu0 0.0
    %4765 = vmatpush2.xpose.msra.mxu0 0.0
    %4766 = vmatprep.subr.mxu0 0.0
    %4767 = vmatpush2.xpose.msra.mxu0 0.0
    %4768 = vmatprep.subr.mxu0 0.0
    %4769 = vmatpush2.xpose.msra.mxu0 0.0
    %4770 = vmatprep.subr.mxu0 0.0
    %4771 = vmatpush2.xpose.msra.mxu0 0.0
    %4772 = vmatprep.subr.mxu0 0.0
    %4773 = vmatpush2.xpose.msra.mxu0 0.0
    %4774 = vmatprep.subr.mxu0 0.0
    %4775 = vmatpush2.xpose.msra.mxu0 0.0
    %4776 = vmatprep.subr.mxu0 0.0
    %4777 = vmatpush2.xpose.msra.mxu0 0.0
    %4778 = vmatprep.subr.mxu0 0.0
    %4779 = vmatpush2.xpose.msra.mxu0 0.0
    %4780 = vmatprep.subr.mxu0 0.0
    %4781 = vmatpush2.xpose.msra.mxu0 0.0
    %4782 = vmatprep.subr.mxu0 0.0
    %4783 = vmatpush2.xpose.msra.mxu0 0.0
    %4784 = vmatprep.subr.mxu0 0.0
    %4785 = vmatpush2.xpose.msra.mxu0 0.0
    %4786 = vmatprep.subr.mxu0 0.0
    %4787 = vmatpush2.xpose.msra.mxu0 0.0
    %4788 = vmatprep.mubr.f32.mxu0 0.0
    %4789 = vmatmul.mubr.f32.gmra.mxu0 %v4720
    %v4790 = vpop.f32.mrf.mxu0
    %v4791 = vadd.f32 0.0, %v4790
    %v4792 = vpop.f32.mrf.mxu0
    %4793 = vdwg.mxu0
    %v4794 = vmul.f32 %v4791, 0.35355338
    %v4795 = vadd.f32 %v4794, %v544
    %v4796 = vsel %vm688, %v4795, -inf
    %4797 = vmax.xlane.f32.xlu0 %v4796
    %v4798 = vpop.xlane.xlu0 %4797
    %v4799 = vsub.f32 %v4795, %v4798
    %v4800 = vmul.f32 %v4799, 1.442695
    %v4801 = vpow.pop %v4800
    %v4802 = vsel %vm688, %v4801, 0.0
    %4803 = vadd.xlane.f32.xlu0 %v4802
    %v4804 = vpop.xlane.xlu0 %4803
    %v4805 = vrcp.pop %v4804
    %v4806 = vmul.f32 %v4801, %v4805
    %4807 = vrot.lane.b32.xlu0 %v4208, 40
    %v4808 = vpop.permute.xlu0 %4807
    %v4811 = vsel %vm688, %v4806, 0
    %4813 = vmatprep.subr.mxu0 0.0
    %4814 = vmatpush1.msra.mxu0 0.0
    %4815 = vmatprep.subr.mxu0 0.0
    %4816 = vmatpush1.msra.mxu0 0.0
    %4817 = vmatprep.subr.mxu0 0.0
    %4818 = vmatpush1.msra.mxu0 0.0
    %4819 = vmatprep.subr.mxu0 0.0
    %4820 = vmatpush1.msra.mxu0 0.0
    %4821 = vmatprep.subr.mxu0 0.0
    %4822 = vmatpush1.msra.mxu0 0.0
    %4823 = vmatprep.subr.mxu0 0.0
    %4824 = vmatpush1.msra.mxu0 0.0
    %4825 = vmatprep.subr.mxu0 0.0
    %4826 = vmatpush1.msra.mxu0 0.0
    %4827 = vmatprep.subr.mxu0 0.0
    %4828 = vmatpush1.msra.mxu0 0.0
    %4829 = vmatprep.subr.mxu0 0.0
    %4830 = vmatpush1.msra.mxu0 0.0
    %4831 = vmatprep.subr.mxu0 0.0
    %4832 = vmatpush1.msra.mxu0 0.0
    %4833 = vmatprep.subr.mxu0 0.0
    %4834 = vmatpush1.msra.mxu0 0.0
    %4835 = vmatprep.subr.mxu0 0.0
    %4836 = vmatpush1.msra.mxu0 0.0
    %4837 = vmatprep.subr.mxu0 0.0
    %4838 = vmatpush1.msra.mxu0 0.0
    %4839 = vmatprep.subr.mxu0 0.0
    %4840 = vmatpush1.msra.mxu0 0.0
    %4841 = vmatprep.subr.mxu0 0.0
    %4842 = vmatpush1.msra.mxu0 0.0
    %4843 = vmatprep.subr.mxu0 0.0
    %4844 = vmatpush1.msra.mxu0 %v4808
    %4845 = vmatprep.subr.mxu0 0.0
    %4846 = vmatpush2.msra.mxu0 0.0
    %4847 = vmatprep.subr.mxu0 0.0
    %4848 = vmatpush2.msra.mxu0 0.0
    %4849 = vmatprep.subr.mxu0 0.0
    %4850 = vmatpush2.msra.mxu0 0.0
    %4851 = vmatprep.subr.mxu0 0.0
    %4852 = vmatpush2.msra.mxu0 0.0
    %4853 = vmatprep.subr.mxu0 0.0
    %4854 = vmatpush2.msra.mxu0 0.0
    %4855 = vmatprep.subr.mxu0 0.0
    %4856 = vmatpush2.msra.mxu0 0.0
    %4857 = vmatprep.subr.mxu0 0.0
    %4858 = vmatpush2.msra.mxu0 0.0
    %4859 = vmatprep.subr.mxu0 0.0
    %4860 = vmatpush2.msra.mxu0 0.0
    %4861 = vmatprep.subr.mxu0 0.0
    %4862 = vmatpush2.msra.mxu0 0.0
    %4863 = vmatprep.subr.mxu0 0.0
    %4864 = vmatpush2.msra.mxu0 0.0
    %4865 = vmatprep.subr.mxu0 0.0
    %4866 = vmatpush2.msra.mxu0 0.0
    %4867 = vmatprep.subr.mxu0 0.0
    %4868 = vmatpush2.msra.mxu0 0.0
    %4869 = vmatprep.subr.mxu0 0.0
    %4870 = vmatpush2.msra.mxu0 0.0
    %4871 = vmatprep.subr.mxu0 0.0
    %4872 = vmatpush2.msra.mxu0 0.0
    %4873 = vmatprep.subr.mxu0 0.0
    %4874 = vmatpush2.msra.mxu0 0.0
    %4875 = vmatprep.subr.mxu0 0.0
    %4876 = vmatpush2.msra.mxu0 0.0
    %4877 = vmatprep.mubr.f32.mxu0 0.0
    %4878 = vmatmul.mubr.f32.gmra.mxu0 %v4811
    %v4879 = vpop.f32.mrf.mxu0
    %v4880 = vadd.f32 0.0, %v4879
    %v4881 = vpop.f32.mrf.mxu0
    %4882 = vdwg.mxu0
    %4884 = vrot.lane.b32.xlu0 %v4546, 8
    %v4885 = vpop.permute.xlu0 %4884
    %4888 = vrot.lane.b32.xlu0 %v4713, 16
    %v4889 = vpop.permute.xlu0 %4888
    %4892 = vrot.lane.b32.xlu0 %v4880, 24
    %v4893 = vpop.permute.xlu0 %4892
    %v4895 = vsel %vm688, %v4379, %v4885
    %v4896 = vsel %vm1366, %v4895, %v4889
    %v4897 = vsel %vm1368, %v4896, %v4893
    %4899 = vrot.lane.b32.xlu0 %v4213, 96
    %v4900 = vpop.permute.xlu0 %4899
    %v4901 = vsel %vm688, %v4213, 0
    %v4903 = vsel %vm688, %v4900, 0
    %4905 = vmatprep.subr.mxu0 0.0
    %4906 = vmatpush1.xpose.msra.mxu0 0.0
    %4907 = vmatprep.subr.mxu0 0.0
    %4908 = vmatpush1.xpose.msra.mxu0 0.0
    %4909 = vmatprep.subr.mxu0 0.0
    %4910 = vmatpush1.xpose.msra.mxu0 0.0
    %4911 = vmatprep.subr.mxu0 0.0
    %4912 = vmatpush1.xpose.msra.mxu0 0.0
    %4913 = vmatprep.subr.mxu0 0.0
    %4914 = vmatpush1.xpose.msra.mxu0 0.0
    %4915 = vmatprep.subr.mxu0 0.0
    %4916 = vmatpush1.xpose.msra.mxu0 0.0
    %4917 = vmatprep.subr.mxu0 0.0
    %4918 = vmatpush1.xpose.msra.mxu0 0.0
    %4919 = vmatprep.subr.mxu0 0.0
    %4920 = vmatpush1.xpose.msra.mxu0 0.0
    %4921 = vmatprep.subr.mxu0 0.0
    %4922 = vmatpush1.xpose.msra.mxu0 0.0
    %4923 = vmatprep.subr.mxu0 0.0
    %4924 = vmatpush1.xpose.msra.mxu0 0.0
    %4925 = vmatprep.subr.mxu0 0.0
    %4926 = vmatpush1.xpose.msra.mxu0 0.0
    %4927 = vmatprep.subr.mxu0 0.0
    %4928 = vmatpush1.xpose.msra.mxu0 0.0
    %4929 = vmatprep.subr.mxu0 0.0
    %4930 = vmatpush1.xpose.msra.mxu0 0.0
    %4931 = vmatprep.subr.mxu0 0.0
    %4932 = vmatpush1.xpose.msra.mxu0 0.0
    %4933 = vmatprep.subr.mxu0 0.0
    %4934 = vmatpush1.xpose.msra.mxu0 0.0
    %4935 = vmatprep.subr.mxu0 0.0
    %4936 = vmatpush1.xpose.msra.mxu0 %v4903
    %4937 = vmatprep.subr.mxu0 0.0
    %4938 = vmatpush2.xpose.msra.mxu0 0.0
    %4939 = vmatprep.subr.mxu0 0.0
    %4940 = vmatpush2.xpose.msra.mxu0 0.0
    %4941 = vmatprep.subr.mxu0 0.0
    %4942 = vmatpush2.xpose.msra.mxu0 0.0
    %4943 = vmatprep.subr.mxu0 0.0
    %4944 = vmatpush2.xpose.msra.mxu0 0.0
    %4945 = vmatprep.subr.mxu0 0.0
    %4946 = vmatpush2.xpose.msra.mxu0 0.0
    %4947 = vmatprep.subr.mxu0 0.0
    %4948 = vmatpush2.xpose.msra.mxu0 0.0
    %4949 = vmatprep.subr.mxu0 0.0
    %4950 = vmatpush2.xpose.msra.mxu0 0.0
    %4951 = vmatprep.subr.mxu0 0.0
    %4952 = vmatpush2.xpose.msra.mxu0 0.0
    %4953 = vmatprep.subr.mxu0 0.0
    %4954 = vmatpush2.xpose.msra.mxu0 0.0
    %4955 = vmatprep.subr.mxu0 0.0
    %4956 = vmatpush2.xpose.msra.mxu0 0.0
    %4957 = vmatprep.subr.mxu0 0.0
    %4958 = vmatpush2.xpose.msra.mxu0 0.0
    %4959 = vmatprep.subr.mxu0 0.0
    %4960 = vmatpush2.xpose.msra.mxu0 0.0
    %4961 = vmatprep.subr.mxu0 0.0
    %4962 = vmatpush2.xpose.msra.mxu0 0.0
    %4963 = vmatprep.subr.mxu0 0.0
    %4964 = vmatpush2.xpose.msra.mxu0 0.0
    %4965 = vmatprep.subr.mxu0 0.0
    %4966 = vmatpush2.xpose.msra.mxu0 0.0
    %4967 = vmatprep.subr.mxu0 0.0
    %4968 = vmatpush2.xpose.msra.mxu0 0.0
    %4969 = vmatprep.mubr.f32.mxu0 0.0
    %4970 = vmatmul.mubr.f32.gmra.mxu0 %v4901
    %v4971 = vpop.f32.mrf.mxu0
    %v4972 = vadd.f32 0.0, %v4971
    %v4973 = vpop.f32.mrf.mxu0
    %4974 = vdwg.mxu0
    %v4975 = vmul.f32 %v4972, 0.35355338
    %v4976 = vadd.f32 %v4975, %v545
    %v4977 = vsel %vm688, %v4976, -inf
    %4978 = vmax.xlane.f32.xlu0 %v4977
    %v4979 = vpop.xlane.xlu0 %4978
    %v4980 = vsub.f32 %v4976, %v4979
    %v4981 = vmul.f32 %v4980, 1.442695
    %v4982 = vpow.pop %v4981
    %v4983 = vsel %vm688, %v4982, 0.0
    %4984 = vadd.xlane.f32.xlu0 %v4983
    %v4985 = vpop.xlane.xlu0 %4984
    %v4986 = vrcp.pop %v4985
    %v4987 = vmul.f32 %v4982, %v4986
    %4988 = vrot.lane.b32.xlu0 %v4213, 64
    %v4989 = vpop.permute.xlu0 %4988
    %v4992 = vsel %vm688, %v4987, 0
    %4994 = vmatprep.subr.mxu0 0.0
    %4995 = vmatpush1.msra.mxu0 0.0
    %4996 = vmatprep.subr.mxu0 0.0
    %4997 = vmatpush1.msra.mxu0 0.0
    %4998 = vmatprep.subr.mxu0 0.0
    %4999 = vmatpush1.msra.mxu0 0.0
    %5000 = vmatprep.subr.mxu0 0.0
    %5001 = vmatpush1.msra.mxu0 0.0
    %5002 = vmatprep.subr.mxu0 0.0
    %5003 = vmatpush1.msra.mxu0 0.0
    %5004 = vmatprep.subr.mxu0 0.0
    %5005 = vmatpush1.msra.mxu0 0.0
    %5006 = vmatprep.subr.mxu0 0.0
    %5007 = vmatpush1.msra.mxu0 0.0
    %5008 = vmatprep.subr.mxu0 0.0
    %5009 = vmatpush1.msra.mxu0 0.0
    %5010 = vmatprep.subr.mxu0 0.0
    %5011 = vmatpush1.msra.mxu0 0.0
    %5012 = vmatprep.subr.mxu0 0.0
    %5013 = vmatpush1.msra.mxu0 0.0
    %5014 = vmatprep.subr.mxu0 0.0
    %5015 = vmatpush1.msra.mxu0 0.0
    %5016 = vmatprep.subr.mxu0 0.0
    %5017 = vmatpush1.msra.mxu0 0.0
    %5018 = vmatprep.subr.mxu0 0.0
    %5019 = vmatpush1.msra.mxu0 0.0
    %5020 = vmatprep.subr.mxu0 0.0
    %5021 = vmatpush1.msra.mxu0 0.0
    %5022 = vmatprep.subr.mxu0 0.0
    %5023 = vmatpush1.msra.mxu0 0.0
    %5024 = vmatprep.subr.mxu0 0.0
    %5025 = vmatpush1.msra.mxu0 %v4989
    %5026 = vmatprep.subr.mxu0 0.0
    %5027 = vmatpush2.msra.mxu0 0.0
    %5028 = vmatprep.subr.mxu0 0.0
    %5029 = vmatpush2.msra.mxu0 0.0
    %5030 = vmatprep.subr.mxu0 0.0
    %5031 = vmatpush2.msra.mxu0 0.0
    %5032 = vmatprep.subr.mxu0 0.0
    %5033 = vmatpush2.msra.mxu0 0.0
    %5034 = vmatprep.subr.mxu0 0.0
    %5035 = vmatpush2.msra.mxu0 0.0
    %5036 = vmatprep.subr.mxu0 0.0
    %5037 = vmatpush2.msra.mxu0 0.0
    %5038 = vmatprep.subr.mxu0 0.0
    %5039 = vmatpush2.msra.mxu0 0.0
    %5040 = vmatprep.subr.mxu0 0.0
    %5041 = vmatpush2.msra.mxu0 0.0
    %5042 = vmatprep.subr.mxu0 0.0
    %5043 = vmatpush2.msra.mxu0 0.0
    %5044 = vmatprep.subr.mxu0 0.0
    %5045 = vmatpush2.msra.mxu0 0.0
    %5046 = vmatprep.subr.mxu0 0.0
    %5047 = vmatpush2.msra.mxu0 0.0
    %5048 = vmatprep.subr.mxu0 0.0
    %5049 = vmatpush2.msra.mxu0 0.0
    %5050 = vmatprep.subr.mxu0 0.0
    %5051 = vmatpush2.msra.mxu0 0.0
    %5052 = vmatprep.subr.mxu0 0.0
    %5053 = vmatpush2.msra.mxu0 0.0
    %5054 = vmatprep.subr.mxu0 0.0
    %5055 = vmatpush2.msra.mxu0 0.0
    %5056 = vmatprep.subr.mxu0 0.0
    %5057 = vmatpush2.msra.mxu0 0.0
    %5058 = vmatprep.mubr.f32.mxu0 0.0
    %5059 = vmatmul.mubr.f32.gmra.mxu0 %v4992
    %v5060 = vpop.f32.mrf.mxu0
    %v5061 = vadd.f32 0.0, %v5060
    %v5062 = vpop.f32.mrf.mxu0
    %5063 = vdwg.mxu0
    %5064 = vrot.lane.b32.xlu0 %v4213, 120
    %v5065 = vpop.permute.xlu0 %5064
    %5066 = vrot.lane.b32.xlu0 %v4213, 88
    %v5067 = vpop.permute.xlu0 %5066
    %v5068 = vsel %vm688, %v5065, 0
    %v5070 = vsel %vm688, %v5067, 0
    %5072 = vmatprep.subr.mxu0 0.0
    %5073 = vmatpush1.xpose.msra.mxu0 0.0
    %5074 = vmatprep.subr.mxu0 0.0
    %5075 = vmatpush1.xpose.msra.mxu0 0.0
    %5076 = vmatprep.subr.mxu0 0.0
    %5077 = vmatpush1.xpose.msra.mxu0 0.0
    %5078 = vmatprep.subr.mxu0 0.0
    %5079 = vmatpush1.xpose.msra.mxu0 0.0
    %5080 = vmatprep.subr.mxu0 0.0
    %5081 = vmatpush1.xpose.msra.mxu0 0.0
    %5082 = vmatprep.subr.mxu0 0.0
    %5083 = vmatpush1.xpose.msra.mxu0 0.0
    %5084 = vmatprep.subr.mxu0 0.0
    %5085 = vmatpush1.xpose.msra.mxu0 0.0
    %5086 = vmatprep.subr.mxu0 0.0
    %5087 = vmatpush1.xpose.msra.mxu0 0.0
    %5088 = vmatprep.subr.mxu0 0.0
    %5089 = vmatpush1.xpose.msra.mxu0 0.0
    %5090 = vmatprep.subr.mxu0 0.0
    %5091 = vmatpush1.xpose.msra.mxu0 0.0
    %5092 = vmatprep.subr.mxu0 0.0
    %5093 = vmatpush1.xpose.msra.mxu0 0.0
    %5094 = vmatprep.subr.mxu0 0.0
    %5095 = vmatpush1.xpose.msra.mxu0 0.0
    %5096 = vmatprep.subr.mxu0 0.0
    %5097 = vmatpush1.xpose.msra.mxu0 0.0
    %5098 = vmatprep.subr.mxu0 0.0
    %5099 = vmatpush1.xpose.msra.mxu0 0.0
    %5100 = vmatprep.subr.mxu0 0.0
    %5101 = vmatpush1.xpose.msra.mxu0 0.0
    %5102 = vmatprep.subr.mxu0 0.0
    %5103 = vmatpush1.xpose.msra.mxu0 %v5070
    %5104 = vmatprep.subr.mxu0 0.0
    %5105 = vmatpush2.xpose.msra.mxu0 0.0
    %5106 = vmatprep.subr.mxu0 0.0
    %5107 = vmatpush2.xpose.msra.mxu0 0.0
    %5108 = vmatprep.subr.mxu0 0.0
    %5109 = vmatpush2.xpose.msra.mxu0 0.0
    %5110 = vmatprep.subr.mxu0 0.0
    %5111 = vmatpush2.xpose.msra.mxu0 0.0
    %5112 = vmatprep.subr.mxu0 0.0
    %5113 = vmatpush2.xpose.msra.mxu0 0.0
    %5114 = vmatprep.subr.mxu0 0.0
    %5115 = vmatpush2.xpose.msra.mxu0 0.0
    %5116 = vmatprep.subr.mxu0 0.0
    %5117 = vmatpush2.xpose.msra.mxu0 0.0
    %5118 = vmatprep.subr.mxu0 0.0
    %5119 = vmatpush2.xpose.msra.mxu0 0.0
    %5120 = vmatprep.subr.mxu0 0.0
    %5121 = vmatpush2.xpose.msra.mxu0 0.0
    %5122 = vmatprep.subr.mxu0 0.0
    %5123 = vmatpush2.xpose.msra.mxu0 0.0
    %5124 = vmatprep.subr.mxu0 0.0
    %5125 = vmatpush2.xpose.msra.mxu0 0.0
    %5126 = vmatprep.subr.mxu0 0.0
    %5127 = vmatpush2.xpose.msra.mxu0 0.0
    %5128 = vmatprep.subr.mxu0 0.0
    %5129 = vmatpush2.xpose.msra.mxu0 0.0
    %5130 = vmatprep.subr.mxu0 0.0
    %5131 = vmatpush2.xpose.msra.mxu0 0.0
    %5132 = vmatprep.subr.mxu0 0.0
    %5133 = vmatpush2.xpose.msra.mxu0 0.0
    %5134 = vmatprep.subr.mxu0 0.0
    %5135 = vmatpush2.xpose.msra.mxu0 0.0
    %5136 = vmatprep.mubr.f32.mxu0 0.0
    %5137 = vmatmul.mubr.f32.gmra.mxu0 %v5068
    %v5138 = vpop.f32.mrf.mxu0
    %v5139 = vadd.f32 0.0, %v5138
    %v5140 = vpop.f32.mrf.mxu0
    %5141 = vdwg.mxu0
    %v5142 = vmul.f32 %v5139, 0.35355338
    %v5143 = vadd.f32 %v5142, %v545
    %v5144 = vsel %vm688, %v5143, -inf
    %5145 = vmax.xlane.f32.xlu0 %v5144
    %v5146 = vpop.xlane.xlu0 %5145
    %v5147 = vsub.f32 %v5143, %v5146
    %v5148 = vmul.f32 %v5147, 1.442695
    %v5149 = vpow.pop %v5148
    %v5150 = vsel %vm688, %v5149, 0.0
    %5151 = vadd.xlane.f32.xlu0 %v5150
    %v5152 = vpop.xlane.xlu0 %5151
    %v5153 = vrcp.pop %v5152
    %v5154 = vmul.f32 %v5149, %v5153
    %5155 = vrot.lane.b32.xlu0 %v4213, 56
    %v5156 = vpop.permute.xlu0 %5155
    %v5159 = vsel %vm688, %v5154, 0
    %5161 = vmatprep.subr.mxu0 0.0
    %5162 = vmatpush1.msra.mxu0 0.0
    %5163 = vmatprep.subr.mxu0 0.0
    %5164 = vmatpush1.msra.mxu0 0.0
    %5165 = vmatprep.subr.mxu0 0.0
    %5166 = vmatpush1.msra.mxu0 0.0
    %5167 = vmatprep.subr.mxu0 0.0
    %5168 = vmatpush1.msra.mxu0 0.0
    %5169 = vmatprep.subr.mxu0 0.0
    %5170 = vmatpush1.msra.mxu0 0.0
    %5171 = vmatprep.subr.mxu0 0.0
    %5172 = vmatpush1.msra.mxu0 0.0
    %5173 = vmatprep.subr.mxu0 0.0
    %5174 = vmatpush1.msra.mxu0 0.0
    %5175 = vmatprep.subr.mxu0 0.0
    %5176 = vmatpush1.msra.mxu0 0.0
    %5177 = vmatprep.subr.mxu0 0.0
    %5178 = vmatpush1.msra.mxu0 0.0
    %5179 = vmatprep.subr.mxu0 0.0
    %5180 = vmatpush1.msra.mxu0 0.0
    %5181 = vmatprep.subr.mxu0 0.0
    %5182 = vmatpush1.msra.mxu0 0.0
    %5183 = vmatprep.subr.mxu0 0.0
    %5184 = vmatpush1.msra.mxu0 0.0
    %5185 = vmatprep.subr.mxu0 0.0
    %5186 = vmatpush1.msra.mxu0 0.0
    %5187 = vmatprep.subr.mxu0 0.0
    %5188 = vmatpush1.msra.mxu0 0.0
    %5189 = vmatprep.subr.mxu0 0.0
    %5190 = vmatpush1.msra.mxu0 0.0
    %5191 = vmatprep.subr.mxu0 0.0
    %5192 = vmatpush1.msra.mxu0 %v5156
    %5193 = vmatprep.subr.mxu0 0.0
    %5194 = vmatpush2.msra.mxu0 0.0
    %5195 = vmatprep.subr.mxu0 0.0
    %5196 = vmatpush2.msra.mxu0 0.0
    %5197 = vmatprep.subr.mxu0 0.0
    %5198 = vmatpush2.msra.mxu0 0.0
    %5199 = vmatprep.subr.mxu0 0.0
    %5200 = vmatpush2.msra.mxu0 0.0
    %5201 = vmatprep.subr.mxu0 0.0
    %5202 = vmatpush2.msra.mxu0 0.0
    %5203 = vmatprep.subr.mxu0 0.0
    %5204 = vmatpush2.msra.mxu0 0.0
    %5205 = vmatprep.subr.mxu0 0.0
    %5206 = vmatpush2.msra.mxu0 0.0
    %5207 = vmatprep.subr.mxu0 0.0
    %5208 = vmatpush2.msra.mxu0 0.0
    %5209 = vmatprep.subr.mxu0 0.0
    %5210 = vmatpush2.msra.mxu0 0.0
    %5211 = vmatprep.subr.mxu0 0.0
    %5212 = vmatpush2.msra.mxu0 0.0
    %5213 = vmatprep.subr.mxu0 0.0
    %5214 = vmatpush2.msra.mxu0 0.0
    %5215 = vmatprep.subr.mxu0 0.0
    %5216 = vmatpush2.msra.mxu0 0.0
    %5217 = vmatprep.subr.mxu0 0.0
    %5218 = vmatpush2.msra.mxu0 0.0
    %5219 = vmatprep.subr.mxu0 0.0
    %5220 = vmatpush2.msra.mxu0 0.0
    %5221 = vmatprep.subr.mxu0 0.0
    %5222 = vmatpush2.msra.mxu0 0.0
    %5223 = vmatprep.subr.mxu0 0.0
    %5224 = vmatpush2.msra.mxu0 0.0
    %5225 = vmatprep.mubr.f32.mxu0 0.0
    %5226 = vmatmul.mubr.f32.gmra.mxu0 %v5159
    %v5227 = vpop.f32.mrf.mxu0
    %v5228 = vadd.f32 0.0, %v5227
    %v5229 = vpop.f32.mrf.mxu0
    %5230 = vdwg.mxu0
    %5231 = vrot.lane.b32.xlu0 %v4213, 112
    %v5232 = vpop.permute.xlu0 %5231
    %5233 = vrot.lane.b32.xlu0 %v4213, 80
    %v5234 = vpop.permute.xlu0 %5233
    %v5235 = vsel %vm688, %v5232, 0
    %v5237 = vsel %vm688, %v5234, 0
    %5239 = vmatprep.subr.mxu0 0.0
    %5240 = vmatpush1.xpose.msra.mxu0 0.0
    %5241 = vmatprep.subr.mxu0 0.0
    %5242 = vmatpush1.xpose.msra.mxu0 0.0
    %5243 = vmatprep.subr.mxu0 0.0
    %5244 = vmatpush1.xpose.msra.mxu0 0.0
    %5245 = vmatprep.subr.mxu0 0.0
    %5246 = vmatpush1.xpose.msra.mxu0 0.0
    %5247 = vmatprep.subr.mxu0 0.0
    %5248 = vmatpush1.xpose.msra.mxu0 0.0
    %5249 = vmatprep.subr.mxu0 0.0
    %5250 = vmatpush1.xpose.msra.mxu0 0.0
    %5251 = vmatprep.subr.mxu0 0.0
    %5252 = vmatpush1.xpose.msra.mxu0 0.0
    %5253 = vmatprep.subr.mxu0 0.0
    %5254 = vmatpush1.xpose.msra.mxu0 0.0
    %5255 = vmatprep.subr.mxu0 0.0
    %5256 = vmatpush1.xpose.msra.mxu0 0.0
    %5257 = vmatprep.subr.mxu0 0.0
    %5258 = vmatpush1.xpose.msra.mxu0 0.0
    %5259 = vmatprep.subr.mxu0 0.0
    %5260 = vmatpush1.xpose.msra.mxu0 0.0
    %5261 = vmatprep.subr.mxu0 0.0
    %5262 = vmatpush1.xpose.msra.mxu0 0.0
    %5263 = vmatprep.subr.mxu0 0.0
    %5264 = vmatpush1.xpose.msra.mxu0 0.0
    %5265 = vmatprep.subr.mxu0 0.0
    %5266 = vmatpush1.xpose.msra.mxu0 0.0
    %5267 = vmatprep.subr.mxu0 0.0
    %5268 = vmatpush1.xpose.msra.mxu0 0.0
    %5269 = vmatprep.subr.mxu0 0.0
    %5270 = vmatpush1.xpose.msra.mxu0 %v5237
    %5271 = vmatprep.subr.mxu0 0.0
    %5272 = vmatpush2.xpose.msra.mxu0 0.0
    %5273 = vmatprep.subr.mxu0 0.0
    %5274 = vmatpush2.xpose.msra.mxu0 0.0
    %5275 = vmatprep.subr.mxu0 0.0
    %5276 = vmatpush2.xpose.msra.mxu0 0.0
    %5277 = vmatprep.subr.mxu0 0.0
    %5278 = vmatpush2.xpose.msra.mxu0 0.0
    %5279 = vmatprep.subr.mxu0 0.0
    %5280 = vmatpush2.xpose.msra.mxu0 0.0
    %5281 = vmatprep.subr.mxu0 0.0
    %5282 = vmatpush2.xpose.msra.mxu0 0.0
    %5283 = vmatprep.subr.mxu0 0.0
    %5284 = vmatpush2.xpose.msra.mxu0 0.0
    %5285 = vmatprep.subr.mxu0 0.0
    %5286 = vmatpush2.xpose.msra.mxu0 0.0
    %5287 = vmatprep.subr.mxu0 0.0
    %5288 = vmatpush2.xpose.msra.mxu0 0.0
    %5289 = vmatprep.subr.mxu0 0.0
    %5290 = vmatpush2.xpose.msra.mxu0 0.0
    %5291 = vmatprep.subr.mxu0 0.0
    %5292 = vmatpush2.xpose.msra.mxu0 0.0
    %5293 = vmatprep.subr.mxu0 0.0
    %5294 = vmatpush2.xpose.msra.mxu0 0.0
    %5295 = vmatprep.subr.mxu0 0.0
    %5296 = vmatpush2.xpose.msra.mxu0 0.0
    %5297 = vmatprep.subr.mxu0 0.0
    %5298 = vmatpush2.xpose.msra.mxu0 0.0
    %5299 = vmatprep.subr.mxu0 0.0
    %5300 = vmatpush2.xpose.msra.mxu0 0.0
    %5301 = vmatprep.subr.mxu0 0.0
    %5302 = vmatpush2.xpose.msra.mxu0 0.0
    %5303 = vmatprep.mubr.f32.mxu0 0.0
    %5304 = vmatmul.mubr.f32.gmra.mxu0 %v5235
    %v5305 = vpop.f32.mrf.mxu0
    %v5306 = vadd.f32 0.0, %v5305
    %v5307 = vpop.f32.mrf.mxu0
    %5308 = vdwg.mxu0
    %v5309 = vmul.f32 %v5306, 0.35355338
    %v5310 = vadd.f32 %v5309, %v545
    %v5311 = vsel %vm688, %v5310, -inf
    %5312 = vmax.xlane.f32.xlu0 %v5311
    %v5313 = vpop.xlane.xlu0 %5312
    %v5314 = vsub.f32 %v5310, %v5313
    %v5315 = vmul.f32 %v5314, 1.442695
    %v5316 = vpow.pop %v5315
    %v5317 = vsel %vm688, %v5316, 0.0
    %5318 = vadd.xlane.f32.xlu0 %v5317
    %v5319 = vpop.xlane.xlu0 %5318
    %v5320 = vrcp.pop %v5319
    %v5321 = vmul.f32 %v5316, %v5320
    %5322 = vrot.lane.b32.xlu0 %v4213, 48
    %v5323 = vpop.permute.xlu0 %5322
    %v5326 = vsel %vm688, %v5321, 0
    %5328 = vmatprep.subr.mxu0 0.0
    %5329 = vmatpush1.msra.mxu0 0.0
    %5330 = vmatprep.subr.mxu0 0.0
    %5331 = vmatpush1.msra.mxu0 0.0
    %5332 = vmatprep.subr.mxu0 0.0
    %5333 = vmatpush1.msra.mxu0 0.0
    %5334 = vmatprep.subr.mxu0 0.0
    %5335 = vmatpush1.msra.mxu0 0.0
    %5336 = vmatprep.subr.mxu0 0.0
    %5337 = vmatpush1.msra.mxu0 0.0
    %5338 = vmatprep.subr.mxu0 0.0
    %5339 = vmatpush1.msra.mxu0 0.0
    %5340 = vmatprep.subr.mxu0 0.0
    %5341 = vmatpush1.msra.mxu0 0.0
    %5342 = vmatprep.subr.mxu0 0.0
    %5343 = vmatpush1.msra.mxu0 0.0
    %5344 = vmatprep.subr.mxu0 0.0
    %5345 = vmatpush1.msra.mxu0 0.0
    %5346 = vmatprep.subr.mxu0 0.0
    %5347 = vmatpush1.msra.mxu0 0.0
    %5348 = vmatprep.subr.mxu0 0.0
    %5349 = vmatpush1.msra.mxu0 0.0
    %5350 = vmatprep.subr.mxu0 0.0
    %5351 = vmatpush1.msra.mxu0 0.0
    %5352 = vmatprep.subr.mxu0 0.0
    %5353 = vmatpush1.msra.mxu0 0.0
    %5354 = vmatprep.subr.mxu0 0.0
    %5355 = vmatpush1.msra.mxu0 0.0
    %5356 = vmatprep.subr.mxu0 0.0
    %5357 = vmatpush1.msra.mxu0 0.0
    %5358 = vmatprep.subr.mxu0 0.0
    %5359 = vmatpush1.msra.mxu0 %v5323
    %5360 = vmatprep.subr.mxu0 0.0
    %5361 = vmatpush2.msra.mxu0 0.0
    %5362 = vmatprep.subr.mxu0 0.0
    %5363 = vmatpush2.msra.mxu0 0.0
    %5364 = vmatprep.subr.mxu0 0.0
    %5365 = vmatpush2.msra.mxu0 0.0
    %5366 = vmatprep.subr.mxu0 0.0
    %5367 = vmatpush2.msra.mxu0 0.0
    %5368 = vmatprep.subr.mxu0 0.0
    %5369 = vmatpush2.msra.mxu0 0.0
    %5370 = vmatprep.subr.mxu0 0.0
    %5371 = vmatpush2.msra.mxu0 0.0
    %5372 = vmatprep.subr.mxu0 0.0
    %5373 = vmatpush2.msra.mxu0 0.0
    %5374 = vmatprep.subr.mxu0 0.0
    %5375 = vmatpush2.msra.mxu0 0.0
    %5376 = vmatprep.subr.mxu0 0.0
    %5377 = vmatpush2.msra.mxu0 0.0
    %5378 = vmatprep.subr.mxu0 0.0
    %5379 = vmatpush2.msra.mxu0 0.0
    %5380 = vmatprep.subr.mxu0 0.0
    %5381 = vmatpush2.msra.mxu0 0.0
    %5382 = vmatprep.subr.mxu0 0.0
    %5383 = vmatpush2.msra.mxu0 0.0
    %5384 = vmatprep.subr.mxu0 0.0
    %5385 = vmatpush2.msra.mxu0 0.0
    %5386 = vmatprep.subr.mxu0 0.0
    %5387 = vmatpush2.msra.mxu0 0.0
    %5388 = vmatprep.subr.mxu0 0.0
    %5389 = vmatpush2.msra.mxu0 0.0
    %5390 = vmatprep.subr.mxu0 0.0
    %5391 = vmatpush2.msra.mxu0 0.0
    %5392 = vmatprep.mubr.f32.mxu0 0.0
    %5393 = vmatmul.mubr.f32.gmra.mxu0 %v5326
    %v5394 = vpop.f32.mrf.mxu0
    %v5395 = vadd.f32 0.0, %v5394
    %v5396 = vpop.f32.mrf.mxu0
    %5397 = vdwg.mxu0
    %5398 = vrot.lane.b32.xlu0 %v4213, 104
    %v5399 = vpop.permute.xlu0 %5398
    %5400 = vrot.lane.b32.xlu0 %v4213, 72
    %v5401 = vpop.permute.xlu0 %5400
    %v5402 = vsel %vm688, %v5399, 0
    %v5404 = vsel %vm688, %v5401, 0
    %5406 = vmatprep.subr.mxu0 0.0
    %5407 = vmatpush1.xpose.msra.mxu0 0.0
    %5408 = vmatprep.subr.mxu0 0.0
    %5409 = vmatpush1.xpose.msra.mxu0 0.0
    %5410 = vmatprep.subr.mxu0 0.0
    %5411 = vmatpush1.xpose.msra.mxu0 0.0
    %5412 = vmatprep.subr.mxu0 0.0
    %5413 = vmatpush1.xpose.msra.mxu0 0.0
    %5414 = vmatprep.subr.mxu0 0.0
    %5415 = vmatpush1.xpose.msra.mxu0 0.0
    %5416 = vmatprep.subr.mxu0 0.0
    %5417 = vmatpush1.xpose.msra.mxu0 0.0
    %5418 = vmatprep.subr.mxu0 0.0
    %5419 = vmatpush1.xpose.msra.mxu0 0.0
    %5420 = vmatprep.subr.mxu0 0.0
    %5421 = vmatpush1.xpose.msra.mxu0 0.0
    %5422 = vmatprep.subr.mxu0 0.0
    %5423 = vmatpush1.xpose.msra.mxu0 0.0
    %5424 = vmatprep.subr.mxu0 0.0
    %5425 = vmatpush1.xpose.msra.mxu0 0.0
    %5426 = vmatprep.subr.mxu0 0.0
    %5427 = vmatpush1.xpose.msra.mxu0 0.0
    %5428 = vmatprep.subr.mxu0 0.0
    %5429 = vmatpush1.xpose.msra.mxu0 0.0
    %5430 = vmatprep.subr.mxu0 0.0
    %5431 = vmatpush1.xpose.msra.mxu0 0.0
    %5432 = vmatprep.subr.mxu0 0.0
    %5433 = vmatpush1.xpose.msra.mxu0 0.0
    %5434 = vmatprep.subr.mxu0 0.0
    %5435 = vmatpush1.xpose.msra.mxu0 0.0
    %5436 = vmatprep.subr.mxu0 0.0
    %5437 = vmatpush1.xpose.msra.mxu0 %v5404
    %5438 = vmatprep.subr.mxu0 0.0
    %5439 = vmatpush2.xpose.msra.mxu0 0.0
    %5440 = vmatprep.subr.mxu0 0.0
    %5441 = vmatpush2.xpose.msra.mxu0 0.0
    %5442 = vmatprep.subr.mxu0 0.0
    %5443 = vmatpush2.xpose.msra.mxu0 0.0
    %5444 = vmatprep.subr.mxu0 0.0
    %5445 = vmatpush2.xpose.msra.mxu0 0.0
    %5446 = vmatprep.subr.mxu0 0.0
    %5447 = vmatpush2.xpose.msra.mxu0 0.0
    %5448 = vmatprep.subr.mxu0 0.0
    %5449 = vmatpush2.xpose.msra.mxu0 0.0
    %5450 = vmatprep.subr.mxu0 0.0
    %5451 = vmatpush2.xpose.msra.mxu0 0.0
    %5452 = vmatprep.subr.mxu0 0.0
    %5453 = vmatpush2.xpose.msra.mxu0 0.0
    %5454 = vmatprep.subr.mxu0 0.0
    %5455 = vmatpush2.xpose.msra.mxu0 0.0
    %5456 = vmatprep.subr.mxu0 0.0
    %5457 = vmatpush2.xpose.msra.mxu0 0.0
    %5458 = vmatprep.subr.mxu0 0.0
    %5459 = vmatpush2.xpose.msra.mxu0 0.0
    %5460 = vmatprep.subr.mxu0 0.0
    %5461 = vmatpush2.xpose.msra.mxu0 0.0
    %5462 = vmatprep.subr.mxu0 0.0
    %5463 = vmatpush2.xpose.msra.mxu0 0.0
    %5464 = vmatprep.subr.mxu0 0.0
    %5465 = vmatpush2.xpose.msra.mxu0 0.0
    %5466 = vmatprep.subr.mxu0 0.0
    %5467 = vmatpush2.xpose.msra.mxu0 0.0
    %5468 = vmatprep.subr.mxu0 0.0
    %5469 = vmatpush2.xpose.msra.mxu0 0.0
    %5470 = vmatprep.mubr.f32.mxu0 0.0
    %5471 = vmatmul.mubr.f32.gmra.mxu0 %v5402
    %v5472 = vpop.f32.mrf.mxu0
    %v5473 = vadd.f32 0.0, %v5472
    %v5474 = vpop.f32.mrf.mxu0
    %5475 = vdwg.mxu0
    %v5476 = vmul.f32 %v5473, 0.35355338
    %v5477 = vadd.f32 %v5476, %v545
    %v5478 = vsel %vm688, %v5477, -inf
    %5479 = vmax.xlane.f32.xlu0 %v5478
    %v5480 = vpop.xlane.xlu0 %5479
    %v5481 = vsub.f32 %v5477, %v5480
    %v5482 = vmul.f32 %v5481, 1.442695
    %v5483 = vpow.pop %v5482
    %v5484 = vsel %vm688, %v5483, 0.0
    %5485 = vadd.xlane.f32.xlu0 %v5484
    %v5486 = vpop.xlane.xlu0 %5485
    %v5487 = vrcp.pop %v5486
    %v5488 = vmul.f32 %v5483, %v5487
    %5489 = vrot.lane.b32.xlu0 %v4213, 40
    %v5490 = vpop.permute.xlu0 %5489
    %v5493 = vsel %vm688, %v5488, 0
    %5495 = vmatprep.subr.mxu0 0.0
    %5496 = vmatpush1.msra.mxu0 0.0
    %5497 = vmatprep.subr.mxu0 0.0
    %5498 = vmatpush1.msra.mxu0 0.0
    %5499 = vmatprep.subr.mxu0 0.0
    %5500 = vmatpush1.msra.mxu0 0.0
    %5501 = vmatprep.subr.mxu0 0.0
    %5502 = vmatpush1.msra.mxu0 0.0
    %5503 = vmatprep.subr.mxu0 0.0
    %5504 = vmatpush1.msra.mxu0 0.0
    %5505 = vmatprep.subr.mxu0 0.0
    %5506 = vmatpush1.msra.mxu0 0.0
    %5507 = vmatprep.subr.mxu0 0.0
    %5508 = vmatpush1.msra.mxu0 0.0
    %5509 = vmatprep.subr.mxu0 0.0
    %5510 = vmatpush1.msra.mxu0 0.0
    %5511 = vmatprep.subr.mxu0 0.0
    %5512 = vmatpush1.msra.mxu0 0.0
    %5513 = vmatprep.subr.mxu0 0.0
    %5514 = vmatpush1.msra.mxu0 0.0
    %5515 = vmatprep.subr.mxu0 0.0
    %5516 = vmatpush1.msra.mxu0 0.0
    %5517 = vmatprep.subr.mxu0 0.0
    %5518 = vmatpush1.msra.mxu0 0.0
    %5519 = vmatprep.subr.mxu0 0.0
    %5520 = vmatpush1.msra.mxu0 0.0
    %5521 = vmatprep.subr.mxu0 0.0
    %5522 = vmatpush1.msra.mxu0 0.0
    %5523 = vmatprep.subr.mxu0 0.0
    %5524 = vmatpush1.msra.mxu0 0.0
    %5525 = vmatprep.subr.mxu0 0.0
    %5526 = vmatpush1.msra.mxu0 %v5490
    %5527 = vmatprep.subr.mxu0 0.0
    %5528 = vmatpush2.msra.mxu0 0.0
    %5529 = vmatprep.subr.mxu0 0.0
    %5530 = vmatpush2.msra.mxu0 0.0
    %5531 = vmatprep.subr.mxu0 0.0
    %5532 = vmatpush2.msra.mxu0 0.0
    %5533 = vmatprep.subr.mxu0 0.0
    %5534 = vmatpush2.msra.mxu0 0.0
    %5535 = vmatprep.subr.mxu0 0.0
    %5536 = vmatpush2.msra.mxu0 0.0
    %5537 = vmatprep.subr.mxu0 0.0
    %5538 = vmatpush2.msra.mxu0 0.0
    %5539 = vmatprep.subr.mxu0 0.0
    %5540 = vmatpush2.msra.mxu0 0.0
    %5541 = vmatprep.subr.mxu0 0.0
    %5542 = vmatpush2.msra.mxu0 0.0
    %5543 = vmatprep.subr.mxu0 0.0
    %5544 = vmatpush2.msra.mxu0 0.0
    %5545 = vmatprep.subr.mxu0 0.0
    %5546 = vmatpush2.msra.mxu0 0.0
    %5547 = vmatprep.subr.mxu0 0.0
    %5548 = vmatpush2.msra.mxu0 0.0
    %5549 = vmatprep.subr.mxu0 0.0
    %5550 = vmatpush2.msra.mxu0 0.0
    %5551 = vmatprep.subr.mxu0 0.0
    %5552 = vmatpush2.msra.mxu0 0.0
    %5553 = vmatprep.subr.mxu0 0.0
    %5554 = vmatpush2.msra.mxu0 0.0
    %5555 = vmatprep.subr.mxu0 0.0
    %5556 = vmatpush2.msra.mxu0 0.0
    %5557 = vmatprep.subr.mxu0 0.0
    %5558 = vmatpush2.msra.mxu0 0.0
    %5559 = vmatprep.mubr.f32.mxu0 0.0
    %5560 = vmatmul.mubr.f32.gmra.mxu0 %v5493
    %v5561 = vpop.f32.mrf.mxu0
    %v5562 = vadd.f32 0.0, %v5561
    %v5563 = vpop.f32.mrf.mxu0
    %5564 = vdwg.mxu0
    %5566 = vrot.lane.b32.xlu0 %v5228, 8
    %v5567 = vpop.permute.xlu0 %5566
    %5570 = vrot.lane.b32.xlu0 %v5395, 16
    %v5571 = vpop.permute.xlu0 %5570
    %5574 = vrot.lane.b32.xlu0 %v5562, 24
    %v5575 = vpop.permute.xlu0 %5574
    %v5577 = vsel %vm688, %v5061, %v5567
    %v5578 = vsel %vm1366, %v5577, %v5571
    %v5579 = vsel %vm1368, %v5578, %v5575
    %v5581 = vlaneseq
    %v5582 = vshrl.u32 %v5581, 7
    %v5583 = vsub.s32 0, %v5582
    %v5584 = vrot.slane %v4093, %v5583
    %v5587 = vsel %vm603, %v4897, 0
    %v5590 = vsel %vm603, %v5579, 0
    %5592 = vmatprep.subr.mxu0 0.0
    %5593 = vmatpush1.msra.mxu0 0.0
    %5594 = vmatprep.subr.mxu0 0.0
    %5595 = vmatpush1.msra.mxu0 0.0
    %5596 = vmatprep.subr.mxu0 0.0
    %5597 = vmatpush1.msra.mxu0 0.0
    %5598 = vmatprep.subr.mxu0 0.0
    %5599 = vmatpush1.msra.mxu0 0.0
    %5600 = vmatprep.subr.mxu0 0.0
    %5601 = vmatpush1.msra.mxu0 0.0
    %5602 = vmatprep.subr.mxu0 0.0
    %5603 = vmatpush1.msra.mxu0 0.0
    %5604 = vmatprep.subr.mxu0 0.0
    %5605 = vmatpush1.msra.mxu0 0.0
    %5606 = vmatprep.subr.mxu0 0.0
    %5607 = vmatpush1.msra.mxu0 0.0
    %5608 = vmatprep.subr.mxu0 0.0
    %5609 = vmatpush1.msra.mxu0 0.0
    %5610 = vmatprep.subr.mxu0 0.0
    %5611 = vmatpush1.msra.mxu0 0.0
    %5612 = vmatprep.subr.mxu0 0.0
    %5613 = vmatpush1.msra.mxu0 0.0
    %5614 = vmatprep.subr.mxu0 0.0
    %5615 = vmatpush1.msra.mxu0 0.0
    %5616 = vmatprep.subr.mxu0 0.0
    %5617 = vmatpush1.msra.mxu0 %v4092
    %5618 = vmatprep.subr.mxu0 0.0
    %5619 = vmatpush1.msra.mxu0 %v4091
    %5620 = vmatprep.subr.mxu0 0.0
    %5621 = vmatpush1.msra.mxu0 %v4090
    %5622 = vmatprep.subr.mxu0 0.0
    %5623 = vmatpush1.msra.mxu0 %v4089
    %5624 = vmatprep.subr.mxu0 0.0
    %5625 = vmatpush2.msra.mxu0 0.0
    %5626 = vmatprep.subr.mxu0 0.0
    %5627 = vmatpush2.msra.mxu0 0.0
    %5628 = vmatprep.subr.mxu0 0.0
    %5629 = vmatpush2.msra.mxu0 0.0
    %5630 = vmatprep.subr.mxu0 0.0
    %5631 = vmatpush2.msra.mxu0 0.0
    %5632 = vmatprep.subr.mxu0 0.0
    %5633 = vmatpush2.msra.mxu0 0.0
    %5634 = vmatprep.subr.mxu0 0.0
    %5635 = vmatpush2.msra.mxu0 0.0
    %5636 = vmatprep.subr.mxu0 0.0
    %5637 = vmatpush2.msra.mxu0 0.0
    %5638 = vmatprep.subr.mxu0 0.0
    %5639 = vmatpush2.msra.mxu0 0.0
    %5640 = vmatprep.subr.mxu0 0.0
    %5641 = vmatpush2.msra.mxu0 0.0
    %5642 = vmatprep.subr.mxu0 0.0
    %5643 = vmatpush2.msra.mxu0 0.0
    %5644 = vmatprep.subr.mxu0 0.0
    %5645 = vmatpush2.msra.mxu0 0.0
    %5646 = vmatprep.subr.mxu0 0.0
    %5647 = vmatpush2.msra.mxu0 0.0
    %5648 = vmatprep.subr.mxu0 0.0
    %5649 = vmatpush2.msra.mxu0 0.0
    %5650 = vmatprep.subr.mxu0 0.0
    %5651 = vmatpush2.msra.mxu0 0.0
    %5652 = vmatprep.subr.mxu0 0.0
    %5653 = vmatpush2.msra.mxu0 0.0
    %5654 = vmatprep.subr.mxu0 0.0
    %5655 = vmatpush2.msra.mxu0 0.0
    %5656 = vmatprep.mubr.f32.mxu0 0.0
    %5657 = vmatmul.mubr.f32.gmra.mxu0 %v5587
    %v5658 = vpop.f32.mrf.mxu0
    %v5659 = vadd.f32 %v5584, %v5658
    %v5660 = vpop.f32.mrf.mxu0
    %5661 = vmatprep.mubr.f32.mxu0 0.0
    %5662 = vmatmul.mubr.f32.gmra.mxu0 %v5590
    %v5663 = vpop.f32.mrf.mxu0
    %v5664 = vadd.f32 %v5584, %v5663
    %v5665 = vpop.f32.mrf.mxu0
    %5666 = vdwg.mxu0
    %v5667 = vadd.f32 %v4082, %v5659
    %v5668 = vadd.f32 %v4083, %v5664
    %v5669 = vsel %vm603, %v5667, 0.0
    %5670 = vadd.xlane.f32.xlu0 %v5669
    %v5671 = vpop.xlane.xlu0 %5670
    %v5672 = vsel %vm603, %v5668, 0.0
    %5673 = vadd.xlane.f32.xlu0 %v5672
    %v5674 = vpop.xlane.xlu0 %5673
    %v5675 = vmul.f32 %v5671, %v2147
    %v5676 = vmul.f32 %v5674, %v2147
    %v5677 = vsub.f32 %v5667, %v5675
    %v5678 = vsub.f32 %v5668, %v5676
    %v5679 = vmul.f32 %v5677, %v5677
    %v5680 = vmul.f32 %v5678, %v5678
    %v5681 = vsel %vm603, %v5679, 0.0
    %5682 = vadd.xlane.f32.xlu0 %v5681
    %v5683 = vpop.xlane.xlu0 %5682
    %v5684 = vsel %vm603, %v5680, 0.0
    %5685 = vadd.xlane.f32.xlu0 %v5684
    %v5686 = vpop.xlane.xlu0 %5685
    %v5687 = vmul.f32 %v5683, %v2147
    %v5688 = vmul.f32 %v5686, %v2147
    %v5689 = vadd.f32 %v5687, 1e-05
    %v5690 = vadd.f32 %v5688, 1e-05
    %v5691 = vrsqrt.pop %v5689
    %v5692 = vrsqrt.pop %v5690
    %v5693 = vmul.f32 %v5677, %v5691
    %v5694 = vmul.f32 %v5678, %v5692
    %v5696 = vlaneseq
    %v5697 = vshrl.u32 %v5696, 7
    %v5698 = vsub.s32 0, %v5697
    %v5699 = vrot.slane %v4123, %v5698
    %v5701 = vmul.f32 %v5693, %v5699
    %v5702 = vmul.f32 %v5694, %v5699
    %v5704 = vlaneseq
    %v5705 = vshrl.u32 %v5704, 7
    %v5706 = vsub.s32 0, %v5705
    %v5707 = vrot.slane %v4124, %v5706
    %v5709 = vadd.f32 %v5701, %v5707
    %v5710 = vadd.f32 %v5702, %v5707
    %v5712 = vlaneseq
    %v5713 = vshrl.u32 %v5712, 7
    %v5714 = vsub.s32 0, %v5713
    %v5715 = vrot.slane %v4098, %v5714
    %v5718 = vsel %vm603, %v5709, 0
    %v5721 = vsel %vm603, %v5710, 0
    %5723 = vmatprep.subr.mxu0 0.0
    %5724 = vmatpush1.msra.mxu0 0.0
    %5725 = vmatprep.subr.mxu0 0.0
    %5726 = vmatpush1.msra.mxu0 0.0
    %5727 = vmatprep.subr.mxu0 0.0
    %5728 = vmatpush1.msra.mxu0 0.0
    %5729 = vmatprep.subr.mxu0 0.0
    %5730 = vmatpush1.msra.mxu0 0.0
    %5731 = vmatprep.subr.mxu0 0.0
    %5732 = vmatpush1.msra.mxu0 0.0
    %5733 = vmatprep.subr.mxu0 0.0
    %5734 = vmatpush1.msra.mxu0 0.0
    %5735 = vmatprep.subr.mxu0 0.0
    %5736 = vmatpush1.msra.mxu0 0.0
    %5737 = vmatprep.subr.mxu0 0.0
    %5738 = vmatpush1.msra.mxu0 0.0
    %5739 = vmatprep.subr.mxu0 0.0
    %5740 = vmatpush1.msra.mxu0 0.0
    %5741 = vmatprep.subr.mxu0 0.0
    %5742 = vmatpush1.msra.mxu0 0.0
    %5743 = vmatprep.subr.mxu0 0.0
    %5744 = vmatpush1.msra.mxu0 0.0
    %5745 = vmatprep.subr.mxu0 0.0
    %5746 = vmatpush1.msra.mxu0 0.0
    %5747 = vmatprep.subr.mxu0 0.0
    %5748 = vmatpush1.msra.mxu0 %v4097
    %5749 = vmatprep.subr.mxu0 0.0
    %5750 = vmatpush1.msra.mxu0 %v4096
    %5751 = vmatprep.subr.mxu0 0.0
    %5752 = vmatpush1.msra.mxu0 %v4095
    %5753 = vmatprep.subr.mxu0 0.0
    %5754 = vmatpush1.msra.mxu0 %v4094
    %5755 = vmatprep.subr.mxu0 0.0
    %5756 = vmatpush2.msra.mxu0 0.0
    %5757 = vmatprep.subr.mxu0 0.0
    %5758 = vmatpush2.msra.mxu0 0.0
    %5759 = vmatprep.subr.mxu0 0.0
    %5760 = vmatpush2.msra.mxu0 0.0
    %5761 = vmatprep.subr.mxu0 0.0
    %5762 = vmatpush2.msra.mxu0 0.0
    %5763 = vmatprep.subr.mxu0 0.0
    %5764 = vmatpush2.msra.mxu0 0.0
    %5765 = vmatprep.subr.mxu0 0.0
    %5766 = vmatpush2.msra.mxu0 0.0
    %5767 = vmatprep.subr.mxu0 0.0
    %5768 = vmatpush2.msra.mxu0 0.0
    %5769 = vmatprep.subr.mxu0 0.0
    %5770 = vmatpush2.msra.mxu0 0.0
    %5771 = vmatprep.subr.mxu0 0.0
    %5772 = vmatpush2.msra.mxu0 0.0
    %5773 = vmatprep.subr.mxu0 0.0
    %5774 = vmatpush2.msra.mxu0 0.0
    %5775 = vmatprep.subr.mxu0 0.0
    %5776 = vmatpush2.msra.mxu0 0.0
    %5777 = vmatprep.subr.mxu0 0.0
    %5778 = vmatpush2.msra.mxu0 0.0
    %5779 = vmatprep.subr.mxu0 0.0
    %5780 = vmatpush2.msra.mxu0 0.0
    %5781 = vmatprep.subr.mxu0 0.0
    %5782 = vmatpush2.msra.mxu0 0.0
    %5783 = vmatprep.subr.mxu0 0.0
    %5784 = vmatpush2.msra.mxu0 0.0
    %5785 = vmatprep.subr.mxu0 0.0
    %5786 = vmatpush2.msra.mxu0 0.0
    %5787 = vmatprep.mubr.f32.mxu0 0.0
    %5788 = vmatmul.mubr.f32.gmra.mxu0 %v5718
    %v5789 = vpop.f32.mrf.mxu0
    %v5790 = vadd.f32 %v5715, %v5789
    %v5791 = vpop.f32.mrf.mxu0
    %5792 = vmatprep.mubr.f32.mxu0 0.0
    %5793 = vmatmul.mubr.f32.gmra.mxu0 %v5721
    %v5794 = vpop.f32.mrf.mxu0
    %v5795 = vadd.f32 %v5715, %v5794
    %v5796 = vpop.f32.mrf.mxu0
    %5797 = vdwg.mxu0
    %v5799 = vlaneseq
    %v5800 = vshrl.u32 %v5799, 7
    %v5801 = vsub.s32 0, %v5800
    %v5802 = vrot.slane %v4103, %v5801
    %5804 = vmatprep.subr.mxu0 0.0
    %5805 = vmatpush1.msra.mxu0 0.0
    %5806 = vmatprep.subr.mxu0 0.0
    %5807 = vmatpush1.msra.mxu0 0.0
    %5808 = vmatprep.subr.mxu0 0.0
    %5809 = vmatpush1.msra.mxu0 0.0
    %5810 = vmatprep.subr.mxu0 0.0
    %5811 = vmatpush1.msra.mxu0 0.0
    %5812 = vmatprep.subr.mxu0 0.0
    %5813 = vmatpush1.msra.mxu0 0.0
    %5814 = vmatprep.subr.mxu0 0.0
    %5815 = vmatpush1.msra.mxu0 0.0
    %5816 = vmatprep.subr.mxu0 0.0
    %5817 = vmatpush1.msra.mxu0 0.0
    %5818 = vmatprep.subr.mxu0 0.0
    %5819 = vmatpush1.msra.mxu0 0.0
    %5820 = vmatprep.subr.mxu0 0.0
    %5821 = vmatpush1.msra.mxu0 0.0
    %5822 = vmatprep.subr.mxu0 0.0
    %5823 = vmatpush1.msra.mxu0 0.0
    %5824 = vmatprep.subr.mxu0 0.0
    %5825 = vmatpush1.msra.mxu0 0.0
    %5826 = vmatprep.subr.mxu0 0.0
    %5827 = vmatpush1.msra.mxu0 0.0
    %5828 = vmatprep.subr.mxu0 0.0
    %5829 = vmatpush1.msra.mxu0 %v4102
    %5830 = vmatprep.subr.mxu0 0.0
    %5831 = vmatpush1.msra.mxu0 %v4101
    %5832 = vmatprep.subr.mxu0 0.0
    %5833 = vmatpush1.msra.mxu0 %v4100
    %5834 = vmatprep.subr.mxu0 0.0
    %5835 = vmatpush1.msra.mxu0 %v4099
    %5836 = vmatprep.subr.mxu0 0.0
    %5837 = vmatpush2.msra.mxu0 0.0
    %5838 = vmatprep.subr.mxu0 0.0
    %5839 = vmatpush2.msra.mxu0 0.0
    %5840 = vmatprep.subr.mxu0 0.0
    %5841 = vmatpush2.msra.mxu0 0.0
    %5842 = vmatprep.subr.mxu0 0.0
    %5843 = vmatpush2.msra.mxu0 0.0
    %5844 = vmatprep.subr.mxu0 0.0
    %5845 = vmatpush2.msra.mxu0 0.0
    %5846 = vmatprep.subr.mxu0 0.0
    %5847 = vmatpush2.msra.mxu0 0.0
    %5848 = vmatprep.subr.mxu0 0.0
    %5849 = vmatpush2.msra.mxu0 0.0
    %5850 = vmatprep.subr.mxu0 0.0
    %5851 = vmatpush2.msra.mxu0 0.0
    %5852 = vmatprep.subr.mxu0 0.0
    %5853 = vmatpush2.msra.mxu0 0.0
    %5854 = vmatprep.subr.mxu0 0.0
    %5855 = vmatpush2.msra.mxu0 0.0
    %5856 = vmatprep.subr.mxu0 0.0
    %5857 = vmatpush2.msra.mxu0 0.0
    %5858 = vmatprep.subr.mxu0 0.0
    %5859 = vmatpush2.msra.mxu0 0.0
    %5860 = vmatprep.subr.mxu0 0.0
    %5861 = vmatpush2.msra.mxu0 0.0
    %5862 = vmatprep.subr.mxu0 0.0
    %5863 = vmatpush2.msra.mxu0 0.0
    %5864 = vmatprep.subr.mxu0 0.0
    %5865 = vmatpush2.msra.mxu0 0.0
    %5866 = vmatprep.subr.mxu0 0.0
    %5867 = vmatpush2.msra.mxu0 0.0
    %5868 = vmatprep.mubr.f32.mxu0 0.0
    %5869 = vmatmul.mubr.f32.gmra.mxu0 %v2278
    %v5870 = vpop.f32.mrf.mxu0
    %v5871 = vadd.f32 %v5802, %v5870
    %v5872 = vpop.f32.mrf.mxu0
    %5873 = vmatprep.mubr.f32.mxu0 0.0
    %5874 = vmatmul.mubr.f32.gmra.mxu0 %v2281
    %v5875 = vpop.f32.mrf.mxu0
    %v5876 = vadd.f32 %v5802, %v5875
    %v5877 = vpop.f32.mrf.mxu0
    %5878 = vdwg.mxu0
    %v5880 = vsel %vm688, %v5790, 0
    %v5883 = vsel %vm688, %v5871, 0
    %5885 = vmatprep.subr.mxu0 0.0
    %5886 = vmatpush1.xpose.msra.mxu0 0.0
    %5887 = vmatprep.subr.mxu0 0.0
    %5888 = vmatpush1.xpose.msra.mxu0 0.0
    %5889 = vmatprep.subr.mxu0 0.0
    %5890 = vmatpush1.xpose.msra.mxu0 0.0
    %5891 = vmatprep.subr.mxu0 0.0
    %5892 = vmatpush1.xpose.msra.mxu0 0.0
    %5893 = vmatprep.subr.mxu0 0.0
    %5894 = vmatpush1.xpose.msra.mxu0 0.0
    %5895 = vmatprep.subr.mxu0 0.0
    %5896 = vmatpush1.xpose.msra.mxu0 0.0
    %5897 = vmatprep.subr.mxu0 0.0
    %5898 = vmatpush1.xpose.msra.mxu0 0.0
    %5899 = vmatprep.subr.mxu0 0.0
    %5900 = vmatpush1.xpose.msra.mxu0 0.0
    %5901 = vmatprep.subr.mxu0 0.0
    %5902 = vmatpush1.xpose.msra.mxu0 0.0
    %5903 = vmatprep.subr.mxu0 0.0
    %5904 = vmatpush1.xpose.msra.mxu0 0.0
    %5905 = vmatprep.subr.mxu0 0.0
    %5906 = vmatpush1.xpose.msra.mxu0 0.0
    %5907 = vmatprep.subr.mxu0 0.0
    %5908 = vmatpush1.xpose.msra.mxu0 0.0
    %5909 = vmatprep.subr.mxu0 0.0
    %5910 = vmatpush1.xpose.msra.mxu0 0.0
    %5911 = vmatprep.subr.mxu0 0.0
    %5912 = vmatpush1.xpose.msra.mxu0 0.0
    %5913 = vmatprep.subr.mxu0 0.0
    %5914 = vmatpush1.xpose.msra.mxu0 0.0
    %5915 = vmatprep.subr.mxu0 0.0
    %5916 = vmatpush1.xpose.msra.mxu0 %v5883
    %5917 = vmatprep.subr.mxu0 0.0
    %5918 = vmatpush2.xpose.msra.mxu0 0.0
    %5919 = vmatprep.subr.mxu0 0.0
    %5920 = vmatpush2.xpose.msra.mxu0 0.0
    %5921 = vmatprep.subr.mxu0 0.0
    %5922 = vmatpush2.xpose.msra.mxu0 0.0
    %5923 = vmatprep.subr.mxu0 0.0
    %5924 = vmatpush2.xpose.msra.mxu0 0.0
    %5925 = vmatprep.subr.mxu0 0.0
    %5926 = vmatpush2.xpose.msra.mxu0 0.0
    %5927 = vmatprep.subr.mxu0 0.0
    %5928 = vmatpush2.xpose.msra.mxu0 0.0
    %5929 = vmatprep.subr.mxu0 0.0
    %5930 = vmatpush2.xpose.msra.mxu0 0.0
    %5931 = vmatprep.subr.mxu0 0.0
    %5932 = vmatpush2.xpose.msra.mxu0 0.0
    %5933 = vmatprep.subr.mxu0 0.0
    %5934 = vmatpush2.xpose.msra.mxu0 0.0
    %5935 = vmatprep.subr.mxu0 0.0
    %5936 = vmatpush2.xpose.msra.mxu0 0.0
    %5937 = vmatprep.subr.mxu0 0.0
    %5938 = vmatpush2.xpose.msra.mxu0 0.0
    %5939 = vmatprep.subr.mxu0 0.0
    %5940 = vmatpush2.xpose.msra.mxu0 0.0
    %5941 = vmatprep.subr.mxu0 0.0
    %5942 = vmatpush2.xpose.msra.mxu0 0.0
    %5943 = vmatprep.subr.mxu0 0.0
    %5944 = vmatpush2.xpose.msra.mxu0 0.0
    %5945 = vmatprep.subr.mxu0 0.0
    %5946 = vmatpush2.xpose.msra.mxu0 0.0
    %5947 = vmatprep.subr.mxu0 0.0
    %5948 = vmatpush2.xpose.msra.mxu0 0.0
    %5949 = vmatprep.mubr.f32.mxu0 0.0
    %5950 = vmatmul.mubr.f32.gmra.mxu0 %v5880
    %v5951 = vpop.f32.mrf.mxu0
    %v5952 = vadd.f32 0.0, %v5951
    %v5953 = vpop.f32.mrf.mxu0
    %5954 = vdwg.mxu0
    %v5955 = vmul.f32 %v5952, 0.35355338
    %v5956 = vadd.f32 %v5955, %v2439
    %v5957 = vsel %vm688, %v5956, -inf
    %5958 = vmax.xlane.f32.xlu0 %v5957
    %v5959 = vpop.xlane.xlu0 %5958
    %v5960 = vsub.f32 %v5956, %v5959
    %v5961 = vmul.f32 %v5960, 1.442695
    %v5962 = vpow.pop %v5961
    %v5963 = vsel %vm688, %v5962, 0.0
    %5964 = vadd.xlane.f32.xlu0 %v5963
    %v5965 = vpop.xlane.xlu0 %5964
    %v5966 = vrcp.pop %v5965
    %v5967 = vmul.f32 %v5962, %v5966
    %5968 = vrot.lane.b32.xlu0 %v5871, 96
    %v5969 = vpop.permute.xlu0 %5968
    %v5972 = vsel %vm688, %v5967, 0
    %5974 = vmatprep.subr.mxu0 0.0
    %5975 = vmatpush1.msra.mxu0 0.0
    %5976 = vmatprep.subr.mxu0 0.0
    %5977 = vmatpush1.msra.mxu0 0.0
    %5978 = vmatprep.subr.mxu0 0.0
    %5979 = vmatpush1.msra.mxu0 0.0
    %5980 = vmatprep.subr.mxu0 0.0
    %5981 = vmatpush1.msra.mxu0 0.0
    %5982 = vmatprep.subr.mxu0 0.0
    %5983 = vmatpush1.msra.mxu0 0.0
    %5984 = vmatprep.subr.mxu0 0.0
    %5985 = vmatpush1.msra.mxu0 0.0
    %5986 = vmatprep.subr.mxu0 0.0
    %5987 = vmatpush1.msra.mxu0 0.0
    %5988 = vmatprep.subr.mxu0 0.0
    %5989 = vmatpush1.msra.mxu0 0.0
    %5990 = vmatprep.subr.mxu0 0.0
    %5991 = vmatpush1.msra.mxu0 0.0
    %5992 = vmatprep.subr.mxu0 0.0
    %5993 = vmatpush1.msra.mxu0 0.0
    %5994 = vmatprep.subr.mxu0 0.0
    %5995 = vmatpush1.msra.mxu0 0.0
    %5996 = vmatprep.subr.mxu0 0.0
    %5997 = vmatpush1.msra.mxu0 0.0
    %5998 = vmatprep.subr.mxu0 0.0
    %5999 = vmatpush1.msra.mxu0 0.0
    %6000 = vmatprep.subr.mxu0 0.0
    %6001 = vmatpush1.msra.mxu0 0.0
    %6002 = vmatprep.subr.mxu0 0.0
    %6003 = vmatpush1.msra.mxu0 0.0
    %6004 = vmatprep.subr.mxu0 0.0
    %6005 = vmatpush1.msra.mxu0 %v5969
    %6006 = vmatprep.subr.mxu0 0.0
    %6007 = vmatpush2.msra.mxu0 0.0
    %6008 = vmatprep.subr.mxu0 0.0
    %6009 = vmatpush2.msra.mxu0 0.0
    %6010 = vmatprep.subr.mxu0 0.0
    %6011 = vmatpush2.msra.mxu0 0.0
    %6012 = vmatprep.subr.mxu0 0.0
    %6013 = vmatpush2.msra.mxu0 0.0
    %6014 = vmatprep.subr.mxu0 0.0
    %6015 = vmatpush2.msra.mxu0 0.0
    %6016 = vmatprep.subr.mxu0 0.0
    %6017 = vmatpush2.msra.mxu0 0.0
    %6018 = vmatprep.subr.mxu0 0.0
    %6019 = vmatpush2.msra.mxu0 0.0
    %6020 = vmatprep.subr.mxu0 0.0
    %6021 = vmatpush2.msra.mxu0 0.0
    %6022 = vmatprep.subr.mxu0 0.0
    %6023 = vmatpush2.msra.mxu0 0.0
    %6024 = vmatprep.subr.mxu0 0.0
    %6025 = vmatpush2.msra.mxu0 0.0
    %6026 = vmatprep.subr.mxu0 0.0
    %6027 = vmatpush2.msra.mxu0 0.0
    %6028 = vmatprep.subr.mxu0 0.0
    %6029 = vmatpush2.msra.mxu0 0.0
    %6030 = vmatprep.subr.mxu0 0.0
    %6031 = vmatpush2.msra.mxu0 0.0
    %6032 = vmatprep.subr.mxu0 0.0
    %6033 = vmatpush2.msra.mxu0 0.0
    %6034 = vmatprep.subr.mxu0 0.0
    %6035 = vmatpush2.msra.mxu0 0.0
    %6036 = vmatprep.subr.mxu0 0.0
    %6037 = vmatpush2.msra.mxu0 0.0
    %6038 = vmatprep.mubr.f32.mxu0 0.0
    %6039 = vmatmul.mubr.f32.gmra.mxu0 %v5972
    %v6040 = vpop.f32.mrf.mxu0
    %v6041 = vadd.f32 0.0, %v6040
    %v6042 = vpop.f32.mrf.mxu0
    %6043 = vdwg.mxu0
    %6044 = vrot.lane.b32.xlu0 %v5790, 120
    %v6045 = vpop.permute.xlu0 %6044
    %6046 = vrot.lane.b32.xlu0 %v5871, 120
    %v6047 = vpop.permute.xlu0 %6046
    %v6048 = vsel %vm688, %v6045, 0
    %v6050 = vsel %vm688, %v6047, 0
    %6052 = vmatprep.subr.mxu0 0.0
    %6053 = vmatpush1.xpose.msra.mxu0 0.0
    %6054 = vmatprep.subr.mxu0 0.0
    %6055 = vmatpush1.xpose.msra.mxu0 0.0
    %6056 = vmatprep.subr.mxu0 0.0
    %6057 = vmatpush1.xpose.msra.mxu0 0.0
    %6058 = vmatprep.subr.mxu0 0.0
    %6059 = vmatpush1.xpose.msra.mxu0 0.0
    %6060 = vmatprep.subr.mxu0 0.0
    %6061 = vmatpush1.xpose.msra.mxu0 0.0
    %6062 = vmatprep.subr.mxu0 0.0
    %6063 = vmatpush1.xpose.msra.mxu0 0.0
    %6064 = vmatprep.subr.mxu0 0.0
    %6065 = vmatpush1.xpose.msra.mxu0 0.0
    %6066 = vmatprep.subr.mxu0 0.0
    %6067 = vmatpush1.xpose.msra.mxu0 0.0
    %6068 = vmatprep.subr.mxu0 0.0
    %6069 = vmatpush1.xpose.msra.mxu0 0.0
    %6070 = vmatprep.subr.mxu0 0.0
    %6071 = vmatpush1.xpose.msra.mxu0 0.0
    %6072 = vmatprep.subr.mxu0 0.0
    %6073 = vmatpush1.xpose.msra.mxu0 0.0
    %6074 = vmatprep.subr.mxu0 0.0
    %6075 = vmatpush1.xpose.msra.mxu0 0.0
    %6076 = vmatprep.subr.mxu0 0.0
    %6077 = vmatpush1.xpose.msra.mxu0 0.0
    %6078 = vmatprep.subr.mxu0 0.0
    %6079 = vmatpush1.xpose.msra.mxu0 0.0
    %6080 = vmatprep.subr.mxu0 0.0
    %6081 = vmatpush1.xpose.msra.mxu0 0.0
    %6082 = vmatprep.subr.mxu0 0.0
    %6083 = vmatpush1.xpose.msra.mxu0 %v6050
    %6084 = vmatprep.subr.mxu0 0.0
    %6085 = vmatpush2.xpose.msra.mxu0 0.0
    %6086 = vmatprep.subr.mxu0 0.0
    %6087 = vmatpush2.xpose.msra.mxu0 0.0
    %6088 = vmatprep.subr.mxu0 0.0
    %6089 = vmatpush2.xpose.msra.mxu0 0.0
    %6090 = vmatprep.subr.mxu0 0.0
    %6091 = vmatpush2.xpose.msra.mxu0 0.0
    %6092 = vmatprep.subr.mxu0 0.0
    %6093 = vmatpush2.xpose.msra.mxu0 0.0
    %6094 = vmatprep.subr.mxu0 0.0
    %6095 = vmatpush2.xpose.msra.mxu0 0.0
    %6096 = vmatprep.subr.mxu0 0.0
    %6097 = vmatpush2.xpose.msra.mxu0 0.0
    %6098 = vmatprep.subr.mxu0 0.0
    %6099 = vmatpush2.xpose.msra.mxu0 0.0
    %6100 = vmatprep.subr.mxu0 0.0
    %6101 = vmatpush2.xpose.msra.mxu0 0.0
    %6102 = vmatprep.subr.mxu0 0.0
    %6103 = vmatpush2.xpose.msra.mxu0 0.0
    %6104 = vmatprep.subr.mxu0 0.0
    %6105 = vmatpush2.xpose.msra.mxu0 0.0
    %6106 = vmatprep.subr.mxu0 0.0
    %6107 = vmatpush2.xpose.msra.mxu0 0.0
    %6108 = vmatprep.subr.mxu0 0.0
    %6109 = vmatpush2.xpose.msra.mxu0 0.0
    %6110 = vmatprep.subr.mxu0 0.0
    %6111 = vmatpush2.xpose.msra.mxu0 0.0
    %6112 = vmatprep.subr.mxu0 0.0
    %6113 = vmatpush2.xpose.msra.mxu0 0.0
    %6114 = vmatprep.subr.mxu0 0.0
    %6115 = vmatpush2.xpose.msra.mxu0 0.0
    %6116 = vmatprep.mubr.f32.mxu0 0.0
    %6117 = vmatmul.mubr.f32.gmra.mxu0 %v6048
    %v6118 = vpop.f32.mrf.mxu0
    %v6119 = vadd.f32 0.0, %v6118
    %v6120 = vpop.f32.mrf.mxu0
    %6121 = vdwg.mxu0
    %v6122 = vmul.f32 %v6119, 0.35355338
    %v6123 = vadd.f32 %v6122, %v2439
    %v6124 = vsel %vm688, %v6123, -inf
    %6125 = vmax.xlane.f32.xlu0 %v6124
    %v6126 = vpop.xlane.xlu0 %6125
    %v6127 = vsub.f32 %v6123, %v6126
    %v6128 = vmul.f32 %v6127, 1.442695
    %v6129 = vpow.pop %v6128
    %v6130 = vsel %vm688, %v6129, 0.0
    %6131 = vadd.xlane.f32.xlu0 %v6130
    %v6132 = vpop.xlane.xlu0 %6131
    %v6133 = vrcp.pop %v6132
    %v6134 = vmul.f32 %v6129, %v6133
    %6135 = vrot.lane.b32.xlu0 %v5871, 88
    %v6136 = vpop.permute.xlu0 %6135
    %v6139 = vsel %vm688, %v6134, 0
    %6141 = vmatprep.subr.mxu0 0.0
    %6142 = vmatpush1.msra.mxu0 0.0
    %6143 = vmatprep.subr.mxu0 0.0
    %6144 = vmatpush1.msra.mxu0 0.0
    %6145 = vmatprep.subr.mxu0 0.0
    %6146 = vmatpush1.msra.mxu0 0.0
    %6147 = vmatprep.subr.mxu0 0.0
    %6148 = vmatpush1.msra.mxu0 0.0
    %6149 = vmatprep.subr.mxu0 0.0
    %6150 = vmatpush1.msra.mxu0 0.0
    %6151 = vmatprep.subr.mxu0 0.0
    %6152 = vmatpush1.msra.mxu0 0.0
    %6153 = vmatprep.subr.mxu0 0.0
    %6154 = vmatpush1.msra.mxu0 0.0
    %6155 = vmatprep.subr.mxu0 0.0
    %6156 = vmatpush1.msra.mxu0 0.0
    %6157 = vmatprep.subr.mxu0 0.0
    %6158 = vmatpush1.msra.mxu0 0.0
    %6159 = vmatprep.subr.mxu0 0.0
    %6160 = vmatpush1.msra.mxu0 0.0
    %6161 = vmatprep.subr.mxu0 0.0
    %6162 = vmatpush1.msra.mxu0 0.0
    %6163 = vmatprep.subr.mxu0 0.0
    %6164 = vmatpush1.msra.mxu0 0.0
    %6165 = vmatprep.subr.mxu0 0.0
    %6166 = vmatpush1.msra.mxu0 0.0
    %6167 = vmatprep.subr.mxu0 0.0
    %6168 = vmatpush1.msra.mxu0 0.0
    %6169 = vmatprep.subr.mxu0 0.0
    %6170 = vmatpush1.msra.mxu0 0.0
    %6171 = vmatprep.subr.mxu0 0.0
    %6172 = vmatpush1.msra.mxu0 %v6136
    %6173 = vmatprep.subr.mxu0 0.0
    %6174 = vmatpush2.msra.mxu0 0.0
    %6175 = vmatprep.subr.mxu0 0.0
    %6176 = vmatpush2.msra.mxu0 0.0
    %6177 = vmatprep.subr.mxu0 0.0
    %6178 = vmatpush2.msra.mxu0 0.0
    %6179 = vmatprep.subr.mxu0 0.0
    %6180 = vmatpush2.msra.mxu0 0.0
    %6181 = vmatprep.subr.mxu0 0.0
    %6182 = vmatpush2.msra.mxu0 0.0
    %6183 = vmatprep.subr.mxu0 0.0
    %6184 = vmatpush2.msra.mxu0 0.0
    %6185 = vmatprep.subr.mxu0 0.0
    %6186 = vmatpush2.msra.mxu0 0.0
    %6187 = vmatprep.subr.mxu0 0.0
    %6188 = vmatpush2.msra.mxu0 0.0
    %6189 = vmatprep.subr.mxu0 0.0
    %6190 = vmatpush2.msra.mxu0 0.0
    %6191 = vmatprep.subr.mxu0 0.0
    %6192 = vmatpush2.msra.mxu0 0.0
    %6193 = vmatprep.subr.mxu0 0.0
    %6194 = vmatpush2.msra.mxu0 0.0
    %6195 = vmatprep.subr.mxu0 0.0
    %6196 = vmatpush2.msra.mxu0 0.0
    %6197 = vmatprep.subr.mxu0 0.0
    %6198 = vmatpush2.msra.mxu0 0.0
    %6199 = vmatprep.subr.mxu0 0.0
    %6200 = vmatpush2.msra.mxu0 0.0
    %6201 = vmatprep.subr.mxu0 0.0
    %6202 = vmatpush2.msra.mxu0 0.0
    %6203 = vmatprep.subr.mxu0 0.0
    %6204 = vmatpush2.msra.mxu0 0.0
    %6205 = vmatprep.mubr.f32.mxu0 0.0
    %6206 = vmatmul.mubr.f32.gmra.mxu0 %v6139
    %v6207 = vpop.f32.mrf.mxu0
    %v6208 = vadd.f32 0.0, %v6207
    %v6209 = vpop.f32.mrf.mxu0
    %6210 = vdwg.mxu0
    %6211 = vrot.lane.b32.xlu0 %v5790, 112
    %v6212 = vpop.permute.xlu0 %6211
    %6213 = vrot.lane.b32.xlu0 %v5871, 112
    %v6214 = vpop.permute.xlu0 %6213
    %v6215 = vsel %vm688, %v6212, 0
    %v6217 = vsel %vm688, %v6214, 0
    %6219 = vmatprep.subr.mxu0 0.0
    %6220 = vmatpush1.xpose.msra.mxu0 0.0
    %6221 = vmatprep.subr.mxu0 0.0
    %6222 = vmatpush1.xpose.msra.mxu0 0.0
    %6223 = vmatprep.subr.mxu0 0.0
    %6224 = vmatpush1.xpose.msra.mxu0 0.0
    %6225 = vmatprep.subr.mxu0 0.0
    %6226 = vmatpush1.xpose.msra.mxu0 0.0
    %6227 = vmatprep.subr.mxu0 0.0
    %6228 = vmatpush1.xpose.msra.mxu0 0.0
    %6229 = vmatprep.subr.mxu0 0.0
    %6230 = vmatpush1.xpose.msra.mxu0 0.0
    %6231 = vmatprep.subr.mxu0 0.0
    %6232 = vmatpush1.xpose.msra.mxu0 0.0
    %6233 = vmatprep.subr.mxu0 0.0
    %6234 = vmatpush1.xpose.msra.mxu0 0.0
    %6235 = vmatprep.subr.mxu0 0.0
    %6236 = vmatpush1.xpose.msra.mxu0 0.0
    %6237 = vmatprep.subr.mxu0 0.0
    %6238 = vmatpush1.xpose.msra.mxu0 0.0
    %6239 = vmatprep.subr.mxu0 0.0
    %6240 = vmatpush1.xpose.msra.mxu0 0.0
    %6241 = vmatprep.subr.mxu0 0.0
    %6242 = vmatpush1.xpose.msra.mxu0 0.0
    %6243 = vmatprep.subr.mxu0 0.0
    %6244 = vmatpush1.xpose.msra.mxu0 0.0
    %6245 = vmatprep.subr.mxu0 0.0
    %6246 = vmatpush1.xpose.msra.mxu0 0.0
    %6247 = vmatprep.subr.mxu0 0.0
    %6248 = vmatpush1.xpose.msra.mxu0 0.0
    %6249 = vmatprep.subr.mxu0 0.0
    %6250 = vmatpush1.xpose.msra.mxu0 %v6217
    %6251 = vmatprep.subr.mxu0 0.0
    %6252 = vmatpush2.xpose.msra.mxu0 0.0
    %6253 = vmatprep.subr.mxu0 0.0
    %6254 = vmatpush2.xpose.msra.mxu0 0.0
    %6255 = vmatprep.subr.mxu0 0.0
    %6256 = vmatpush2.xpose.msra.mxu0 0.0
    %6257 = vmatprep.subr.mxu0 0.0
    %6258 = vmatpush2.xpose.msra.mxu0 0.0
    %6259 = vmatprep.subr.mxu0 0.0
    %6260 = vmatpush2.xpose.msra.mxu0 0.0
    %6261 = vmatprep.subr.mxu0 0.0
    %6262 = vmatpush2.xpose.msra.mxu0 0.0
    %6263 = vmatprep.subr.mxu0 0.0
    %6264 = vmatpush2.xpose.msra.mxu0 0.0
    %6265 = vmatprep.subr.mxu0 0.0
    %6266 = vmatpush2.xpose.msra.mxu0 0.0
    %6267 = vmatprep.subr.mxu0 0.0
    %6268 = vmatpush2.xpose.msra.mxu0 0.0
    %6269 = vmatprep.subr.mxu0 0.0
    %6270 = vmatpush2.xpose.msra.mxu0 0.0
    %6271 = vmatprep.subr.mxu0 0.0
    %6272 = vmatpush2.xpose.msra.mxu0 0.0
    %6273 = vmatprep.subr.mxu0 0.0
    %6274 = vmatpush2.xpose.msra.mxu0 0.0
    %6275 = vmatprep.subr.mxu0 0.0
    %6276 = vmatpush2.xpose.msra.mxu0 0.0
    %6277 = vmatprep.subr.mxu0 0.0
    %6278 = vmatpush2.xpose.msra.mxu0 0.0
    %6279 = vmatprep.subr.mxu0 0.0
    %6280 = vmatpush2.xpose.msra.mxu0 0.0
    %6281 = vmatprep.subr.mxu0 0.0
    %6282 = vmatpush2.xpose.msra.mxu0 0.0
    %6283 = vmatprep.mubr.f32.mxu0 0.0
    %6284 = vmatmul.mubr.f32.gmra.mxu0 %v6215
    %v6285 = vpop.f32.mrf.mxu0
    %v6286 = vadd.f32 0.0, %v6285
    %v6287 = vpop.f32.mrf.mxu0
    %6288 = vdwg.mxu0
    %v6289 = vmul.f32 %v6286, 0.35355338
    %v6290 = vadd.f32 %v6289, %v2439
    %v6291 = vsel %vm688, %v6290, -inf
    %6292 = vmax.xlane.f32.xlu0 %v6291
    %v6293 = vpop.xlane.xlu0 %6292
    %v6294 = vsub.f32 %v6290, %v6293
    %v6295 = vmul.f32 %v6294, 1.442695
    %v6296 = vpow.pop %v6295
    %v6297 = vsel %vm688, %v6296, 0.0
    %6298 = vadd.xlane.f32.xlu0 %v6297
    %v6299 = vpop.xlane.xlu0 %6298
    %v6300 = vrcp.pop %v6299
    %v6301 = vmul.f32 %v6296, %v6300
    %6302 = vrot.lane.b32.xlu0 %v5871, 80
    %v6303 = vpop.permute.xlu0 %6302
    %v6306 = vsel %vm688, %v6301, 0
    %6308 = vmatprep.subr.mxu0 0.0
    %6309 = vmatpush1.msra.mxu0 0.0
    %6310 = vmatprep.subr.mxu0 0.0
    %6311 = vmatpush1.msra.mxu0 0.0
    %6312 = vmatprep.subr.mxu0 0.0
    %6313 = vmatpush1.msra.mxu0 0.0
    %6314 = vmatprep.subr.mxu0 0.0
    %6315 = vmatpush1.msra.mxu0 0.0
    %6316 = vmatprep.subr.mxu0 0.0
    %6317 = vmatpush1.msra.mxu0 0.0
    %6318 = vmatprep.subr.mxu0 0.0
    %6319 = vmatpush1.msra.mxu0 0.0
    %6320 = vmatprep.subr.mxu0 0.0
    %6321 = vmatpush1.msra.mxu0 0.0
    %6322 = vmatprep.subr.mxu0 0.0
    %6323 = vmatpush1.msra.mxu0 0.0
    %6324 = vmatprep.subr.mxu0 0.0
    %6325 = vmatpush1.msra.mxu0 0.0
    %6326 = vmatprep.subr.mxu0 0.0
    %6327 = vmatpush1.msra.mxu0 0.0
    %6328 = vmatprep.subr.mxu0 0.0
    %6329 = vmatpush1.msra.mxu0 0.0
    %6330 = vmatprep.subr.mxu0 0.0
    %6331 = vmatpush1.msra.mxu0 0.0
    %6332 = vmatprep.subr.mxu0 0.0
    %6333 = vmatpush1.msra.mxu0 0.0
    %6334 = vmatprep.subr.mxu0 0.0
    %6335 = vmatpush1.msra.mxu0 0.0
    %6336 = vmatprep.subr.mxu0 0.0
    %6337 = vmatpush1.msra.mxu0 0.0
    %6338 = vmatprep.subr.mxu0 0.0
    %6339 = vmatpush1.msra.mxu0 %v6303
    %6340 = vmatprep.subr.mxu0 0.0
    %6341 = vmatpush2.msra.mxu0 0.0
    %6342 = vmatprep.subr.mxu0 0.0
    %6343 = vmatpush2.msra.mxu0 0.0
    %6344 = vmatprep.subr.mxu0 0.0
    %6345 = vmatpush2.msra.mxu0 0.0
    %6346 = vmatprep.subr.mxu0 0.0
    %6347 = vmatpush2.msra.mxu0 0.0
    %6348 = vmatprep.subr.mxu0 0.0
    %6349 = vmatpush2.msra.mxu0 0.0
    %6350 = vmatprep.subr.mxu0 0.0
    %6351 = vmatpush2.msra.mxu0 0.0
    %6352 = vmatprep.subr.mxu0 0.0
    %6353 = vmatpush2.msra.mxu0 0.0
    %6354 = vmatprep.subr.mxu0 0.0
    %6355 = vmatpush2.msra.mxu0 0.0
    %6356 = vmatprep.subr.mxu0 0.0
    %6357 = vmatpush2.msra.mxu0 0.0
    %6358 = vmatprep.subr.mxu0 0.0
    %6359 = vmatpush2.msra.mxu0 0.0
    %6360 = vmatprep.subr.mxu0 0.0
    %6361 = vmatpush2.msra.mxu0 0.0
    %6362 = vmatprep.subr.mxu0 0.0
    %6363 = vmatpush2.msra.mxu0 0.0
    %6364 = vmatprep.subr.mxu0 0.0
    %6365 = vmatpush2.msra.mxu0 0.0
    %6366 = vmatprep.subr.mxu0 0.0
    %6367 = vmatpush2.msra.mxu0 0.0
    %6368 = vmatprep.subr.mxu0 0.0
    %6369 = vmatpush2.msra.mxu0 0.0
    %6370 = vmatprep.subr.mxu0 0.0
    %6371 = vmatpush2.msra.mxu0 0.0
    %6372 = vmatprep.mubr.f32.mxu0 0.0
    %6373 = vmatmul.mubr.f32.gmra.mxu0 %v6306
    %v6374 = vpop.f32.mrf.mxu0
    %v6375 = vadd.f32 0.0, %v6374
    %v6376 = vpop.f32.mrf.mxu0
    %6377 = vdwg.mxu0
    %6378 = vrot.lane.b32.xlu0 %v5790, 104
    %v6379 = vpop.permute.xlu0 %6378
    %6380 = vrot.lane.b32.xlu0 %v5871, 104
    %v6381 = vpop.permute.xlu0 %6380
    %v6382 = vsel %vm688, %v6379, 0
    %v6384 = vsel %vm688, %v6381, 0
    %6386 = vmatprep.subr.mxu0 0.0
    %6387 = vmatpush1.xpose.msra.mxu0 0.0
    %6388 = vmatprep.subr.mxu0 0.0
    %6389 = vmatpush1.xpose.msra.mxu0 0.0
    %6390 = vmatprep.subr.mxu0 0.0
    %6391 = vmatpush1.xpose.msra.mxu0 0.0
    %6392 = vmatprep.subr.mxu0 0.0
    %6393 = vmatpush1.xpose.msra.mxu0 0.0
    %6394 = vmatprep.subr.mxu0 0.0
    %6395 = vmatpush1.xpose.msra.mxu0 0.0
    %6396 = vmatprep.subr.mxu0 0.0
    %6397 = vmatpush1.xpose.msra.mxu0 0.0
    %6398 = vmatprep.subr.mxu0 0.0
    %6399 = vmatpush1.xpose.msra.mxu0 0.0
    %6400 = vmatprep.subr.mxu0 0.0
    %6401 = vmatpush1.xpose.msra.mxu0 0.0
    %6402 = vmatprep.subr.mxu0 0.0
    %6403 = vmatpush1.xpose.msra.mxu0 0.0
    %6404 = vmatprep.subr.mxu0 0.0
    %6405 = vmatpush1.xpose.msra.mxu0 0.0
    %6406 = vmatprep.subr.mxu0 0.0
    %6407 = vmatpush1.xpose.msra.mxu0 0.0
    %6408 = vmatprep.subr.mxu0 0.0
    %6409 = vmatpush1.xpose.msra.mxu0 0.0
    %6410 = vmatprep.subr.mxu0 0.0
    %6411 = vmatpush1.xpose.msra.mxu0 0.0
    %6412 = vmatprep.subr.mxu0 0.0
    %6413 = vmatpush1.xpose.msra.mxu0 0.0
    %6414 = vmatprep.subr.mxu0 0.0
    %6415 = vmatpush1.xpose.msra.mxu0 0.0
    %6416 = vmatprep.subr.mxu0 0.0
    %6417 = vmatpush1.xpose.msra.mxu0 %v6384
    %6418 = vmatprep.subr.mxu0 0.0
    %6419 = vmatpush2.xpose.msra.mxu0 0.0
    %6420 = vmatprep.subr.mxu0 0.0
    %6421 = vmatpush2.xpose.msra.mxu0 0.0
    %6422 = vmatprep.subr.mxu0 0.0
    %6423 = vmatpush2.xpose.msra.mxu0 0.0
    %6424 = vmatprep.subr.mxu0 0.0
    %6425 = vmatpush2.xpose.msra.mxu0 0.0
    %6426 = vmatprep.subr.mxu0 0.0
    %6427 = vmatpush2.xpose.msra.mxu0 0.0
    %6428 = vmatprep.subr.mxu0 0.0
    %6429 = vmatpush2.xpose.msra.mxu0 0.0
    %6430 = vmatprep.subr.mxu0 0.0
    %6431 = vmatpush2.xpose.msra.mxu0 0.0
    %6432 = vmatprep.subr.mxu0 0.0
    %6433 = vmatpush2.xpose.msra.mxu0 0.0
    %6434 = vmatprep.subr.mxu0 0.0
    %6435 = vmatpush2.xpose.msra.mxu0 0.0
    %6436 = vmatprep.subr.mxu0 0.0
    %6437 = vmatpush2.xpose.msra.mxu0 0.0
    %6438 = vmatprep.subr.mxu0 0.0
    %6439 = vmatpush2.xpose.msra.mxu0 0.0
    %6440 = vmatprep.subr.mxu0 0.0
    %6441 = vmatpush2.xpose.msra.mxu0 0.0
    %6442 = vmatprep.subr.mxu0 0.0
    %6443 = vmatpush2.xpose.msra.mxu0 0.0
    %6444 = vmatprep.subr.mxu0 0.0
    %6445 = vmatpush2.xpose.msra.mxu0 0.0
    %6446 = vmatprep.subr.mxu0 0.0
    %6447 = vmatpush2.xpose.msra.mxu0 0.0
    %6448 = vmatprep.subr.mxu0 0.0
    %6449 = vmatpush2.xpose.msra.mxu0 0.0
    %6450 = vmatprep.mubr.f32.mxu0 0.0
    %6451 = vmatmul.mubr.f32.gmra.mxu0 %v6382
    %v6452 = vpop.f32.mrf.mxu0
    %v6453 = vadd.f32 0.0, %v6452
    %v6454 = vpop.f32.mrf.mxu0
    %6455 = vdwg.mxu0
    %v6456 = vmul.f32 %v6453, 0.35355338
    %v6457 = vadd.f32 %v6456, %v2439
    %v6458 = vsel %vm688, %v6457, -inf
    %6459 = vmax.xlane.f32.xlu0 %v6458
    %v6460 = vpop.xlane.xlu0 %6459
    %v6461 = vsub.f32 %v6457, %v6460
    %v6462 = vmul.f32 %v6461, 1.442695
    %v6463 = vpow.pop %v6462
    %v6464 = vsel %vm688, %v6463, 0.0
    %6465 = vadd.xlane.f32.xlu0 %v6464
    %v6466 = vpop.xlane.xlu0 %6465
    %v6467 = vrcp.pop %v6466
    %v6468 = vmul.f32 %v6463, %v6467
    %6469 = vrot.lane.b32.xlu0 %v5871, 72
    %v6470 = vpop.permute.xlu0 %6469
    %v6473 = vsel %vm688, %v6468, 0
    %6475 = vmatprep.subr.mxu0 0.0
    %6476 = vmatpush1.msra.mxu0 0.0
    %6477 = vmatprep.subr.mxu0 0.0
    %6478 = vmatpush1.msra.mxu0 0.0
    %6479 = vmatprep.subr.mxu0 0.0
    %6480 = vmatpush1.msra.mxu0 0.0
    %6481 = vmatprep.subr.mxu0 0.0
    %6482 = vmatpush1.msra.mxu0 0.0
    %6483 = vmatprep.subr.mxu0 0.0
    %6484 = vmatpush1.msra.mxu0 0.0
    %6485 = vmatprep.subr.mxu0 0.0
    %6486 = vmatpush1.msra.mxu0 0.0
    %6487 = vmatprep.subr.mxu0 0.0
    %6488 = vmatpush1.msra.mxu0 0.0
    %6489 = vmatprep.subr.mxu0 0.0
    %6490 = vmatpush1.msra.mxu0 0.0
    %6491 = vmatprep.subr.mxu0 0.0
    %6492 = vmatpush1.msra.mxu0 0.0
    %6493 = vmatprep.subr.mxu0 0.0
    %6494 = vmatpush1.msra.mxu0 0.0
    %6495 = vmatprep.subr.mxu0 0.0
    %6496 = vmatpush1.msra.mxu0 0.0
    %6497 = vmatprep.subr.mxu0 0.0
    %6498 = vmatpush1.msra.mxu0 0.0
    %6499 = vmatprep.subr.mxu0 0.0
    %6500 = vmatpush1.msra.mxu0 0.0
    %6501 = vmatprep.subr.mxu0 0.0
    %6502 = vmatpush1.msra.mxu0 0.0
    %6503 = vmatprep.subr.mxu0 0.0
    %6504 = vmatpush1.msra.mxu0 0.0
    %6505 = vmatprep.subr.mxu0 0.0
    %6506 = vmatpush1.msra.mxu0 %v6470
    %6507 = vmatprep.subr.mxu0 0.0
    %6508 = vmatpush2.msra.mxu0 0.0
    %6509 = vmatprep.subr.mxu0 0.0
    %6510 = vmatpush2.msra.mxu0 0.0
    %6511 = vmatprep.subr.mxu0 0.0
    %6512 = vmatpush2.msra.mxu0 0.0
    %6513 = vmatprep.subr.mxu0 0.0
    %6514 = vmatpush2.msra.mxu0 0.0
    %6515 = vmatprep.subr.mxu0 0.0
    %6516 = vmatpush2.msra.mxu0 0.0
    %6517 = vmatprep.subr.mxu0 0.0
    %6518 = vmatpush2.msra.mxu0 0.0
    %6519 = vmatprep.subr.mxu0 0.0
    %6520 = vmatpush2.msra.mxu0 0.0
    %6521 = vmatprep.subr.mxu0 0.0
    %6522 = vmatpush2.msra.mxu0 0.0
    %6523 = vmatprep.subr.mxu0 0.0
    %6524 = vmatpush2.msra.mxu0 0.0
    %6525 = vmatprep.subr.mxu0 0.0
    %6526 = vmatpush2.msra.mxu0 0.0
    %6527 = vmatprep.subr.mxu0 0.0
    %6528 = vmatpush2.msra.mxu0 0.0
    %6529 = vmatprep.subr.mxu0 0.0
    %6530 = vmatpush2.msra.mxu0 0.0
    %6531 = vmatprep.subr.mxu0 0.0
    %6532 = vmatpush2.msra.mxu0 0.0
    %6533 = vmatprep.subr.mxu0 0.0
    %6534 = vmatpush2.msra.mxu0 0.0
    %6535 = vmatprep.subr.mxu0 0.0
    %6536 = vmatpush2.msra.mxu0 0.0
    %6537 = vmatprep.subr.mxu0 0.0
    %6538 = vmatpush2.msra.mxu0 0.0
    %6539 = vmatprep.mubr.f32.mxu0 0.0
    %6540 = vmatmul.mubr.f32.gmra.mxu0 %v6473
    %v6541 = vpop.f32.mrf.mxu0
    %v6542 = vadd.f32 0.0, %v6541
    %v6543 = vpop.f32.mrf.mxu0
    %6544 = vdwg.mxu0
    %6546 = vrot.lane.b32.xlu0 %v6208, 8
    %v6547 = vpop.permute.xlu0 %6546
    %6550 = vrot.lane.b32.xlu0 %v6375, 16
    %v6551 = vpop.permute.xlu0 %6550
    %6554 = vrot.lane.b32.xlu0 %v6542, 24
    %v6555 = vpop.permute.xlu0 %6554
    %v6557 = vsel %vm688, %v6041, %v6547
    %v6558 = vsel %vm1366, %v6557, %v6551
    %v6559 = vsel %vm1368, %v6558, %v6555
    %v6561 = vsel %vm688, %v5795, 0
    %v6564 = vsel %vm688, %v5876, 0
    %6566 = vmatprep.subr.mxu0 0.0
    %6567 = vmatpush1.xpose.msra.mxu0 0.0
    %6568 = vmatprep.subr.mxu0 0.0
    %6569 = vmatpush1.xpose.msra.mxu0 0.0
    %6570 = vmatprep.subr.mxu0 0.0
    %6571 = vmatpush1.xpose.msra.mxu0 0.0
    %6572 = vmatprep.subr.mxu0 0.0
    %6573 = vmatpush1.xpose.msra.mxu0 0.0
    %6574 = vmatprep.subr.mxu0 0.0
    %6575 = vmatpush1.xpose.msra.mxu0 0.0
    %6576 = vmatprep.subr.mxu0 0.0
    %6577 = vmatpush1.xpose.msra.mxu0 0.0
    %6578 = vmatprep.subr.mxu0 0.0
    %6579 = vmatpush1.xpose.msra.mxu0 0.0
    %6580 = vmatprep.subr.mxu0 0.0
    %6581 = vmatpush1.xpose.msra.mxu0 0.0
    %6582 = vmatprep.subr.mxu0 0.0
    %6583 = vmatpush1.xpose.msra.mxu0 0.0
    %6584 = vmatprep.subr.mxu0 0.0
    %6585 = vmatpush1.xpose.msra.mxu0 0.0
    %6586 = vmatprep.subr.mxu0 0.0
    %6587 = vmatpush1.xpose.msra.mxu0 0.0
    %6588 = vmatprep.subr.mxu0 0.0
    %6589 = vmatpush1.xpose.msra.mxu0 0.0
    %6590 = vmatprep.subr.mxu0 0.0
    %6591 = vmatpush1.xpose.msra.mxu0 0.0
    %6592 = vmatprep.subr.mxu0 0.0
    %6593 = vmatpush1.xpose.msra.mxu0 0.0
    %6594 = vmatprep.subr.mxu0 0.0
    %6595 = vmatpush1.xpose.msra.mxu0 0.0
    %6596 = vmatprep.subr.mxu0 0.0
    %6597 = vmatpush1.xpose.msra.mxu0 %v6564
    %6598 = vmatprep.subr.mxu0 0.0
    %6599 = vmatpush2.xpose.msra.mxu0 0.0
    %6600 = vmatprep.subr.mxu0 0.0
    %6601 = vmatpush2.xpose.msra.mxu0 0.0
    %6602 = vmatprep.subr.mxu0 0.0
    %6603 = vmatpush2.xpose.msra.mxu0 0.0
    %6604 = vmatprep.subr.mxu0 0.0
    %6605 = vmatpush2.xpose.msra.mxu0 0.0
    %6606 = vmatprep.subr.mxu0 0.0
    %6607 = vmatpush2.xpose.msra.mxu0 0.0
    %6608 = vmatprep.subr.mxu0 0.0
    %6609 = vmatpush2.xpose.msra.mxu0 0.0
    %6610 = vmatprep.subr.mxu0 0.0
    %6611 = vmatpush2.xpose.msra.mxu0 0.0
    %6612 = vmatprep.subr.mxu0 0.0
    %6613 = vmatpush2.xpose.msra.mxu0 0.0
    %6614 = vmatprep.subr.mxu0 0.0
    %6615 = vmatpush2.xpose.msra.mxu0 0.0
    %6616 = vmatprep.subr.mxu0 0.0
    %6617 = vmatpush2.xpose.msra.mxu0 0.0
    %6618 = vmatprep.subr.mxu0 0.0
    %6619 = vmatpush2.xpose.msra.mxu0 0.0
    %6620 = vmatprep.subr.mxu0 0.0
    %6621 = vmatpush2.xpose.msra.mxu0 0.0
    %6622 = vmatprep.subr.mxu0 0.0
    %6623 = vmatpush2.xpose.msra.mxu0 0.0
    %6624 = vmatprep.subr.mxu0 0.0
    %6625 = vmatpush2.xpose.msra.mxu0 0.0
    %6626 = vmatprep.subr.mxu0 0.0
    %6627 = vmatpush2.xpose.msra.mxu0 0.0
    %6628 = vmatprep.subr.mxu0 0.0
    %6629 = vmatpush2.xpose.msra.mxu0 0.0
    %6630 = vmatprep.mubr.f32.mxu0 0.0
    %6631 = vmatmul.mubr.f32.gmra.mxu0 %v6561
    %v6632 = vpop.f32.mrf.mxu0
    %v6633 = vadd.f32 0.0, %v6632
    %v6634 = vpop.f32.mrf.mxu0
    %6635 = vdwg.mxu0
    %v6636 = vmul.f32 %v6633, 0.35355338
    %v6637 = vadd.f32 %v6636, %v3126
    %v6638 = vsel %vm688, %v6637, -inf
    %6639 = vmax.xlane.f32.xlu0 %v6638
    %v6640 = vpop.xlane.xlu0 %6639
    %v6641 = vsub.f32 %v6637, %v6640
    %v6642 = vmul.f32 %v6641, 1.442695
    %v6643 = vpow.pop %v6642
    %v6644 = vsel %vm688, %v6643, 0.0
    %6645 = vadd.xlane.f32.xlu0 %v6644
    %v6646 = vpop.xlane.xlu0 %6645
    %v6647 = vrcp.pop %v6646
    %v6648 = vmul.f32 %v6643, %v6647
    %6649 = vrot.lane.b32.xlu0 %v5876, 96
    %v6650 = vpop.permute.xlu0 %6649
    %v6653 = vsel %vm688, %v6648, 0
    %6655 = vmatprep.subr.mxu0 0.0
    %6656 = vmatpush1.msra.mxu0 0.0
    %6657 = vmatprep.subr.mxu0 0.0
    %6658 = vmatpush1.msra.mxu0 0.0
    %6659 = vmatprep.subr.mxu0 0.0
    %6660 = vmatpush1.msra.mxu0 0.0
    %6661 = vmatprep.subr.mxu0 0.0
    %6662 = vmatpush1.msra.mxu0 0.0
    %6663 = vmatprep.subr.mxu0 0.0
    %6664 = vmatpush1.msra.mxu0 0.0
    %6665 = vmatprep.subr.mxu0 0.0
    %6666 = vmatpush1.msra.mxu0 0.0
    %6667 = vmatprep.subr.mxu0 0.0
    %6668 = vmatpush1.msra.mxu0 0.0
    %6669 = vmatprep.subr.mxu0 0.0
    %6670 = vmatpush1.msra.mxu0 0.0
    %6671 = vmatprep.subr.mxu0 0.0
    %6672 = vmatpush1.msra.mxu0 0.0
    %6673 = vmatprep.subr.mxu0 0.0
    %6674 = vmatpush1.msra.mxu0 0.0
    %6675 = vmatprep.subr.mxu0 0.0
    %6676 = vmatpush1.msra.mxu0 0.0
    %6677 = vmatprep.subr.mxu0 0.0
    %6678 = vmatpush1.msra.mxu0 0.0
    %6679 = vmatprep.subr.mxu0 0.0
    %6680 = vmatpush1.msra.mxu0 0.0
    %6681 = vmatprep.subr.mxu0 0.0
    %6682 = vmatpush1.msra.mxu0 0.0
    %6683 = vmatprep.subr.mxu0 0.0
    %6684 = vmatpush1.msra.mxu0 0.0
    %6685 = vmatprep.subr.mxu0 0.0
    %6686 = vmatpush1.msra.mxu0 %v6650
    %6687 = vmatprep.subr.mxu0 0.0
    %6688 = vmatpush2.msra.mxu0 0.0
    %6689 = vmatprep.subr.mxu0 0.0
    %6690 = vmatpush2.msra.mxu0 0.0
    %6691 = vmatprep.subr.mxu0 0.0
    %6692 = vmatpush2.msra.mxu0 0.0
    %6693 = vmatprep.subr.mxu0 0.0
    %6694 = vmatpush2.msra.mxu0 0.0
    %6695 = vmatprep.subr.mxu0 0.0
    %6696 = vmatpush2.msra.mxu0 0.0
    %6697 = vmatprep.subr.mxu0 0.0
    %6698 = vmatpush2.msra.mxu0 0.0
    %6699 = vmatprep.subr.mxu0 0.0
    %6700 = vmatpush2.msra.mxu0 0.0
    %6701 = vmatprep.subr.mxu0 0.0
    %6702 = vmatpush2.msra.mxu0 0.0
    %6703 = vmatprep.subr.mxu0 0.0
    %6704 = vmatpush2.msra.mxu0 0.0
    %6705 = vmatprep.subr.mxu0 0.0
    %6706 = vmatpush2.msra.mxu0 0.0
    %6707 = vmatprep.subr.mxu0 0.0
    %6708 = vmatpush2.msra.mxu0 0.0
    %6709 = vmatprep.subr.mxu0 0.0
    %6710 = vmatpush2.msra.mxu0 0.0
    %6711 = vmatprep.subr.mxu0 0.0
    %6712 = vmatpush2.msra.mxu0 0.0
    %6713 = vmatprep.subr.mxu0 0.0
    %6714 = vmatpush2.msra.mxu0 0.0
    %6715 = vmatprep.subr.mxu0 0.0
    %6716 = vmatpush2.msra.mxu0 0.0
    %6717 = vmatprep.subr.mxu0 0.0
    %6718 = vmatpush2.msra.mxu0 0.0
    %6719 = vmatprep.mubr.f32.mxu0 0.0
    %6720 = vmatmul.mubr.f32.gmra.mxu0 %v6653
    %v6721 = vpop.f32.mrf.mxu0
    %v6722 = vadd.f32 0.0, %v6721
    %v6723 = vpop.f32.mrf.mxu0
    %6724 = vdwg.mxu0
    %6725 = vrot.lane.b32.xlu0 %v5795, 120
    %v6726 = vpop.permute.xlu0 %6725
    %6727 = vrot.lane.b32.xlu0 %v5876, 120
    %v6728 = vpop.permute.xlu0 %6727
    %v6729 = vsel %vm688, %v6726, 0
    %v6731 = vsel %vm688, %v6728, 0
    %6733 = vmatprep.subr.mxu0 0.0
    %6734 = vmatpush1.xpose.msra.mxu0 0.0
    %6735 = vmatprep.subr.mxu0 0.0
    %6736 = vmatpush1.xpose.msra.mxu0 0.0
    %6737 = vmatprep.subr.mxu0 0.0
    %6738 = vmatpush1.xpose.msra.mxu0 0.0
    %6739 = vmatprep.subr.mxu0 0.0
    %6740 = vmatpush1.xpose.msra.mxu0 0.0
    %6741 = vmatprep.subr.mxu0 0.0
    %6742 = vmatpush1.xpose.msra.mxu0 0.0
    %6743 = vmatprep.subr.mxu0 0.0
    %6744 = vmatpush1.xpose.msra.mxu0 0.0
    %6745 = vmatprep.subr.mxu0 0.0
    %6746 = vmatpush1.xpose.msra.mxu0 0.0
    %6747 = vmatprep.subr.mxu0 0.0
    %6748 = vmatpush1.xpose.msra.mxu0 0.0
    %6749 = vmatprep.subr.mxu0 0.0
    %6750 = vmatpush1.xpose.msra.mxu0 0.0
    %6751 = vmatprep.subr.mxu0 0.0
    %6752 = vmatpush1.xpose.msra.mxu0 0.0
    %6753 = vmatprep.subr.mxu0 0.0
    %6754 = vmatpush1.xpose.msra.mxu0 0.0
    %6755 = vmatprep.subr.mxu0 0.0
    %6756 = vmatpush1.xpose.msra.mxu0 0.0
    %6757 = vmatprep.subr.mxu0 0.0
    %6758 = vmatpush1.xpose.msra.mxu0 0.0
    %6759 = vmatprep.subr.mxu0 0.0
    %6760 = vmatpush1.xpose.msra.mxu0 0.0
    %6761 = vmatprep.subr.mxu0 0.0
    %6762 = vmatpush1.xpose.msra.mxu0 0.0
    %6763 = vmatprep.subr.mxu0 0.0
    %6764 = vmatpush1.xpose.msra.mxu0 %v6731
    %6765 = vmatprep.subr.mxu0 0.0
    %6766 = vmatpush2.xpose.msra.mxu0 0.0
    %6767 = vmatprep.subr.mxu0 0.0
    %6768 = vmatpush2.xpose.msra.mxu0 0.0
    %6769 = vmatprep.subr.mxu0 0.0
    %6770 = vmatpush2.xpose.msra.mxu0 0.0
    %6771 = vmatprep.subr.mxu0 0.0
    %6772 = vmatpush2.xpose.msra.mxu0 0.0
    %6773 = vmatprep.subr.mxu0 0.0
    %6774 = vmatpush2.xpose.msra.mxu0 0.0
    %6775 = vmatprep.subr.mxu0 0.0
    %6776 = vmatpush2.xpose.msra.mxu0 0.0
    %6777 = vmatprep.subr.mxu0 0.0
    %6778 = vmatpush2.xpose.msra.mxu0 0.0
    %6779 = vmatprep.subr.mxu0 0.0
    %6780 = vmatpush2.xpose.msra.mxu0 0.0
    %6781 = vmatprep.subr.mxu0 0.0
    %6782 = vmatpush2.xpose.msra.mxu0 0.0
    %6783 = vmatprep.subr.mxu0 0.0
    %6784 = vmatpush2.xpose.msra.mxu0 0.0
    %6785 = vmatprep.subr.mxu0 0.0
    %6786 = vmatpush2.xpose.msra.mxu0 0.0
    %6787 = vmatprep.subr.mxu0 0.0
    %6788 = vmatpush2.xpose.msra.mxu0 0.0
    %6789 = vmatprep.subr.mxu0 0.0
    %6790 = vmatpush2.xpose.msra.mxu0 0.0
    %6791 = vmatprep.subr.mxu0 0.0
    %6792 = vmatpush2.xpose.msra.mxu0 0.0
    %6793 = vmatprep.subr.mxu0 0.0
    %6794 = vmatpush2.xpose.msra.mxu0 0.0
    %6795 = vmatprep.subr.mxu0 0.0
    %6796 = vmatpush2.xpose.msra.mxu0 0.0
    %6797 = vmatprep.mubr.f32.mxu0 0.0
    %6798 = vmatmul.mubr.f32.gmra.mxu0 %v6729
    %v6799 = vpop.f32.mrf.mxu0
    %v6800 = vadd.f32 0.0, %v6799
    %v6801 = vpop.f32.mrf.mxu0
    %6802 = vdwg.mxu0
    %v6803 = vmul.f32 %v6800, 0.35355338
    %v6804 = vadd.f32 %v6803, %v3126
    %v6805 = vsel %vm688, %v6804, -inf
    %6806 = vmax.xlane.f32.xlu0 %v6805
    %v6807 = vpop.xlane.xlu0 %6806
    %v6808 = vsub.f32 %v6804, %v6807
    %v6809 = vmul.f32 %v6808, 1.442695
    %v6810 = vpow.pop %v6809
    %v6811 = vsel %vm688, %v6810, 0.0
    %6812 = vadd.xlane.f32.xlu0 %v6811
    %v6813 = vpop.xlane.xlu0 %6812
    %v6814 = vrcp.pop %v6813
    %v6815 = vmul.f32 %v6810, %v6814
    %6816 = vrot.lane.b32.xlu0 %v5876, 88
    %v6817 = vpop.permute.xlu0 %6816
    %v6820 = vsel %vm688, %v6815, 0
    %6822 = vmatprep.subr.mxu0 0.0
    %6823 = vmatpush1.msra.mxu0 0.0
    %6824 = vmatprep.subr.mxu0 0.0
    %6825 = vmatpush1.msra.mxu0 0.0
    %6826 = vmatprep.subr.mxu0 0.0
    %6827 = vmatpush1.msra.mxu0 0.0
    %6828 = vmatprep.subr.mxu0 0.0
    %6829 = vmatpush1.msra.mxu0 0.0
    %6830 = vmatprep.subr.mxu0 0.0
    %6831 = vmatpush1.msra.mxu0 0.0
    %6832 = vmatprep.subr.mxu0 0.0
    %6833 = vmatpush1.msra.mxu0 0.0
    %6834 = vmatprep.subr.mxu0 0.0
    %6835 = vmatpush1.msra.mxu0 0.0
    %6836 = vmatprep.subr.mxu0 0.0
    %6837 = vmatpush1.msra.mxu0 0.0
    %6838 = vmatprep.subr.mxu0 0.0
    %6839 = vmatpush1.msra.mxu0 0.0
    %6840 = vmatprep.subr.mxu0 0.0
    %6841 = vmatpush1.msra.mxu0 0.0
    %6842 = vmatprep.subr.mxu0 0.0
    %6843 = vmatpush1.msra.mxu0 0.0
    %6844 = vmatprep.subr.mxu0 0.0
    %6845 = vmatpush1.msra.mxu0 0.0
    %6846 = vmatprep.subr.mxu0 0.0
    %6847 = vmatpush1.msra.mxu0 0.0
    %6848 = vmatprep.subr.mxu0 0.0
    %6849 = vmatpush1.msra.mxu0 0.0
    %6850 = vmatprep.subr.mxu0 0.0
    %6851 = vmatpush1.msra.mxu0 0.0
    %6852 = vmatprep.subr.mxu0 0.0
    %6853 = vmatpush1.msra.mxu0 %v6817
    %6854 = vmatprep.subr.mxu0 0.0
    %6855 = vmatpush2.msra.mxu0 0.0
    %6856 = vmatprep.subr.mxu0 0.0
    %6857 = vmatpush2.msra.mxu0 0.0
    %6858 = vmatprep.subr.mxu0 0.0
    %6859 = vmatpush2.msra.mxu0 0.0
    %6860 = vmatprep.subr.mxu0 0.0
    %6861 = vmatpush2.msra.mxu0 0.0
    %6862 = vmatprep.subr.mxu0 0.0
    %6863 = vmatpush2.msra.mxu0 0.0
    %6864 = vmatprep.subr.mxu0 0.0
    %6865 = vmatpush2.msra.mxu0 0.0
    %6866 = vmatprep.subr.mxu0 0.0
    %6867 = vmatpush2.msra.mxu0 0.0
    %6868 = vmatprep.subr.mxu0 0.0
    %6869 = vmatpush2.msra.mxu0 0.0
    %6870 = vmatprep.subr.mxu0 0.0
    %6871 = vmatpush2.msra.mxu0 0.0
    %6872 = vmatprep.subr.mxu0 0.0
    %6873 = vmatpush2.msra.mxu0 0.0
    %6874 = vmatprep.subr.mxu0 0.0
    %6875 = vmatpush2.msra.mxu0 0.0
    %6876 = vmatprep.subr.mxu0 0.0
    %6877 = vmatpush2.msra.mxu0 0.0
    %6878 = vmatprep.subr.mxu0 0.0
    %6879 = vmatpush2.msra.mxu0 0.0
    %6880 = vmatprep.subr.mxu0 0.0
    %6881 = vmatpush2.msra.mxu0 0.0
    %6882 = vmatprep.subr.mxu0 0.0
    %6883 = vmatpush2.msra.mxu0 0.0
    %6884 = vmatprep.subr.mxu0 0.0
    %6885 = vmatpush2.msra.mxu0 0.0
    %6886 = vmatprep.mubr.f32.mxu0 0.0
    %6887 = vmatmul.mubr.f32.gmra.mxu0 %v6820
    %v6888 = vpop.f32.mrf.mxu0
    %v6889 = vadd.f32 0.0, %v6888
    %v6890 = vpop.f32.mrf.mxu0
    %6891 = vdwg.mxu0
    %6892 = vrot.lane.b32.xlu0 %v5795, 112
    %v6893 = vpop.permute.xlu0 %6892
    %6894 = vrot.lane.b32.xlu0 %v5876, 112
    %v6895 = vpop.permute.xlu0 %6894
    %v6896 = vsel %vm688, %v6893, 0
    %v6898 = vsel %vm688, %v6895, 0
    %6900 = vmatprep.subr.mxu0 0.0
    %6901 = vmatpush1.xpose.msra.mxu0 0.0
    %6902 = vmatprep.subr.mxu0 0.0
    %6903 = vmatpush1.xpose.msra.mxu0 0.0
    %6904 = vmatprep.subr.mxu0 0.0
    %6905 = vmatpush1.xpose.msra.mxu0 0.0
    %6906 = vmatprep.subr.mxu0 0.0
    %6907 = vmatpush1.xpose.msra.mxu0 0.0
    %6908 = vmatprep.subr.mxu0 0.0
    %6909 = vmatpush1.xpose.msra.mxu0 0.0
    %6910 = vmatprep.subr.mxu0 0.0
    %6911 = vmatpush1.xpose.msra.mxu0 0.0
    %6912 = vmatprep.subr.mxu0 0.0
    %6913 = vmatpush1.xpose.msra.mxu0 0.0
    %6914 = vmatprep.subr.mxu0 0.0
    %6915 = vmatpush1.xpose.msra.mxu0 0.0
    %6916 = vmatprep.subr.mxu0 0.0
    %6917 = vmatpush1.xpose.msra.mxu0 0.0
    %6918 = vmatprep.subr.mxu0 0.0
    %6919 = vmatpush1.xpose.msra.mxu0 0.0
    %6920 = vmatprep.subr.mxu0 0.0
    %6921 = vmatpush1.xpose.msra.mxu0 0.0
    %6922 = vmatprep.subr.mxu0 0.0
    %6923 = vmatpush1.xpose.msra.mxu0 0.0
    %6924 = vmatprep.subr.mxu0 0.0
    %6925 = vmatpush1.xpose.msra.mxu0 0.0
    %6926 = vmatprep.subr.mxu0 0.0
    %6927 = vmatpush1.xpose.msra.mxu0 0.0
    %6928 = vmatprep.subr.mxu0 0.0
    %6929 = vmatpush1.xpose.msra.mxu0 0.0
    %6930 = vmatprep.subr.mxu0 0.0
    %6931 = vmatpush1.xpose.msra.mxu0 %v6898
    %6932 = vmatprep.subr.mxu0 0.0
    %6933 = vmatpush2.xpose.msra.mxu0 0.0
    %6934 = vmatprep.subr.mxu0 0.0
    %6935 = vmatpush2.xpose.msra.mxu0 0.0
    %6936 = vmatprep.subr.mxu0 0.0
    %6937 = vmatpush2.xpose.msra.mxu0 0.0
    %6938 = vmatprep.subr.mxu0 0.0
    %6939 = vmatpush2.xpose.msra.mxu0 0.0
    %6940 = vmatprep.subr.mxu0 0.0
    %6941 = vmatpush2.xpose.msra.mxu0 0.0
    %6942 = vmatprep.subr.mxu0 0.0
    %6943 = vmatpush2.xpose.msra.mxu0 0.0
    %6944 = vmatprep.subr.mxu0 0.0
    %6945 = vmatpush2.xpose.msra.mxu0 0.0
    %6946 = vmatprep.subr.mxu0 0.0
    %6947 = vmatpush2.xpose.msra.mxu0 0.0
    %6948 = vmatprep.subr.mxu0 0.0
    %6949 = vmatpush2.xpose.msra.mxu0 0.0
    %6950 = vmatprep.subr.mxu0 0.0
    %6951 = vmatpush2.xpose.msra.mxu0 0.0
    %6952 = vmatprep.subr.mxu0 0.0
    %6953 = vmatpush2.xpose.msra.mxu0 0.0
    %6954 = vmatprep.subr.mxu0 0.0
    %6955 = vmatpush2.xpose.msra.mxu0 0.0
    %6956 = vmatprep.subr.mxu0 0.0
    %6957 = vmatpush2.xpose.msra.mxu0 0.0
    %6958 = vmatprep.subr.mxu0 0.0
    %6959 = vmatpush2.xpose.msra.mxu0 0.0
    %6960 = vmatprep.subr.mxu0 0.0
    %6961 = vmatpush2.xpose.msra.mxu0 0.0
    %6962 = vmatprep.subr.mxu0 0.0
    %6963 = vmatpush2.xpose.msra.mxu0 0.0
    %6964 = vmatprep.mubr.f32.mxu0 0.0
    %6965 = vmatmul.mubr.f32.gmra.mxu0 %v6896
    %v6966 = vpop.f32.mrf.mxu0
    %v6967 = vadd.f32 0.0, %v6966
    %v6968 = vpop.f32.mrf.mxu0
    %6969 = vdwg.mxu0
    %v6970 = vmul.f32 %v6967, 0.35355338
    %v6971 = vadd.f32 %v6970, %v3126
    %v6972 = vsel %vm688, %v6971, -inf
    %6973 = vmax.xlane.f32.xlu0 %v6972
    %v6974 = vpop.xlane.xlu0 %6973
    %v6975 = vsub.f32 %v6971, %v6974
    %v6976 = vmul.f32 %v6975, 1.442695
    %v6977 = vpow.pop %v6976
    %v6978 = vsel %vm688, %v6977, 0.0
    %6979 = vadd.xlane.f32.xlu0 %v6978
    %v6980 = vpop.xlane.xlu0 %6979
    %v6981 = vrcp.pop %v6980
    %v6982 = vmul.f32 %v6977, %v6981
    %6983 = vrot.lane.b32.xlu0 %v5876, 80
    %v6984 = vpop.permute.xlu0 %6983
    %v6987 = vsel %vm688, %v6982, 0
    %6989 = vmatprep.subr.mxu0 0.0
    %6990 = vmatpush1.msra.mxu0 0.0
    %6991 = vmatprep.subr.mxu0 0.0
    %6992 = vmatpush1.msra.mxu0 0.0
    %6993 = vmatprep.subr.mxu0 0.0
    %6994 = vmatpush1.msra.mxu0 0.0
    %6995 = vmatprep.subr.mxu0 0.0
    %6996 = vmatpush1.msra.mxu0 0.0
    %6997 = vmatprep.subr.mxu0 0.0
    %6998 = vmatpush1.msra.mxu0 0.0
    %6999 = vmatprep.subr.mxu0 0.0
    %7000 = vmatpush1.msra.mxu0 0.0
    %7001 = vmatprep.subr.mxu0 0.0
    %7002 = vmatpush1.msra.mxu0 0.0
    %7003 = vmatprep.subr.mxu0 0.0
    %7004 = vmatpush1.msra.mxu0 0.0
    %7005 = vmatprep.subr.mxu0 0.0
    %7006 = vmatpush1.msra.mxu0 0.0
    %7007 = vmatprep.subr.mxu0 0.0
    %7008 = vmatpush1.msra.mxu0 0.0
    %7009 = vmatprep.subr.mxu0 0.0
    %7010 = vmatpush1.msra.mxu0 0.0
    %7011 = vmatprep.subr.mxu0 0.0
    %7012 = vmatpush1.msra.mxu0 0.0
    %7013 = vmatprep.subr.mxu0 0.0
    %7014 = vmatpush1.msra.mxu0 0.0
    %7015 = vmatprep.subr.mxu0 0.0
    %7016 = vmatpush1.msra.mxu0 0.0
    %7017 = vmatprep.subr.mxu0 0.0
    %7018 = vmatpush1.msra.mxu0 0.0
    %7019 = vmatprep.subr.mxu0 0.0
    %7020 = vmatpush1.msra.mxu0 %v6984
    %7021 = vmatprep.subr.mxu0 0.0
    %7022 = vmatpush2.msra.mxu0 0.0
    %7023 = vmatprep.subr.mxu0 0.0
    %7024 = vmatpush2.msra.mxu0 0.0
    %7025 = vmatprep.subr.mxu0 0.0
    %7026 = vmatpush2.msra.mxu0 0.0
    %7027 = vmatprep.subr.mxu0 0.0
    %7028 = vmatpush2.msra.mxu0 0.0
    %7029 = vmatprep.subr.mxu0 0.0
    %7030 = vmatpush2.msra.mxu0 0.0
    %7031 = vmatprep.subr.mxu0 0.0
    %7032 = vmatpush2.msra.mxu0 0.0
    %7033 = vmatprep.subr.mxu0 0.0
    %7034 = vmatpush2.msra.mxu0 0.0
    %7035 = vmatprep.subr.mxu0 0.0
    %7036 = vmatpush2.msra.mxu0 0.0
    %7037 = vmatprep.subr.mxu0 0.0
    %7038 = vmatpush2.msra.mxu0 0.0
    %7039 = vmatprep.subr.mxu0 0.0
    %7040 = vmatpush2.msra.mxu0 0.0
    %7041 = vmatprep.subr.mxu0 0.0
    %7042 = vmatpush2.msra.mxu0 0.0
    %7043 = vmatprep.subr.mxu0 0.0
    %7044 = vmatpush2.msra.mxu0 0.0
    %7045 = vmatprep.subr.mxu0 0.0
    %7046 = vmatpush2.msra.mxu0 0.0
    %7047 = vmatprep.subr.mxu0 0.0
    %7048 = vmatpush2.msra.mxu0 0.0
    %7049 = vmatprep.subr.mxu0 0.0
    %7050 = vmatpush2.msra.mxu0 0.0
    %7051 = vmatprep.subr.mxu0 0.0
    %7052 = vmatpush2.msra.mxu0 0.0
    %7053 = vmatprep.mubr.f32.mxu0 0.0
    %7054 = vmatmul.mubr.f32.gmra.mxu0 %v6987
    %v7055 = vpop.f32.mrf.mxu0
    %v7056 = vadd.f32 0.0, %v7055
    %v7057 = vpop.f32.mrf.mxu0
    %7058 = vdwg.mxu0
    %7059 = vrot.lane.b32.xlu0 %v5795, 104
    %v7060 = vpop.permute.xlu0 %7059
    %7061 = vrot.lane.b32.xlu0 %v5876, 104
    %v7062 = vpop.permute.xlu0 %7061
    %v7063 = vsel %vm688, %v7060, 0
    %v7065 = vsel %vm688, %v7062, 0
    %7067 = vmatprep.subr.mxu0 0.0
    %7068 = vmatpush1.xpose.msra.mxu0 0.0
    %7069 = vmatprep.subr.mxu0 0.0
    %7070 = vmatpush1.xpose.msra.mxu0 0.0
    %7071 = vmatprep.subr.mxu0 0.0
    %7072 = vmatpush1.xpose.msra.mxu0 0.0
    %7073 = vmatprep.subr.mxu0 0.0
    %7074 = vmatpush1.xpose.msra.mxu0 0.0
    %7075 = vmatprep.subr.mxu0 0.0
    %7076 = vmatpush1.xpose.msra.mxu0 0.0
    %7077 = vmatprep.subr.mxu0 0.0
    %7078 = vmatpush1.xpose.msra.mxu0 0.0
    %7079 = vmatprep.subr.mxu0 0.0
    %7080 = vmatpush1.xpose.msra.mxu0 0.0
    %7081 = vmatprep.subr.mxu0 0.0
    %7082 = vmatpush1.xpose.msra.mxu0 0.0
    %7083 = vmatprep.subr.mxu0 0.0
    %7084 = vmatpush1.xpose.msra.mxu0 0.0
    %7085 = vmatprep.subr.mxu0 0.0
    %7086 = vmatpush1.xpose.msra.mxu0 0.0
    %7087 = vmatprep.subr.mxu0 0.0
    %7088 = vmatpush1.xpose.msra.mxu0 0.0
    %7089 = vmatprep.subr.mxu0 0.0
    %7090 = vmatpush1.xpose.msra.mxu0 0.0
    %7091 = vmatprep.subr.mxu0 0.0
    %7092 = vmatpush1.xpose.msra.mxu0 0.0
    %7093 = vmatprep.subr.mxu0 0.0
    %7094 = vmatpush1.xpose.msra.mxu0 0.0
    %7095 = vmatprep.subr.mxu0 0.0
    %7096 = vmatpush1.xpose.msra.mxu0 0.0
    %7097 = vmatprep.subr.mxu0 0.0
    %7098 = vmatpush1.xpose.msra.mxu0 %v7065
    %7099 = vmatprep.subr.mxu0 0.0
    %7100 = vmatpush2.xpose.msra.mxu0 0.0
    %7101 = vmatprep.subr.mxu0 0.0
    %7102 = vmatpush2.xpose.msra.mxu0 0.0
    %7103 = vmatprep.subr.mxu0 0.0
    %7104 = vmatpush2.xpose.msra.mxu0 0.0
    %7105 = vmatprep.subr.mxu0 0.0
    %7106 = vmatpush2.xpose.msra.mxu0 0.0
    %7107 = vmatprep.subr.mxu0 0.0
    %7108 = vmatpush2.xpose.msra.mxu0 0.0
    %7109 = vmatprep.subr.mxu0 0.0
    %7110 = vmatpush2.xpose.msra.mxu0 0.0
    %7111 = vmatprep.subr.mxu0 0.0
    %7112 = vmatpush2.xpose.msra.mxu0 0.0
    %7113 = vmatprep.subr.mxu0 0.0
    %7114 = vmatpush2.xpose.msra.mxu0 0.0
    %7115 = vmatprep.subr.mxu0 0.0
    %7116 = vmatpush2.xpose.msra.mxu0 0.0
    %7117 = vmatprep.subr.mxu0 0.0
    %7118 = vmatpush2.xpose.msra.mxu0 0.0
    %7119 = vmatprep.subr.mxu0 0.0
    %7120 = vmatpush2.xpose.msra.mxu0 0.0
    %7121 = vmatprep.subr.mxu0 0.0
    %7122 = vmatpush2.xpose.msra.mxu0 0.0
    %7123 = vmatprep.subr.mxu0 0.0
    %7124 = vmatpush2.xpose.msra.mxu0 0.0
    %7125 = vmatprep.subr.mxu0 0.0
    %7126 = vmatpush2.xpose.msra.mxu0 0.0
    %7127 = vmatprep.subr.mxu0 0.0
    %7128 = vmatpush2.xpose.msra.mxu0 0.0
    %7129 = vmatprep.subr.mxu0 0.0
    %7130 = vmatpush2.xpose.msra.mxu0 0.0
    %7131 = vmatprep.mubr.f32.mxu0 0.0
    %7132 = vmatmul.mubr.f32.gmra.mxu0 %v7063
    %v7133 = vpop.f32.mrf.mxu0
    %v7134 = vadd.f32 0.0, %v7133
    %v7135 = vpop.f32.mrf.mxu0
    %7136 = vdwg.mxu0
    %v7137 = vmul.f32 %v7134, 0.35355338
    %v7138 = vadd.f32 %v7137, %v3126
    %v7139 = vsel %vm688, %v7138, -inf
    %7140 = vmax.xlane.f32.xlu0 %v7139
    %v7141 = vpop.xlane.xlu0 %7140
    %v7142 = vsub.f32 %v7138, %v7141
    %v7143 = vmul.f32 %v7142, 1.442695
    %v7144 = vpow.pop %v7143
    %v7145 = vsel %vm688, %v7144, 0.0
    %7146 = vadd.xlane.f32.xlu0 %v7145
    %v7147 = vpop.xlane.xlu0 %7146
    %v7148 = vrcp.pop %v7147
    %v7149 = vmul.f32 %v7144, %v7148
    %7150 = vrot.lane.b32.xlu0 %v5876, 72
    %v7151 = vpop.permute.xlu0 %7150
    %v7154 = vsel %vm688, %v7149, 0
    %7156 = vmatprep.subr.mxu0 0.0
    %7157 = vmatpush1.msra.mxu0 0.0
    %7158 = vmatprep.subr.mxu0 0.0
    %7159 = vmatpush1.msra.mxu0 0.0
    %7160 = vmatprep.subr.mxu0 0.0
    %7161 = vmatpush1.msra.mxu0 0.0
    %7162 = vmatprep.subr.mxu0 0.0
    %7163 = vmatpush1.msra.mxu0 0.0
    %7164 = vmatprep.subr.mxu0 0.0
    %7165 = vmatpush1.msra.mxu0 0.0
    %7166 = vmatprep.subr.mxu0 0.0
    %7167 = vmatpush1.msra.mxu0 0.0
    %7168 = vmatprep.subr.mxu0 0.0
    %7169 = vmatpush1.msra.mxu0 0.0
    %7170 = vmatprep.subr.mxu0 0.0
    %7171 = vmatpush1.msra.mxu0 0.0
    %7172 = vmatprep.subr.mxu0 0.0
    %7173 = vmatpush1.msra.mxu0 0.0
    %7174 = vmatprep.subr.mxu0 0.0
    %7175 = vmatpush1.msra.mxu0 0.0
    %7176 = vmatprep.subr.mxu0 0.0
    %7177 = vmatpush1.msra.mxu0 0.0
    %7178 = vmatprep.subr.mxu0 0.0
    %7179 = vmatpush1.msra.mxu0 0.0
    %7180 = vmatprep.subr.mxu0 0.0
    %7181 = vmatpush1.msra.mxu0 0.0
    %7182 = vmatprep.subr.mxu0 0.0
    %7183 = vmatpush1.msra.mxu0 0.0
    %7184 = vmatprep.subr.mxu0 0.0
    %7185 = vmatpush1.msra.mxu0 0.0
    %7186 = vmatprep.subr.mxu0 0.0
    %7187 = vmatpush1.msra.mxu0 %v7151
    %7188 = vmatprep.subr.mxu0 0.0
    %7189 = vmatpush2.msra.mxu0 0.0
    %7190 = vmatprep.subr.mxu0 0.0
    %7191 = vmatpush2.msra.mxu0 0.0
    %7192 = vmatprep.subr.mxu0 0.0
    %7193 = vmatpush2.msra.mxu0 0.0
    %7194 = vmatprep.subr.mxu0 0.0
    %7195 = vmatpush2.msra.mxu0 0.0
    %7196 = vmatprep.subr.mxu0 0.0
    %7197 = vmatpush2.msra.mxu0 0.0
    %7198 = vmatprep.subr.mxu0 0.0
    %7199 = vmatpush2.msra.mxu0 0.0
    %7200 = vmatprep.subr.mxu0 0.0
    %7201 = vmatpush2.msra.mxu0 0.0
    %7202 = vmatprep.subr.mxu0 0.0
    %7203 = vmatpush2.msra.mxu0 0.0
    %7204 = vmatprep.subr.mxu0 0.0
    %7205 = vmatpush2.msra.mxu0 0.0
    %7206 = vmatprep.subr.mxu0 0.0
    %7207 = vmatpush2.msra.mxu0 0.0
    %7208 = vmatprep.subr.mxu0 0.0
    %7209 = vmatpush2.msra.mxu0 0.0
    %7210 = vmatprep.subr.mxu0 0.0
    %7211 = vmatpush2.msra.mxu0 0.0
    %7212 = vmatprep.subr.mxu0 0.0
    %7213 = vmatpush2.msra.mxu0 0.0
    %7214 = vmatprep.subr.mxu0 0.0
    %7215 = vmatpush2.msra.mxu0 0.0
    %7216 = vmatprep.subr.mxu0 0.0
    %7217 = vmatpush2.msra.mxu0 0.0
    %7218 = vmatprep.subr.mxu0 0.0
    %7219 = vmatpush2.msra.mxu0 0.0
    %7220 = vmatprep.mubr.f32.mxu0 0.0
    %7221 = vmatmul.mubr.f32.gmra.mxu0 %v7154
    %v7222 = vpop.f32.mrf.mxu0
    %v7223 = vadd.f32 0.0, %v7222
    %v7224 = vpop.f32.mrf.mxu0
    %7225 = vdwg.mxu0
    %7227 = vrot.lane.b32.xlu0 %v6889, 8
    %v7228 = vpop.permute.xlu0 %7227
    %7231 = vrot.lane.b32.xlu0 %v7056, 16
    %v7232 = vpop.permute.xlu0 %7231
    %7235 = vrot.lane.b32.xlu0 %v7223, 24
    %v7236 = vpop.permute.xlu0 %7235
    %v7238 = vsel %vm688, %v6722, %v7228
    %v7239 = vsel %vm1366, %v7238, %v7232
    %v7240 = vsel %vm1368, %v7239, %v7236
    %v7242 = vlaneseq
    %v7243 = vshrl.u32 %v7242, 7
    %v7244 = vsub.s32 0, %v7243
    %v7245 = vrot.slane %v4108, %v7244
    %v7248 = vsel %vm603, %v6559, 0
    %v7251 = vsel %vm603, %v7240, 0
    %7253 = vmatprep.subr.mxu0 0.0
    %7254 = vmatpush1.msra.mxu0 0.0
    %7255 = vmatprep.subr.mxu0 0.0
    %7256 = vmatpush1.msra.mxu0 0.0
    %7257 = vmatprep.subr.mxu0 0.0
    %7258 = vmatpush1.msra.mxu0 0.0
    %7259 = vmatprep.subr.mxu0 0.0
    %7260 = vmatpush1.msra.mxu0 0.0
    %7261 = vmatprep.subr.mxu0 0.0
    %7262 = vmatpush1.msra.mxu0 0.0
    %7263 = vmatprep.subr.mxu0 0.0
    %7264 = vmatpush1.msra.mxu0 0.0
    %7265 = vmatprep.subr.mxu0 0.0
    %7266 = vmatpush1.msra.mxu0 0.0
    %7267 = vmatprep.subr.mxu0 0.0
    %7268 = vmatpush1.msra.mxu0 0.0
    %7269 = vmatprep.subr.mxu0 0.0
    %7270 = vmatpush1.msra.mxu0 0.0
    %7271 = vmatprep.subr.mxu0 0.0
    %7272 = vmatpush1.msra.mxu0 0.0
    %7273 = vmatprep.subr.mxu0 0.0
    %7274 = vmatpush1.msra.mxu0 0.0
    %7275 = vmatprep.subr.mxu0 0.0
    %7276 = vmatpush1.msra.mxu0 0.0
    %7277 = vmatprep.subr.mxu0 0.0
    %7278 = vmatpush1.msra.mxu0 %v4107
    %7279 = vmatprep.subr.mxu0 0.0
    %7280 = vmatpush1.msra.mxu0 %v4106
    %7281 = vmatprep.subr.mxu0 0.0
    %7282 = vmatpush1.msra.mxu0 %v4105
    %7283 = vmatprep.subr.mxu0 0.0
    %7284 = vmatpush1.msra.mxu0 %v4104
    %7285 = vmatprep.subr.mxu0 0.0
    %7286 = vmatpush2.msra.mxu0 0.0
    %7287 = vmatprep.subr.mxu0 0.0
    %7288 = vmatpush2.msra.mxu0 0.0
    %7289 = vmatprep.subr.mxu0 0.0
    %7290 = vmatpush2.msra.mxu0 0.0
    %7291 = vmatprep.subr.mxu0 0.0
    %7292 = vmatpush2.msra.mxu0 0.0
    %7293 = vmatprep.subr.mxu0 0.0
    %7294 = vmatpush2.msra.mxu0 0.0
    %7295 = vmatprep.subr.mxu0 0.0
    %7296 = vmatpush2.msra.mxu0 0.0
    %7297 = vmatprep.subr.mxu0 0.0
    %7298 = vmatpush2.msra.mxu0 0.0
    %7299 = vmatprep.subr.mxu0 0.0
    %7300 = vmatpush2.msra.mxu0 0.0
    %7301 = vmatprep.subr.mxu0 0.0
    %7302 = vmatpush2.msra.mxu0 0.0
    %7303 = vmatprep.subr.mxu0 0.0
    %7304 = vmatpush2.msra.mxu0 0.0
    %7305 = vmatprep.subr.mxu0 0.0
    %7306 = vmatpush2.msra.mxu0 0.0
    %7307 = vmatprep.subr.mxu0 0.0
    %7308 = vmatpush2.msra.mxu0 0.0
    %7309 = vmatprep.subr.mxu0 0.0
    %7310 = vmatpush2.msra.mxu0 0.0
    %7311 = vmatprep.subr.mxu0 0.0
    %7312 = vmatpush2.msra.mxu0 0.0
    %7313 = vmatprep.subr.mxu0 0.0
    %7314 = vmatpush2.msra.mxu0 0.0
    %7315 = vmatprep.subr.mxu0 0.0
    %7316 = vmatpush2.msra.mxu0 0.0
    %7317 = vmatprep.mubr.f32.mxu0 0.0
    %7318 = vmatmul.mubr.f32.gmra.mxu0 %v7248
    %v7319 = vpop.f32.mrf.mxu0
    %v7320 = vadd.f32 %v7245, %v7319
    %v7321 = vpop.f32.mrf.mxu0
    %7322 = vmatprep.mubr.f32.mxu0 0.0
    %7323 = vmatmul.mubr.f32.gmra.mxu0 %v7251
    %v7324 = vpop.f32.mrf.mxu0
    %v7325 = vadd.f32 %v7245, %v7324
    %v7326 = vpop.f32.mrf.mxu0
    %7327 = vdwg.mxu0
    %v7328 = vadd.f32 %v5709, %v7320
    %v7329 = vadd.f32 %v5710, %v7325
    %v7330 = vsel %vm603, %v7328, 0.0
    %7331 = vadd.xlane.f32.xlu0 %v7330
    %v7332 = vpop.xlane.xlu0 %7331
    %v7333 = vsel %vm603, %v7329, 0.0
    %7334 = vadd.xlane.f32.xlu0 %v7333
    %v7335 = vpop.xlane.xlu0 %7334
    %v7336 = vmul.f32 %v7332, %v2147
    %v7337 = vmul.f32 %v7335, %v2147
    %v7338 = vsub.f32 %v7328, %v7336
    %v7339 = vsub.f32 %v7329, %v7337
    %v7340 = vmul.f32 %v7338, %v7338
    %v7341 = vmul.f32 %v7339, %v7339
    %v7342 = vsel %vm603, %v7340, 0.0
    %7343 = vadd.xlane.f32.xlu0 %v7342
    %v7344 = vpop.xlane.xlu0 %7343
    %v7345 = vsel %vm603, %v7341, 0.0
    %7346 = vadd.xlane.f32.xlu0 %v7345
    %v7347 = vpop.xlane.xlu0 %7346
    %v7348 = vmul.f32 %v7344, %v2147
    %v7349 = vmul.f32 %v7347, %v2147
    %v7350 = vadd.f32 %v7348, 1e-05
    %v7351 = vadd.f32 %v7349, 1e-05
    %v7352 = vrsqrt.pop %v7350
    %v7353 = vrsqrt.pop %v7351
    %v7354 = vmul.f32 %v7338, %v7352
    %v7355 = vmul.f32 %v7339, %v7353
    %v7357 = vlaneseq
    %v7358 = vshrl.u32 %v7357, 7
    %v7359 = vsub.s32 0, %v7358
    %v7360 = vrot.slane %v4125, %v7359
    %v7362 = vmul.f32 %v7354, %v7360
    %v7363 = vmul.f32 %v7355, %v7360
    %v7365 = vlaneseq
    %v7366 = vshrl.u32 %v7365, 7
    %v7367 = vsub.s32 0, %v7366
    %v7368 = vrot.slane %v4126, %v7367
    %v7370 = vadd.f32 %v7362, %v7368
    %v7371 = vadd.f32 %v7363, %v7368
    %v7373 = vlaneseq
    %v7374 = vshrl.u32 %v7373, 7
    %v7375 = vsub.s32 0, %v7374
    %v7376 = vrot.slane %v4113, %v7375
    %v7379 = vsel %vm603, %v7370, 0
    %v7382 = vsel %vm603, %v7371, 0
    %7384 = vmatprep.subr.mxu0 0.0
    %7385 = vmatpush1.msra.mxu0 0.0
    %7386 = vmatprep.subr.mxu0 0.0
    %7387 = vmatpush1.msra.mxu0 0.0
    %7388 = vmatprep.subr.mxu0 0.0
    %7389 = vmatpush1.msra.mxu0 0.0
    %7390 = vmatprep.subr.mxu0 0.0
    %7391 = vmatpush1.msra.mxu0 0.0
    %7392 = vmatprep.subr.mxu0 0.0
    %7393 = vmatpush1.msra.mxu0 0.0
    %7394 = vmatprep.subr.mxu0 0.0
    %7395 = vmatpush1.msra.mxu0 0.0
    %7396 = vmatprep.subr.mxu0 0.0
    %7397 = vmatpush1.msra.mxu0 0.0
    %7398 = vmatprep.subr.mxu0 0.0
    %7399 = vmatpush1.msra.mxu0 0.0
    %7400 = vmatprep.subr.mxu0 0.0
    %7401 = vmatpush1.msra.mxu0 0.0
    %7402 = vmatprep.subr.mxu0 0.0
    %7403 = vmatpush1.msra.mxu0 0.0
    %7404 = vmatprep.subr.mxu0 0.0
    %7405 = vmatpush1.msra.mxu0 0.0
    %7406 = vmatprep.subr.mxu0 0.0
    %7407 = vmatpush1.msra.mxu0 0.0
    %7408 = vmatprep.subr.mxu0 0.0
    %7409 = vmatpush1.msra.mxu0 %v4112
    %7410 = vmatprep.subr.mxu0 0.0
    %7411 = vmatpush1.msra.mxu0 %v4111
    %7412 = vmatprep.subr.mxu0 0.0
    %7413 = vmatpush1.msra.mxu0 %v4110
    %7414 = vmatprep.subr.mxu0 0.0
    %7415 = vmatpush1.msra.mxu0 %v4109
    %7416 = vmatprep.subr.mxu0 0.0
    %7417 = vmatpush2.msra.mxu0 0.0
    %7418 = vmatprep.subr.mxu0 0.0
    %7419 = vmatpush2.msra.mxu0 0.0
    %7420 = vmatprep.subr.mxu0 0.0
    %7421 = vmatpush2.msra.mxu0 0.0
    %7422 = vmatprep.subr.mxu0 0.0
    %7423 = vmatpush2.msra.mxu0 0.0
    %7424 = vmatprep.subr.mxu0 0.0
    %7425 = vmatpush2.msra.mxu0 0.0
    %7426 = vmatprep.subr.mxu0 0.0
    %7427 = vmatpush2.msra.mxu0 0.0
    %7428 = vmatprep.subr.mxu0 0.0
    %7429 = vmatpush2.msra.mxu0 0.0
    %7430 = vmatprep.subr.mxu0 0.0
    %7431 = vmatpush2.msra.mxu0 0.0
    %7432 = vmatprep.subr.mxu0 0.0
    %7433 = vmatpush2.msra.mxu0 0.0
    %7434 = vmatprep.subr.mxu0 0.0
    %7435 = vmatpush2.msra.mxu0 0.0
    %7436 = vmatprep.subr.mxu0 0.0
    %7437 = vmatpush2.msra.mxu0 0.0
    %7438 = vmatprep.subr.mxu0 0.0
    %7439 = vmatpush2.msra.mxu0 0.0
    %7440 = vmatprep.subr.mxu0 0.0
    %7441 = vmatpush2.msra.mxu0 0.0
    %7442 = vmatprep.subr.mxu0 0.0
    %7443 = vmatpush2.msra.mxu0 0.0
    %7444 = vmatprep.subr.mxu0 0.0
    %7445 = vmatpush2.msra.mxu0 0.0
    %7446 = vmatprep.subr.mxu0 0.0
    %7447 = vmatpush2.msra.mxu0 0.0
    %7448 = vmatprep.mubr.f32.mxu0 0.0
    %7449 = vmatmul.mubr.f32.gmra.mxu0 %v7379
    %v7450 = vpop.f32.mrf.mxu0
    %v7451 = vadd.f32 %v7376, %v7450
    %v7452 = vpop.f32.mrf.mxu0
    %7453 = vmatprep.mubr.f32.mxu0 0.0
    %7454 = vmatmul.mubr.f32.gmra.mxu0 %v7382
    %v7455 = vpop.f32.mrf.mxu0
    %v7456 = vadd.f32 %v7376, %v7455
    %v7457 = vpop.f32.mrf.mxu0
    %7458 = vdwg.mxu0
    %v7459 = vmax.f32 %v7451, 0.0
    %v7460 = vmax.f32 %v7456, 0.0
    %v7462 = vlaneseq
    %v7463 = vshrl.u32 %v7462, 7
    %v7464 = vsub.s32 0, %v7463
    %v7465 = vrot.slane %v4122, %v7464
    %v7468 = vsel %vm3958, %v7459, 0
    %v7471 = vsel %vm3958, %v7460, 0
    %7473 = vmatprep.subr.mxu0 0.0
    %7474 = vmatpush1.msra.mxu0 0.0
    %7475 = vmatprep.subr.mxu0 0.0
    %7476 = vmatpush1.msra.mxu0 0.0
    %7477 = vmatprep.subr.mxu0 0.0
    %7478 = vmatpush1.msra.mxu0 0.0
    %7479 = vmatprep.subr.mxu0 0.0
    %7480 = vmatpush1.msra.mxu0 0.0
    %7481 = vmatprep.subr.mxu0 0.0
    %7482 = vmatpush1.msra.mxu0 0.0
    %7483 = vmatprep.subr.mxu0 0.0
    %7484 = vmatpush1.msra.mxu0 0.0
    %7485 = vmatprep.subr.mxu0 0.0
    %7486 = vmatpush1.msra.mxu0 0.0
    %7487 = vmatprep.subr.mxu0 0.0
    %7488 = vmatpush1.msra.mxu0 0.0
    %7489 = vmatprep.subr.mxu0 0.0
    %7490 = vmatpush1.msra.mxu0 %v4121
    %7491 = vmatprep.subr.mxu0 0.0
    %7492 = vmatpush1.msra.mxu0 %v4120
    %7493 = vmatprep.subr.mxu0 0.0
    %7494 = vmatpush1.msra.mxu0 %v4119
    %7495 = vmatprep.subr.mxu0 0.0
    %7496 = vmatpush1.msra.mxu0 %v4118
    %7497 = vmatprep.subr.mxu0 0.0
    %7498 = vmatpush1.msra.mxu0 %v4117
    %7499 = vmatprep.subr.mxu0 0.0
    %7500 = vmatpush1.msra.mxu0 %v4116
    %7501 = vmatprep.subr.mxu0 0.0
    %7502 = vmatpush1.msra.mxu0 %v4115
    %7503 = vmatprep.subr.mxu0 0.0
    %7504 = vmatpush1.msra.mxu0 %v4114
    %7505 = vmatprep.subr.mxu0 0.0
    %7506 = vmatpush2.msra.mxu0 0.0
    %7507 = vmatprep.subr.mxu0 0.0
    %7508 = vmatpush2.msra.mxu0 0.0
    %7509 = vmatprep.subr.mxu0 0.0
    %7510 = vmatpush2.msra.mxu0 0.0
    %7511 = vmatprep.subr.mxu0 0.0
    %7512 = vmatpush2.msra.mxu0 0.0
    %7513 = vmatprep.subr.mxu0 0.0
    %7514 = vmatpush2.msra.mxu0 0.0
    %7515 = vmatprep.subr.mxu0 0.0
    %7516 = vmatpush2.msra.mxu0 0.0
    %7517 = vmatprep.subr.mxu0 0.0
    %7518 = vmatpush2.msra.mxu0 0.0
    %7519 = vmatprep.subr.mxu0 0.0
    %7520 = vmatpush2.msra.mxu0 0.0
    %7521 = vmatprep.subr.mxu0 0.0
    %7522 = vmatpush2.msra.mxu0 0.0
    %7523 = vmatprep.subr.mxu0 0.0
    %7524 = vmatpush2.msra.mxu0 0.0
    %7525 = vmatprep.subr.mxu0 0.0
    %7526 = vmatpush2.msra.mxu0 0.0
    %7527 = vmatprep.subr.mxu0 0.0
    %7528 = vmatpush2.msra.mxu0 0.0
    %7529 = vmatprep.subr.mxu0 0.0
    %7530 = vmatpush2.msra.mxu0 0.0
    %7531 = vmatprep.subr.mxu0 0.0
    %7532 = vmatpush2.msra.mxu0 0.0
    %7533 = vmatprep.subr.mxu0 0.0
    %7534 = vmatpush2.msra.mxu0 0.0
    %7535 = vmatprep.subr.mxu0 0.0
    %7536 = vmatpush2.msra.mxu0 0.0
    %7537 = vmatprep.mubr.f32.mxu0 0.0
    %7538 = vmatmul.mubr.f32.gmra.mxu0 %v7468
    %v7539 = vpop.f32.mrf.mxu0
    %v7540 = vadd.f32 %v7465, %v7539
    %v7541 = vpop.f32.mrf.mxu0
    %7542 = vmatprep.mubr.f32.mxu0 0.0
    %7543 = vmatmul.mubr.f32.gmra.mxu0 %v7471
    %v7544 = vpop.f32.mrf.mxu0
    %v7545 = vadd.f32 %v7465, %v7544
    %v7546 = vpop.f32.mrf.mxu0
    %7547 = vdwg.mxu0
    %v7548 = vadd.f32 %v7370, %v7540
    %v7549 = vadd.f32 %v7371, %v7545
    %v7550 = vsel %vm603, %v7548, 0.0
    %7551 = vadd.xlane.f32.xlu0 %v7550
    %v7552 = vpop.xlane.xlu0 %7551
    %v7553 = vsel %vm603, %v7549, 0.0
    %7554 = vadd.xlane.f32.xlu0 %v7553
    %v7555 = vpop.xlane.xlu0 %7554
    %v7556 = vmul.f32 %v7552, %v2147
    %v7557 = vmul.f32 %v7555, %v2147
    %v7558 = vsub.f32 %v7548, %v7556
    %v7559 = vsub.f32 %v7549, %v7557
    %v7560 = vmul.f32 %v7558, %v7558
    %v7561 = vmul.f32 %v7559, %v7559
    %v7562 = vsel %vm603, %v7560, 0.0
    %7563 = vadd.xlane.f32.xlu0 %v7562
    %v7564 = vpop.xlane.xlu0 %7563
    %v7565 = vsel %vm603, %v7561, 0.0
    %7566 = vadd.xlane.f32.xlu0 %v7565
    %v7567 = vpop.xlane.xlu0 %7566
    %v7568 = vmul.f32 %v7564, %v2147
    %v7569 = vmul.f32 %v7567, %v2147
    %v7570 = vadd.f32 %v7568, 1e-05
    %v7571 = vadd.f32 %v7569, 1e-05
    %v7572 = vrsqrt.pop %v7570
    %v7573 = vrsqrt.pop %v7571
    %v7574 = vmul.f32 %v7558, %v7572
    %v7575 = vmul.f32 %v7559, %v7573
    %v7577 = vlaneseq
    %v7578 = vshrl.u32 %v7577, 7
    %v7579 = vsub.s32 0, %v7578
    %v7580 = vrot.slane %v4127, %v7579
    %v7582 = vmul.f32 %v7574, %v7580
    %v7583 = vmul.f32 %v7575, %v7580
    %v7585 = vlaneseq
    %v7586 = vshrl.u32 %v7585, 7
    %v7587 = vsub.s32 0, %v7586
    %v7588 = vrot.slane %v4128, %v7587
    %v7590 = vadd.f32 %v7582, %v7588
    %v7591 = vadd.f32 %v7583, %v7588
    %7592 = vst.msk [vmem:[#allocation46] sm:$0xff] %vm603, %v7590
    %7593 = vst.msk [vmem:[#allocation46 + $0x8] sm:$0xff] %vm603, %v7591
    // Predicated region
    $region294: #{tpu_custom_call.1} parent=1 // pred_check
      _
    $region295: #{tpu_custom_call.1} parent=1 // pred_check_branch
      %7595 = sbr.rel (0) target = $region297
    $region296: #{tpu_custom_call.1} parent=1 // pred_region
      %s7597 = ssub.s32 256, 256
      %7598 = vsyncadd [#allocation4], %s7597
      %s7599 = sshll.u32 [#allocation46], 4
      %s7600 = int_to_ptr.vmem [resolvable:$true] %s7599
      %7605 = dma.vmem_to_hbm [thread:$0]  %s7600, 256, %s91, [#allocation4], 128, 128, 8
    $region297: #{tpu_custom_call.1} parent=1 // pred_fallthru
      _
    // Predicated region
    $region298: #{tpu_custom_call.1} parent=1 // pred_check
      _
    $region299: #{tpu_custom_call.1} parent=1 // pred_check_branch
      %7607 = sbr.rel (0) target = $region301
    $region300: #{tpu_custom_call.1} parent=1 // pred_region
      %7608 = dma.done [#allocation4], 256
    $region301: #{tpu_custom_call.1} parent=1 // pred_fallthru
      _
    %7609 = vsyncpa [#allocation3], 1
    %7610 = vsyncpa [#allocation6], 1
    %7611 = vsyncpa [#allocation9], 1
    %7612 = vsyncpa [#allocation12], 1
    %7613 = vsyncpa [#allocation15], 1
    %7614 = vsyncpa [#allocation18], 1
    %7615 = vsyncpa [#allocation21], 1
    %7616 = vsyncpa [#allocation24], 1
    %7617 = vsyncpa [#allocation27], 1
    %7618 = vsyncpa [#allocation30], 1
    %7619 = vsyncpa [#allocation33], 1
    %7620 = vsyncpa [#allocation36], 1
    %7621 = vsyncpa [#allocation39], 1
    %7622 = vsyncpa [#allocation42], 1
    %7623 = vsyncpa [#allocation45], 1
    %7624 = vsyncpa [#allocation4], 1

</llo_original>
